<compile_context>
chip_gen: v7x
topology: tpu7x:2x2x1
jax: 0.10.0
libtpu: 0.0.40
codegen_flags: <defaults>
</compile_context>

<pallas_src>
import functools

import jax
import jax.numpy as jnp
from jax import lax
from jax.experimental import pallas as pl
from jax.experimental.pallas import tpu as pltpu

_BF16 = jnp.bfloat16


def _pack3(rp, h, rows, fin, c):
    """dx-pack a bf16 activation into a conv rowpack scratch.

    rp: VMEM ref (rows + 2, fin, 3*c); h: bf16 value (rows, fin, c).
    rp[tt, f, dx*c + ch] = h_timepad[tt - 1, f + dx - 1, ch] (zero outside).
    Every element of rp is written on every call, so the scratch carries no
    state across grid iterations.
    """
    z_row = jnp.zeros((1, fin, 3 * c), h.dtype)
    rp[0:1, :, :] = z_row
    rp[rows + 1:rows + 2, :, :] = z_row
    z_col = jnp.zeros((rows + 2, 1, c), h.dtype)
    rp[:, 0:1, 0:c] = z_col
    rp[:, fin - 1:fin, 2 * c:3 * c] = z_col
    rp[1:rows + 1, 1:fin, 0:c] = h[:, 0:fin - 1, :]            # dx = 0 (left)
    rp[1:rows + 1, :, c:2 * c] = h                              # dx = 1 (center)
    rp[1:rows + 1, 0:fin - 1, 2 * c:3 * c] = h[:, 1:fin, :]     # dx = 2 (right)


def _conv3x3(rp, w_ref, b_ref, rows, fin, cin, cout):
    """3x3 'same' conv + ReLU from a dx-packed rowpack.

    rp: (rows+2, fin, 3*cin) bf16; w_ref: (3, 3*cin, cout) bf16; b_ref: (1, cout)
    f32.  Three K=3*cin matmuls (one per dy, free leading-dim shift), f32
    accumulation, single bias add at the end.
    """
    acc = None
    for dy in range(3):
        op = rp[dy:dy + rows, :, :].reshape(rows * fin, 3 * cin)
        d = jnp.dot(op, w_ref[dy], preferred_element_type=jnp.float32)
        acc = d if acc is None else acc + d
    return jnp.maximum(acc + b_ref[...], 0.0).reshape(rows, fin, cout)


def _vgg2l_kernel(cfg, x_ref, w1_ref, b1_ref, w2_ref, b2_ref, w3_ref, b3_ref,
                  w4_ref, b4_ref, wl_ref, bl_ref, o_ref, rp2, rp3, rp4, p2f):
    T, Tp1, F, Fp1, Fp2, TIN, ROWS1, TT2 = cfg
    g = pl.program_id(1)
    t0 = g * TT2                       # first output (Tp2-space) row of this tile

    # ---- conv1 (1 -> 64) on the MXU: one K=9 matmul over the im2col block ----
    a1 = jnp.dot(x_ref[0, 0], w1_ref[...], preferred_element_type=jnp.float32)
    h1 = jnp.maximum(a1 + b1_ref[...], 0.0).reshape(TIN, F, 64)
    # Rows whose global time index is outside [0, T) must be zero: they are the
    # conv2 zero padding at the true sequence boundaries (ReLU(bias) != 0).
    r1 = lax.broadcasted_iota(jnp.int32, (TIN, F, 64), 0) + (6 * t0 - 8)
    h1 = jnp.where((r1 >= 0) & (r1 < T), h1, 0.0).astype(_BF16)

    # ---- conv2 (64 -> 64): dx-packed K=192 bf16 matmuls ----------------------
    _pack3(rp2, h1, TIN, F, 64)
    h2 = _conv3x3(rp2, w2_ref, b2_ref, TIN, F, 64, 64)          # (TIN, F, 64) f32

    # ---- MaxPool2d((3, 2)) over the exact h2 rows [2, TIN-3] -----------------
    h2r = h2[2:2 + 3 * ROWS1].reshape(ROWS1, 3, F, 64)
    tp = jnp.maximum(jnp.maximum(h2r[:, 0], h2r[:, 1]), h2r[:, 2])
    # TODO(synk): strided-sublane max instead of the (.., 2, C) reshape.
    p1 = tp[:, :2 * Fp1, :].reshape(ROWS1 * Fp1, 2, 64).max(axis=1)
    p1 = p1.reshape(ROWS1, Fp1, 64)
    rpi = lax.broadcasted_iota(jnp.int32, (ROWS1, Fp1, 64), 0) + (2 * t0 - 2)
    p1 = jnp.where((rpi >= 0) & (rpi < Tp1), p1, 0.0).astype(_BF16)

    # ---- conv3 (64 -> 128) + conv4 (128 -> 128) -------------------------------
    _pack3(rp3, p1, ROWS1, Fp1, 64)
    h3 = _conv3x3(rp3, w3_ref, b3_ref, ROWS1, Fp1, 64, 128)
    r3 = lax.broadcasted_iota(jnp.int32, (ROWS1, Fp1, 128), 0) + (2 * t0 - 2)
    h3 = jnp.where((r3 >= 0) & (r3 < Tp1), h3, 0.0).astype(_BF16)
    _pack3(rp4, h3, ROWS1, Fp1, 128)
    h4 = _conv3x3(rp4, w4_ref, b4_ref, ROWS1, Fp1, 128, 128)    # (ROWS1, Fp1, 128)

    # ---- MaxPool2d((2, 2)) over the exact h4 rows [2, 2*TT2+1] ----------------
    h4r = h4[2:2 + 2 * TT2].reshape(TT2, 2, Fp1, 128)
    tq = jnp.maximum(h4r[:, 0], h4r[:, 1])
    p2 = tq[:, :2 * Fp2, :].reshape(TT2 * Fp2, 2, 128).max(axis=1)
    p2 = p2.reshape(TT2, Fp2, 128).astype(_BF16)

    # ---- output Linear: one K = Fp2*128 matmul (lane-dense flatten) ----------
    for f2 in range(Fp2):
        p2f[:, f2 * 128:(f2 + 1) * 128] = p2[:, f2, :]
    out = jnp.dot(p2f[...], wl_ref[...], preferred_element_type=jnp.float32)
    o_ref[0, 0] = out + bl_ref[...]


def _subsample_mask(x_mask):
    # Mirrors VGG2L.create_new_mask (pure slicing -> plain JAX glue).
    t1 = x_mask.shape[2] - x_mask.shape[2] % 3
    m = x_mask[:, :, :t1][:, :, ::3]
    t2 = m.shape[2] - m.shape[2] % 2
    m = m[:, :, :t2][:, :, ::2]
    return m


def vgg2l_forward(x, x_mask, params, *, tile_rows=32):
    """x: (B, T, idim) float32, x_mask: (B, 1, T) bool or None."""
    B, T, F = x.shape
    assert T >= 6 and F >= 4, "VGG2L kernel needs T >= 6 and idim >= 4"
    Tp1, Fp1 = T // 3, F // 2
    Tp2, Fp2 = Tp1 // 2, Fp1 // 2
    odim = params["bl"].shape[0]
    odim_p = ((odim + 127) // 128) * 128          # lane-dense output block

    # ---- time tiling: TT2 output frames per grid step, halo'd input window ---
    TT2 = max(1, min(tile_rows, Tp2))
    ntiles = -(-Tp2 // TT2)
    TIN = 6 * TT2 + 16                            # input rows incl. halo
    ROWS1 = 2 * TT2 + 4                           # pool1 rows incl. halo

    # ---- conv1 im2col + halo'd windows (cheap XLA glue, bf16 in HBM) ---------
    xp = jnp.pad(x, ((0, 0), (1, 1), (1, 1)))
    taps = jnp.stack([xp[:, dy:dy + T, dx:dx + F]
                      for dy in range(3) for dx in range(3)], axis=-1)
    taps = taps.astype(_BF16)                                     # (B, T, F, 9)
    total = 6 * TT2 * ntiles + 16
    taps = jnp.pad(taps, ((0, 0), (8, total - 8 - T), (0, 0), (0, 0)))
    idx = 6 * TT2 * jnp.arange(ntiles)[:, None] + jnp.arange(TIN)[None, :]
    xwin = taps[:, idx]                                           # (B, nt, TIN, F, 9)
    xwin = xwin.reshape(B, ntiles, TIN * F, 9)

    # ---- param re-layout (all cheap, done by XLA) -----------------------------
    w1 = params["w1"].reshape(9, 64).astype(_BF16)                # (dy*3+dx, 64)
    w2 = params["w2"].reshape(3, 3 * 64, 64).astype(_BF16)        # (dy, dx*ci, co)
    w3 = params["w3"].reshape(3, 3 * 64, 128).astype(_BF16)
    w4 = params["w4"].reshape(3, 3 * 128, 128).astype(_BF16)
    # PyTorch flatten order is idx = c*Fp2 + f; kernel flatten is f*128 + c.
    wl = params["wl"].reshape(128, Fp2, odim).transpose(1, 0, 2).reshape(Fp2 * 128, odim)
    wl = jnp.pad(wl, ((0, 0), (0, odim_p - odim))).astype(_BF16)
    b1 = params["b1"].reshape(1, 64).astype(jnp.float32)
    b2 = params["b2"].reshape(1, 64).astype(jnp.float32)
    b3 = params["b3"].reshape(1, 128).astype(jnp.float32)
    b4 = params["b4"].reshape(1, 128).astype(jnp.float32)
    bl = jnp.pad(params["bl"], (0, odim_p - odim)).reshape(1, odim_p).astype(jnp.float32)

    def full(a):
        return pl.BlockSpec(a.shape, lambda b, g, _n=a.ndim: (0,) * _n)

    # ---- per-generation VMEM budget -------------------------------------------
    try:
        kind = jax.devices()[0].device_kind.lower()
    except Exception:  # pragma: no cover
        kind = ""
    if "v5" in kind or "v6" in kind:
        vmem_limit = 100 * 1024 * 1024
    elif "7" in kind:
        vmem_limit = 48 * 1024 * 1024
    else:
        vmem_limit = 64 * 1024 * 1024

    cfg = (T, Tp1, F, Fp1, Fp2, TIN, ROWS1, TT2)
    kernel = functools.partial(_vgg2l_kernel, cfg)

    out = pl.pallas_call(
        kernel,
        out_shape=jax.ShapeDtypeStruct((B, ntiles, TT2, odim_p), jnp.float32),
        grid_spec=pltpu.PrefetchScalarGridSpec(
            num_scalar_prefetch=0,
            grid=(B, ntiles),
            in_specs=[
                pl.BlockSpec((1, 1, TIN * F, 9), lambda b, g: (b, g, 0, 0)),
                full(w1), full(b1), full(w2), full(b2),
                full(w3), full(b3), full(w4), full(b4),
                full(wl), full(bl),
            ],
            out_specs=pl.BlockSpec((1, 1, TT2, odim_p), lambda b, g: (b, g, 0, 0)),
            scratch_shapes=[
                pltpu.VMEM((TIN + 2, F, 3 * 64), _BF16),      # conv2 rowpack
                pltpu.VMEM((ROWS1 + 2, Fp1, 3 * 64), _BF16),  # conv3 rowpack
                pltpu.VMEM((ROWS1 + 2, Fp1, 3 * 128), _BF16),  # conv4 rowpack
                pltpu.VMEM((TT2, Fp2 * 128), _BF16),           # flattened p2
            ],
        ),
        compiler_params=pltpu.CompilerParams(
            dimension_semantics=("parallel", "parallel"),
            vmem_limit_bytes=vmem_limit,
        ),
    )(xwin, w1, b1, w2, b2, w3, b3, w4, b4, wl, bl)

    out = out.reshape(B, ntiles * TT2, odim_p)[:, :Tp2, :odim]
    if x_mask is None:
        return out, None
    return out, _subsample_mask(x_mask)


# ----------------------------- pure-JAX reference -----------------------------
def reference_forward(x, x_mask, params):
    def conv(h, w, b):
        y = lax.conv_general_dilated(h, w, (1, 1), [(1, 1), (1, 1)],
                                     dimension_numbers=("NHWC", "HWIO", "NHWC"))
        return jax.nn.relu(y + b)

    def pool(h, wt, wf):
        return lax.reduce_window(h, -jnp.inf, lax.max,
                                 (1, wt, wf, 1), (1, wt, wf, 1), "VALID")

    h = x[:, :, :, None]
    h = conv(h, params["w1"], params["b1"])
    h = conv(h, params["w2"], params["b2"])
    h = pool(h, 3, 2)
    h = conv(h, params["w3"], params["b3"])
    h = conv(h, params["w4"], params["b4"])
    h = pool(h, 2, 2)
    B, t, f, c = h.shape
    feat = jnp.transpose(h, (0, 1, 3, 2)).reshape(B, t, c * f)  # (C, f) flatten order
    out = feat @ params["wl"] + params["bl"]
    if x_mask is None:
        return out, None
    return out, _subsample_mask(x_mask)


def init_params(key, idim, odim):
    ks = jax.random.split(key, 10)

    def w(k, shape, fan_in):
        return jax.random.normal(k, shape, jnp.float32) / jnp.sqrt(float(fan_in))

    return {
        "w1": w(ks[0], (3, 3, 1, 64), 9),
        "b1": 0.01 * jax.random.normal(ks[1], (64,), jnp.float32),
        "w2": w(ks[2], (3, 3, 64, 64), 9 * 64),
        "b2": 0.01 * jax.random.normal(ks[3], (64,), jnp.float32),
        "w3": w(ks[4], (3, 3, 64, 128), 9 * 64),
        "b3": 0.01 * jax.random.normal(ks[5], (128,), jnp.float32),
        "w4": w(ks[6], (3, 3, 128, 128), 9 * 128),
        "b4": 0.01 * jax.random.normal(ks[7], (128,), jnp.float32),
        "wl": w(ks[8], (128 * (idim // 2 // 2), odim), 128 * (idim // 2 // 2)),
        "bl": 0.01 * jax.random.normal(ks[9], (odim,), jnp.float32),
    }


if __name__ == "__main__":
    key = jax.random.PRNGKey(0)
    fwd = jax.jit(vgg2l_forward, static_argnames=("tile_rows",))

    # ---- test 1: small shapes, single time tile -------------------------------
    B, T, idim, odim = 2, 12, 16, 32
    kx, kp, kx2 = jax.random.split(key, 3)
    x = jax.random.normal(kx, (B, T, idim), jnp.float32)
    x_mask = jnp.ones((B, 1, T), dtype=jnp.bool_)
    params = init_params(kp, idim, odim)

    out, new_mask = fwd(x, x_mask, params)
    out = jax.block_until_ready(out)
    ref_out, ref_mask = reference_forward(x, x_mask, params)
    assert out.shape == (B, T // 3 // 2, odim), out.shape
    assert new_mask.shape == (B, 1, T // 3 // 2), new_mask.shape
    max_diff = float(jnp.max(jnp.abs(out - ref_out)))
    assert jnp.allclose(out, ref_out, atol=6e-2, rtol=6e-2), max_diff
    assert bool(jnp.all(new_mask == ref_mask))

    # ---- test 2: ragged T, multiple time tiles (exercises the halo/masks) -----
    B2, T2 = 1, 45
    x2 = jax.random.normal(kx2, (B2, T2, idim), jnp.float32)
    m2 = jnp.ones((B2, 1, T2), dtype=jnp.bool_)
    out2, mask2 = fwd(x2, m2, params, tile_rows=3)
    out2 = jax.block_until_ready(out2)
    ref2, refm2 = reference_forward(x2, m2, params)
    assert out2.shape == (B2, T2 // 3 // 2, odim), out2.shape
    max_diff2 = float(jnp.max(jnp.abs(out2 - ref2)))
    assert jnp.allclose(out2, ref2, atol=6e-2, rtol=6e-2), max_diff2
    assert bool(jnp.all(mask2 == refm2))

    print("KERNEL_OK")
</pallas_src>

<mosaic_0001>
module attributes {stable_mosaic.version = 11 : i64} {
  func.func @_vgg2l_kernel(%arg0: i32, %arg1: i32, %arg2: memref<1x1x448x9xbf16, #tpu.memory_space<vmem>>, %arg3: memref<9x64xbf16, #tpu.memory_space<vmem>>, %arg4: memref<1x64xf32, #tpu.memory_space<vmem>>, %arg5: memref<3x192x64xbf16, #tpu.memory_space<vmem>>, %arg6: memref<1x64xf32, #tpu.memory_space<vmem>>, %arg7: memref<3x192x128xbf16, #tpu.memory_space<vmem>>, %arg8: memref<1x128xf32, #tpu.memory_space<vmem>>, %arg9: memref<3x384x128xbf16, #tpu.memory_space<vmem>>, %arg10: memref<1x128xf32, #tpu.memory_space<vmem>>, %arg11: memref<512x128xbf16, #tpu.memory_space<vmem>>, %arg12: memref<1x128xf32, #tpu.memory_space<vmem>>, %arg13: memref<1x1x2x128xf32, #tpu.memory_space<vmem>>, %arg14: memref<30x16x192xbf16, #tpu.memory_space<vmem>>, %arg15: memref<10x8x192xbf16, #tpu.memory_space<vmem>>, %arg16: memref<10x8x384xbf16, #tpu.memory_space<vmem>>, %arg17: memref<2x512xbf16, #tpu.memory_space<vmem>>) attributes {dimension_semantics = [#tpu.dimension_semantics<parallel>, #tpu.dimension_semantics<parallel>], iteration_bounds = array<i64: 2, 1>, scalar_prefetch = 0 : i64, scratch_operands = 4 : i64, tpu.core_type = #tpu.core_type<tc>, window_params = [{transform_indices = @transform_0, window_bounds = array<i64: 1, 1, 448, 9>}, {pipeline_mode = #tpu.pipeline_mode<synchronous>, transform_indices = @transform_1, window_bounds = array<i64: 9, 64>}, {pipeline_mode = #tpu.pipeline_mode<synchronous>, transform_indices = @transform_2, window_bounds = array<i64: 1, 64>}, {pipeline_mode = #tpu.pipeline_mode<synchronous>, transform_indices = @transform_3, window_bounds = array<i64: 3, 192, 64>}, {pipeline_mode = #tpu.pipeline_mode<synchronous>, transform_indices = @transform_4, window_bounds = array<i64: 1, 64>}, {pipeline_mode = #tpu.pipeline_mode<synchronous>, transform_indices = @transform_5, window_bounds = array<i64: 3, 192, 128>}, {pipeline_mode = #tpu.pipeline_mode<synchronous>, transform_indices = @transform_6, window_bounds = array<i64: 1, 128>}, {pipeline_mode = #tpu.pipeline_mode<synchronous>, transform_indices = @transform_7, window_bounds = array<i64: 3, 384, 128>}, {pipeline_mode = #tpu.pipeline_mode<synchronous>, transform_indices = @transform_8, window_bounds = array<i64: 1, 128>}, {pipeline_mode = #tpu.pipeline_mode<synchronous>, transform_indices = @transform_9, window_bounds = array<i64: 512, 128>}, {pipeline_mode = #tpu.pipeline_mode<synchronous>, transform_indices = @transform_10, window_bounds = array<i64: 1, 128>}, {transform_indices = @transform_11, window_bounds = array<i64: 1, 1, 2, 128>}]} {
    %c2_i32 = arith.constant 2 : i32
    %0 = arith.muli %arg1, %c2_i32 : i32
    %c0 = arith.constant 0 : index
    %c0_0 = arith.constant 0 : index
    %c0_1 = arith.constant 0 : index
    %c0_2 = arith.constant 0 : index
    %1 = vector.load %arg2[%c0, %c0_0, %c0_1, %c0_2] : memref<1x1x448x9xbf16, #tpu.memory_space<vmem>>, vector<1x1x448x9xbf16>
    %2 = vector.shape_cast %1 : vector<1x1x448x9xbf16> to vector<448x9xbf16>
    %c0_3 = arith.constant 0 : index
    %c0_4 = arith.constant 0 : index
    %3 = vector.load %arg3[%c0_3, %c0_4] : memref<9x64xbf16, #tpu.memory_space<vmem>>, vector<9x64xbf16>
    %cst = arith.constant dense<0.000000e+00> : vector<448x64xf32>
    %4 = tpu.matmul %2, %3, %cst {dimension_numbers = #tpu.dot_dimension_numbers<[1], [0], [0], [1], [0, 0, 1, 1], [], []>} : vector<448x9xbf16>, vector<9x64xbf16>, vector<448x64xf32> -> vector<448x64xf32>
    %c0_5 = arith.constant 0 : index
    %c0_6 = arith.constant 0 : index
    %5 = vector.load %arg4[%c0_5, %c0_6] : memref<1x64xf32, #tpu.memory_space<vmem>>, vector<1x64xf32>
    %6 = vector.broadcast %5 : vector<1x64xf32> to vector<448x64xf32>
    %7 = arith.addf %4, %6 : vector<448x64xf32>
    %cst_7 = arith.constant 0.000000e+00 : f32
    %8 = vector.broadcast %cst_7 : f32 to vector<448x64xf32>
    %9 = arith.maximumf %7, %8 : vector<448x64xf32>
    %10 = vector.shape_cast %9 : vector<448x64xf32> to vector<28x16x64xf32>
    %11 = tpu.iota {dimensions = array<i32: 0>} : vector<28x16x64xi32>
    %c6_i32 = arith.constant 6 : i32
    %12 = arith.muli %c6_i32, %0 : i32
    %c8_i32 = arith.constant 8 : i32
    %13 = arith.subi %12, %c8_i32 : i32
    %14 = vector.broadcast %13 : i32 to vector<28x16x64xi32>
    %15 = arith.addi %11, %14 : vector<28x16x64xi32>
    %c0_i32 = arith.constant 0 : i32
    %16 = vector.broadcast %c0_i32 : i32 to vector<28x16x64xi32>
    %17 = arith.cmpi sge, %15, %16 : vector<28x16x64xi32>
    %c12_i32 = arith.constant 12 : i32
    %18 = vector.broadcast %c12_i32 : i32 to vector<28x16x64xi32>
    %19 = arith.cmpi slt, %15, %18 : vector<28x16x64xi32>
    %20 = arith.andi %17, %19 : vector<28x16x64xi1>
    %cst_8 = arith.constant 0.000000e+00 : f32
    %21 = vector.broadcast %cst_8 : f32 to vector<28x16x64xf32>
    %22 = arith.select %20, %10, %21 : vector<28x16x64xi1>, vector<28x16x64xf32>
    %23 = arith.truncf %22 : vector<28x16x64xf32> to vector<28x16x64xbf16>
    %cst_9 = arith.constant 0.000000e+00 : bf16
    %24 = vector.broadcast %cst_9 : bf16 to vector<1x16x192xbf16>
    %c0_10 = arith.constant 0 : index
    %c0_11 = arith.constant 0 : index
    %c0_12 = arith.constant 0 : index
    %25 = vector.load %arg14[%c0_10, %c0_11, %c0_12] : memref<30x16x192xbf16, #tpu.memory_space<vmem>>, vector<1x16x192xbf16>
    tpu.vector_store %arg14[%c0_10, %c0_11, %c0_12], %24 {strides = array<i32>} : memref<30x16x192xbf16, #tpu.memory_space<vmem>>, vector<1x16x192xbf16>,
    %c29 = arith.constant 29 : index
    %c0_13 = arith.constant 0 : index
    %c0_14 = arith.constant 0 : index
    %26 = vector.load %arg14[%c29, %c0_13, %c0_14] : memref<30x16x192xbf16, #tpu.memory_space<vmem>>, vector<1x16x192xbf16>
    tpu.vector_store %arg14[%c29, %c0_13, %c0_14], %24 {strides = array<i32>} : memref<30x16x192xbf16, #tpu.memory_space<vmem>>, vector<1x16x192xbf16>,
    %cst_15 = arith.constant 0.000000e+00 : bf16
    %27 = vector.broadcast %cst_15 : bf16 to vector<30x1x64xbf16>
    %c0_16 = arith.constant 0 : index
    %c0_17 = arith.constant 0 : index
    %c0_18 = arith.constant 0 : index
    %28 = vector.load %arg14[%c0_16, %c0_17, %c0_18] : memref<30x16x192xbf16, #tpu.memory_space<vmem>>, vector<30x1x64xbf16>
    tpu.vector_store %arg14[%c0_16, %c0_17, %c0_18], %27 {strides = array<i32>} : memref<30x16x192xbf16, #tpu.memory_space<vmem>>, vector<30x1x64xbf16>,
    %c0_19 = arith.constant 0 : index
    %c15 = arith.constant 15 : index
    %c128 = arith.constant 128 : index
    %29 = vector.load %arg14[%c0_19, %c15, %c128] : memref<30x16x192xbf16, #tpu.memory_space<vmem>>, vector<30x1x64xbf16>
    tpu.vector_store %arg14[%c0_19, %c15, %c128], %27 {strides = array<i32>} : memref<30x16x192xbf16, #tpu.memory_space<vmem>>, vector<30x1x64xbf16>,
    %30 = vector.extract_strided_slice %23 {offsets = [0, 0, 0], sizes = [28, 15, 64], strides = [1, 1, 1]} : vector<28x16x64xbf16> to vector<28x15x64xbf16>
    %c1 = arith.constant 1 : index
    %c1_20 = arith.constant 1 : index
    %c0_21 = arith.constant 0 : index
    %31 = vector.load %arg14[%c1, %c1_20, %c0_21] : memref<30x16x192xbf16, #tpu.memory_space<vmem>>, vector<28x15x64xbf16>
    tpu.vector_store %arg14[%c1, %c1_20, %c0_21], %30 {strides = array<i32>} : memref<30x16x192xbf16, #tpu.memory_space<vmem>>, vector<28x15x64xbf16>,
    %c1_22 = arith.constant 1 : index
    %c0_23 = arith.constant 0 : index
    %c64 = arith.constant 64 : index
    %32 = vector.load %arg14[%c1_22, %c0_23, %c64] : memref<30x16x192xbf16, #tpu.memory_space<vmem>>, vector<28x16x64xbf16>
    tpu.vector_store %arg14[%c1_22, %c0_23, %c64], %23 {strides = array<i32>} : memref<30x16x192xbf16, #tpu.memory_space<vmem>>, vector<28x16x64xbf16>,
    %33 = vector.extract_strided_slice %23 {offsets = [0, 1, 0], sizes = [28, 15, 64], strides = [1, 1, 1]} : vector<28x16x64xbf16> to vector<28x15x64xbf16>
    %c1_24 = arith.constant 1 : index
    %c0_25 = arith.constant 0 : index
    %c128_26 = arith.constant 128 : index
    %34 = vector.load %arg14[%c1_24, %c0_25, %c128_26] : memref<30x16x192xbf16, #tpu.memory_space<vmem>>, vector<28x15x64xbf16>
    tpu.vector_store %arg14[%c1_24, %c0_25, %c128_26], %33 {strides = array<i32>} : memref<30x16x192xbf16, #tpu.memory_space<vmem>>, vector<28x15x64xbf16>,
    %c0_27 = arith.constant 0 : index
    %c0_28 = arith.constant 0 : index
    %c0_29 = arith.constant 0 : index
    %35 = vector.load %arg14[%c0_27, %c0_28, %c0_29] : memref<30x16x192xbf16, #tpu.memory_space<vmem>>, vector<28x16x192xbf16>
    %36 = vector.shape_cast %35 : vector<28x16x192xbf16> to vector<448x192xbf16>
    %c0_30 = arith.constant 0 : index
    %c0_31 = arith.constant 0 : index
    %c0_32 = arith.constant 0 : index
    %37 = vector.load %arg5[%c0_30, %c0_31, %c0_32] : memref<3x192x64xbf16, #tpu.memory_space<vmem>>, vector<1x192x64xbf16>
    %38 = vector.shape_cast %37 : vector<1x192x64xbf16> to vector<192x64xbf16>
    %cst_33 = arith.constant dense<0.000000e+00> : vector<448x64xf32>
    %39 = tpu.matmul %36, %38, %cst_33 {dimension_numbers = #tpu.dot_dimension_numbers<[1], [0], [0], [1], [0, 0, 1, 1], [], []>} : vector<448x192xbf16>, vector<192x64xbf16>, vector<448x64xf32> -> vector<448x64xf32>
    %c1_34 = arith.constant 1 : index
    %c0_35 = arith.constant 0 : index
    %c0_36 = arith.constant 0 : index
    %40 = vector.load %arg14[%c1_34, %c0_35, %c0_36] : memref<30x16x192xbf16, #tpu.memory_space<vmem>>, vector<28x16x192xbf16>
    %41 = vector.shape_cast %40 : vector<28x16x192xbf16> to vector<448x192xbf16>
    %c1_37 = arith.constant 1 : index
    %c0_38 = arith.constant 0 : index
    %c0_39 = arith.constant 0 : index
    %42 = vector.load %arg5[%c1_37, %c0_38, %c0_39] : memref<3x192x64xbf16, #tpu.memory_space<vmem>>, vector<1x192x64xbf16>
    %43 = vector.shape_cast %42 : vector<1x192x64xbf16> to vector<192x64xbf16>
    %cst_40 = arith.constant dense<0.000000e+00> : vector<448x64xf32>
    %44 = tpu.matmul %41, %43, %cst_40 {dimension_numbers = #tpu.dot_dimension_numbers<[1], [0], [0], [1], [0, 0, 1, 1], [], []>} : vector<448x192xbf16>, vector<192x64xbf16>, vector<448x64xf32> -> vector<448x64xf32>
    %45 = arith.addf %39, %44 : vector<448x64xf32>
    %c2 = arith.constant 2 : index
    %c0_41 = arith.constant 0 : index
    %c0_42 = arith.constant 0 : index
    %46 = vector.load %arg14[%c2, %c0_41, %c0_42] : memref<30x16x192xbf16, #tpu.memory_space<vmem>>, vector<28x16x192xbf16>
    %47 = vector.shape_cast %46 : vector<28x16x192xbf16> to vector<448x192xbf16>
    %c2_43 = arith.constant 2 : index
    %c0_44 = arith.constant 0 : index
    %c0_45 = arith.constant 0 : index
    %48 = vector.load %arg5[%c2_43, %c0_44, %c0_45] : memref<3x192x64xbf16, #tpu.memory_space<vmem>>, vector<1x192x64xbf16>
    %49 = vector.shape_cast %48 : vector<1x192x64xbf16> to vector<192x64xbf16>
    %cst_46 = arith.constant dense<0.000000e+00> : vector<448x64xf32>
    %50 = tpu.matmul %47, %49, %cst_46 {dimension_numbers = #tpu.dot_dimension_numbers<[1], [0], [0], [1], [0, 0, 1, 1], [], []>} : vector<448x192xbf16>, vector<192x64xbf16>, vector<448x64xf32> -> vector<448x64xf32>
    %51 = arith.addf %45, %50 : vector<448x64xf32>
    %c0_47 = arith.constant 0 : index
    %c0_48 = arith.constant 0 : index
    %52 = vector.load %arg6[%c0_47, %c0_48] : memref<1x64xf32, #tpu.memory_space<vmem>>, vector<1x64xf32>
    %53 = vector.broadcast %52 : vector<1x64xf32> to vector<448x64xf32>
    %54 = arith.addf %51, %53 : vector<448x64xf32>
    %cst_49 = arith.constant 0.000000e+00 : f32
    %55 = vector.broadcast %cst_49 : f32 to vector<448x64xf32>
    %56 = arith.maximumf %54, %55 : vector<448x64xf32>
    %57 = vector.shape_cast %56 : vector<448x64xf32> to vector<28x16x64xf32>
    %58 = vector.extract_strided_slice %57 {offsets = [2, 0, 0], sizes = [24, 16, 64], strides = [1, 1, 1]} : vector<28x16x64xf32> to vector<24x16x64xf32>
    %59 = vector.shape_cast %58 : vector<24x16x64xf32> to vector<8x3x16x64xf32>
    %60 = vector.extract_strided_slice %59 {offsets = [0, 0, 0, 0], sizes = [8, 1, 16, 64], strides = [1, 1, 1, 1]} : vector<8x3x16x64xf32> to vector<8x1x16x64xf32>
    %61 = vector.shape_cast %60 : vector<8x1x16x64xf32> to vector<8x16x64xf32>
    %62 = vector.extract_strided_slice %59 {offsets = [0, 1, 0, 0], sizes = [8, 1, 16, 64], strides = [1, 1, 1, 1]} : vector<8x3x16x64xf32> to vector<8x1x16x64xf32>
    %63 = vector.shape_cast %62 : vector<8x1x16x64xf32> to vector<8x16x64xf32>
    %64 = arith.maximumf %61, %63 : vector<8x16x64xf32>
    %65 = vector.extract_strided_slice %59 {offsets = [0, 2, 0, 0], sizes = [8, 1, 16, 64], strides = [1, 1, 1, 1]} : vector<8x3x16x64xf32> to vector<8x1x16x64xf32>
    %66 = vector.shape_cast %65 : vector<8x1x16x64xf32> to vector<8x16x64xf32>
    %67 = arith.maximumf %64, %66 : vector<8x16x64xf32>
    %68 = vector.shape_cast %67 : vector<8x16x64xf32> to vector<64x2x64xf32>
    %cst_50 = arith.constant dense<0xFF800000> : vector<64x64xf32>
    %69 = vector.multi_reduction <maximumf>, %68, %cst_50 [1] : vector<64x2x64xf32> to vector<64x64xf32>
    %70 = vector.shape_cast %69 : vector<64x64xf32> to vector<8x8x64xf32>
    %71 = tpu.iota {dimensions = array<i32: 0>} : vector<8x8x64xi32>
    %c2_i32_51 = arith.constant 2 : i32
    %72 = arith.muli %c2_i32_51, %0 : i32
    %c2_i32_52 = arith.constant 2 : i32
    %73 = arith.subi %72, %c2_i32_52 : i32
    %74 = vector.broadcast %73 : i32 to vector<8x8x64xi32>
    %75 = arith.addi %71, %74 : vector<8x8x64xi32>
    %c0_i32_53 = arith.constant 0 : i32
    %76 = vector.broadcast %c0_i32_53 : i32 to vector<8x8x64xi32>
    %77 = arith.cmpi sge, %75, %76 : vector<8x8x64xi32>
    %c4_i32 = arith.constant 4 : i32
    %78 = vector.broadcast %c4_i32 : i32 to vector<8x8x64xi32>
    %79 = arith.cmpi slt, %75, %78 : vector<8x8x64xi32>
    %80 = arith.andi %77, %79 : vector<8x8x64xi1>
    %cst_54 = arith.constant 0.000000e+00 : f32
    %81 = vector.broadcast %cst_54 : f32 to vector<8x8x64xf32>
    %82 = arith.select %80, %70, %81 : vector<8x8x64xi1>, vector<8x8x64xf32>
    %83 = arith.truncf %82 : vector<8x8x64xf32> to vector<8x8x64xbf16>
    %cst_55 = arith.constant 0.000000e+00 : bf16
    %84 = vector.broadcast %cst_55 : bf16 to vector<1x8x192xbf16>
    %c0_56 = arith.constant 0 : index
    %c0_57 = arith.constant 0 : index
    %c0_58 = arith.constant 0 : index
    %85 = vector.load %arg15[%c0_56, %c0_57, %c0_58] : memref<10x8x192xbf16, #tpu.memory_space<vmem>>, vector<1x8x192xbf16>
    tpu.vector_store %arg15[%c0_56, %c0_57, %c0_58], %84 {strides = array<i32>} : memref<10x8x192xbf16, #tpu.memory_space<vmem>>, vector<1x8x192xbf16>,
    %c9 = arith.constant 9 : index
    %c0_59 = arith.constant 0 : index
    %c0_60 = arith.constant 0 : index
    %86 = vector.load %arg15[%c9, %c0_59, %c0_60] : memref<10x8x192xbf16, #tpu.memory_space<vmem>>, vector<1x8x192xbf16>
    tpu.vector_store %arg15[%c9, %c0_59, %c0_60], %84 {strides = array<i32>} : memref<10x8x192xbf16, #tpu.memory_space<vmem>>, vector<1x8x192xbf16>,
    %cst_61 = arith.constant 0.000000e+00 : bf16
    %87 = vector.broadcast %cst_61 : bf16 to vector<10x1x64xbf16>
    %c0_62 = arith.constant 0 : index
    %c0_63 = arith.constant 0 : index
    %c0_64 = arith.constant 0 : index
    %88 = vector.load %arg15[%c0_62, %c0_63, %c0_64] : memref<10x8x192xbf16, #tpu.memory_space<vmem>>, vector<10x1x64xbf16>
    tpu.vector_store %arg15[%c0_62, %c0_63, %c0_64], %87 {strides = array<i32>} : memref<10x8x192xbf16, #tpu.memory_space<vmem>>, vector<10x1x64xbf16>,
    %c0_65 = arith.constant 0 : index
    %c7 = arith.constant 7 : index
    %c128_66 = arith.constant 128 : index
    %89 = vector.load %arg15[%c0_65, %c7, %c128_66] : memref<10x8x192xbf16, #tpu.memory_space<vmem>>, vector<10x1x64xbf16>
    tpu.vector_store %arg15[%c0_65, %c7, %c128_66], %87 {strides = array<i32>} : memref<10x8x192xbf16, #tpu.memory_space<vmem>>, vector<10x1x64xbf16>,
    %90 = vector.extract_strided_slice %83 {offsets = [0, 0, 0], sizes = [8, 7, 64], strides = [1, 1, 1]} : vector<8x8x64xbf16> to vector<8x7x64xbf16>
    %c1_67 = arith.constant 1 : index
    %c1_68 = arith.constant 1 : index
    %c0_69 = arith.constant 0 : index
    %91 = vector.load %arg15[%c1_67, %c1_68, %c0_69] : memref<10x8x192xbf16, #tpu.memory_space<vmem>>, vector<8x7x64xbf16>
    tpu.vector_store %arg15[%c1_67, %c1_68, %c0_69], %90 {strides = array<i32>} : memref<10x8x192xbf16, #tpu.memory_space<vmem>>, vector<8x7x64xbf16>,
    %c1_70 = arith.constant 1 : index
    %c0_71 = arith.constant 0 : index
    %c64_72 = arith.constant 64 : index
    %92 = vector.load %arg15[%c1_70, %c0_71, %c64_72] : memref<10x8x192xbf16, #tpu.memory_space<vmem>>, vector<8x8x64xbf16>
    tpu.vector_store %arg15[%c1_70, %c0_71, %c64_72], %83 {strides = array<i32>} : memref<10x8x192xbf16, #tpu.memory_space<vmem>>, vector<8x8x64xbf16>,
    %93 = vector.extract_strided_slice %83 {offsets = [0, 1, 0], sizes = [8, 7, 64], strides = [1, 1, 1]} : vector<8x8x64xbf16> to vector<8x7x64xbf16>
    %c1_73 = arith.constant 1 : index
    %c0_74 = arith.constant 0 : index
    %c128_75 = arith.constant 128 : index
    %94 = vector.load %arg15[%c1_73, %c0_74, %c128_75] : memref<10x8x192xbf16, #tpu.memory_space<vmem>>, vector<8x7x64xbf16>
    tpu.vector_store %arg15[%c1_73, %c0_74, %c128_75], %93 {strides = array<i32>} : memref<10x8x192xbf16, #tpu.memory_space<vmem>>, vector<8x7x64xbf16>,
    %c0_76 = arith.constant 0 : index
    %c0_77 = arith.constant 0 : index
    %c0_78 = arith.constant 0 : index
    %95 = vector.load %arg15[%c0_76, %c0_77, %c0_78] : memref<10x8x192xbf16, #tpu.memory_space<vmem>>, vector<8x8x192xbf16>
    %96 = vector.shape_cast %95 : vector<8x8x192xbf16> to vector<64x192xbf16>
    %c0_79 = arith.constant 0 : index
    %c0_80 = arith.constant 0 : index
    %c0_81 = arith.constant 0 : index
    %97 = vector.load %arg7[%c0_79, %c0_80, %c0_81] : memref<3x192x128xbf16, #tpu.memory_space<vmem>>, vector<1x192x128xbf16>
    %98 = vector.shape_cast %97 : vector<1x192x128xbf16> to vector<192x128xbf16>
    %cst_82 = arith.constant dense<0.000000e+00> : vector<64x128xf32>
    %99 = tpu.matmul %96, %98, %cst_82 {dimension_numbers = #tpu.dot_dimension_numbers<[1], [0], [0], [1], [0, 0, 1, 1], [], []>} : vector<64x192xbf16>, vector<192x128xbf16>, vector<64x128xf32> -> vector<64x128xf32>
    %c1_83 = arith.constant 1 : index
    %c0_84 = arith.constant 0 : index
    %c0_85 = arith.constant 0 : index
    %100 = vector.load %arg15[%c1_83, %c0_84, %c0_85] : memref<10x8x192xbf16, #tpu.memory_space<vmem>>, vector<8x8x192xbf16>
    %101 = vector.shape_cast %100 : vector<8x8x192xbf16> to vector<64x192xbf16>
    %c1_86 = arith.constant 1 : index
    %c0_87 = arith.constant 0 : index
    %c0_88 = arith.constant 0 : index
    %102 = vector.load %arg7[%c1_86, %c0_87, %c0_88] : memref<3x192x128xbf16, #tpu.memory_space<vmem>>, vector<1x192x128xbf16>
    %103 = vector.shape_cast %102 : vector<1x192x128xbf16> to vector<192x128xbf16>
    %cst_89 = arith.constant dense<0.000000e+00> : vector<64x128xf32>
    %104 = tpu.matmul %101, %103, %cst_89 {dimension_numbers = #tpu.dot_dimension_numbers<[1], [0], [0], [1], [0, 0, 1, 1], [], []>} : vector<64x192xbf16>, vector<192x128xbf16>, vector<64x128xf32> -> vector<64x128xf32>
    %105 = arith.addf %99, %104 : vector<64x128xf32>
    %c2_90 = arith.constant 2 : index
    %c0_91 = arith.constant 0 : index
    %c0_92 = arith.constant 0 : index
    %106 = vector.load %arg15[%c2_90, %c0_91, %c0_92] : memref<10x8x192xbf16, #tpu.memory_space<vmem>>, vector<8x8x192xbf16>
    %107 = vector.shape_cast %106 : vector<8x8x192xbf16> to vector<64x192xbf16>
    %c2_93 = arith.constant 2 : index
    %c0_94 = arith.constant 0 : index
    %c0_95 = arith.constant 0 : index
    %108 = vector.load %arg7[%c2_93, %c0_94, %c0_95] : memref<3x192x128xbf16, #tpu.memory_space<vmem>>, vector<1x192x128xbf16>
    %109 = vector.shape_cast %108 : vector<1x192x128xbf16> to vector<192x128xbf16>
    %cst_96 = arith.constant dense<0.000000e+00> : vector<64x128xf32>
    %110 = tpu.matmul %107, %109, %cst_96 {dimension_numbers = #tpu.dot_dimension_numbers<[1], [0], [0], [1], [0, 0, 1, 1], [], []>} : vector<64x192xbf16>, vector<192x128xbf16>, vector<64x128xf32> -> vector<64x128xf32>
    %111 = arith.addf %105, %110 : vector<64x128xf32>
    %c0_97 = arith.constant 0 : index
    %c0_98 = arith.constant 0 : index
    %112 = vector.load %arg8[%c0_97, %c0_98] : memref<1x128xf32, #tpu.memory_space<vmem>>, vector<1x128xf32>
    %113 = vector.broadcast %112 : vector<1x128xf32> to vector<64x128xf32>
    %114 = arith.addf %111, %113 : vector<64x128xf32>
    %cst_99 = arith.constant 0.000000e+00 : f32
    %115 = vector.broadcast %cst_99 : f32 to vector<64x128xf32>
    %116 = arith.maximumf %114, %115 : vector<64x128xf32>
    %117 = vector.shape_cast %116 : vector<64x128xf32> to vector<8x8x128xf32>
    %118 = tpu.iota {dimensions = array<i32: 0>} : vector<8x8x128xi32>
    %c2_i32_100 = arith.constant 2 : i32
    %119 = arith.muli %c2_i32_100, %0 : i32
    %c2_i32_101 = arith.constant 2 : i32
    %120 = arith.subi %119, %c2_i32_101 : i32
    %121 = vector.broadcast %120 : i32 to vector<8x8x128xi32>
    %122 = arith.addi %118, %121 : vector<8x8x128xi32>
    %c0_i32_102 = arith.constant 0 : i32
    %123 = vector.broadcast %c0_i32_102 : i32 to vector<8x8x128xi32>
    %124 = arith.cmpi sge, %122, %123 : vector<8x8x128xi32>
    %c4_i32_103 = arith.constant 4 : i32
    %125 = vector.broadcast %c4_i32_103 : i32 to vector<8x8x128xi32>
    %126 = arith.cmpi slt, %122, %125 : vector<8x8x128xi32>
    %127 = arith.andi %124, %126 : vector<8x8x128xi1>
    %cst_104 = arith.constant 0.000000e+00 : f32
    %128 = vector.broadcast %cst_104 : f32 to vector<8x8x128xf32>
    %129 = arith.select %127, %117, %128 : vector<8x8x128xi1>, vector<8x8x128xf32>
    %130 = arith.truncf %129 : vector<8x8x128xf32> to vector<8x8x128xbf16>
    %cst_105 = arith.constant 0.000000e+00 : bf16
    %131 = vector.broadcast %cst_105 : bf16 to vector<1x8x384xbf16>
    %c0_106 = arith.constant 0 : index
    %c0_107 = arith.constant 0 : index
    %c0_108 = arith.constant 0 : index
    %132 = vector.load %arg16[%c0_106, %c0_107, %c0_108] : memref<10x8x384xbf16, #tpu.memory_space<vmem>>, vector<1x8x384xbf16>
    tpu.vector_store %arg16[%c0_106, %c0_107, %c0_108], %131 {strides = array<i32>} : memref<10x8x384xbf16, #tpu.memory_space<vmem>>, vector<1x8x384xbf16>,
    %c9_109 = arith.constant 9 : index
    %c0_110 = arith.constant 0 : index
    %c0_111 = arith.constant 0 : index
    %133 = vector.load %arg16[%c9_109, %c0_110, %c0_111] : memref<10x8x384xbf16, #tpu.memory_space<vmem>>, vector<1x8x384xbf16>
    tpu.vector_store %arg16[%c9_109, %c0_110, %c0_111], %131 {strides = array<i32>} : memref<10x8x384xbf16, #tpu.memory_space<vmem>>, vector<1x8x384xbf16>,
    %cst_112 = arith.constant 0.000000e+00 : bf16
    %134 = vector.broadcast %cst_112 : bf16 to vector<10x1x128xbf16>
    %c0_113 = arith.constant 0 : index
    %c0_114 = arith.constant 0 : index
    %c0_115 = arith.constant 0 : index
    %135 = vector.load %arg16[%c0_113, %c0_114, %c0_115] : memref<10x8x384xbf16, #tpu.memory_space<vmem>>, vector<10x1x128xbf16>
    tpu.vector_store %arg16[%c0_113, %c0_114, %c0_115], %134 {strides = array<i32>} : memref<10x8x384xbf16, #tpu.memory_space<vmem>>, vector<10x1x128xbf16>,
    %c0_116 = arith.constant 0 : index
    %c7_117 = arith.constant 7 : index
    %c256 = arith.constant 256 : index
    %136 = vector.load %arg16[%c0_116, %c7_117, %c256] : memref<10x8x384xbf16, #tpu.memory_space<vmem>>, vector<10x1x128xbf16>
    tpu.vector_store %arg16[%c0_116, %c7_117, %c256], %134 {strides = array<i32>} : memref<10x8x384xbf16, #tpu.memory_space<vmem>>, vector<10x1x128xbf16>,
    %137 = vector.extract_strided_slice %130 {offsets = [0, 0, 0], sizes = [8, 7, 128], strides = [1, 1, 1]} : vector<8x8x128xbf16> to vector<8x7x128xbf16>
    %c1_118 = arith.constant 1 : index
    %c1_119 = arith.constant 1 : index
    %c0_120 = arith.constant 0 : index
    %138 = vector.load %arg16[%c1_118, %c1_119, %c0_120] : memref<10x8x384xbf16, #tpu.memory_space<vmem>>, vector<8x7x128xbf16>
    tpu.vector_store %arg16[%c1_118, %c1_119, %c0_120], %137 {strides = array<i32>} : memref<10x8x384xbf16, #tpu.memory_space<vmem>>, vector<8x7x128xbf16>,
    %c1_121 = arith.constant 1 : index
    %c0_122 = arith.constant 0 : index
    %c128_123 = arith.constant 128 : index
    %139 = vector.load %arg16[%c1_121, %c0_122, %c128_123] : memref<10x8x384xbf16, #tpu.memory_space<vmem>>, vector<8x8x128xbf16>
    tpu.vector_store %arg16[%c1_121, %c0_122, %c128_123], %130 {strides = array<i32>} : memref<10x8x384xbf16, #tpu.memory_space<vmem>>, vector<8x8x128xbf16>,
    %140 = vector.extract_strided_slice %130 {offsets = [0, 1, 0], sizes = [8, 7, 128], strides = [1, 1, 1]} : vector<8x8x128xbf16> to vector<8x7x128xbf16>
    %c1_124 = arith.constant 1 : index
    %c0_125 = arith.constant 0 : index
    %c256_126 = arith.constant 256 : index
    %141 = vector.load %arg16[%c1_124, %c0_125, %c256_126] : memref<10x8x384xbf16, #tpu.memory_space<vmem>>, vector<8x7x128xbf16>
    tpu.vector_store %arg16[%c1_124, %c0_125, %c256_126], %140 {strides = array<i32>} : memref<10x8x384xbf16, #tpu.memory_space<vmem>>, vector<8x7x128xbf16>,
    %c0_127 = arith.constant 0 : index
    %c0_128 = arith.constant 0 : index
    %c0_129 = arith.constant 0 : index
    %142 = vector.load %arg16[%c0_127, %c0_128, %c0_129] : memref<10x8x384xbf16, #tpu.memory_space<vmem>>, vector<8x8x384xbf16>
    %143 = vector.shape_cast %142 : vector<8x8x384xbf16> to vector<64x384xbf16>
    %c0_130 = arith.constant 0 : index
    %c0_131 = arith.constant 0 : index
    %c0_132 = arith.constant 0 : index
    %144 = vector.load %arg9[%c0_130, %c0_131, %c0_132] : memref<3x384x128xbf16, #tpu.memory_space<vmem>>, vector<1x384x128xbf16>
    %145 = vector.shape_cast %144 : vector<1x384x128xbf16> to vector<384x128xbf16>
    %cst_133 = arith.constant dense<0.000000e+00> : vector<64x128xf32>
    %146 = tpu.matmul %143, %145, %cst_133 {dimension_numbers = #tpu.dot_dimension_numbers<[1], [0], [0], [1], [0, 0, 1, 1], [], []>} : vector<64x384xbf16>, vector<384x128xbf16>, vector<64x128xf32> -> vector<64x128xf32>
    %c1_134 = arith.constant 1 : index
    %c0_135 = arith.constant 0 : index
    %c0_136 = arith.constant 0 : index
    %147 = vector.load %arg16[%c1_134, %c0_135, %c0_136] : memref<10x8x384xbf16, #tpu.memory_space<vmem>>, vector<8x8x384xbf16>
    %148 = vector.shape_cast %147 : vector<8x8x384xbf16> to vector<64x384xbf16>
    %c1_137 = arith.constant 1 : index
    %c0_138 = arith.constant 0 : index
    %c0_139 = arith.constant 0 : index
    %149 = vector.load %arg9[%c1_137, %c0_138, %c0_139] : memref<3x384x128xbf16, #tpu.memory_space<vmem>>, vector<1x384x128xbf16>
    %150 = vector.shape_cast %149 : vector<1x384x128xbf16> to vector<384x128xbf16>
    %cst_140 = arith.constant dense<0.000000e+00> : vector<64x128xf32>
    %151 = tpu.matmul %148, %150, %cst_140 {dimension_numbers = #tpu.dot_dimension_numbers<[1], [0], [0], [1], [0, 0, 1, 1], [], []>} : vector<64x384xbf16>, vector<384x128xbf16>, vector<64x128xf32> -> vector<64x128xf32>
    %152 = arith.addf %146, %151 : vector<64x128xf32>
    %c2_141 = arith.constant 2 : index
    %c0_142 = arith.constant 0 : index
    %c0_143 = arith.constant 0 : index
    %153 = vector.load %arg16[%c2_141, %c0_142, %c0_143] : memref<10x8x384xbf16, #tpu.memory_space<vmem>>, vector<8x8x384xbf16>
    %154 = vector.shape_cast %153 : vector<8x8x384xbf16> to vector<64x384xbf16>
    %c2_144 = arith.constant 2 : index
    %c0_145 = arith.constant 0 : index
    %c0_146 = arith.constant 0 : index
    %155 = vector.load %arg9[%c2_144, %c0_145, %c0_146] : memref<3x384x128xbf16, #tpu.memory_space<vmem>>, vector<1x384x128xbf16>
    %156 = vector.shape_cast %155 : vector<1x384x128xbf16> to vector<384x128xbf16>
    %cst_147 = arith.constant dense<0.000000e+00> : vector<64x128xf32>
    %157 = tpu.matmul %154, %156, %cst_147 {dimension_numbers = #tpu.dot_dimension_numbers<[1], [0], [0], [1], [0, 0, 1, 1], [], []>} : vector<64x384xbf16>, vector<384x128xbf16>, vector<64x128xf32> -> vector<64x128xf32>
    %158 = arith.addf %152, %157 : vector<64x128xf32>
    %c0_148 = arith.constant 0 : index
    %c0_149 = arith.constant 0 : index
    %159 = vector.load %arg10[%c0_148, %c0_149] : memref<1x128xf32, #tpu.memory_space<vmem>>, vector<1x128xf32>
    %160 = vector.broadcast %159 : vector<1x128xf32> to vector<64x128xf32>
    %161 = arith.addf %158, %160 : vector<64x128xf32>
    %cst_150 = arith.constant 0.000000e+00 : f32
    %162 = vector.broadcast %cst_150 : f32 to vector<64x128xf32>
    %163 = arith.maximumf %161, %162 : vector<64x128xf32>
    %164 = vector.shape_cast %163 : vector<64x128xf32> to vector<8x8x128xf32>
    %165 = vector.extract_strided_slice %164 {offsets = [2, 0, 0], sizes = [4, 8, 128], strides = [1, 1, 1]} : vector<8x8x128xf32> to vector<4x8x128xf32>
    %166 = vector.shape_cast %165 : vector<4x8x128xf32> to vector<2x2x8x128xf32>
    %167 = vector.extract_strided_slice %166 {offsets = [0, 0, 0, 0], sizes = [2, 1, 8, 128], strides = [1, 1, 1, 1]} : vector<2x2x8x128xf32> to vector<2x1x8x128xf32>
    %168 = vector.shape_cast %167 : vector<2x1x8x128xf32> to vector<2x8x128xf32>
    %169 = vector.extract_strided_slice %166 {offsets = [0, 1, 0, 0], sizes = [2, 1, 8, 128], strides = [1, 1, 1, 1]} : vector<2x2x8x128xf32> to vector<2x1x8x128xf32>
    %170 = vector.shape_cast %169 : vector<2x1x8x128xf32> to vector<2x8x128xf32>
    %171 = arith.maximumf %168, %170 : vector<2x8x128xf32>
    %172 = vector.shape_cast %171 : vector<2x8x128xf32> to vector<8x2x128xf32>
    %cst_151 = arith.constant dense<0xFF800000> : vector<8x128xf32>
    %173 = vector.multi_reduction <maximumf>, %172, %cst_151 [1] : vector<8x2x128xf32> to vector<8x128xf32>
    %174 = vector.shape_cast %173 : vector<8x128xf32> to vector<2x4x128xf32>
    %175 = arith.truncf %174 : vector<2x4x128xf32> to vector<2x4x128xbf16>
    %176 = vector.extract_strided_slice %175 {offsets = [0, 0, 0], sizes = [2, 1, 128], strides = [1, 1, 1]} : vector<2x4x128xbf16> to vector<2x1x128xbf16>
    %177 = vector.shape_cast %176 : vector<2x1x128xbf16> to vector<2x128xbf16>
    %c0_152 = arith.constant 0 : index
    %c0_153 = arith.constant 0 : index
    %178 = vector.load %arg17[%c0_152, %c0_153] : memref<2x512xbf16, #tpu.memory_space<vmem>>, vector<2x128xbf16>
    tpu.vector_store %arg17[%c0_152, %c0_153], %177 {strides = array<i32>} : memref<2x512xbf16, #tpu.memory_space<vmem>>, vector<2x128xbf16>,
    %179 = vector.extract_strided_slice %175 {offsets = [0, 1, 0], sizes = [2, 1, 128], strides = [1, 1, 1]} : vector<2x4x128xbf16> to vector<2x1x128xbf16>
    %180 = vector.shape_cast %179 : vector<2x1x128xbf16> to vector<2x128xbf16>
    %c0_154 = arith.constant 0 : index
    %c128_155 = arith.constant 128 : index
    %181 = vector.load %arg17[%c0_154, %c128_155] : memref<2x512xbf16, #tpu.memory_space<vmem>>, vector<2x128xbf16>
    tpu.vector_store %arg17[%c0_154, %c128_155], %180 {strides = array<i32>} : memref<2x512xbf16, #tpu.memory_space<vmem>>, vector<2x128xbf16>,
    %182 = vector.extract_strided_slice %175 {offsets = [0, 2, 0], sizes = [2, 1, 128], strides = [1, 1, 1]} : vector<2x4x128xbf16> to vector<2x1x128xbf16>
    %183 = vector.shape_cast %182 : vector<2x1x128xbf16> to vector<2x128xbf16>
    %c0_156 = arith.constant 0 : index
    %c256_157 = arith.constant 256 : index
    %184 = vector.load %arg17[%c0_156, %c256_157] : memref<2x512xbf16, #tpu.memory_space<vmem>>, vector<2x128xbf16>
    tpu.vector_store %arg17[%c0_156, %c256_157], %183 {strides = array<i32>} : memref<2x512xbf16, #tpu.memory_space<vmem>>, vector<2x128xbf16>,
    %185 = vector.extract_strided_slice %175 {offsets = [0, 3, 0], sizes = [2, 1, 128], strides = [1, 1, 1]} : vector<2x4x128xbf16> to vector<2x1x128xbf16>
    %186 = vector.shape_cast %185 : vector<2x1x128xbf16> to vector<2x128xbf16>
    %c0_158 = arith.constant 0 : index
    %c384 = arith.constant 384 : index
    %187 = vector.load %arg17[%c0_158, %c384] : memref<2x512xbf16, #tpu.memory_space<vmem>>, vector<2x128xbf16>
    tpu.vector_store %arg17[%c0_158, %c384], %186 {strides = array<i32>} : memref<2x512xbf16, #tpu.memory_space<vmem>>, vector<2x128xbf16>,
    %c0_159 = arith.constant 0 : index
    %c0_160 = arith.constant 0 : index
    %188 = vector.load %arg17[%c0_159, %c0_160] : memref<2x512xbf16, #tpu.memory_space<vmem>>, vector<2x512xbf16>
    %c0_161 = arith.constant 0 : index
    %c0_162 = arith.constant 0 : index
    %189 = vector.load %arg11[%c0_161, %c0_162] : memref<512x128xbf16, #tpu.memory_space<vmem>>, vector<512x128xbf16>
    %cst_163 = arith.constant dense<0.000000e+00> : vector<2x128xf32>
    %190 = tpu.matmul %188, %189, %cst_163 {dimension_numbers = #tpu.dot_dimension_numbers<[1], [0], [0], [1], [0, 0, 1, 1], [], []>} : vector<2x512xbf16>, vector<512x128xbf16>, vector<2x128xf32> -> vector<2x128xf32>
    %c0_164 = arith.constant 0 : index
    %c0_165 = arith.constant 0 : index
    %191 = vector.load %arg12[%c0_164, %c0_165] : memref<1x128xf32, #tpu.memory_space<vmem>>, vector<1x128xf32>
    %192 = vector.broadcast %191 : vector<1x128xf32> to vector<2x128xf32>
    %193 = arith.addf %190, %192 : vector<2x128xf32>
    %c0_166 = arith.constant 0 : index
    %c0_167 = arith.constant 0 : index
    %c0_168 = arith.constant 0 : index
    %c0_169 = arith.constant 0 : index
    %194 = vector.load %arg13[%c0_166, %c0_167, %c0_168, %c0_169] : memref<1x1x2x128xf32, #tpu.memory_space<vmem>>, vector<1x1x2x128xf32>
    %195 = vector.shape_cast %194 : vector<1x1x2x128xf32> to vector<2x128xf32>
    %196 = vector.shape_cast %193 : vector<2x128xf32> to vector<1x1x2x128xf32>
    tpu.vector_store %arg13[%c0_166, %c0_167, %c0_168, %c0_169], %196 {strides = array<i32>} : memref<1x1x2x128xf32, #tpu.memory_space<vmem>>, vector<1x1x2x128xf32>,
    return
  }
  func.func @transform_0(%arg0: i32, %arg1: i32) -> (i32, i32, i32, i32) {
    %c0_i32 = arith.constant 0 : i32
    %c0_i32_0 = arith.constant 0 : i32
    %c0_i32_1 = arith.constant 0 : i32
    return %arg0, %arg1, %c0_i32, %c0_i32_0 : i32, i32, i32, i32
  }
  func.func @transform_1(%arg0: i32, %arg1: i32) -> (i32, i32) {
    %c0_i32 = arith.constant 0 : i32
    %c0_i32_0 = arith.constant 0 : i32
    %c0_i32_1 = arith.constant 0 : i32
    return %c0_i32, %c0_i32_0 : i32, i32
  }
  func.func @transform_2(%arg0: i32, %arg1: i32) -> (i32, i32) {
    %c0_i32 = arith.constant 0 : i32
    %c0_i32_0 = arith.constant 0 : i32
    %c0_i32_1 = arith.constant 0 : i32
    return %c0_i32, %c0_i32_0 : i32, i32
  }
  func.func @transform_3(%arg0: i32, %arg1: i32) -> (i32, i32, i32) {
    %c0_i32 = arith.constant 0 : i32
    %c0_i32_0 = arith.constant 0 : i32
    %c0_i32_1 = arith.constant 0 : i32
    %c0_i32_2 = arith.constant 0 : i32
    return %c0_i32, %c0_i32_0, %c0_i32_1 : i32, i32, i32
  }
  func.func @transform_4(%arg0: i32, %arg1: i32) -> (i32, i32) {
    %c0_i32 = arith.constant 0 : i32
    %c0_i32_0 = arith.constant 0 : i32
    %c0_i32_1 = arith.constant 0 : i32
    return %c0_i32, %c0_i32_0 : i32, i32
  }
  func.func @transform_5(%arg0: i32, %arg1: i32) -> (i32, i32, i32) {
    %c0_i32 = arith.constant 0 : i32
    %c0_i32_0 = arith.constant 0 : i32
    %c0_i32_1 = arith.constant 0 : i32
    %c0_i32_2 = arith.constant 0 : i32
    return %c0_i32, %c0_i32_0, %c0_i32_1 : i32, i32, i32
  }
  func.func @transform_6(%arg0: i32, %arg1: i32) -> (i32, i32) {
    %c0_i32 = arith.constant 0 : i32
    %c0_i32_0 = arith.constant 0 : i32
    %c0_i32_1 = arith.constant 0 : i32
    return %c0_i32, %c0_i32_0 : i32, i32
  }
  func.func @transform_7(%arg0: i32, %arg1: i32) -> (i32, i32, i32) {
    %c0_i32 = arith.constant 0 : i32
    %c0_i32_0 = arith.constant 0 : i32
    %c0_i32_1 = arith.constant 0 : i32
    %c0_i32_2 = arith.constant 0 : i32
    return %c0_i32, %c0_i32_0, %c0_i32_1 : i32, i32, i32
  }
  func.func @transform_8(%arg0: i32, %arg1: i32) -> (i32, i32) {
    %c0_i32 = arith.constant 0 : i32
    %c0_i32_0 = arith.constant 0 : i32
    %c0_i32_1 = arith.constant 0 : i32
    return %c0_i32, %c0_i32_0 : i32, i32
  }
  func.func @transform_9(%arg0: i32, %arg1: i32) -> (i32, i32) {
    %c0_i32 = arith.constant 0 : i32
    %c0_i32_0 = arith.constant 0 : i32
    %c0_i32_1 = arith.constant 0 : i32
    return %c0_i32, %c0_i32_0 : i32, i32
  }
  func.func @transform_10(%arg0: i32, %arg1: i32) -> (i32, i32) {
    %c0_i32 = arith.constant 0 : i32
    %c0_i32_0 = arith.constant 0 : i32
    %c0_i32_1 = arith.constant 0 : i32
    return %c0_i32, %c0_i32_0 : i32, i32
  }
  func.func @transform_11(%arg0: i32, %arg1: i32) -> (i32, i32, i32, i32) {
    %c0_i32 = arith.constant 0 : i32
    %c0_i32_0 = arith.constant 0 : i32
    %c0_i32_1 = arith.constant 0 : i32
    return %arg0, %arg1, %c0_i32, %c0_i32_0 : i32, i32, i32, i32
  }
}

</mosaic_0001>

<llo_original>
// kernel: vgg2l_forward.1
$region0: #{vgg2l_forward.1}
  #allocation0 [shape = 'u32[]', space=smem, size = 0x4, offset = 0x4, fixed_abs, tag = 'smem constant byte address 0x4 - core index']
  #allocation1 [shape = 'u32[144,128]{1,0:T(1,128)}', space=vmem, size = 0x12000, scoped, tag = 'internal scratch']
  #allocation2 [shape = 'bf16[30,16,192]{2,1,0:T(16,128)(2,1)}', space=vmem, size = 0x3c000, scoped, tag = 'scratch operand']
  #allocation3 [shape = 'bf16[10,8,192]{2,1,0:T(8,128)(2,1)}', space=vmem, size = 0xa000, scoped, tag = 'scratch operand']
  #allocation4 [shape = 'bf16[10,8,384]{2,1,0:T(8,128)(2,1)}', space=vmem, size = 0xf000, scoped, tag = 'scratch operand']
  #allocation5 [shape = 'bf16[2,512]{1,0:T(2,128)(2,1)}', space=vmem, size = 0x800, scoped, tag = 'scratch operand']
  %s0 = inlined_call_operand.hbm [shape: bf16[2,1,448,9], index: 0, kind: input, shape index: {}]
  %s1 = inlined_call_operand.hbm [shape: bf16[9,64], index: 1, kind: input, shape index: {}]
  %s2 = inlined_call_operand.hbm [shape: f32[1,64], index: 2, kind: input, shape index: {}]
  %s3 = inlined_call_operand.hbm [shape: bf16[3,192,64], index: 3, kind: input, shape index: {}]
  %s4 = inlined_call_operand.hbm [shape: f32[1,64], index: 4, kind: input, shape index: {}]
  %s5 = inlined_call_operand.hbm [shape: bf16[3,192,128], index: 5, kind: input, shape index: {}]
  %s6 = inlined_call_operand.hbm [shape: f32[1,128], index: 6, kind: input, shape index: {}]
  %s7 = inlined_call_operand.hbm [shape: bf16[3,384,128], index: 7, kind: input, shape index: {}]
  %s8 = inlined_call_operand.hbm [shape: f32[1,128], index: 8, kind: input, shape index: {}]
  %s9 = inlined_call_operand.hbm [shape: bf16[512,128], index: 9, kind: input, shape index: {}]
  %s10 = inlined_call_operand.hbm [shape: f32[1,128], index: 10, kind: input, shape index: {}]
  %s11 = inlined_call_operand.hbm [shape: f32[2,1,2,128], index: 11, kind: output, shape index: {}]
  %s12 = sld [smem:[#allocation0]]
  $region121: #{vgg2l_forward.1} parent=0
    _
  %s14 = ssub.s32 1, %s12
  %s15 = scalar_select 0, %s14, %s12
  $region1: #{vgg2l_forward.1} parent=0
    #allocation6 [shape = 'u8[229376]{0}', space=vmem, size = 0x38000, scoped, tag = 'input window, operand 0']
    #allocation7 [shape = 's32[2]{0}', space=sflag, size = 0x8, scoped, tag = 'scoped memory for vgg2l_forward.1']
    #allocation8 [shape = 's32[2]{0}', space=sflag, size = 0x8, scoped, tag = 'scoped memory for vgg2l_forward.1']
    #allocation9 [shape = 'u8[4096]{0}', space=vmem, size = 0x1000, scoped, tag = 'input window, operand 1, single buffered']
    #allocation10 [shape = 's32[1]{0}', space=sflag, size = 0x4, scoped, tag = 'scoped memory for vgg2l_forward.1']
    #allocation11 [shape = 'u8[512]{0}', space=vmem, size = 0x400, scoped, tag = 'input window, operand 2, single buffered']
    #allocation12 [shape = 'u8[147456]{0}', space=vmem, size = 0x24000, scoped, tag = 'input window, operand 3, single buffered']
    #allocation13 [shape = 's32[1]{0}', space=sflag, size = 0x4, scoped, tag = 'scoped memory for vgg2l_forward.1']
    #allocation14 [shape = 'u8[512]{0}', space=vmem, size = 0x400, scoped, tag = 'input window, operand 4, single buffered']
    #allocation15 [shape = 'u8[147456]{0}', space=vmem, size = 0x24000, scoped, tag = 'input window, operand 5, single buffered']
    #allocation16 [shape = 's32[1]{0}', space=sflag, size = 0x4, scoped, tag = 'scoped memory for vgg2l_forward.1']
    #allocation17 [shape = 'u8[512]{0}', space=vmem, size = 0x400, scoped, tag = 'input window, operand 6, single buffered']
    #allocation18 [shape = 'u8[294912]{0}', space=vmem, size = 0x48000, scoped, tag = 'input window, operand 7, single buffered']
    #allocation19 [shape = 's32[1]{0}', space=sflag, size = 0x4, scoped, tag = 'scoped memory for vgg2l_forward.1']
    #allocation20 [shape = 'u8[512]{0}', space=vmem, size = 0x400, scoped, tag = 'input window, operand 8, single buffered']
    #allocation21 [shape = 'u8[131072]{0}', space=vmem, size = 0x20000, scoped, tag = 'input window, operand 9, single buffered']
    #allocation22 [shape = 's32[1]{0}', space=sflag, size = 0x4, scoped, tag = 'scoped memory for vgg2l_forward.1']
    #allocation23 [shape = 'u8[512]{0}', space=vmem, size = 0x400, scoped, tag = 'input window, operand 10, single buffered']
    #allocation24 [shape = 'u8[2048]{0}', space=vmem, size = 0x800, scoped, tag = 'output window, operand 0']
    %16 = vsyncpa [#allocation7], 0
    %s17 = scalar_lea.sflag [#allocation7], 1
    %18 = vsyncpa %s17, 0
    %19 = vsyncpa [#allocation10], 0
    %20 = vsyncpa [#allocation13], 0
    %21 = vsyncpa [#allocation16], 0
    %22 = vsyncpa [#allocation19], 0
    %23 = vsyncpa [#allocation22], 0
    %24 = vsyncpa [#allocation8], 0
    %s25 = scalar_lea.sflag [#allocation8], 1
    %26 = vsyncpa %s25, 0
    loop: start=0, step=1, limit=4
    $region2: #{vgg2l_forward.1} parent=1 // loop_pre_header
      _
    $region3: #{vgg2l_forward.1} parent=1 // loop_header
      %s28 = sphi 0, %s32
      %p29 = scmp.ge.s32.totalorder %s28, 4
      %s35 = sphi 0, %s47
      %s36 = sphi 0, %s43
      %s37 = sphi 0, %s35
      %s38 = sphi 0, %s36
      %s39 = sphi 0, %s37
      %s40 = sphi 0, %s38
      %s52 = sphi 0, %s54
      %s55 = sphi 0, %s52
      %s56 = sphi 0, %s55
      %s72 = sphi 0, %s56
      %s76 = sphi 0, %s76
      %s78 = sphi 0, %s76
      %s79 = sphi 0, %s78
      %s93 = sphi 0, %s79
      %s97 = sphi 0, %s97
      %s99 = sphi 0, %s97
      %s100 = sphi 0, %s99
      %s114 = sphi 0, %s100
      %s118 = sphi 0, %s118
      %s120 = sphi 0, %s118
      %s121 = sphi 0, %s120
      %s135 = sphi 0, %s121
      %s139 = sphi 0, %s139
      %s141 = sphi 0, %s139
      %s142 = sphi 0, %s141
      %s156 = sphi 0, %s142
      %s160 = sphi 0, %s160
      %s162 = sphi 0, %s160
      %s163 = sphi 0, %s162
      %s177 = sphi 0, %s163
      %s181 = sphi 0, %s181
      %s183 = sphi 0, %s181
      %s184 = sphi 0, %s183
      %s198 = sphi 0, %s184
      %s202 = sphi 0, %s202
      %s204 = sphi 0, %s202
      %s205 = sphi 0, %s204
      %s219 = sphi 0, %s205
      %s223 = sphi 0, %s223
      %s225 = sphi 0, %s223
      %s226 = sphi 0, %s225
      %s240 = sphi 0, %s226
      %s244 = sphi 0, %s244
      %s246 = sphi 0, %s244
      %s247 = sphi 0, %s246
      %s261 = sphi 0, %s247
      %s265 = sphi 0, %s265
      %s267 = sphi 0, %s265
      %s268 = sphi 0, %s267
      %s282 = sphi 0, %s268
      %s290 = sphi 0, %s292
      %s293 = sphi 0, %s290
      %s294 = sphi 0, %s293
      %s310 = sphi 0, %s294
    $region4: #{vgg2l_forward.1} parent=1 // loop_header_branch
      %31 = sbr.rel (%p29) target = $region8
    $region5: #{vgg2l_forward.1} parent=1 // loop_body
      %s33 = ssub.s32 %s28, 1
      %s34 = ssub.s32 %s28, 2
      %s41 = sadd.s32 1, %s36
      %p42 = scmp.ge.s32.totalorder %s41, 1
      %s43 = scalar_select %p42, 0, %s41
      %s44 = sadd.s32 1, %s35
      %s45 = scalar_select %p42, %s44, %s35
      %p46 = scmp.ge.s32.totalorder %s45, 2
      %s47 = scalar_select %p46, 0, %s45
      %s48 = ssub.s32 %s35, %s47
      %s49 = ssub.s32 %s36, %s43
      %s50 = sor.u32 %s48, %s49
      %p51 = scmp.eq.s32.totalorder %s50, 0
      %s53 = sadd.s32 %s52, 1
      %s54 = scalar_select %p51, %s52, %s53
      %p57 = pneg %p51
      %p58 = scmp.eq.s32.totalorder %s28, 1
      %p59 = por %p57, %p58
      %p60 = scmp.ne.s32.totalorder %s52, %s55
      %p61 = scmp.eq.s32.totalorder %s28, 0
      %p62 = por %p60, %p61
      %p63 = scmp.ne.s32.totalorder %s52, %s55
      %p64 = scmp.eq.s32.totalorder %s33, 1
      %p65 = por %p63, %p64
      %p66 = scmp.ne.s32.totalorder %s55, %s56
      %p67 = scmp.eq.s32.totalorder %s33, 0
      %p68 = por %p66, %p67
      %p69 = scmp.ne.s32.totalorder %s55, %s56
      %p70 = scmp.eq.s32.totalorder %s34, 1
      %p71 = por %p69, %p70
      %p73 = scmp.ne.s32.totalorder %s56, %s72
      %p74 = scmp.eq.s32.totalorder %s34, 0
      %p75 = por %p73, %p74
      %s77 = sadd.s32 %s76, 1
      %p80 = scmp.eq.s32.totalorder %s28, 1
      %p81 = scmp.ne.s32.totalorder %s76, %s78
      %p82 = scmp.eq.s32.totalorder %s28, 0
      %p83 = por %p81, %p82
      %p84 = scmp.ne.s32.totalorder %s76, %s78
      %p85 = scmp.eq.s32.totalorder %s33, 1
      %p86 = por %p84, %p85
      %p87 = scmp.ne.s32.totalorder %s78, %s79
      %p88 = scmp.eq.s32.totalorder %s33, 0
      %p89 = por %p87, %p88
      %p90 = scmp.ne.s32.totalorder %s78, %s79
      %p91 = scmp.eq.s32.totalorder %s34, 1
      %p92 = por %p90, %p91
      %p94 = scmp.ne.s32.totalorder %s79, %s93
      %p95 = scmp.eq.s32.totalorder %s34, 0
      %p96 = por %p94, %p95
      %s98 = sadd.s32 %s97, 1
      %p101 = scmp.eq.s32.totalorder %s28, 1
      %p102 = scmp.ne.s32.totalorder %s97, %s99
      %p103 = scmp.eq.s32.totalorder %s28, 0
      %p104 = por %p102, %p103
      %p105 = scmp.ne.s32.totalorder %s97, %s99
      %p106 = scmp.eq.s32.totalorder %s33, 1
      %p107 = por %p105, %p106
      %p108 = scmp.ne.s32.totalorder %s99, %s100
      %p109 = scmp.eq.s32.totalorder %s33, 0
      %p110 = por %p108, %p109
      %p111 = scmp.ne.s32.totalorder %s99, %s100
      %p112 = scmp.eq.s32.totalorder %s34, 1
      %p113 = por %p111, %p112
      %p115 = scmp.ne.s32.totalorder %s100, %s114
      %p116 = scmp.eq.s32.totalorder %s34, 0
      %p117 = por %p115, %p116
      %s119 = sadd.s32 %s118, 1
      %p122 = scmp.eq.s32.totalorder %s28, 1
      %p123 = scmp.ne.s32.totalorder %s118, %s120
      %p124 = scmp.eq.s32.totalorder %s28, 0
      %p125 = por %p123, %p124
      %p126 = scmp.ne.s32.totalorder %s118, %s120
      %p127 = scmp.eq.s32.totalorder %s33, 1
      %p128 = por %p126, %p127
      %p129 = scmp.ne.s32.totalorder %s120, %s121
      %p130 = scmp.eq.s32.totalorder %s33, 0
      %p131 = por %p129, %p130
      %p132 = scmp.ne.s32.totalorder %s120, %s121
      %p133 = scmp.eq.s32.totalorder %s34, 1
      %p134 = por %p132, %p133
      %p136 = scmp.ne.s32.totalorder %s121, %s135
      %p137 = scmp.eq.s32.totalorder %s34, 0
      %p138 = por %p136, %p137
      %s140 = sadd.s32 %s139, 1
      %p143 = scmp.eq.s32.totalorder %s28, 1
      %p144 = scmp.ne.s32.totalorder %s139, %s141
      %p145 = scmp.eq.s32.totalorder %s28, 0
      %p146 = por %p144, %p145
      %p147 = scmp.ne.s32.totalorder %s139, %s141
      %p148 = scmp.eq.s32.totalorder %s33, 1
      %p149 = por %p147, %p148
      %p150 = scmp.ne.s32.totalorder %s141, %s142
      %p151 = scmp.eq.s32.totalorder %s33, 0
      %p152 = por %p150, %p151
      %p153 = scmp.ne.s32.totalorder %s141, %s142
      %p154 = scmp.eq.s32.totalorder %s34, 1
      %p155 = por %p153, %p154
      %p157 = scmp.ne.s32.totalorder %s142, %s156
      %p158 = scmp.eq.s32.totalorder %s34, 0
      %p159 = por %p157, %p158
      %s161 = sadd.s32 %s160, 1
      %p164 = scmp.eq.s32.totalorder %s28, 1
      %p165 = scmp.ne.s32.totalorder %s160, %s162
      %p166 = scmp.eq.s32.totalorder %s28, 0
      %p167 = por %p165, %p166
      %p168 = scmp.ne.s32.totalorder %s160, %s162
      %p169 = scmp.eq.s32.totalorder %s33, 1
      %p170 = por %p168, %p169
      %p171 = scmp.ne.s32.totalorder %s162, %s163
      %p172 = scmp.eq.s32.totalorder %s33, 0
      %p173 = por %p171, %p172
      %p174 = scmp.ne.s32.totalorder %s162, %s163
      %p175 = scmp.eq.s32.totalorder %s34, 1
      %p176 = por %p174, %p175
      %p178 = scmp.ne.s32.totalorder %s163, %s177
      %p179 = scmp.eq.s32.totalorder %s34, 0
      %p180 = por %p178, %p179
      %s182 = sadd.s32 %s181, 1
      %p185 = scmp.eq.s32.totalorder %s28, 1
      %p186 = scmp.ne.s32.totalorder %s181, %s183
      %p187 = scmp.eq.s32.totalorder %s28, 0
      %p188 = por %p186, %p187
      %p189 = scmp.ne.s32.totalorder %s181, %s183
      %p190 = scmp.eq.s32.totalorder %s33, 1
      %p191 = por %p189, %p190
      %p192 = scmp.ne.s32.totalorder %s183, %s184
      %p193 = scmp.eq.s32.totalorder %s33, 0
      %p194 = por %p192, %p193
      %p195 = scmp.ne.s32.totalorder %s183, %s184
      %p196 = scmp.eq.s32.totalorder %s34, 1
      %p197 = por %p195, %p196
      %p199 = scmp.ne.s32.totalorder %s184, %s198
      %p200 = scmp.eq.s32.totalorder %s34, 0
      %p201 = por %p199, %p200
      %s203 = sadd.s32 %s202, 1
      %p206 = scmp.eq.s32.totalorder %s28, 1
      %p207 = scmp.ne.s32.totalorder %s202, %s204
      %p208 = scmp.eq.s32.totalorder %s28, 0
      %p209 = por %p207, %p208
      %p210 = scmp.ne.s32.totalorder %s202, %s204
      %p211 = scmp.eq.s32.totalorder %s33, 1
      %p212 = por %p210, %p211
      %p213 = scmp.ne.s32.totalorder %s204, %s205
      %p214 = scmp.eq.s32.totalorder %s33, 0
      %p215 = por %p213, %p214
      %p216 = scmp.ne.s32.totalorder %s204, %s205
      %p217 = scmp.eq.s32.totalorder %s34, 1
      %p218 = por %p216, %p217
      %p220 = scmp.ne.s32.totalorder %s205, %s219
      %p221 = scmp.eq.s32.totalorder %s34, 0
      %p222 = por %p220, %p221
      %s224 = sadd.s32 %s223, 1
      %p227 = scmp.eq.s32.totalorder %s28, 1
      %p228 = scmp.ne.s32.totalorder %s223, %s225
      %p229 = scmp.eq.s32.totalorder %s28, 0
      %p230 = por %p228, %p229
      %p231 = scmp.ne.s32.totalorder %s223, %s225
      %p232 = scmp.eq.s32.totalorder %s33, 1
      %p233 = por %p231, %p232
      %p234 = scmp.ne.s32.totalorder %s225, %s226
      %p235 = scmp.eq.s32.totalorder %s33, 0
      %p236 = por %p234, %p235
      %p237 = scmp.ne.s32.totalorder %s225, %s226
      %p238 = scmp.eq.s32.totalorder %s34, 1
      %p239 = por %p237, %p238
      %p241 = scmp.ne.s32.totalorder %s226, %s240
      %p242 = scmp.eq.s32.totalorder %s34, 0
      %p243 = por %p241, %p242
      %s245 = sadd.s32 %s244, 1
      %p248 = scmp.eq.s32.totalorder %s28, 1
      %p249 = scmp.ne.s32.totalorder %s244, %s246
      %p250 = scmp.eq.s32.totalorder %s28, 0
      %p251 = por %p249, %p250
      %p252 = scmp.ne.s32.totalorder %s244, %s246
      %p253 = scmp.eq.s32.totalorder %s33, 1
      %p254 = por %p252, %p253
      %p255 = scmp.ne.s32.totalorder %s246, %s247
      %p256 = scmp.eq.s32.totalorder %s33, 0
      %p257 = por %p255, %p256
      %p258 = scmp.ne.s32.totalorder %s246, %s247
      %p259 = scmp.eq.s32.totalorder %s34, 1
      %p260 = por %p258, %p259
      %p262 = scmp.ne.s32.totalorder %s247, %s261
      %p263 = scmp.eq.s32.totalorder %s34, 0
      %p264 = por %p262, %p263
      %s266 = sadd.s32 %s265, 1
      %p269 = scmp.eq.s32.totalorder %s28, 1
      %p270 = scmp.ne.s32.totalorder %s265, %s267
      %p271 = scmp.eq.s32.totalorder %s28, 0
      %p272 = por %p270, %p271
      %p273 = scmp.ne.s32.totalorder %s265, %s267
      %p274 = scmp.eq.s32.totalorder %s33, 1
      %p275 = por %p273, %p274
      %p276 = scmp.ne.s32.totalorder %s267, %s268
      %p277 = scmp.eq.s32.totalorder %s33, 0
      %p278 = por %p276, %p277
      %p279 = scmp.ne.s32.totalorder %s267, %s268
      %p280 = scmp.eq.s32.totalorder %s34, 1
      %p281 = por %p279, %p280
      %p283 = scmp.ne.s32.totalorder %s268, %s282
      %p284 = scmp.eq.s32.totalorder %s34, 0
      %p285 = por %p283, %p284
      %s286 = ssub.s32 %s35, %s47
      %s287 = ssub.s32 %s36, %s43
      %s288 = sor.u32 %s286, %s287
      %p289 = scmp.eq.s32.totalorder %s288, 0
      %s291 = sadd.s32 %s290, 1
      %s292 = scalar_select %p289, %s290, %s291
      %p295 = pneg %p289
      %p296 = scmp.eq.s32.totalorder %s28, 1
      %p297 = por %p295, %p296
      %p298 = scmp.ne.s32.totalorder %s290, %s293
      %p299 = scmp.eq.s32.totalorder %s28, 0
      %p300 = por %p298, %p299
      %p301 = scmp.ne.s32.totalorder %s290, %s293
      %p302 = scmp.eq.s32.totalorder %s33, 1
      %p303 = por %p301, %p302
      %p304 = scmp.ne.s32.totalorder %s293, %s294
      %p305 = scmp.eq.s32.totalorder %s33, 0
      %p306 = por %p304, %p305
      %p307 = scmp.ne.s32.totalorder %s293, %s294
      %p308 = scmp.eq.s32.totalorder %s34, 1
      %p309 = por %p307, %p308
      %p311 = scmp.ne.s32.totalorder %s294, %s310
      %p312 = scmp.eq.s32.totalorder %s34, 0
      %p313 = por %p311, %p312
      %p314 = scmp.le.s32.totalorder 1, %s28
      %p315 = scmp.lt.s32.totalorder %s28, 3
      %p316 = pnand %p314, %p315
      %p317 = pneg %p316
      // Predicated region
      $region9: #{vgg2l_forward.1} parent=5 // pred_check
        _
      $region10: #{vgg2l_forward.1} parent=5 // pred_check_branch
        %319 = sbr.rel (%p316) target = $region12
      $region11: #{vgg2l_forward.1} parent=5 // pred_region
        %s320 = ssub.s32 %s28, 1
        // Predicated region
        $region13: #{vgg2l_forward.1} parent=11 // pred_check
          %p321 = pneg %p89
        $region14: #{vgg2l_forward.1} parent=11 // pred_check_branch
          %323 = sbr.rel (%p321) target = $region16
        $region15: #{vgg2l_forward.1} parent=11 // pred_region
          %s325 = ssub.s32 128, 128
          %326 = vsyncadd [#allocation10], %s325
          %s327 = sshll.u32 [#allocation9], 4
          %s328 = int_to_ptr.vmem [resolvable:$true] %s327
          %333 = dma.hbm_to_vmem [thread:$0]  %s1, 128, %s328, [#allocation10], 64, 64, 4
        $region16: #{vgg2l_forward.1} parent=11 // pred_fallthru
          _
        // Predicated region
        $region17: #{vgg2l_forward.1} parent=11 // pred_check
          %p334 = pneg %p110
        $region18: #{vgg2l_forward.1} parent=11 // pred_check_branch
          %336 = sbr.rel (%p334) target = $region20
        $region19: #{vgg2l_forward.1} parent=11 // pred_region
          %s338 = ssub.s32 16, 16
          %339 = vsyncadd [#allocation10], %s338
          %s341 = sshll.u32 [#allocation11], 4
          %s342 = int_to_ptr.vmem [resolvable:$true] %s341
          %344 = dma.hbm_to_vmem [thread:$0]  %s2, 16, %s342, [#allocation10]
        $region20: #{vgg2l_forward.1} parent=11 // pred_fallthru
          _
        // Predicated region
        $region21: #{vgg2l_forward.1} parent=11 // pred_check
          %p345 = pneg %p131
        $region22: #{vgg2l_forward.1} parent=11 // pred_check_branch
          %347 = sbr.rel (%p345) target = $region24
        $region23: #{vgg2l_forward.1} parent=11 // pred_region
          %s349 = ssub.s32 4608, 4608
          %350 = vsyncadd [#allocation13], %s349
          %s351 = sshll.u32 [#allocation12], 4
          %s352 = int_to_ptr.vmem [resolvable:$true] %s351
          %357 = dma.hbm_to_vmem [thread:$0]  %s3, 4608, %s352, [#allocation13], 64, 64, 4
        $region24: #{vgg2l_forward.1} parent=11 // pred_fallthru
          _
        // Predicated region
        $region25: #{vgg2l_forward.1} parent=11 // pred_check
          %p358 = pneg %p152
        $region26: #{vgg2l_forward.1} parent=11 // pred_check_branch
          %360 = sbr.rel (%p358) target = $region28
        $region27: #{vgg2l_forward.1} parent=11 // pred_region
          %s362 = ssub.s32 16, 16
          %363 = vsyncadd [#allocation13], %s362
          %s365 = sshll.u32 [#allocation14], 4
          %s366 = int_to_ptr.vmem [resolvable:$true] %s365
          %368 = dma.hbm_to_vmem [thread:$0]  %s4, 16, %s366, [#allocation13]
        $region28: #{vgg2l_forward.1} parent=11 // pred_fallthru
          _
        // Predicated region
        $region29: #{vgg2l_forward.1} parent=11 // pred_check
          %p369 = pneg %p173
        $region30: #{vgg2l_forward.1} parent=11 // pred_check_branch
          %371 = sbr.rel (%p369) target = $region32
        $region31: #{vgg2l_forward.1} parent=11 // pred_region
          %s373 = ssub.s32 4608, 4608
          %374 = vsyncadd [#allocation16], %s373
          %s375 = sshll.u32 [#allocation15], 4
          %s376 = int_to_ptr.vmem [resolvable:$true] %s375
          %381 = dma.hbm_to_vmem [thread:$0]  %s5, 4608, %s376, [#allocation16], 64, 64, 4
        $region32: #{vgg2l_forward.1} parent=11 // pred_fallthru
          _
        // Predicated region
        $region33: #{vgg2l_forward.1} parent=11 // pred_check
          %p382 = pneg %p194
        $region34: #{vgg2l_forward.1} parent=11 // pred_check_branch
          %384 = sbr.rel (%p382) target = $region36
        $region35: #{vgg2l_forward.1} parent=11 // pred_region
          %s386 = ssub.s32 16, 16
          %387 = vsyncadd [#allocation16], %s386
          %s389 = sshll.u32 [#allocation17], 4
          %s390 = int_to_ptr.vmem [resolvable:$true] %s389
          %392 = dma.hbm_to_vmem [thread:$0]  %s6, 16, %s390, [#allocation16]
        $region36: #{vgg2l_forward.1} parent=11 // pred_fallthru
          _
        // Predicated region
        $region37: #{vgg2l_forward.1} parent=11 // pred_check
          %p393 = pneg %p215
        $region38: #{vgg2l_forward.1} parent=11 // pred_check_branch
          %395 = sbr.rel (%p393) target = $region40
        $region39: #{vgg2l_forward.1} parent=11 // pred_region
          %s397 = ssub.s32 9216, 9216
          %398 = vsyncadd [#allocation19], %s397
          %s399 = sshll.u32 [#allocation18], 4
          %s400 = int_to_ptr.vmem [resolvable:$true] %s399
          %405 = dma.hbm_to_vmem [thread:$0]  %s7, 9216, %s400, [#allocation19], 64, 64, 4
        $region40: #{vgg2l_forward.1} parent=11 // pred_fallthru
          _
        // Predicated region
        $region41: #{vgg2l_forward.1} parent=11 // pred_check
          %p406 = pneg %p236
        $region42: #{vgg2l_forward.1} parent=11 // pred_check_branch
          %408 = sbr.rel (%p406) target = $region44
        $region43: #{vgg2l_forward.1} parent=11 // pred_region
          %s410 = ssub.s32 16, 16
          %411 = vsyncadd [#allocation19], %s410
          %s413 = sshll.u32 [#allocation20], 4
          %s414 = int_to_ptr.vmem [resolvable:$true] %s413
          %416 = dma.hbm_to_vmem [thread:$0]  %s8, 16, %s414, [#allocation19]
        $region44: #{vgg2l_forward.1} parent=11 // pred_fallthru
          _
        // Predicated region
        $region45: #{vgg2l_forward.1} parent=11 // pred_check
          %p417 = pneg %p257
        $region46: #{vgg2l_forward.1} parent=11 // pred_check_branch
          %419 = sbr.rel (%p417) target = $region48
        $region47: #{vgg2l_forward.1} parent=11 // pred_region
          %s421 = ssub.s32 4096, 4096
          %422 = vsyncadd [#allocation22], %s421
          %s423 = sshll.u32 [#allocation21], 4
          %s424 = int_to_ptr.vmem [resolvable:$true] %s423
          %429 = dma.hbm_to_vmem [thread:$0]  %s9, 4096, %s424, [#allocation22], 64, 64, 4
        $region48: #{vgg2l_forward.1} parent=11 // pred_fallthru
          _
        // Predicated region
        $region49: #{vgg2l_forward.1} parent=11 // pred_check
          %p430 = pneg %p278
        $region50: #{vgg2l_forward.1} parent=11 // pred_check_branch
          %432 = sbr.rel (%p430) target = $region52
        $region51: #{vgg2l_forward.1} parent=11 // pred_region
          %s434 = ssub.s32 16, 16
          %435 = vsyncadd [#allocation22], %s434
          %s437 = sshll.u32 [#allocation23], 4
          %s438 = int_to_ptr.vmem [resolvable:$true] %s437
          %440 = dma.hbm_to_vmem [thread:$0]  %s10, 16, %s438, [#allocation22]
        $region52: #{vgg2l_forward.1} parent=11 // pred_fallthru
          _
      $region12: #{vgg2l_forward.1} parent=5 // pred_fallthru
        _
      %p441 = scmp.lt.s32.totalorder %s28, 2
      // Predicated region
      $region53: #{vgg2l_forward.1} parent=5 // pred_check
        %p442 = pneg %p441
      $region54: #{vgg2l_forward.1} parent=5 // pred_check_branch
        %444 = sbr.rel (%p442) target = $region56
      $region55: #{vgg2l_forward.1} parent=5 // pred_region
        // Predicated region
        $region57: #{vgg2l_forward.1} parent=55 // pred_check
          %p445 = pneg %p62
        $region58: #{vgg2l_forward.1} parent=55 // pred_check_branch
          %447 = sbr.rel (%p445) target = $region60
        $region59: #{vgg2l_forward.1} parent=55 // pred_region
          %s448 = sand.u32 %s52, 1
          %s449 = scalar_lea.sflag [#allocation7], %s448
          %s450 = sand.u32 %s52, 1
          %s451 = smul.addr %s450, 224
          %s452 = scalar_lea.vmem [#allocation6], %s451
          %s454 = ssub.s32 3584, 3584
          %455 = vsyncadd %s449, %s454
          %s456 = smul.addr %s36, 56
          %s457 = smul.addr %s35, 56
          %s458 = sadd.s32 %s456, %s457
          %s459 = smul.addr %s458, 64
          %s460 = scalar_lea.hbm %s0, %s459
          %s461 = sshll.u32 %s452, 4
          %s462 = int_to_ptr.vmem [resolvable:$true] %s461
          %467 = dma.hbm_to_vmem [thread:$0]  %s460, 3584, %s462, %s449, 64, 64, 4
        $region60: #{vgg2l_forward.1} parent=55 // pred_fallthru
          _
      $region56: #{vgg2l_forward.1} parent=5 // pred_fallthru
        _
      %p468 = scmp.le.s32.totalorder 1, %s28
      %p469 = scmp.lt.s32.totalorder %s28, 3
      %p470 = pnand %p468, %p469
      %p471 = pneg %p470
      // Predicated region
      $region61: #{vgg2l_forward.1} parent=5 // pred_check
        _
      $region62: #{vgg2l_forward.1} parent=5 // pred_check_branch
        %473 = sbr.rel (%p470) target = $region64
      $region63: #{vgg2l_forward.1} parent=5 // pred_region
        %s474 = ssub.s32 %s28, 1
        %s475 = sand.u32 %s55, 1
        %s476 = scalar_lea.sflag [#allocation7], %s475
        %s477 = sand.u32 %s55, 1
        %s478 = smul.addr %s477, 224
        %s479 = scalar_lea.vmem [#allocation6], %s478
        // Predicated region
        $region65: #{vgg2l_forward.1} parent=63 // pred_check
          %p480 = pneg %p68
        $region66: #{vgg2l_forward.1} parent=63 // pred_check_branch
          %482 = sbr.rel (%p480) target = $region68
        $region67: #{vgg2l_forward.1} parent=63 // pred_region
          %483 = dma.done %s476, 3584
        $region68: #{vgg2l_forward.1} parent=63 // pred_fallthru
          _
        // Predicated region
        $region69: #{vgg2l_forward.1} parent=63 // pred_check
          %p484 = pneg %p89
        $region70: #{vgg2l_forward.1} parent=63 // pred_check_branch
          %486 = sbr.rel (%p484) target = $region72
        $region71: #{vgg2l_forward.1} parent=63 // pred_region
          %487 = dma.done [#allocation10], 128
        $region72: #{vgg2l_forward.1} parent=63 // pred_fallthru
          _
        // Predicated region
        $region73: #{vgg2l_forward.1} parent=63 // pred_check
          %p488 = pneg %p110
        $region74: #{vgg2l_forward.1} parent=63 // pred_check_branch
          %490 = sbr.rel (%p488) target = $region76
        $region75: #{vgg2l_forward.1} parent=63 // pred_region
          %491 = dma.done [#allocation10], 16
        $region76: #{vgg2l_forward.1} parent=63 // pred_fallthru
          _
        // Predicated region
        $region77: #{vgg2l_forward.1} parent=63 // pred_check
          %p492 = pneg %p131
        $region78: #{vgg2l_forward.1} parent=63 // pred_check_branch
          %494 = sbr.rel (%p492) target = $region80
        $region79: #{vgg2l_forward.1} parent=63 // pred_region
          %495 = dma.done [#allocation13], 4608
        $region80: #{vgg2l_forward.1} parent=63 // pred_fallthru
          _
        // Predicated region
        $region81: #{vgg2l_forward.1} parent=63 // pred_check
          %p496 = pneg %p152
        $region82: #{vgg2l_forward.1} parent=63 // pred_check_branch
          %498 = sbr.rel (%p496) target = $region84
        $region83: #{vgg2l_forward.1} parent=63 // pred_region
          %499 = dma.done [#allocation13], 16
        $region84: #{vgg2l_forward.1} parent=63 // pred_fallthru
          _
        // Predicated region
        $region85: #{vgg2l_forward.1} parent=63 // pred_check
          %p500 = pneg %p173
        $region86: #{vgg2l_forward.1} parent=63 // pred_check_branch
          %502 = sbr.rel (%p500) target = $region88
        $region87: #{vgg2l_forward.1} parent=63 // pred_region
          %503 = dma.done [#allocation16], 4608
        $region88: #{vgg2l_forward.1} parent=63 // pred_fallthru
          _
        // Predicated region
        $region89: #{vgg2l_forward.1} parent=63 // pred_check
          %p504 = pneg %p194
        $region90: #{vgg2l_forward.1} parent=63 // pred_check_branch
          %506 = sbr.rel (%p504) target = $region92
        $region91: #{vgg2l_forward.1} parent=63 // pred_region
          %507 = dma.done [#allocation16], 16
        $region92: #{vgg2l_forward.1} parent=63 // pred_fallthru
          _
        // Predicated region
        $region93: #{vgg2l_forward.1} parent=63 // pred_check
          %p508 = pneg %p215
        $region94: #{vgg2l_forward.1} parent=63 // pred_check_branch
          %510 = sbr.rel (%p508) target = $region96
        $region95: #{vgg2l_forward.1} parent=63 // pred_region
          %511 = dma.done [#allocation19], 9216
        $region96: #{vgg2l_forward.1} parent=63 // pred_fallthru
          _
        // Predicated region
        $region97: #{vgg2l_forward.1} parent=63 // pred_check
          %p512 = pneg %p236
        $region98: #{vgg2l_forward.1} parent=63 // pred_check_branch
          %514 = sbr.rel (%p512) target = $region100
        $region99: #{vgg2l_forward.1} parent=63 // pred_region
          %515 = dma.done [#allocation19], 16
        $region100: #{vgg2l_forward.1} parent=63 // pred_fallthru
          _
        // Predicated region
        $region101: #{vgg2l_forward.1} parent=63 // pred_check
          %p516 = pneg %p257
        $region102: #{vgg2l_forward.1} parent=63 // pred_check_branch
          %518 = sbr.rel (%p516) target = $region104
        $region103: #{vgg2l_forward.1} parent=63 // pred_region
          %519 = dma.done [#allocation22], 4096
        $region104: #{vgg2l_forward.1} parent=63 // pred_fallthru
          _
        // Predicated region
        $region105: #{vgg2l_forward.1} parent=63 // pred_check
          %p520 = pneg %p278
        $region106: #{vgg2l_forward.1} parent=63 // pred_check_branch
          %522 = sbr.rel (%p520) target = $region108
        $region107: #{vgg2l_forward.1} parent=63 // pred_region
          %523 = dma.done [#allocation22], 16
        $region108: #{vgg2l_forward.1} parent=63 // pred_fallthru
          _
        %s524 = sand.u32 %s55, 1
        %s525 = scalar_lea.sflag [#allocation7], %s524
        %s526 = sand.u32 %s55, 1
        %s527 = smul.addr %s526, 224
        %s528 = scalar_lea.vmem [#allocation6], %s527
        %p529 = pneg %p68
        %p530 = pneg %p65
        %p531 = pneg %p89
        %p532 = pneg %p86
        %p533 = pneg %p110
        %p534 = pneg %p107
        %p535 = pneg %p131
        %p536 = pneg %p128
        %p537 = pneg %p152
        %p538 = pneg %p149
        %p539 = pneg %p173
        %p540 = pneg %p170
        %p541 = pneg %p194
        %p542 = pneg %p191
        %p543 = pneg %p215
        %p544 = pneg %p212
        %p545 = pneg %p236
        %p546 = pneg %p233
        %p547 = pneg %p257
        %p548 = pneg %p254
        %p549 = pneg %p278
        %p550 = pneg %p275
        %p551 = pneg %p306
        %p552 = pneg %p303
        %s553 = sand.u32 %s293, 1
        %s554 = scalar_lea.sflag [#allocation8], %s553
        %s555 = sand.u32 %s293, 1
        %s556 = smul.addr %s555, 2
        %s557 = scalar_lea.vmem [#allocation24], %s556
        %v559 = vld [vmem:[%s479] sm:$0xf]
        %v560 = vld [vmem:[%s479 + $0x4] sm:$0xf]
        %v561 = vld [vmem:[%s479 + $0x8] sm:$0xf]
        %v562 = vld [vmem:[%s479 + $0xc] sm:$0xf]
        %v563 = vld [vmem:[%s479 + $0x10] sm:$0xf]
        %v564 = vld [vmem:[%s479 + $0x14] sm:$0xf]
        %v565 = vld [vmem:[%s479 + $0x18] sm:$0xf]
        %v566 = vld [vmem:[%s479 + $0x1c] sm:$0xf]
        %v567 = vld [vmem:[%s479 + $0x20] sm:$0xf]
        %v568 = vld [vmem:[%s479 + $0x24] sm:$0xf]
        %v569 = vld [vmem:[%s479 + $0x28] sm:$0xf]
        %v570 = vld [vmem:[%s479 + $0x2c] sm:$0xf]
        %v571 = vld [vmem:[%s479 + $0x30] sm:$0xf]
        %v572 = vld [vmem:[%s479 + $0x34] sm:$0xf]
        %v573 = vld [vmem:[%s479 + $0x38] sm:$0xf]
        %v574 = vld [vmem:[%s479 + $0x3c] sm:$0xf]
        %v575 = vld [vmem:[%s479 + $0x40] sm:$0xf]
        %v576 = vld [vmem:[%s479 + $0x44] sm:$0xf]
        %v577 = vld [vmem:[%s479 + $0x48] sm:$0xf]
        %v578 = vld [vmem:[%s479 + $0x4c] sm:$0xf]
        %v579 = vld [vmem:[%s479 + $0x50] sm:$0xf]
        %v580 = vld [vmem:[%s479 + $0x54] sm:$0xf]
        %v581 = vld [vmem:[%s479 + $0x58] sm:$0xf]
        %v582 = vld [vmem:[%s479 + $0x5c] sm:$0xf]
        %v583 = vld [vmem:[%s479 + $0x60] sm:$0xf]
        %v584 = vld [vmem:[%s479 + $0x64] sm:$0xf]
        %v585 = vld [vmem:[%s479 + $0x68] sm:$0xf]
        %v586 = vld [vmem:[%s479 + $0x6c] sm:$0xf]
        %v587 = vld [vmem:[%s479 + $0x70] sm:$0xf]
        %v588 = vld [vmem:[%s479 + $0x74] sm:$0xf]
        %v589 = vld [vmem:[%s479 + $0x78] sm:$0xf]
        %v590 = vld [vmem:[%s479 + $0x7c] sm:$0xf]
        %v591 = vld [vmem:[%s479 + $0x80] sm:$0xf]
        %v592 = vld [vmem:[%s479 + $0x84] sm:$0xf]
        %v593 = vld [vmem:[%s479 + $0x88] sm:$0xf]
        %v594 = vld [vmem:[%s479 + $0x8c] sm:$0xf]
        %v595 = vld [vmem:[%s479 + $0x90] sm:$0xf]
        %v596 = vld [vmem:[%s479 + $0x94] sm:$0xf]
        %v597 = vld [vmem:[%s479 + $0x98] sm:$0xf]
        %v598 = vld [vmem:[%s479 + $0x9c] sm:$0xf]
        %v599 = vld [vmem:[%s479 + $0xa0] sm:$0xf]
        %v600 = vld [vmem:[%s479 + $0xa4] sm:$0xf]
        %v601 = vld [vmem:[%s479 + $0xa8] sm:$0xf]
        %v602 = vld [vmem:[%s479 + $0xac] sm:$0xf]
        %v603 = vld [vmem:[%s479 + $0xb0] sm:$0xf]
        %v604 = vld [vmem:[%s479 + $0xb4] sm:$0xf]
        %v605 = vld [vmem:[%s479 + $0xb8] sm:$0xf]
        %v606 = vld [vmem:[%s479 + $0xbc] sm:$0xf]
        %v607 = vld [vmem:[%s479 + $0xc0] sm:$0xf]
        %v608 = vld [vmem:[%s479 + $0xc4] sm:$0xf]
        %v609 = vld [vmem:[%s479 + $0xc8] sm:$0xf]
        %v610 = vld [vmem:[%s479 + $0xcc] sm:$0xf]
        %v611 = vld [vmem:[%s479 + $0xd0] sm:$0xf]
        %v612 = vld [vmem:[%s479 + $0xd4] sm:$0xf]
        %v613 = vld [vmem:[%s479 + $0xd8] sm:$0xf]
        %v614 = vld [vmem:[%s479 + $0xdc] sm:$0xf]
        %v615 = vld [vmem:[#allocation9] sm:$0xf]
        %v616 = vld [vmem:[#allocation9 + $0x4] sm:$0x1]
        %v617 = vld [vmem:[#allocation11] sm:$0x1]
        %v619 = vlaneseq
        %v620 = vshrl.u32 %v619, 7
        %v621 = vsub.s32 0, %v620
        %v622 = vrot.slane %v617, %v621
        %v680 = vunpack.c.l.b16 %v559
        %v681 = vunpack.c.l.b16 %v560
        %v682 = vunpack.c.l.b16 %v561
        %v683 = vunpack.c.l.b16 %v562
        %v684 = vunpack.c.l.b16 %v563
        %v685 = vunpack.c.l.b16 %v564
        %v686 = vunpack.c.l.b16 %v565
        %v687 = vunpack.c.l.b16 %v566
        %v688 = vunpack.c.l.b16 %v567
        %v689 = vunpack.c.l.b16 %v568
        %v690 = vunpack.c.l.b16 %v569
        %v691 = vunpack.c.l.b16 %v570
        %v692 = vunpack.c.l.b16 %v571
        %v693 = vunpack.c.l.b16 %v572
        %v694 = vunpack.c.l.b16 %v573
        %v695 = vunpack.c.l.b16 %v574
        %v696 = vunpack.c.l.b16 %v575
        %v697 = vunpack.c.l.b16 %v576
        %v698 = vunpack.c.l.b16 %v577
        %v699 = vunpack.c.l.b16 %v578
        %v700 = vunpack.c.l.b16 %v579
        %v701 = vunpack.c.l.b16 %v580
        %v702 = vunpack.c.l.b16 %v581
        %v703 = vunpack.c.l.b16 %v582
        %v704 = vunpack.c.l.b16 %v583
        %v705 = vunpack.c.l.b16 %v584
        %v706 = vunpack.c.l.b16 %v585
        %v707 = vunpack.c.l.b16 %v586
        %v708 = vunpack.c.l.b16 %v587
        %v709 = vunpack.c.l.b16 %v588
        %v710 = vunpack.c.l.b16 %v589
        %v711 = vunpack.c.l.b16 %v590
        %v712 = vunpack.c.l.b16 %v591
        %v713 = vunpack.c.l.b16 %v592
        %v714 = vunpack.c.l.b16 %v593
        %v715 = vunpack.c.l.b16 %v594
        %v716 = vunpack.c.l.b16 %v595
        %v717 = vunpack.c.l.b16 %v596
        %v718 = vunpack.c.l.b16 %v597
        %v719 = vunpack.c.l.b16 %v598
        %v720 = vunpack.c.l.b16 %v599
        %v721 = vunpack.c.l.b16 %v600
        %v722 = vunpack.c.l.b16 %v601
        %v723 = vunpack.c.l.b16 %v602
        %v724 = vunpack.c.l.b16 %v603
        %v725 = vunpack.c.l.b16 %v604
        %v726 = vunpack.c.l.b16 %v605
        %v727 = vunpack.c.l.b16 %v606
        %v728 = vunpack.c.l.b16 %v607
        %v729 = vunpack.c.l.b16 %v608
        %v730 = vunpack.c.l.b16 %v609
        %v731 = vunpack.c.l.b16 %v610
        %v732 = vunpack.c.l.b16 %v611
        %v733 = vunpack.c.l.b16 %v612
        %v734 = vunpack.c.l.b16 %v613
        %v735 = vunpack.c.l.b16 %v614
        %v736 = vpack.c.b16 %v681, %v680
        %v737 = vpack.c.b16 %v683, %v682
        %v738 = vpack.c.b16 %v685, %v684
        %v739 = vpack.c.b16 %v687, %v686
        %v740 = vpack.c.b16 %v689, %v688
        %v741 = vpack.c.b16 %v691, %v690
        %v742 = vpack.c.b16 %v693, %v692
        %v743 = vpack.c.b16 %v695, %v694
        %v744 = vpack.c.b16 %v697, %v696
        %v745 = vpack.c.b16 %v699, %v698
        %v746 = vpack.c.b16 %v701, %v700
        %v747 = vpack.c.b16 %v703, %v702
        %v748 = vpack.c.b16 %v705, %v704
        %v749 = vpack.c.b16 %v707, %v706
        %v750 = vpack.c.b16 %v709, %v708
        %v751 = vpack.c.b16 %v711, %v710
        %v752 = vpack.c.b16 %v713, %v712
        %v753 = vpack.c.b16 %v715, %v714
        %v754 = vpack.c.b16 %v717, %v716
        %v755 = vpack.c.b16 %v719, %v718
        %v756 = vpack.c.b16 %v721, %v720
        %v757 = vpack.c.b16 %v723, %v722
        %v758 = vpack.c.b16 %v725, %v724
        %v759 = vpack.c.b16 %v727, %v726
        %v760 = vpack.c.b16 %v729, %v728
        %v761 = vpack.c.b16 %v731, %v730
        %v762 = vpack.c.b16 %v733, %v732
        %v763 = vpack.c.b16 %v735, %v734
        %v766 = vunpack.c.l.b16 %v615
        %v767 = vunpack.c.l.b16 %v616
        %v768 = vpack.c.b16 %v767, %v766
        %vm769 = vcmask 72704
        %v771 = vsel %vm769, %v736, 0
        %v774 = vsel %vm769, %v737, 0
        %v777 = vsel %vm769, %v738, 0
        %v780 = vsel %vm769, %v739, 0
        %v783 = vsel %vm769, %v740, 0
        %v786 = vsel %vm769, %v741, 0
        %v789 = vsel %vm769, %v742, 0
        %v792 = vsel %vm769, %v743, 0
        %v795 = vsel %vm769, %v744, 0
        %v798 = vsel %vm769, %v745, 0
        %v801 = vsel %vm769, %v746, 0
        %v804 = vsel %vm769, %v747, 0
        %v807 = vsel %vm769, %v748, 0
        %v810 = vsel %vm769, %v749, 0
        %v813 = vsel %vm769, %v750, 0
        %v816 = vsel %vm769, %v751, 0
        %v819 = vsel %vm769, %v752, 0
        %v822 = vsel %vm769, %v753, 0
        %v825 = vsel %vm769, %v754, 0
        %v828 = vsel %vm769, %v755, 0
        %v831 = vsel %vm769, %v756, 0
        %v834 = vsel %vm769, %v757, 0
        %v837 = vsel %vm769, %v758, 0
        %v840 = vsel %vm769, %v759, 0
        %v843 = vsel %vm769, %v760, 0
        %v846 = vsel %vm769, %v761, 0
        %v849 = vsel %vm769, %v762, 0
        %v852 = vsel %vm769, %v763, 0
        %vm854 = vcmask 1043456
        %vm855 = vcmask 1044480
        %v856 = vsel %vm854, 4294967295, 65535
        %v857 = vsel %vm855, %v856, 0
        %v859 = vand.u32 %v768, %v857
        %861 = vmatprep.subr.bf16.mxu0 0
        %862 = vmatpush1.bf16.msra.mxu0 %v859
        %863 = vmatprep.subr.bf16.mxu0 0
        %864 = vmatpush1.bf16.msra.mxu0 0
        %865 = vmatprep.subr.bf16.mxu0 0
        %866 = vmatpush1.bf16.msra.mxu0 0
        %867 = vmatprep.subr.bf16.mxu0 0
        %868 = vmatpush1.bf16.msra.mxu0 0
        %869 = vmatprep.subr.bf16.mxu0 0
        %870 = vmatpush1.bf16.msra.mxu0 0
        %871 = vmatprep.subr.bf16.mxu0 0
        %872 = vmatpush1.bf16.msra.mxu0 0
        %873 = vmatprep.subr.bf16.mxu0 0
        %874 = vmatpush1.bf16.msra.mxu0 0
        %875 = vmatprep.subr.bf16.mxu0 0
        %876 = vmatpush1.bf16.msra.mxu0 0
        %877 = vmatprep.subr.bf16.mxu0 0
        %878 = vmatpush1.bf16.msra.mxu0 0
        %879 = vmatprep.subr.bf16.mxu0 0
        %880 = vmatpush1.bf16.msra.mxu0 0
        %881 = vmatprep.subr.bf16.mxu0 0
        %882 = vmatpush1.bf16.msra.mxu0 0
        %883 = vmatprep.subr.bf16.mxu0 0
        %884 = vmatpush1.bf16.msra.mxu0 0
        %885 = vmatprep.subr.bf16.mxu0 0
        %886 = vmatpush1.bf16.msra.mxu0 0
        %887 = vmatprep.subr.bf16.mxu0 0
        %888 = vmatpush1.bf16.msra.mxu0 0
        %889 = vmatprep.subr.bf16.mxu0 0
        %890 = vmatpush1.bf16.msra.mxu0 0
        %891 = vmatprep.subr.bf16.mxu0 0
        %892 = vmatpush1.bf16.msra.mxu0 0
        %893 = vmatprep.mubr.bf16.mxu0 0
        %894 = vmatmul.mubr.bf16.gmra.mrb[0].mxu0 %v771
        %v895 = vpop.f32.mrb[0].mxu0
        %v896 = vadd.f32 %v622, %v895
        %v897 = vpop.f32.mrb[0].mxu0
        %v898 = vpop.f32.mrb[0].mxu0
        %v899 = vadd.f32 %v622, %v898
        %v900 = vpop.f32.mrb[0].mxu0
        %901 = vmatprep.mubr.bf16.mxu0 0
        %902 = vmatmul.mubr.bf16.gmra.mrb[0].mxu0 %v774
        %v903 = vpop.f32.mrb[0].mxu0
        %v904 = vadd.f32 %v622, %v903
        %v905 = vpop.f32.mrb[0].mxu0
        %v906 = vpop.f32.mrb[0].mxu0
        %v907 = vadd.f32 %v622, %v906
        %v908 = vpop.f32.mrb[0].mxu0
        %909 = vmatprep.mubr.bf16.mxu0 0
        %910 = vmatmul.mubr.bf16.gmra.mrb[0].mxu0 %v777
        %v911 = vpop.f32.mrb[0].mxu0
        %v912 = vadd.f32 %v622, %v911
        %v913 = vpop.f32.mrb[0].mxu0
        %v914 = vpop.f32.mrb[0].mxu0
        %v915 = vadd.f32 %v622, %v914
        %v916 = vpop.f32.mrb[0].mxu0
        %917 = vmatprep.mubr.bf16.mxu0 0
        %918 = vmatmul.mubr.bf16.gmra.mrb[0].mxu0 %v780
        %v919 = vpop.f32.mrb[0].mxu0
        %v920 = vadd.f32 %v622, %v919
        %v921 = vpop.f32.mrb[0].mxu0
        %v922 = vpop.f32.mrb[0].mxu0
        %v923 = vadd.f32 %v622, %v922
        %v924 = vpop.f32.mrb[0].mxu0
        %925 = vmatprep.mubr.bf16.mxu0 0
        %926 = vmatmul.mubr.bf16.gmra.mrb[0].mxu0 %v783
        %v927 = vpop.f32.mrb[0].mxu0
        %v928 = vadd.f32 %v622, %v927
        %v929 = vpop.f32.mrb[0].mxu0
        %v930 = vpop.f32.mrb[0].mxu0
        %v931 = vadd.f32 %v622, %v930
        %v932 = vpop.f32.mrb[0].mxu0
        %933 = vmatprep.mubr.bf16.mxu0 0
        %934 = vmatmul.mubr.bf16.gmra.mrb[0].mxu0 %v786
        %v935 = vpop.f32.mrb[0].mxu0
        %v936 = vadd.f32 %v622, %v935
        %v937 = vpop.f32.mrb[0].mxu0
        %v938 = vpop.f32.mrb[0].mxu0
        %v939 = vadd.f32 %v622, %v938
        %v940 = vpop.f32.mrb[0].mxu0
        %941 = vmatprep.mubr.bf16.mxu0 0
        %942 = vmatmul.mubr.bf16.gmra.mrb[0].mxu0 %v789
        %v943 = vpop.f32.mrb[0].mxu0
        %v944 = vadd.f32 %v622, %v943
        %v945 = vpop.f32.mrb[0].mxu0
        %v946 = vpop.f32.mrb[0].mxu0
        %v947 = vadd.f32 %v622, %v946
        %v948 = vpop.f32.mrb[0].mxu0
        %949 = vmatprep.mubr.bf16.mxu0 0
        %950 = vmatmul.mubr.bf16.gmra.mrb[0].mxu0 %v792
        %v951 = vpop.f32.mrb[0].mxu0
        %v952 = vadd.f32 %v622, %v951
        %v953 = vpop.f32.mrb[0].mxu0
        %v954 = vpop.f32.mrb[0].mxu0
        %v955 = vadd.f32 %v622, %v954
        %v956 = vpop.f32.mrb[0].mxu0
        %957 = vmatprep.mubr.bf16.mxu0 0
        %958 = vmatmul.mubr.bf16.gmra.mrb[0].mxu0 %v795
        %v959 = vpop.f32.mrb[0].mxu0
        %v960 = vadd.f32 %v622, %v959
        %v961 = vpop.f32.mrb[0].mxu0
        %v962 = vpop.f32.mrb[0].mxu0
        %v963 = vadd.f32 %v622, %v962
        %v964 = vpop.f32.mrb[0].mxu0
        %965 = vmatprep.mubr.bf16.mxu0 0
        %966 = vmatmul.mubr.bf16.gmra.mrb[0].mxu0 %v798
        %v967 = vpop.f32.mrb[0].mxu0
        %v968 = vadd.f32 %v622, %v967
        %v969 = vpop.f32.mrb[0].mxu0
        %v970 = vpop.f32.mrb[0].mxu0
        %v971 = vadd.f32 %v622, %v970
        %v972 = vpop.f32.mrb[0].mxu0
        %973 = vmatprep.mubr.bf16.mxu0 0
        %974 = vmatmul.mubr.bf16.gmra.mrb[0].mxu0 %v801
        %v975 = vpop.f32.mrb[0].mxu0
        %v976 = vadd.f32 %v622, %v975
        %v977 = vpop.f32.mrb[0].mxu0
        %v978 = vpop.f32.mrb[0].mxu0
        %v979 = vadd.f32 %v622, %v978
        %v980 = vpop.f32.mrb[0].mxu0
        %981 = vmatprep.mubr.bf16.mxu0 0
        %982 = vmatmul.mubr.bf16.gmra.mrb[0].mxu0 %v804
        %v983 = vpop.f32.mrb[0].mxu0
        %v984 = vadd.f32 %v622, %v983
        %v985 = vpop.f32.mrb[0].mxu0
        %v986 = vpop.f32.mrb[0].mxu0
        %v987 = vadd.f32 %v622, %v986
        %v988 = vpop.f32.mrb[0].mxu0
        %989 = vmatprep.mubr.bf16.mxu0 0
        %990 = vmatmul.mubr.bf16.gmra.mrb[0].mxu0 %v807
        %v991 = vpop.f32.mrb[0].mxu0
        %v992 = vadd.f32 %v622, %v991
        %v993 = vpop.f32.mrb[0].mxu0
        %v994 = vpop.f32.mrb[0].mxu0
        %v995 = vadd.f32 %v622, %v994
        %v996 = vpop.f32.mrb[0].mxu0
        %997 = vmatprep.mubr.bf16.mxu0 0
        %998 = vmatmul.mubr.bf16.gmra.mrb[0].mxu0 %v810
        %v999 = vpop.f32.mrb[0].mxu0
        %v1000 = vadd.f32 %v622, %v999
        %v1001 = vpop.f32.mrb[0].mxu0
        %v1002 = vpop.f32.mrb[0].mxu0
        %v1003 = vadd.f32 %v622, %v1002
        %v1004 = vpop.f32.mrb[0].mxu0
        %1005 = vmatprep.mubr.bf16.mxu0 0
        %1006 = vmatmul.mubr.bf16.gmra.mrb[0].mxu0 %v813
        %v1007 = vpop.f32.mrb[0].mxu0
        %v1008 = vadd.f32 %v622, %v1007
        %v1009 = vpop.f32.mrb[0].mxu0
        %v1010 = vpop.f32.mrb[0].mxu0
        %v1011 = vadd.f32 %v622, %v1010
        %v1012 = vpop.f32.mrb[0].mxu0
        %1013 = vmatprep.mubr.bf16.mxu0 0
        %1014 = vmatmul.mubr.bf16.gmra.mrb[0].mxu0 %v816
        %v1015 = vpop.f32.mrb[0].mxu0
        %v1016 = vadd.f32 %v622, %v1015
        %v1017 = vpop.f32.mrb[0].mxu0
        %v1018 = vpop.f32.mrb[0].mxu0
        %v1019 = vadd.f32 %v622, %v1018
        %v1020 = vpop.f32.mrb[0].mxu0
        %1021 = vmatprep.mubr.bf16.mxu0 0
        %1022 = vmatmul.mubr.bf16.gmra.mrb[0].mxu0 %v819
        %v1023 = vpop.f32.mrb[0].mxu0
        %v1024 = vadd.f32 %v622, %v1023
        %v1025 = vpop.f32.mrb[0].mxu0
        %v1026 = vpop.f32.mrb[0].mxu0
        %v1027 = vadd.f32 %v622, %v1026
        %v1028 = vpop.f32.mrb[0].mxu0
        %1029 = vmatprep.mubr.bf16.mxu0 0
        %1030 = vmatmul.mubr.bf16.gmra.mrb[0].mxu0 %v822
        %v1031 = vpop.f32.mrb[0].mxu0
        %v1032 = vadd.f32 %v622, %v1031
        %v1033 = vpop.f32.mrb[0].mxu0
        %v1034 = vpop.f32.mrb[0].mxu0
        %v1035 = vadd.f32 %v622, %v1034
        %v1036 = vpop.f32.mrb[0].mxu0
        %1037 = vmatprep.mubr.bf16.mxu0 0
        %1038 = vmatmul.mubr.bf16.gmra.mrb[0].mxu0 %v825
        %v1039 = vpop.f32.mrb[0].mxu0
        %v1040 = vadd.f32 %v622, %v1039
        %v1041 = vpop.f32.mrb[0].mxu0
        %v1042 = vpop.f32.mrb[0].mxu0
        %v1043 = vadd.f32 %v622, %v1042
        %v1044 = vpop.f32.mrb[0].mxu0
        %1045 = vmatprep.mubr.bf16.mxu0 0
        %1046 = vmatmul.mubr.bf16.gmra.mrb[0].mxu0 %v828
        %v1047 = vpop.f32.mrb[0].mxu0
        %v1048 = vadd.f32 %v622, %v1047
        %v1049 = vpop.f32.mrb[0].mxu0
        %v1050 = vpop.f32.mrb[0].mxu0
        %v1051 = vadd.f32 %v622, %v1050
        %v1052 = vpop.f32.mrb[0].mxu0
        %1053 = vmatprep.mubr.bf16.mxu0 0
        %1054 = vmatmul.mubr.bf16.gmra.mrb[0].mxu0 %v831
        %v1055 = vpop.f32.mrb[0].mxu0
        %v1056 = vadd.f32 %v622, %v1055
        %v1057 = vpop.f32.mrb[0].mxu0
        %v1058 = vpop.f32.mrb[0].mxu0
        %v1059 = vadd.f32 %v622, %v1058
        %v1060 = vpop.f32.mrb[0].mxu0
        %1061 = vmatprep.mubr.bf16.mxu0 0
        %1062 = vmatmul.mubr.bf16.gmra.mrb[0].mxu0 %v834
        %v1063 = vpop.f32.mrb[0].mxu0
        %v1064 = vadd.f32 %v622, %v1063
        %v1065 = vpop.f32.mrb[0].mxu0
        %v1066 = vpop.f32.mrb[0].mxu0
        %v1067 = vadd.f32 %v622, %v1066
        %v1068 = vpop.f32.mrb[0].mxu0
        %1069 = vmatprep.mubr.bf16.mxu0 0
        %1070 = vmatmul.mubr.bf16.gmra.mrb[0].mxu0 %v837
        %v1071 = vpop.f32.mrb[0].mxu0
        %v1072 = vadd.f32 %v622, %v1071
        %v1073 = vpop.f32.mrb[0].mxu0
        %v1074 = vpop.f32.mrb[0].mxu0
        %v1075 = vadd.f32 %v622, %v1074
        %v1076 = vpop.f32.mrb[0].mxu0
        %1077 = vmatprep.mubr.bf16.mxu0 0
        %1078 = vmatmul.mubr.bf16.gmra.mrb[0].mxu0 %v840
        %v1079 = vpop.f32.mrb[0].mxu0
        %v1080 = vadd.f32 %v622, %v1079
        %v1081 = vpop.f32.mrb[0].mxu0
        %v1082 = vpop.f32.mrb[0].mxu0
        %v1083 = vadd.f32 %v622, %v1082
        %v1084 = vpop.f32.mrb[0].mxu0
        %1085 = vmatprep.mubr.bf16.mxu0 0
        %1086 = vmatmul.mubr.bf16.gmra.mrb[0].mxu0 %v843
        %v1087 = vpop.f32.mrb[0].mxu0
        %v1088 = vadd.f32 %v622, %v1087
        %v1089 = vpop.f32.mrb[0].mxu0
        %v1090 = vpop.f32.mrb[0].mxu0
        %v1091 = vadd.f32 %v622, %v1090
        %v1092 = vpop.f32.mrb[0].mxu0
        %1093 = vmatprep.mubr.bf16.mxu0 0
        %1094 = vmatmul.mubr.bf16.gmra.mrb[0].mxu0 %v846
        %v1095 = vpop.f32.mrb[0].mxu0
        %v1096 = vadd.f32 %v622, %v1095
        %v1097 = vpop.f32.mrb[0].mxu0
        %v1098 = vpop.f32.mrb[0].mxu0
        %v1099 = vadd.f32 %v622, %v1098
        %v1100 = vpop.f32.mrb[0].mxu0
        %1101 = vmatprep.mubr.bf16.mxu0 0
        %1102 = vmatmul.mubr.bf16.gmra.mrb[0].mxu0 %v849
        %v1103 = vpop.f32.mrb[0].mxu0
        %v1104 = vadd.f32 %v622, %v1103
        %v1105 = vpop.f32.mrb[0].mxu0
        %v1106 = vpop.f32.mrb[0].mxu0
        %v1107 = vadd.f32 %v622, %v1106
        %v1108 = vpop.f32.mrb[0].mxu0
        %1109 = vmatprep.mubr.bf16.mxu0 0
        %1110 = vmatmul.mubr.bf16.gmra.mrb[0].mxu0 %v852
        %v1111 = vpop.f32.mrb[0].mxu0
        %v1112 = vadd.f32 %v622, %v1111
        %v1113 = vpop.f32.mrb[0].mxu0
        %v1114 = vpop.f32.mrb[0].mxu0
        %v1115 = vadd.f32 %v622, %v1114
        %v1116 = vpop.f32.mrb[0].mxu0
        %1117 = vdwg.mxu0
        %v1118 = vmax.f32 %v896, 0.0
        %v1119 = vmax.f32 %v899, 0.0
        %v1120 = vmax.f32 %v904, 0.0
        %v1121 = vmax.f32 %v907, 0.0
        %v1122 = vmax.f32 %v912, 0.0
        %v1123 = vmax.f32 %v915, 0.0
        %v1124 = vmax.f32 %v920, 0.0
        %v1125 = vmax.f32 %v923, 0.0
        %v1126 = vmax.f32 %v928, 0.0
        %v1127 = vmax.f32 %v931, 0.0
        %v1128 = vmax.f32 %v936, 0.0
        %v1129 = vmax.f32 %v939, 0.0
        %v1130 = vmax.f32 %v944, 0.0
        %v1131 = vmax.f32 %v947, 0.0
        %v1132 = vmax.f32 %v952, 0.0
        %v1133 = vmax.f32 %v955, 0.0
        %v1134 = vmax.f32 %v960, 0.0
        %v1135 = vmax.f32 %v963, 0.0
        %v1136 = vmax.f32 %v968, 0.0
        %v1137 = vmax.f32 %v971, 0.0
        %v1138 = vmax.f32 %v976, 0.0
        %v1139 = vmax.f32 %v979, 0.0
        %v1140 = vmax.f32 %v984, 0.0
        %v1141 = vmax.f32 %v987, 0.0
        %v1142 = vmax.f32 %v992, 0.0
        %v1143 = vmax.f32 %v995, 0.0
        %v1144 = vmax.f32 %v1000, 0.0
        %v1145 = vmax.f32 %v1003, 0.0
        %v1146 = vmax.f32 %v1008, 0.0
        %v1147 = vmax.f32 %v1011, 0.0
        %v1148 = vmax.f32 %v1016, 0.0
        %v1149 = vmax.f32 %v1019, 0.0
        %v1150 = vmax.f32 %v1024, 0.0
        %v1151 = vmax.f32 %v1027, 0.0
        %v1152 = vmax.f32 %v1032, 0.0
        %v1153 = vmax.f32 %v1035, 0.0
        %v1154 = vmax.f32 %v1040, 0.0
        %v1155 = vmax.f32 %v1043, 0.0
        %v1156 = vmax.f32 %v1048, 0.0
        %v1157 = vmax.f32 %v1051, 0.0
        %v1158 = vmax.f32 %v1056, 0.0
        %v1159 = vmax.f32 %v1059, 0.0
        %v1160 = vmax.f32 %v1064, 0.0
        %v1161 = vmax.f32 %v1067, 0.0
        %v1162 = vmax.f32 %v1072, 0.0
        %v1163 = vmax.f32 %v1075, 0.0
        %v1164 = vmax.f32 %v1080, 0.0
        %v1165 = vmax.f32 %v1083, 0.0
        %v1166 = vmax.f32 %v1088, 0.0
        %v1167 = vmax.f32 %v1091, 0.0
        %v1168 = vmax.f32 %v1096, 0.0
        %v1169 = vmax.f32 %v1099, 0.0
        %v1170 = vmax.f32 %v1104, 0.0
        %v1171 = vmax.f32 %v1107, 0.0
        %v1172 = vmax.f32 %v1112, 0.0
        %v1173 = vmax.f32 %v1115, 0.0
        %s1174 = smul.u32 %s38, 12
        %s1175 = ssub.s32 %s1174, 8
        %v1176 = vstv %s1175
        %v1177 = vadd.s32 %v1176, 1
        %v1178 = vadd.s32 %v1176, 2
        %v1179 = vadd.s32 %v1176, 3
        %v1180 = vadd.s32 %v1176, 4
        %v1181 = vadd.s32 %v1176, 5
        %v1182 = vadd.s32 %v1176, 6
        %v1183 = vadd.s32 %v1176, 7
        %v1184 = vadd.s32 %v1176, 8
        %v1185 = vadd.s32 %v1176, 9
        %v1186 = vadd.s32 %v1176, 10
        %v1187 = vadd.s32 %v1176, 11
        %v1188 = vadd.s32 %v1176, 12
        %v1189 = vadd.s32 %v1176, 13
        %v1190 = vadd.s32 %v1176, 14
        %v1191 = vadd.s32 %v1176, 15
        %v1192 = vadd.s32 %v1176, 16
        %v1193 = vadd.s32 %v1176, 17
        %v1194 = vadd.s32 %v1176, 18
        %v1195 = vadd.s32 %v1176, 19
        %v1196 = vadd.s32 %v1176, 20
        %v1197 = vadd.s32 %v1176, 21
        %v1198 = vadd.s32 %v1176, 22
        %v1199 = vadd.s32 %v1176, 23
        %v1200 = vadd.s32 %v1176, 24
        %v1201 = vadd.s32 %v1176, 25
        %v1202 = vadd.s32 %v1176, 26
        %v1203 = vadd.s32 %v1176, 27
        %vm1204 = vcmp.ge.s32.totalorder %v1176, 0
        %vm1205 = vcmp.ge.s32.totalorder %v1177, 0
        %vm1206 = vcmp.ge.s32.totalorder %v1178, 0
        %vm1207 = vcmp.ge.s32.totalorder %v1179, 0
        %vm1208 = vcmp.ge.s32.totalorder %v1180, 0
        %vm1209 = vcmp.ge.s32.totalorder %v1181, 0
        %vm1210 = vcmp.ge.s32.totalorder %v1182, 0
        %vm1211 = vcmp.ge.s32.totalorder %v1183, 0
        %vm1212 = vcmp.ge.s32.totalorder %v1184, 0
        %vm1213 = vcmp.ge.s32.totalorder %v1185, 0
        %vm1214 = vcmp.ge.s32.totalorder %v1186, 0
        %vm1215 = vcmp.ge.s32.totalorder %v1187, 0
        %vm1216 = vcmp.ge.s32.totalorder %v1188, 0
        %vm1217 = vcmp.ge.s32.totalorder %v1189, 0
        %vm1218 = vcmp.ge.s32.totalorder %v1190, 0
        %vm1219 = vcmp.ge.s32.totalorder %v1191, 0
        %vm1220 = vcmp.ge.s32.totalorder %v1192, 0
        %vm1221 = vcmp.ge.s32.totalorder %v1193, 0
        %vm1222 = vcmp.ge.s32.totalorder %v1194, 0
        %vm1223 = vcmp.ge.s32.totalorder %v1195, 0
        %vm1224 = vcmp.ge.s32.totalorder %v1196, 0
        %vm1225 = vcmp.ge.s32.totalorder %v1197, 0
        %vm1226 = vcmp.ge.s32.totalorder %v1198, 0
        %vm1227 = vcmp.ge.s32.totalorder %v1199, 0
        %vm1228 = vcmp.ge.s32.totalorder %v1200, 0
        %vm1229 = vcmp.ge.s32.totalorder %v1201, 0
        %vm1230 = vcmp.ge.s32.totalorder %v1202, 0
        %vm1231 = vcmp.ge.s32.totalorder %v1203, 0
        %vm1232 = vcmp.lt.s32.totalorder %v1176, 12
        %vm1233 = vcmp.lt.s32.totalorder %v1177, 12
        %vm1234 = vcmp.lt.s32.totalorder %v1178, 12
        %vm1235 = vcmp.lt.s32.totalorder %v1179, 12
        %vm1236 = vcmp.lt.s32.totalorder %v1180, 12
        %vm1237 = vcmp.lt.s32.totalorder %v1181, 12
        %vm1238 = vcmp.lt.s32.totalorder %v1182, 12
        %vm1239 = vcmp.lt.s32.totalorder %v1183, 12
        %vm1240 = vcmp.lt.s32.totalorder %v1184, 12
        %vm1241 = vcmp.lt.s32.totalorder %v1185, 12
        %vm1242 = vcmp.lt.s32.totalorder %v1186, 12
        %vm1243 = vcmp.lt.s32.totalorder %v1187, 12
        %vm1244 = vcmp.lt.s32.totalorder %v1188, 12
        %vm1245 = vcmp.lt.s32.totalorder %v1189, 12
        %vm1246 = vcmp.lt.s32.totalorder %v1190, 12
        %vm1247 = vcmp.lt.s32.totalorder %v1191, 12
        %vm1248 = vcmp.lt.s32.totalorder %v1192, 12
        %vm1249 = vcmp.lt.s32.totalorder %v1193, 12
        %vm1250 = vcmp.lt.s32.totalorder %v1194, 12
        %vm1251 = vcmp.lt.s32.totalorder %v1195, 12
        %vm1252 = vcmp.lt.s32.totalorder %v1196, 12
        %vm1253 = vcmp.lt.s32.totalorder %v1197, 12
        %vm1254 = vcmp.lt.s32.totalorder %v1198, 12
        %vm1255 = vcmp.lt.s32.totalorder %v1199, 12
        %vm1256 = vcmp.lt.s32.totalorder %v1200, 12
        %vm1257 = vcmp.lt.s32.totalorder %v1201, 12
        %vm1258 = vcmp.lt.s32.totalorder %v1202, 12
        %vm1259 = vcmp.lt.s32.totalorder %v1203, 12
        %vm1260 = vmand %vm1204, %vm1232
        %vm1261 = vmand %vm1205, %vm1233
        %vm1262 = vmand %vm1206, %vm1234
        %vm1263 = vmand %vm1207, %vm1235
        %vm1264 = vmand %vm1208, %vm1236
        %vm1265 = vmand %vm1209, %vm1237
        %vm1266 = vmand %vm1210, %vm1238
        %vm1267 = vmand %vm1211, %vm1239
        %vm1268 = vmand %vm1212, %vm1240
        %vm1269 = vmand %vm1213, %vm1241
        %vm1270 = vmand %vm1214, %vm1242
        %vm1271 = vmand %vm1215, %vm1243
        %vm1272 = vmand %vm1216, %vm1244
        %vm1273 = vmand %vm1217, %vm1245
        %vm1274 = vmand %vm1218, %vm1246
        %vm1275 = vmand %vm1219, %vm1247
        %vm1276 = vmand %vm1220, %vm1248
        %vm1277 = vmand %vm1221, %vm1249
        %vm1278 = vmand %vm1222, %vm1250
        %vm1279 = vmand %vm1223, %vm1251
        %vm1280 = vmand %vm1224, %vm1252
        %vm1281 = vmand %vm1225, %vm1253
        %vm1282 = vmand %vm1226, %vm1254
        %vm1283 = vmand %vm1227, %vm1255
        %vm1284 = vmand %vm1228, %vm1256
        %vm1285 = vmand %vm1229, %vm1257
        %vm1286 = vmand %vm1230, %vm1258
        %vm1287 = vmand %vm1231, %vm1259
        %v1288 = vsel %vm1260, %v1118, 0.0
        %v1289 = vsel %vm1260, %v1119, 0.0
        %v1290 = vsel %vm1261, %v1120, 0.0
        %v1291 = vsel %vm1261, %v1121, 0.0
        %v1292 = vsel %vm1262, %v1122, 0.0
        %v1293 = vsel %vm1262, %v1123, 0.0
        %v1294 = vsel %vm1263, %v1124, 0.0
        %v1295 = vsel %vm1263, %v1125, 0.0
        %v1296 = vsel %vm1264, %v1126, 0.0
        %v1297 = vsel %vm1264, %v1127, 0.0
        %v1298 = vsel %vm1265, %v1128, 0.0
        %v1299 = vsel %vm1265, %v1129, 0.0
        %v1300 = vsel %vm1266, %v1130, 0.0
        %v1301 = vsel %vm1266, %v1131, 0.0
        %v1302 = vsel %vm1267, %v1132, 0.0
        %v1303 = vsel %vm1267, %v1133, 0.0
        %v1304 = vsel %vm1268, %v1134, 0.0
        %v1305 = vsel %vm1268, %v1135, 0.0
        %v1306 = vsel %vm1269, %v1136, 0.0
        %v1307 = vsel %vm1269, %v1137, 0.0
        %v1308 = vsel %vm1270, %v1138, 0.0
        %v1309 = vsel %vm1270, %v1139, 0.0
        %v1310 = vsel %vm1271, %v1140, 0.0
        %v1311 = vsel %vm1271, %v1141, 0.0
        %v1312 = vsel %vm1272, %v1142, 0.0
        %v1313 = vsel %vm1272, %v1143, 0.0
        %v1314 = vsel %vm1273, %v1144, 0.0
        %v1315 = vsel %vm1273, %v1145, 0.0
        %v1316 = vsel %vm1274, %v1146, 0.0
        %v1317 = vsel %vm1274, %v1147, 0.0
        %v1318 = vsel %vm1275, %v1148, 0.0
        %v1319 = vsel %vm1275, %v1149, 0.0
        %v1320 = vsel %vm1276, %v1150, 0.0
        %v1321 = vsel %vm1276, %v1151, 0.0
        %v1322 = vsel %vm1277, %v1152, 0.0
        %v1323 = vsel %vm1277, %v1153, 0.0
        %v1324 = vsel %vm1278, %v1154, 0.0
        %v1325 = vsel %vm1278, %v1155, 0.0
        %v1326 = vsel %vm1279, %v1156, 0.0
        %v1327 = vsel %vm1279, %v1157, 0.0
        %v1328 = vsel %vm1280, %v1158, 0.0
        %v1329 = vsel %vm1280, %v1159, 0.0
        %v1330 = vsel %vm1281, %v1160, 0.0
        %v1331 = vsel %vm1281, %v1161, 0.0
        %v1332 = vsel %vm1282, %v1162, 0.0
        %v1333 = vsel %vm1282, %v1163, 0.0
        %v1334 = vsel %vm1283, %v1164, 0.0
        %v1335 = vsel %vm1283, %v1165, 0.0
        %v1336 = vsel %vm1284, %v1166, 0.0
        %v1337 = vsel %vm1284, %v1167, 0.0
        %v1338 = vsel %vm1285, %v1168, 0.0
        %v1339 = vsel %vm1285, %v1169, 0.0
        %v1340 = vsel %vm1286, %v1170, 0.0
        %v1341 = vsel %vm1286, %v1171, 0.0
        %v1342 = vsel %vm1287, %v1172, 0.0
        %v1343 = vsel %vm1287, %v1173, 0.0
        %v1344 = vpack.c.bf16 %v1289, %v1288
        %v1345 = vpack.c.bf16 %v1291, %v1290
        %v1346 = vpack.c.bf16 %v1293, %v1292
        %v1347 = vpack.c.bf16 %v1295, %v1294
        %v1348 = vpack.c.bf16 %v1297, %v1296
        %v1349 = vpack.c.bf16 %v1299, %v1298
        %v1350 = vpack.c.bf16 %v1301, %v1300
        %v1351 = vpack.c.bf16 %v1303, %v1302
        %v1352 = vpack.c.bf16 %v1305, %v1304
        %v1353 = vpack.c.bf16 %v1307, %v1306
        %v1354 = vpack.c.bf16 %v1309, %v1308
        %v1355 = vpack.c.bf16 %v1311, %v1310
        %v1356 = vpack.c.bf16 %v1313, %v1312
        %v1357 = vpack.c.bf16 %v1315, %v1314
        %v1358 = vpack.c.bf16 %v1317, %v1316
        %v1359 = vpack.c.bf16 %v1319, %v1318
        %v1360 = vpack.c.bf16 %v1321, %v1320
        %v1361 = vpack.c.bf16 %v1323, %v1322
        %v1362 = vpack.c.bf16 %v1325, %v1324
        %v1363 = vpack.c.bf16 %v1327, %v1326
        %v1364 = vpack.c.bf16 %v1329, %v1328
        %v1365 = vpack.c.bf16 %v1331, %v1330
        %v1366 = vpack.c.bf16 %v1333, %v1332
        %v1367 = vpack.c.bf16 %v1335, %v1334
        %v1368 = vpack.c.bf16 %v1337, %v1336
        %v1369 = vpack.c.bf16 %v1339, %v1338
        %v1370 = vpack.c.bf16 %v1341, %v1340
        %v1371 = vpack.c.bf16 %v1343, %v1342
        %1372 = vst [vmem:[#allocation2] sm:$0xff] 0
        %vm1373 = vcmask 523264
        %1374 = vst.msk [vmem:[#allocation2 + $0x8] sm:$0xff] %vm1373, 0
        %s1375 = scalar_lea.vmem [#allocation2], 464
        %1376 = vst [vmem:[%s1375] sm:$0xff] 0
        %1377 = vst.msk [vmem:[%s1375 + $0x8] sm:$0xff] %vm1373, 0
        %vm1378 = vcmask 516096
        %vm1379 = vsmask.f32 256
        %vm1380 = vmand %vm1378, %vm1379
        %v1381 = vld [vmem:[#allocation2] sm:$0x1]
        %v1382 = vsel %vm1380, 0, %v1381
        %1383 = vst [vmem:[#allocation2] sm:$0x1] %v1382
        %v1384 = vld [vmem:[#allocation2 + $0x10] sm:$0x1]
        %v1385 = vsel %vm1380, 0, %v1384
        %1386 = vst [vmem:[#allocation2 + $0x10] sm:$0x1] %v1385
        %v1387 = vld [vmem:[#allocation2 + $0x20] sm:$0x1]
        %v1388 = vsel %vm1380, 0, %v1387
        %1389 = vst [vmem:[#allocation2 + $0x20] sm:$0x1] %v1388
        %v1390 = vld [vmem:[#allocation2 + $0x30] sm:$0x1]
        %v1391 = vsel %vm1380, 0, %v1390
        %1392 = vst [vmem:[#allocation2 + $0x30] sm:$0x1] %v1391
        %v1393 = vld [vmem:[#allocation2 + $0x40] sm:$0x1]
        %v1394 = vsel %vm1380, 0, %v1393
        %1395 = vst [vmem:[#allocation2 + $0x40] sm:$0x1] %v1394
        %v1396 = vld [vmem:[#allocation2 + $0x50] sm:$0x1]
        %v1397 = vsel %vm1380, 0, %v1396
        %1398 = vst [vmem:[#allocation2 + $0x50] sm:$0x1] %v1397
        %v1399 = vld [vmem:[#allocation2 + $0x60] sm:$0x1]
        %v1400 = vsel %vm1380, 0, %v1399
        %1401 = vst [vmem:[#allocation2 + $0x60] sm:$0x1] %v1400
        %v1402 = vld [vmem:[#allocation2 + $0x70] sm:$0x1]
        %v1403 = vsel %vm1380, 0, %v1402
        %1404 = vst [vmem:[#allocation2 + $0x70] sm:$0x1] %v1403
        %v1405 = vld [vmem:[#allocation2 + $0x80] sm:$0x1]
        %v1406 = vsel %vm1380, 0, %v1405
        %1407 = vst [vmem:[#allocation2 + $0x80] sm:$0x1] %v1406
        %v1408 = vld [vmem:[#allocation2 + $0x90] sm:$0x1]
        %v1409 = vsel %vm1380, 0, %v1408
        %1410 = vst [vmem:[#allocation2 + $0x90] sm:$0x1] %v1409
        %v1411 = vld [vmem:[#allocation2 + $0xa0] sm:$0x1]
        %v1412 = vsel %vm1380, 0, %v1411
        %1413 = vst [vmem:[#allocation2 + $0xa0] sm:$0x1] %v1412
        %v1414 = vld [vmem:[#allocation2 + $0xb0] sm:$0x1]
        %v1415 = vsel %vm1380, 0, %v1414
        %1416 = vst [vmem:[#allocation2 + $0xb0] sm:$0x1] %v1415
        %v1417 = vld [vmem:[#allocation2 + $0xc0] sm:$0x1]
        %v1418 = vsel %vm1380, 0, %v1417
        %1419 = vst [vmem:[#allocation2 + $0xc0] sm:$0x1] %v1418
        %v1420 = vld [vmem:[#allocation2 + $0xd0] sm:$0x1]
        %v1421 = vsel %vm1380, 0, %v1420
        %1422 = vst [vmem:[#allocation2 + $0xd0] sm:$0x1] %v1421
        %v1423 = vld [vmem:[#allocation2 + $0xe0] sm:$0x1]
        %v1424 = vsel %vm1380, 0, %v1423
        %1425 = vst [vmem:[#allocation2 + $0xe0] sm:$0x1] %v1424
        %v1426 = vld [vmem:[#allocation2 + $0xf0] sm:$0x1]
        %v1427 = vsel %vm1380, 0, %v1426
        %1428 = vst [vmem:[#allocation2 + $0xf0] sm:$0x1] %v1427
        %v1429 = vld [vmem:[#allocation2 + $0x100] sm:$0x1]
        %v1430 = vsel %vm1380, 0, %v1429
        %1431 = vst [vmem:[#allocation2 + $0x100] sm:$0x1] %v1430
        %v1432 = vld [vmem:[#allocation2 + $0x110] sm:$0x1]
        %v1433 = vsel %vm1380, 0, %v1432
        %1434 = vst [vmem:[#allocation2 + $0x110] sm:$0x1] %v1433
        %v1435 = vld [vmem:[#allocation2 + $0x120] sm:$0x1]
        %v1436 = vsel %vm1380, 0, %v1435
        %1437 = vst [vmem:[#allocation2 + $0x120] sm:$0x1] %v1436
        %v1438 = vld [vmem:[#allocation2 + $0x130] sm:$0x1]
        %v1439 = vsel %vm1380, 0, %v1438
        %1440 = vst [vmem:[#allocation2 + $0x130] sm:$0x1] %v1439
        %v1441 = vld [vmem:[#allocation2 + $0x140] sm:$0x1]
        %v1442 = vsel %vm1380, 0, %v1441
        %1443 = vst [vmem:[#allocation2 + $0x140] sm:$0x1] %v1442
        %v1444 = vld [vmem:[#allocation2 + $0x150] sm:$0x1]
        %v1445 = vsel %vm1380, 0, %v1444
        %1446 = vst [vmem:[#allocation2 + $0x150] sm:$0x1] %v1445
        %v1447 = vld [vmem:[#allocation2 + $0x160] sm:$0x1]
        %v1448 = vsel %vm1380, 0, %v1447
        %1449 = vst [vmem:[#allocation2 + $0x160] sm:$0x1] %v1448
        %v1450 = vld [vmem:[#allocation2 + $0x170] sm:$0x1]
        %v1451 = vsel %vm1380, 0, %v1450
        %1452 = vst [vmem:[#allocation2 + $0x170] sm:$0x1] %v1451
        %v1453 = vld [vmem:[#allocation2 + $0x180] sm:$0x1]
        %v1454 = vsel %vm1380, 0, %v1453
        %1455 = vst [vmem:[#allocation2 + $0x180] sm:$0x1] %v1454
        %v1456 = vld [vmem:[#allocation2 + $0x190] sm:$0x1]
        %v1457 = vsel %vm1380, 0, %v1456
        %1458 = vst [vmem:[#allocation2 + $0x190] sm:$0x1] %v1457
        %v1459 = vld [vmem:[#allocation2 + $0x1a0] sm:$0x1]
        %v1460 = vsel %vm1380, 0, %v1459
        %1461 = vst [vmem:[#allocation2 + $0x1a0] sm:$0x1] %v1460
        %v1462 = vld [vmem:[#allocation2 + $0x1b0] sm:$0x1]
        %v1463 = vsel %vm1380, 0, %v1462
        %1464 = vst [vmem:[#allocation2 + $0x1b0] sm:$0x1] %v1463
        %v1465 = vld [vmem:[#allocation2 + $0x1c0] sm:$0x1]
        %v1466 = vsel %vm1380, 0, %v1465
        %1467 = vst [vmem:[#allocation2 + $0x1c0] sm:$0x1] %v1466
        %v1468 = vld [vmem:[#allocation2 + $0x1d0] sm:$0x1]
        %v1469 = vsel %vm1380, 0, %v1468
        %1470 = vst [vmem:[#allocation2 + $0x1d0] sm:$0x1] %v1469
        %vm1471 = vcmask 523271
        %vm1472 = vsmask.f32 7966
        %vm1473 = vmand %vm1471, %vm1472
        %v1474 = vld [vmem:[#allocation2 + $0x8] sm:$0x80]
        %v1475 = vsel %vm1473, 0, %v1474
        %1476 = vst [vmem:[#allocation2 + $0x8] sm:$0x80] %v1475
        %v1477 = vld [vmem:[#allocation2 + $0x18] sm:$0x80]
        %v1478 = vsel %vm1473, 0, %v1477
        %1479 = vst [vmem:[#allocation2 + $0x18] sm:$0x80] %v1478
        %v1480 = vld [vmem:[#allocation2 + $0x28] sm:$0x80]
        %v1481 = vsel %vm1473, 0, %v1480
        %1482 = vst [vmem:[#allocation2 + $0x28] sm:$0x80] %v1481
        %v1483 = vld [vmem:[#allocation2 + $0x38] sm:$0x80]
        %v1484 = vsel %vm1473, 0, %v1483
        %1485 = vst [vmem:[#allocation2 + $0x38] sm:$0x80] %v1484
        %v1486 = vld [vmem:[#allocation2 + $0x48] sm:$0x80]
        %v1487 = vsel %vm1473, 0, %v1486
        %1488 = vst [vmem:[#allocation2 + $0x48] sm:$0x80] %v1487
        %v1489 = vld [vmem:[#allocation2 + $0x58] sm:$0x80]
        %v1490 = vsel %vm1473, 0, %v1489
        %1491 = vst [vmem:[#allocation2 + $0x58] sm:$0x80] %v1490
        %v1492 = vld [vmem:[#allocation2 + $0x68] sm:$0x80]
        %v1493 = vsel %vm1473, 0, %v1492
        %1494 = vst [vmem:[#allocation2 + $0x68] sm:$0x80] %v1493
        %v1495 = vld [vmem:[#allocation2 + $0x78] sm:$0x80]
        %v1496 = vsel %vm1473, 0, %v1495
        %1497 = vst [vmem:[#allocation2 + $0x78] sm:$0x80] %v1496
        %v1498 = vld [vmem:[#allocation2 + $0x88] sm:$0x80]
        %v1499 = vsel %vm1473, 0, %v1498
        %1500 = vst [vmem:[#allocation2 + $0x88] sm:$0x80] %v1499
        %v1501 = vld [vmem:[#allocation2 + $0x98] sm:$0x80]
        %v1502 = vsel %vm1473, 0, %v1501
        %1503 = vst [vmem:[#allocation2 + $0x98] sm:$0x80] %v1502
        %v1504 = vld [vmem:[#allocation2 + $0xa8] sm:$0x80]
        %v1505 = vsel %vm1473, 0, %v1504
        %1506 = vst [vmem:[#allocation2 + $0xa8] sm:$0x80] %v1505
        %v1507 = vld [vmem:[#allocation2 + $0xb8] sm:$0x80]
        %v1508 = vsel %vm1473, 0, %v1507
        %1509 = vst [vmem:[#allocation2 + $0xb8] sm:$0x80] %v1508
        %v1510 = vld [vmem:[#allocation2 + $0xc8] sm:$0x80]
        %v1511 = vsel %vm1473, 0, %v1510
        %1512 = vst [vmem:[#allocation2 + $0xc8] sm:$0x80] %v1511
        %v1513 = vld [vmem:[#allocation2 + $0xd8] sm:$0x80]
        %v1514 = vsel %vm1473, 0, %v1513
        %1515 = vst [vmem:[#allocation2 + $0xd8] sm:$0x80] %v1514
        %v1516 = vld [vmem:[#allocation2 + $0xe8] sm:$0x80]
        %v1517 = vsel %vm1473, 0, %v1516
        %1518 = vst [vmem:[#allocation2 + $0xe8] sm:$0x80] %v1517
        %v1519 = vld [vmem:[#allocation2 + $0xf8] sm:$0x80]
        %v1520 = vsel %vm1473, 0, %v1519
        %1521 = vst [vmem:[#allocation2 + $0xf8] sm:$0x80] %v1520
        %v1522 = vld [vmem:[#allocation2 + $0x108] sm:$0x80]
        %v1523 = vsel %vm1473, 0, %v1522
        %1524 = vst [vmem:[#allocation2 + $0x108] sm:$0x80] %v1523
        %v1525 = vld [vmem:[#allocation2 + $0x118] sm:$0x80]
        %v1526 = vsel %vm1473, 0, %v1525
        %1527 = vst [vmem:[#allocation2 + $0x118] sm:$0x80] %v1526
        %v1528 = vld [vmem:[#allocation2 + $0x128] sm:$0x80]
        %v1529 = vsel %vm1473, 0, %v1528
        %1530 = vst [vmem:[#allocation2 + $0x128] sm:$0x80] %v1529
        %v1531 = vld [vmem:[#allocation2 + $0x138] sm:$0x80]
        %v1532 = vsel %vm1473, 0, %v1531
        %1533 = vst [vmem:[#allocation2 + $0x138] sm:$0x80] %v1532
        %v1534 = vld [vmem:[#allocation2 + $0x148] sm:$0x80]
        %v1535 = vsel %vm1473, 0, %v1534
        %1536 = vst [vmem:[#allocation2 + $0x148] sm:$0x80] %v1535
        %v1537 = vld [vmem:[#allocation2 + $0x158] sm:$0x80]
        %v1538 = vsel %vm1473, 0, %v1537
        %1539 = vst [vmem:[#allocation2 + $0x158] sm:$0x80] %v1538
        %v1540 = vld [vmem:[#allocation2 + $0x168] sm:$0x80]
        %v1541 = vsel %vm1473, 0, %v1540
        %1542 = vst [vmem:[#allocation2 + $0x168] sm:$0x80] %v1541
        %v1543 = vld [vmem:[#allocation2 + $0x178] sm:$0x80]
        %v1544 = vsel %vm1473, 0, %v1543
        %1545 = vst [vmem:[#allocation2 + $0x178] sm:$0x80] %v1544
        %v1546 = vld [vmem:[#allocation2 + $0x188] sm:$0x80]
        %v1547 = vsel %vm1473, 0, %v1546
        %1548 = vst [vmem:[#allocation2 + $0x188] sm:$0x80] %v1547
        %v1549 = vld [vmem:[#allocation2 + $0x198] sm:$0x80]
        %v1550 = vsel %vm1473, 0, %v1549
        %1551 = vst [vmem:[#allocation2 + $0x198] sm:$0x80] %v1550
        %v1552 = vld [vmem:[#allocation2 + $0x1a8] sm:$0x80]
        %v1553 = vsel %vm1473, 0, %v1552
        %1554 = vst [vmem:[#allocation2 + $0x1a8] sm:$0x80] %v1553
        %v1555 = vld [vmem:[#allocation2 + $0x1b8] sm:$0x80]
        %v1556 = vsel %vm1473, 0, %v1555
        %1557 = vst [vmem:[#allocation2 + $0x1b8] sm:$0x80] %v1556
        %v1558 = vld [vmem:[#allocation2 + $0x1c8] sm:$0x80]
        %v1559 = vsel %vm1473, 0, %v1558
        %1560 = vst [vmem:[#allocation2 + $0x1c8] sm:$0x80] %v1559
        %v1561 = vld [vmem:[#allocation2 + $0x1d8] sm:$0x80]
        %v1562 = vsel %vm1473, 0, %v1561
        %1563 = vst [vmem:[#allocation2 + $0x1d8] sm:$0x80] %v1562
        %v1565 = vshrl.u32 %v1344, 16
        %v1567 = vrot.slane %v1565, 7
        %v1568 = vshll.u32 %v1344, 16
        %v1570 = vor.u32 %v1567, %v1568
        %v1572 = vshrl.u32 %v1345, 16
        %v1574 = vrot.slane %v1572, 7
        %v1575 = vshll.u32 %v1345, 16
        %v1577 = vor.u32 %v1574, %v1575
        %v1579 = vshrl.u32 %v1346, 16
        %v1581 = vrot.slane %v1579, 7
        %v1582 = vshll.u32 %v1346, 16
        %v1584 = vor.u32 %v1581, %v1582
        %v1586 = vshrl.u32 %v1347, 16
        %v1588 = vrot.slane %v1586, 7
        %v1589 = vshll.u32 %v1347, 16
        %v1591 = vor.u32 %v1588, %v1589
        %v1593 = vshrl.u32 %v1348, 16
        %v1595 = vrot.slane %v1593, 7
        %v1596 = vshll.u32 %v1348, 16
        %v1598 = vor.u32 %v1595, %v1596
        %v1600 = vshrl.u32 %v1349, 16
        %v1602 = vrot.slane %v1600, 7
        %v1603 = vshll.u32 %v1349, 16
        %v1605 = vor.u32 %v1602, %v1603
        %v1607 = vshrl.u32 %v1350, 16
        %v1609 = vrot.slane %v1607, 7
        %v1610 = vshll.u32 %v1350, 16
        %v1612 = vor.u32 %v1609, %v1610
        %v1614 = vshrl.u32 %v1351, 16
        %v1616 = vrot.slane %v1614, 7
        %v1617 = vshll.u32 %v1351, 16
        %v1619 = vor.u32 %v1616, %v1617
        %v1621 = vshrl.u32 %v1352, 16
        %v1623 = vrot.slane %v1621, 7
        %v1624 = vshll.u32 %v1352, 16
        %v1626 = vor.u32 %v1623, %v1624
        %v1628 = vshrl.u32 %v1353, 16
        %v1630 = vrot.slane %v1628, 7
        %v1631 = vshll.u32 %v1353, 16
        %v1633 = vor.u32 %v1630, %v1631
        %v1635 = vshrl.u32 %v1354, 16
        %v1637 = vrot.slane %v1635, 7
        %v1638 = vshll.u32 %v1354, 16
        %v1640 = vor.u32 %v1637, %v1638
        %v1642 = vshrl.u32 %v1355, 16
        %v1644 = vrot.slane %v1642, 7
        %v1645 = vshll.u32 %v1355, 16
        %v1647 = vor.u32 %v1644, %v1645
        %v1649 = vshrl.u32 %v1356, 16
        %v1651 = vrot.slane %v1649, 7
        %v1652 = vshll.u32 %v1356, 16
        %v1654 = vor.u32 %v1651, %v1652
        %v1656 = vshrl.u32 %v1357, 16
        %v1658 = vrot.slane %v1656, 7
        %v1659 = vshll.u32 %v1357, 16
        %v1661 = vor.u32 %v1658, %v1659
        %v1663 = vshrl.u32 %v1358, 16
        %v1665 = vrot.slane %v1663, 7
        %v1666 = vshll.u32 %v1358, 16
        %v1668 = vor.u32 %v1665, %v1666
        %v1670 = vshrl.u32 %v1359, 16
        %v1672 = vrot.slane %v1670, 7
        %v1673 = vshll.u32 %v1359, 16
        %v1675 = vor.u32 %v1672, %v1673
        %v1677 = vshrl.u32 %v1360, 16
        %v1679 = vrot.slane %v1677, 7
        %v1680 = vshll.u32 %v1360, 16
        %v1682 = vor.u32 %v1679, %v1680
        %v1684 = vshrl.u32 %v1361, 16
        %v1686 = vrot.slane %v1684, 7
        %v1687 = vshll.u32 %v1361, 16
        %v1689 = vor.u32 %v1686, %v1687
        %v1691 = vshrl.u32 %v1362, 16
        %v1693 = vrot.slane %v1691, 7
        %v1694 = vshll.u32 %v1362, 16
        %v1696 = vor.u32 %v1693, %v1694
        %v1698 = vshrl.u32 %v1363, 16
        %v1700 = vrot.slane %v1698, 7
        %v1701 = vshll.u32 %v1363, 16
        %v1703 = vor.u32 %v1700, %v1701
        %v1705 = vshrl.u32 %v1364, 16
        %v1707 = vrot.slane %v1705, 7
        %v1708 = vshll.u32 %v1364, 16
        %v1710 = vor.u32 %v1707, %v1708
        %v1712 = vshrl.u32 %v1365, 16
        %v1714 = vrot.slane %v1712, 7
        %v1715 = vshll.u32 %v1365, 16
        %v1717 = vor.u32 %v1714, %v1715
        %v1719 = vshrl.u32 %v1366, 16
        %v1721 = vrot.slane %v1719, 7
        %v1722 = vshll.u32 %v1366, 16
        %v1724 = vor.u32 %v1721, %v1722
        %v1726 = vshrl.u32 %v1367, 16
        %v1728 = vrot.slane %v1726, 7
        %v1729 = vshll.u32 %v1367, 16
        %v1731 = vor.u32 %v1728, %v1729
        %v1733 = vshrl.u32 %v1368, 16
        %v1735 = vrot.slane %v1733, 7
        %v1736 = vshll.u32 %v1368, 16
        %v1738 = vor.u32 %v1735, %v1736
        %v1740 = vshrl.u32 %v1369, 16
        %v1742 = vrot.slane %v1740, 7
        %v1743 = vshll.u32 %v1369, 16
        %v1745 = vor.u32 %v1742, %v1743
        %v1747 = vshrl.u32 %v1370, 16
        %v1749 = vrot.slane %v1747, 7
        %v1750 = vshll.u32 %v1370, 16
        %v1752 = vor.u32 %v1749, %v1750
        %v1754 = vshrl.u32 %v1371, 16
        %v1756 = vrot.slane %v1754, 7
        %v1757 = vshll.u32 %v1371, 16
        %v1759 = vor.u32 %v1756, %v1757
        %s1788 = scalar_lea.vmem [#allocation2], 16
        %vm1789 = vcmask 523264
        %vm1790 = vsmask.f32 7938
        %vm1791 = vmand %vm1789, %vm1790
        %v1792 = vld [vmem:[%s1788] sm:$0xff]
        %v1793 = vsel %vm1791, %v1570, %v1792
        %1794 = vst [vmem:[%s1788] sm:$0xff] %v1793
        %v1795 = vld [vmem:[%s1788 + $0x10] sm:$0xff]
        %v1796 = vsel %vm1791, %v1577, %v1795
        %1797 = vst [vmem:[%s1788 + $0x10] sm:$0xff] %v1796
        %v1798 = vld [vmem:[%s1788 + $0x20] sm:$0xff]
        %v1799 = vsel %vm1791, %v1584, %v1798
        %1800 = vst [vmem:[%s1788 + $0x20] sm:$0xff] %v1799
        %v1801 = vld [vmem:[%s1788 + $0x30] sm:$0xff]
        %v1802 = vsel %vm1791, %v1591, %v1801
        %1803 = vst [vmem:[%s1788 + $0x30] sm:$0xff] %v1802
        %v1804 = vld [vmem:[%s1788 + $0x40] sm:$0xff]
        %v1805 = vsel %vm1791, %v1598, %v1804
        %1806 = vst [vmem:[%s1788 + $0x40] sm:$0xff] %v1805
        %v1807 = vld [vmem:[%s1788 + $0x50] sm:$0xff]
        %v1808 = vsel %vm1791, %v1605, %v1807
        %1809 = vst [vmem:[%s1788 + $0x50] sm:$0xff] %v1808
        %v1810 = vld [vmem:[%s1788 + $0x60] sm:$0xff]
        %v1811 = vsel %vm1791, %v1612, %v1810
        %1812 = vst [vmem:[%s1788 + $0x60] sm:$0xff] %v1811
        %v1813 = vld [vmem:[%s1788 + $0x70] sm:$0xff]
        %v1814 = vsel %vm1791, %v1619, %v1813
        %1815 = vst [vmem:[%s1788 + $0x70] sm:$0xff] %v1814
        %v1816 = vld [vmem:[%s1788 + $0x80] sm:$0xff]
        %v1817 = vsel %vm1791, %v1626, %v1816
        %1818 = vst [vmem:[%s1788 + $0x80] sm:$0xff] %v1817
        %v1819 = vld [vmem:[%s1788 + $0x90] sm:$0xff]
        %v1820 = vsel %vm1791, %v1633, %v1819
        %1821 = vst [vmem:[%s1788 + $0x90] sm:$0xff] %v1820
        %v1822 = vld [vmem:[%s1788 + $0xa0] sm:$0xff]
        %v1823 = vsel %vm1791, %v1640, %v1822
        %1824 = vst [vmem:[%s1788 + $0xa0] sm:$0xff] %v1823
        %v1825 = vld [vmem:[%s1788 + $0xb0] sm:$0xff]
        %v1826 = vsel %vm1791, %v1647, %v1825
        %1827 = vst [vmem:[%s1788 + $0xb0] sm:$0xff] %v1826
        %v1828 = vld [vmem:[%s1788 + $0xc0] sm:$0xff]
        %v1829 = vsel %vm1791, %v1654, %v1828
        %1830 = vst [vmem:[%s1788 + $0xc0] sm:$0xff] %v1829
        %v1831 = vld [vmem:[%s1788 + $0xd0] sm:$0xff]
        %v1832 = vsel %vm1791, %v1661, %v1831
        %1833 = vst [vmem:[%s1788 + $0xd0] sm:$0xff] %v1832
        %v1834 = vld [vmem:[%s1788 + $0xe0] sm:$0xff]
        %v1835 = vsel %vm1791, %v1668, %v1834
        %1836 = vst [vmem:[%s1788 + $0xe0] sm:$0xff] %v1835
        %v1837 = vld [vmem:[%s1788 + $0xf0] sm:$0xff]
        %v1838 = vsel %vm1791, %v1675, %v1837
        %1839 = vst [vmem:[%s1788 + $0xf0] sm:$0xff] %v1838
        %v1840 = vld [vmem:[%s1788 + $0x100] sm:$0xff]
        %v1841 = vsel %vm1791, %v1682, %v1840
        %1842 = vst [vmem:[%s1788 + $0x100] sm:$0xff] %v1841
        %v1843 = vld [vmem:[%s1788 + $0x110] sm:$0xff]
        %v1844 = vsel %vm1791, %v1689, %v1843
        %1845 = vst [vmem:[%s1788 + $0x110] sm:$0xff] %v1844
        %v1846 = vld [vmem:[%s1788 + $0x120] sm:$0xff]
        %v1847 = vsel %vm1791, %v1696, %v1846
        %1848 = vst [vmem:[%s1788 + $0x120] sm:$0xff] %v1847
        %v1849 = vld [vmem:[%s1788 + $0x130] sm:$0xff]
        %v1850 = vsel %vm1791, %v1703, %v1849
        %1851 = vst [vmem:[%s1788 + $0x130] sm:$0xff] %v1850
        %v1852 = vld [vmem:[%s1788 + $0x140] sm:$0xff]
        %v1853 = vsel %vm1791, %v1710, %v1852
        %1854 = vst [vmem:[%s1788 + $0x140] sm:$0xff] %v1853
        %v1855 = vld [vmem:[%s1788 + $0x150] sm:$0xff]
        %v1856 = vsel %vm1791, %v1717, %v1855
        %1857 = vst [vmem:[%s1788 + $0x150] sm:$0xff] %v1856
        %v1858 = vld [vmem:[%s1788 + $0x160] sm:$0xff]
        %v1859 = vsel %vm1791, %v1724, %v1858
        %1860 = vst [vmem:[%s1788 + $0x160] sm:$0xff] %v1859
        %v1861 = vld [vmem:[%s1788 + $0x170] sm:$0xff]
        %v1862 = vsel %vm1791, %v1731, %v1861
        %1863 = vst [vmem:[%s1788 + $0x170] sm:$0xff] %v1862
        %v1864 = vld [vmem:[%s1788 + $0x180] sm:$0xff]
        %v1865 = vsel %vm1791, %v1738, %v1864
        %1866 = vst [vmem:[%s1788 + $0x180] sm:$0xff] %v1865
        %v1867 = vld [vmem:[%s1788 + $0x190] sm:$0xff]
        %v1868 = vsel %vm1791, %v1745, %v1867
        %1869 = vst [vmem:[%s1788 + $0x190] sm:$0xff] %v1868
        %v1870 = vld [vmem:[%s1788 + $0x1a0] sm:$0xff]
        %v1871 = vsel %vm1791, %v1752, %v1870
        %1872 = vst [vmem:[%s1788 + $0x1a0] sm:$0xff] %v1871
        %v1873 = vld [vmem:[%s1788 + $0x1b0] sm:$0xff]
        %v1874 = vsel %vm1791, %v1759, %v1873
        %1875 = vst [vmem:[%s1788 + $0x1b0] sm:$0xff] %v1874
        %1904 = vrot.lane.b32.xlu0 %v1344, 64
        %v1905 = vpop.permute.xlu0 %1904
        %1906 = vrot.lane.b32.xlu0 %v1345, 64
        %v1907 = vpop.permute.xlu0 %1906
        %1908 = vrot.lane.b32.xlu0 %v1346, 64
        %v1909 = vpop.permute.xlu0 %1908
        %1910 = vrot.lane.b32.xlu0 %v1347, 64
        %v1911 = vpop.permute.xlu0 %1910
        %1912 = vrot.lane.b32.xlu0 %v1348, 64
        %v1913 = vpop.permute.xlu0 %1912
        %1914 = vrot.lane.b32.xlu0 %v1349, 64
        %v1915 = vpop.permute.xlu0 %1914
        %1916 = vrot.lane.b32.xlu0 %v1350, 64
        %v1917 = vpop.permute.xlu0 %1916
        %1918 = vrot.lane.b32.xlu0 %v1351, 64
        %v1919 = vpop.permute.xlu0 %1918
        %1920 = vrot.lane.b32.xlu0 %v1352, 64
        %v1921 = vpop.permute.xlu0 %1920
        %1922 = vrot.lane.b32.xlu0 %v1353, 64
        %v1923 = vpop.permute.xlu0 %1922
        %1924 = vrot.lane.b32.xlu0 %v1354, 64
        %v1925 = vpop.permute.xlu0 %1924
        %1926 = vrot.lane.b32.xlu0 %v1355, 64
        %v1927 = vpop.permute.xlu0 %1926
        %1928 = vrot.lane.b32.xlu0 %v1356, 64
        %v1929 = vpop.permute.xlu0 %1928
        %1930 = vrot.lane.b32.xlu0 %v1357, 64
        %v1931 = vpop.permute.xlu0 %1930
        %1932 = vrot.lane.b32.xlu0 %v1358, 64
        %v1933 = vpop.permute.xlu0 %1932
        %1934 = vrot.lane.b32.xlu0 %v1359, 64
        %v1935 = vpop.permute.xlu0 %1934
        %1936 = vrot.lane.b32.xlu0 %v1360, 64
        %v1937 = vpop.permute.xlu0 %1936
        %1938 = vrot.lane.b32.xlu0 %v1361, 64
        %v1939 = vpop.permute.xlu0 %1938
        %1940 = vrot.lane.b32.xlu0 %v1362, 64
        %v1941 = vpop.permute.xlu0 %1940
        %1942 = vrot.lane.b32.xlu0 %v1363, 64
        %v1943 = vpop.permute.xlu0 %1942
        %1944 = vrot.lane.b32.xlu0 %v1364, 64
        %v1945 = vpop.permute.xlu0 %1944
        %1946 = vrot.lane.b32.xlu0 %v1365, 64
        %v1947 = vpop.permute.xlu0 %1946
        %1948 = vrot.lane.b32.xlu0 %v1366, 64
        %v1949 = vpop.permute.xlu0 %1948
        %1950 = vrot.lane.b32.xlu0 %v1367, 64
        %v1951 = vpop.permute.xlu0 %1950
        %1952 = vrot.lane.b32.xlu0 %v1368, 64
        %v1953 = vpop.permute.xlu0 %1952
        %1954 = vrot.lane.b32.xlu0 %v1369, 64
        %v1955 = vpop.permute.xlu0 %1954
        %1956 = vrot.lane.b32.xlu0 %v1370, 64
        %v1957 = vpop.permute.xlu0 %1956
        %1958 = vrot.lane.b32.xlu0 %v1371, 64
        %v1959 = vpop.permute.xlu0 %1958
        %vm1988 = vcmask 1048064
        %1989 = vst.msk [vmem:[%s1788] sm:$0xff] %vm1988, %v1905
        %1990 = vst.msk [vmem:[%s1788 + $0x10] sm:$0xff] %vm1988, %v1907
        %1991 = vst.msk [vmem:[%s1788 + $0x20] sm:$0xff] %vm1988, %v1909
        %1992 = vst.msk [vmem:[%s1788 + $0x30] sm:$0xff] %vm1988, %v1911
        %1993 = vst.msk [vmem:[%s1788 + $0x40] sm:$0xff] %vm1988, %v1913
        %1994 = vst.msk [vmem:[%s1788 + $0x50] sm:$0xff] %vm1988, %v1915
        %1995 = vst.msk [vmem:[%s1788 + $0x60] sm:$0xff] %vm1988, %v1917
        %1996 = vst.msk [vmem:[%s1788 + $0x70] sm:$0xff] %vm1988, %v1919
        %1997 = vst.msk [vmem:[%s1788 + $0x80] sm:$0xff] %vm1988, %v1921
        %1998 = vst.msk [vmem:[%s1788 + $0x90] sm:$0xff] %vm1988, %v1923
        %1999 = vst.msk [vmem:[%s1788 + $0xa0] sm:$0xff] %vm1988, %v1925
        %2000 = vst.msk [vmem:[%s1788 + $0xb0] sm:$0xff] %vm1988, %v1927
        %2001 = vst.msk [vmem:[%s1788 + $0xc0] sm:$0xff] %vm1988, %v1929
        %2002 = vst.msk [vmem:[%s1788 + $0xd0] sm:$0xff] %vm1988, %v1931
        %2003 = vst.msk [vmem:[%s1788 + $0xe0] sm:$0xff] %vm1988, %v1933
        %2004 = vst.msk [vmem:[%s1788 + $0xf0] sm:$0xff] %vm1988, %v1935
        %2005 = vst.msk [vmem:[%s1788 + $0x100] sm:$0xff] %vm1988, %v1937
        %2006 = vst.msk [vmem:[%s1788 + $0x110] sm:$0xff] %vm1988, %v1939
        %2007 = vst.msk [vmem:[%s1788 + $0x120] sm:$0xff] %vm1988, %v1941
        %2008 = vst.msk [vmem:[%s1788 + $0x130] sm:$0xff] %vm1988, %v1943
        %2009 = vst.msk [vmem:[%s1788 + $0x140] sm:$0xff] %vm1988, %v1945
        %2010 = vst.msk [vmem:[%s1788 + $0x150] sm:$0xff] %vm1988, %v1947
        %2011 = vst.msk [vmem:[%s1788 + $0x160] sm:$0xff] %vm1988, %v1949
        %2012 = vst.msk [vmem:[%s1788 + $0x170] sm:$0xff] %vm1988, %v1951
        %2013 = vst.msk [vmem:[%s1788 + $0x180] sm:$0xff] %vm1988, %v1953
        %2014 = vst.msk [vmem:[%s1788 + $0x190] sm:$0xff] %vm1988, %v1955
        %2015 = vst.msk [vmem:[%s1788 + $0x1a0] sm:$0xff] %vm1988, %v1957
        %2016 = vst.msk [vmem:[%s1788 + $0x1b0] sm:$0xff] %vm1988, %v1959
        %v2017 = vrot.slane %v1568, 1
        %v2018 = vor.u32 %v1565, %v2017
        %v2019 = vrot.slane %v1575, 1
        %v2020 = vor.u32 %v1572, %v2019
        %v2021 = vrot.slane %v1582, 1
        %v2022 = vor.u32 %v1579, %v2021
        %v2023 = vrot.slane %v1589, 1
        %v2024 = vor.u32 %v1586, %v2023
        %v2025 = vrot.slane %v1596, 1
        %v2026 = vor.u32 %v1593, %v2025
        %v2027 = vrot.slane %v1603, 1
        %v2028 = vor.u32 %v1600, %v2027
        %v2029 = vrot.slane %v1610, 1
        %v2030 = vor.u32 %v1607, %v2029
        %v2031 = vrot.slane %v1617, 1
        %v2032 = vor.u32 %v1614, %v2031
        %v2033 = vrot.slane %v1624, 1
        %v2034 = vor.u32 %v1621, %v2033
        %v2035 = vrot.slane %v1631, 1
        %v2036 = vor.u32 %v1628, %v2035
        %v2037 = vrot.slane %v1638, 1
        %v2038 = vor.u32 %v1635, %v2037
        %v2039 = vrot.slane %v1645, 1
        %v2040 = vor.u32 %v1642, %v2039
        %v2041 = vrot.slane %v1652, 1
        %v2042 = vor.u32 %v1649, %v2041
        %v2043 = vrot.slane %v1659, 1
        %v2044 = vor.u32 %v1656, %v2043
        %v2045 = vrot.slane %v1666, 1
        %v2046 = vor.u32 %v1663, %v2045
        %v2047 = vrot.slane %v1673, 1
        %v2048 = vor.u32 %v1670, %v2047
        %v2049 = vrot.slane %v1680, 1
        %v2050 = vor.u32 %v1677, %v2049
        %v2051 = vrot.slane %v1687, 1
        %v2052 = vor.u32 %v1684, %v2051
        %v2053 = vrot.slane %v1694, 1
        %v2054 = vor.u32 %v1691, %v2053
        %v2055 = vrot.slane %v1701, 1
        %v2056 = vor.u32 %v1698, %v2055
        %v2057 = vrot.slane %v1708, 1
        %v2058 = vor.u32 %v1705, %v2057
        %v2059 = vrot.slane %v1715, 1
        %v2060 = vor.u32 %v1712, %v2059
        %v2061 = vrot.slane %v1722, 1
        %v2062 = vor.u32 %v1719, %v2061
        %v2063 = vrot.slane %v1729, 1
        %v2064 = vor.u32 %v1726, %v2063
        %v2065 = vrot.slane %v1736, 1
        %v2066 = vor.u32 %v1733, %v2065
        %v2067 = vrot.slane %v1743, 1
        %v2068 = vor.u32 %v1740, %v2067
        %v2069 = vrot.slane %v1750, 1
        %v2070 = vor.u32 %v1747, %v2069
        %v2071 = vrot.slane %v1757, 1
        %v2072 = vor.u32 %v1754, %v2071
        %vm2101 = vsmask.f32 7424
        %vm2102 = vmand %vm1789, %vm2101
        %v2103 = vld [vmem:[%s1788 + $0x8] sm:$0xff]
        %v2104 = vsel %vm2102, %v2018, %v2103
        %2105 = vst [vmem:[%s1788 + $0x8] sm:$0xff] %v2104
        %v2106 = vld [vmem:[%s1788 + $0x18] sm:$0xff]
        %v2107 = vsel %vm2102, %v2020, %v2106
        %2108 = vst [vmem:[%s1788 + $0x18] sm:$0xff] %v2107
        %v2109 = vld [vmem:[%s1788 + $0x28] sm:$0xff]
        %v2110 = vsel %vm2102, %v2022, %v2109
        %2111 = vst [vmem:[%s1788 + $0x28] sm:$0xff] %v2110
        %v2112 = vld [vmem:[%s1788 + $0x38] sm:$0xff]
        %v2113 = vsel %vm2102, %v2024, %v2112
        %2114 = vst [vmem:[%s1788 + $0x38] sm:$0xff] %v2113
        %v2115 = vld [vmem:[%s1788 + $0x48] sm:$0xff]
        %v2116 = vsel %vm2102, %v2026, %v2115
        %2117 = vst [vmem:[%s1788 + $0x48] sm:$0xff] %v2116
        %v2118 = vld [vmem:[%s1788 + $0x58] sm:$0xff]
        %v2119 = vsel %vm2102, %v2028, %v2118
        %2120 = vst [vmem:[%s1788 + $0x58] sm:$0xff] %v2119
        %v2121 = vld [vmem:[%s1788 + $0x68] sm:$0xff]
        %v2122 = vsel %vm2102, %v2030, %v2121
        %2123 = vst [vmem:[%s1788 + $0x68] sm:$0xff] %v2122
        %v2124 = vld [vmem:[%s1788 + $0x78] sm:$0xff]
        %v2125 = vsel %vm2102, %v2032, %v2124
        %2126 = vst [vmem:[%s1788 + $0x78] sm:$0xff] %v2125
        %v2127 = vld [vmem:[%s1788 + $0x88] sm:$0xff]
        %v2128 = vsel %vm2102, %v2034, %v2127
        %2129 = vst [vmem:[%s1788 + $0x88] sm:$0xff] %v2128
        %v2130 = vld [vmem:[%s1788 + $0x98] sm:$0xff]
        %v2131 = vsel %vm2102, %v2036, %v2130
        %2132 = vst [vmem:[%s1788 + $0x98] sm:$0xff] %v2131
        %v2133 = vld [vmem:[%s1788 + $0xa8] sm:$0xff]
        %v2134 = vsel %vm2102, %v2038, %v2133
        %2135 = vst [vmem:[%s1788 + $0xa8] sm:$0xff] %v2134
        %v2136 = vld [vmem:[%s1788 + $0xb8] sm:$0xff]
        %v2137 = vsel %vm2102, %v2040, %v2136
        %2138 = vst [vmem:[%s1788 + $0xb8] sm:$0xff] %v2137
        %v2139 = vld [vmem:[%s1788 + $0xc8] sm:$0xff]
        %v2140 = vsel %vm2102, %v2042, %v2139
        %2141 = vst [vmem:[%s1788 + $0xc8] sm:$0xff] %v2140
        %v2142 = vld [vmem:[%s1788 + $0xd8] sm:$0xff]
        %v2143 = vsel %vm2102, %v2044, %v2142
        %2144 = vst [vmem:[%s1788 + $0xd8] sm:$0xff] %v2143
        %v2145 = vld [vmem:[%s1788 + $0xe8] sm:$0xff]
        %v2146 = vsel %vm2102, %v2046, %v2145
        %2147 = vst [vmem:[%s1788 + $0xe8] sm:$0xff] %v2146
        %v2148 = vld [vmem:[%s1788 + $0xf8] sm:$0xff]
        %v2149 = vsel %vm2102, %v2048, %v2148
        %2150 = vst [vmem:[%s1788 + $0xf8] sm:$0xff] %v2149
        %v2151 = vld [vmem:[%s1788 + $0x108] sm:$0xff]
        %v2152 = vsel %vm2102, %v2050, %v2151
        %2153 = vst [vmem:[%s1788 + $0x108] sm:$0xff] %v2152
        %v2154 = vld [vmem:[%s1788 + $0x118] sm:$0xff]
        %v2155 = vsel %vm2102, %v2052, %v2154
        %2156 = vst [vmem:[%s1788 + $0x118] sm:$0xff] %v2155
        %v2157 = vld [vmem:[%s1788 + $0x128] sm:$0xff]
        %v2158 = vsel %vm2102, %v2054, %v2157
        %2159 = vst [vmem:[%s1788 + $0x128] sm:$0xff] %v2158
        %v2160 = vld [vmem:[%s1788 + $0x138] sm:$0xff]
        %v2161 = vsel %vm2102, %v2056, %v2160
        %2162 = vst [vmem:[%s1788 + $0x138] sm:$0xff] %v2161
        %v2163 = vld [vmem:[%s1788 + $0x148] sm:$0xff]
        %v2164 = vsel %vm2102, %v2058, %v2163
        %2165 = vst [vmem:[%s1788 + $0x148] sm:$0xff] %v2164
        %v2166 = vld [vmem:[%s1788 + $0x158] sm:$0xff]
        %v2167 = vsel %vm2102, %v2060, %v2166
        %2168 = vst [vmem:[%s1788 + $0x158] sm:$0xff] %v2167
        %v2169 = vld [vmem:[%s1788 + $0x168] sm:$0xff]
        %v2170 = vsel %vm2102, %v2062, %v2169
        %2171 = vst [vmem:[%s1788 + $0x168] sm:$0xff] %v2170
        %v2172 = vld [vmem:[%s1788 + $0x178] sm:$0xff]
        %v2173 = vsel %vm2102, %v2064, %v2172
        %2174 = vst [vmem:[%s1788 + $0x178] sm:$0xff] %v2173
        %v2175 = vld [vmem:[%s1788 + $0x188] sm:$0xff]
        %v2176 = vsel %vm2102, %v2066, %v2175
        %2177 = vst [vmem:[%s1788 + $0x188] sm:$0xff] %v2176
        %v2178 = vld [vmem:[%s1788 + $0x198] sm:$0xff]
        %v2179 = vsel %vm2102, %v2068, %v2178
        %2180 = vst [vmem:[%s1788 + $0x198] sm:$0xff] %v2179
        %v2181 = vld [vmem:[%s1788 + $0x1a8] sm:$0xff]
        %v2182 = vsel %vm2102, %v2070, %v2181
        %2183 = vst [vmem:[%s1788 + $0x1a8] sm:$0xff] %v2182
        %v2184 = vld [vmem:[%s1788 + $0x1b8] sm:$0xff]
        %v2185 = vsel %vm2102, %v2072, %v2184
        %2186 = vst [vmem:[%s1788 + $0x1b8] sm:$0xff] %v2185
        %v2187 = vld [vmem:[#allocation2] sm:$0xff]
        %v2188 = vld [vmem:[#allocation2 + $0x8] sm:$0xff]
        %v2189 = vld [vmem:[#allocation2 + $0x10] sm:$0xff]
        %v2190 = vld [vmem:[#allocation2 + $0x18] sm:$0xff]
        %v2191 = vld [vmem:[#allocation2 + $0x20] sm:$0xff]
        %v2192 = vld [vmem:[#allocation2 + $0x28] sm:$0xff]
        %v2193 = vld [vmem:[#allocation2 + $0x30] sm:$0xff]
        %v2194 = vld [vmem:[#allocation2 + $0x38] sm:$0xff]
        %v2195 = vld [vmem:[#allocation2 + $0x40] sm:$0xff]
        %v2196 = vld [vmem:[#allocation2 + $0x48] sm:$0xff]
        %v2197 = vld [vmem:[#allocation2 + $0x50] sm:$0xff]
        %v2198 = vld [vmem:[#allocation2 + $0x58] sm:$0xff]
        %v2199 = vld [vmem:[#allocation2 + $0x60] sm:$0xff]
        %v2200 = vld [vmem:[#allocation2 + $0x68] sm:$0xff]
        %v2201 = vld [vmem:[#allocation2 + $0x70] sm:$0xff]
        %v2202 = vld [vmem:[#allocation2 + $0x78] sm:$0xff]
        %v2203 = vld [vmem:[#allocation2 + $0x80] sm:$0xff]
        %v2204 = vld [vmem:[#allocation2 + $0x88] sm:$0xff]
        %v2205 = vld [vmem:[#allocation2 + $0x90] sm:$0xff]
        %v2206 = vld [vmem:[#allocation2 + $0x98] sm:$0xff]
        %v2207 = vld [vmem:[#allocation2 + $0xa0] sm:$0xff]
        %v2208 = vld [vmem:[#allocation2 + $0xa8] sm:$0xff]
        %v2209 = vld [vmem:[#allocation2 + $0xb0] sm:$0xff]
        %v2210 = vld [vmem:[#allocation2 + $0xb8] sm:$0xff]
        %v2211 = vld [vmem:[#allocation2 + $0xc0] sm:$0xff]
        %v2212 = vld [vmem:[#allocation2 + $0xc8] sm:$0xff]
        %v2213 = vld [vmem:[#allocation2 + $0xd0] sm:$0xff]
        %v2214 = vld [vmem:[#allocation2 + $0xd8] sm:$0xff]
        %v2215 = vld [vmem:[#allocation2 + $0xe0] sm:$0xff]
        %v2216 = vld [vmem:[#allocation2 + $0xe8] sm:$0xff]
        %v2217 = vld [vmem:[#allocation2 + $0xf0] sm:$0xff]
        %v2218 = vld [vmem:[#allocation2 + $0xf8] sm:$0xff]
        %v2219 = vld [vmem:[#allocation2 + $0x100] sm:$0xff]
        %v2220 = vld [vmem:[#allocation2 + $0x108] sm:$0xff]
        %v2221 = vld [vmem:[#allocation2 + $0x110] sm:$0xff]
        %v2222 = vld [vmem:[#allocation2 + $0x118] sm:$0xff]
        %v2223 = vld [vmem:[#allocation2 + $0x120] sm:$0xff]
        %v2224 = vld [vmem:[#allocation2 + $0x128] sm:$0xff]
        %v2225 = vld [vmem:[#allocation2 + $0x130] sm:$0xff]
        %v2226 = vld [vmem:[#allocation2 + $0x138] sm:$0xff]
        %v2227 = vld [vmem:[#allocation2 + $0x140] sm:$0xff]
        %v2228 = vld [vmem:[#allocation2 + $0x148] sm:$0xff]
        %v2229 = vld [vmem:[#allocation2 + $0x150] sm:$0xff]
        %v2230 = vld [vmem:[#allocation2 + $0x158] sm:$0xff]
        %v2231 = vld [vmem:[#allocation2 + $0x160] sm:$0xff]
        %v2232 = vld [vmem:[#allocation2 + $0x168] sm:$0xff]
        %v2233 = vld [vmem:[#allocation2 + $0x170] sm:$0xff]
        %v2234 = vld [vmem:[#allocation2 + $0x178] sm:$0xff]
        %v2235 = vld [vmem:[#allocation2 + $0x180] sm:$0xff]
        %v2236 = vld [vmem:[#allocation2 + $0x188] sm:$0xff]
        %v2237 = vld [vmem:[#allocation2 + $0x190] sm:$0xff]
        %v2238 = vld [vmem:[#allocation2 + $0x198] sm:$0xff]
        %v2239 = vld [vmem:[#allocation2 + $0x1a0] sm:$0xff]
        %v2240 = vld [vmem:[#allocation2 + $0x1a8] sm:$0xff]
        %v2241 = vld [vmem:[#allocation2 + $0x1b0] sm:$0xff]
        %v2242 = vld [vmem:[#allocation2 + $0x1b8] sm:$0xff]
        %v2243 = vld [vmem:[#allocation12] sm:$0xf]
        %v2244 = vld [vmem:[#allocation12 + $0x4] sm:$0xf]
        %v2245 = vld [vmem:[#allocation12 + $0x8] sm:$0xf]
        %v2246 = vld [vmem:[#allocation12 + $0xc] sm:$0xf]
        %v2247 = vld [vmem:[#allocation12 + $0x10] sm:$0xf]
        %v2248 = vld [vmem:[#allocation12 + $0x14] sm:$0xf]
        %v2249 = vld [vmem:[#allocation12 + $0x18] sm:$0xf]
        %v2250 = vld [vmem:[#allocation12 + $0x1c] sm:$0xf]
        %v2251 = vld [vmem:[#allocation12 + $0x20] sm:$0xf]
        %v2252 = vld [vmem:[#allocation12 + $0x24] sm:$0xf]
        %v2253 = vld [vmem:[#allocation12 + $0x28] sm:$0xf]
        %v2254 = vld [vmem:[#allocation12 + $0x2c] sm:$0xf]
        %v2255 = vld [vmem:[#allocation12 + $0x30] sm:$0xf]
        %v2256 = vld [vmem:[#allocation12 + $0x34] sm:$0xf]
        %v2257 = vld [vmem:[#allocation12 + $0x38] sm:$0xf]
        %v2258 = vld [vmem:[#allocation12 + $0x3c] sm:$0xf]
        %v2259 = vld [vmem:[#allocation12 + $0x40] sm:$0xf]
        %v2260 = vld [vmem:[#allocation12 + $0x44] sm:$0xf]
        %v2261 = vld [vmem:[#allocation12 + $0x48] sm:$0xf]
        %v2262 = vld [vmem:[#allocation12 + $0x4c] sm:$0xf]
        %v2263 = vld [vmem:[#allocation12 + $0x50] sm:$0xf]
        %v2264 = vld [vmem:[#allocation12 + $0x54] sm:$0xf]
        %v2265 = vld [vmem:[#allocation12 + $0x58] sm:$0xf]
        %v2266 = vld [vmem:[#allocation12 + $0x5c] sm:$0xf]
        %v2267 = vld [vmem:[%s1788] sm:$0xff]
        %v2268 = vld [vmem:[%s1788 + $0x8] sm:$0xff]
        %v2269 = vld [vmem:[%s1788 + $0x10] sm:$0xff]
        %v2270 = vld [vmem:[%s1788 + $0x18] sm:$0xff]
        %v2271 = vld [vmem:[%s1788 + $0x20] sm:$0xff]
        %v2272 = vld [vmem:[%s1788 + $0x28] sm:$0xff]
        %v2273 = vld [vmem:[%s1788 + $0x30] sm:$0xff]
        %v2274 = vld [vmem:[%s1788 + $0x38] sm:$0xff]
        %v2275 = vld [vmem:[%s1788 + $0x40] sm:$0xff]
        %v2276 = vld [vmem:[%s1788 + $0x48] sm:$0xff]
        %v2277 = vld [vmem:[%s1788 + $0x50] sm:$0xff]
        %v2278 = vld [vmem:[%s1788 + $0x58] sm:$0xff]
        %v2279 = vld [vmem:[%s1788 + $0x60] sm:$0xff]
        %v2280 = vld [vmem:[%s1788 + $0x68] sm:$0xff]
        %v2281 = vld [vmem:[%s1788 + $0x70] sm:$0xff]
        %v2282 = vld [vmem:[%s1788 + $0x78] sm:$0xff]
        %v2283 = vld [vmem:[%s1788 + $0x80] sm:$0xff]
        %v2284 = vld [vmem:[%s1788 + $0x88] sm:$0xff]
        %v2285 = vld [vmem:[%s1788 + $0x90] sm:$0xff]
        %v2286 = vld [vmem:[%s1788 + $0x98] sm:$0xff]
        %v2287 = vld [vmem:[%s1788 + $0xa0] sm:$0xff]
        %v2288 = vld [vmem:[%s1788 + $0xa8] sm:$0xff]
        %v2289 = vld [vmem:[%s1788 + $0xb0] sm:$0xff]
        %v2290 = vld [vmem:[%s1788 + $0xb8] sm:$0xff]
        %v2291 = vld [vmem:[%s1788 + $0xc0] sm:$0xff]
        %v2292 = vld [vmem:[%s1788 + $0xc8] sm:$0xff]
        %v2293 = vld [vmem:[%s1788 + $0xd0] sm:$0xff]
        %v2294 = vld [vmem:[%s1788 + $0xd8] sm:$0xff]
        %v2295 = vld [vmem:[%s1788 + $0xe0] sm:$0xff]
        %v2296 = vld [vmem:[%s1788 + $0xe8] sm:$0xff]
        %v2297 = vld [vmem:[%s1788 + $0xf0] sm:$0xff]
        %v2298 = vld [vmem:[%s1788 + $0xf8] sm:$0xff]
        %v2299 = vld [vmem:[%s1788 + $0x100] sm:$0xff]
        %v2300 = vld [vmem:[%s1788 + $0x108] sm:$0xff]
        %v2301 = vld [vmem:[%s1788 + $0x110] sm:$0xff]
        %v2302 = vld [vmem:[%s1788 + $0x118] sm:$0xff]
        %v2303 = vld [vmem:[%s1788 + $0x120] sm:$0xff]
        %v2304 = vld [vmem:[%s1788 + $0x128] sm:$0xff]
        %v2305 = vld [vmem:[%s1788 + $0x130] sm:$0xff]
        %v2306 = vld [vmem:[%s1788 + $0x138] sm:$0xff]
        %v2307 = vld [vmem:[%s1788 + $0x140] sm:$0xff]
        %v2308 = vld [vmem:[%s1788 + $0x148] sm:$0xff]
        %v2309 = vld [vmem:[%s1788 + $0x150] sm:$0xff]
        %v2310 = vld [vmem:[%s1788 + $0x158] sm:$0xff]
        %v2311 = vld [vmem:[%s1788 + $0x160] sm:$0xff]
        %v2312 = vld [vmem:[%s1788 + $0x168] sm:$0xff]
        %v2313 = vld [vmem:[%s1788 + $0x170] sm:$0xff]
        %v2314 = vld [vmem:[%s1788 + $0x178] sm:$0xff]
        %v2315 = vld [vmem:[%s1788 + $0x180] sm:$0xff]
        %v2316 = vld [vmem:[%s1788 + $0x188] sm:$0xff]
        %v2317 = vld [vmem:[%s1788 + $0x190] sm:$0xff]
        %v2318 = vld [vmem:[%s1788 + $0x198] sm:$0xff]
        %v2319 = vld [vmem:[%s1788 + $0x1a0] sm:$0xff]
        %v2320 = vld [vmem:[%s1788 + $0x1a8] sm:$0xff]
        %v2321 = vld [vmem:[%s1788 + $0x1b0] sm:$0xff]
        %v2322 = vld [vmem:[%s1788 + $0x1b8] sm:$0xff]
        %s2323 = scalar_lea.vmem [#allocation12], 96
        %v2324 = vld [vmem:[%s2323] sm:$0xf]
        %v2325 = vld [vmem:[%s2323 + $0x4] sm:$0xf]
        %v2326 = vld [vmem:[%s2323 + $0x8] sm:$0xf]
        %v2327 = vld [vmem:[%s2323 + $0xc] sm:$0xf]
        %v2328 = vld [vmem:[%s2323 + $0x10] sm:$0xf]
        %v2329 = vld [vmem:[%s2323 + $0x14] sm:$0xf]
        %v2330 = vld [vmem:[%s2323 + $0x18] sm:$0xf]
        %v2331 = vld [vmem:[%s2323 + $0x1c] sm:$0xf]
        %v2332 = vld [vmem:[%s2323 + $0x20] sm:$0xf]
        %v2333 = vld [vmem:[%s2323 + $0x24] sm:$0xf]
        %v2334 = vld [vmem:[%s2323 + $0x28] sm:$0xf]
        %v2335 = vld [vmem:[%s2323 + $0x2c] sm:$0xf]
        %v2336 = vld [vmem:[%s2323 + $0x30] sm:$0xf]
        %v2337 = vld [vmem:[%s2323 + $0x34] sm:$0xf]
        %v2338 = vld [vmem:[%s2323 + $0x38] sm:$0xf]
        %v2339 = vld [vmem:[%s2323 + $0x3c] sm:$0xf]
        %v2340 = vld [vmem:[%s2323 + $0x40] sm:$0xf]
        %v2341 = vld [vmem:[%s2323 + $0x44] sm:$0xf]
        %v2342 = vld [vmem:[%s2323 + $0x48] sm:$0xf]
        %v2343 = vld [vmem:[%s2323 + $0x4c] sm:$0xf]
        %v2344 = vld [vmem:[%s2323 + $0x50] sm:$0xf]
        %v2345 = vld [vmem:[%s2323 + $0x54] sm:$0xf]
        %v2346 = vld [vmem:[%s2323 + $0x58] sm:$0xf]
        %v2347 = vld [vmem:[%s2323 + $0x5c] sm:$0xf]
        %v2372 = vunpack.c.l.b16 %v2324
        %v2373 = vunpack.c.l.b16 %v2325
        %v2374 = vunpack.c.l.b16 %v2326
        %v2375 = vunpack.c.l.b16 %v2327
        %v2376 = vunpack.c.l.b16 %v2328
        %v2377 = vunpack.c.l.b16 %v2329
        %v2378 = vunpack.c.l.b16 %v2330
        %v2379 = vunpack.c.l.b16 %v2331
        %v2380 = vunpack.c.l.b16 %v2332
        %v2381 = vunpack.c.l.b16 %v2333
        %v2382 = vunpack.c.l.b16 %v2334
        %v2383 = vunpack.c.l.b16 %v2335
        %v2384 = vunpack.c.l.b16 %v2336
        %v2385 = vunpack.c.l.b16 %v2337
        %v2386 = vunpack.c.l.b16 %v2338
        %v2387 = vunpack.c.l.b16 %v2339
        %v2388 = vunpack.c.l.b16 %v2340
        %v2389 = vunpack.c.l.b16 %v2341
        %v2390 = vunpack.c.l.b16 %v2342
        %v2391 = vunpack.c.l.b16 %v2343
        %v2392 = vunpack.c.l.b16 %v2344
        %v2393 = vunpack.c.l.b16 %v2345
        %v2394 = vunpack.c.l.b16 %v2346
        %v2395 = vunpack.c.l.b16 %v2347
        %v2396 = vpack.c.b16 %v2373, %v2372
        %v2397 = vpack.c.b16 %v2375, %v2374
        %v2398 = vpack.c.b16 %v2377, %v2376
        %v2399 = vpack.c.b16 %v2379, %v2378
        %v2400 = vpack.c.b16 %v2381, %v2380
        %v2401 = vpack.c.b16 %v2383, %v2382
        %v2402 = vpack.c.b16 %v2385, %v2384
        %v2403 = vpack.c.b16 %v2387, %v2386
        %v2404 = vpack.c.b16 %v2389, %v2388
        %v2405 = vpack.c.b16 %v2391, %v2390
        %v2406 = vpack.c.b16 %v2393, %v2392
        %v2407 = vpack.c.b16 %v2395, %v2394
        %v2421 = vsel %vm1373, %v2268, 0
        %v2424 = vsel %vm1373, %v2270, 0
        %v2427 = vsel %vm1373, %v2272, 0
        %v2430 = vsel %vm1373, %v2274, 0
        %v2433 = vsel %vm1373, %v2276, 0
        %v2436 = vsel %vm1373, %v2278, 0
        %v2439 = vsel %vm1373, %v2280, 0
        %v2442 = vsel %vm1373, %v2282, 0
        %v2445 = vsel %vm1373, %v2284, 0
        %v2448 = vsel %vm1373, %v2286, 0
        %v2451 = vsel %vm1373, %v2288, 0
        %v2454 = vsel %vm1373, %v2290, 0
        %v2457 = vsel %vm1373, %v2292, 0
        %v2460 = vsel %vm1373, %v2294, 0
        %v2463 = vsel %vm1373, %v2296, 0
        %v2466 = vsel %vm1373, %v2298, 0
        %v2469 = vsel %vm1373, %v2300, 0
        %v2472 = vsel %vm1373, %v2302, 0
        %v2475 = vsel %vm1373, %v2304, 0
        %v2478 = vsel %vm1373, %v2306, 0
        %v2481 = vsel %vm1373, %v2308, 0
        %v2484 = vsel %vm1373, %v2310, 0
        %v2487 = vsel %vm1373, %v2312, 0
        %v2490 = vsel %vm1373, %v2314, 0
        %v2493 = vsel %vm1373, %v2316, 0
        %v2496 = vsel %vm1373, %v2318, 0
        %v2499 = vsel %vm1373, %v2320, 0
        %v2502 = vsel %vm1373, %v2322, 0
        %2504 = vmatprep.subr.bf16.mxu0 0
        %2505 = vmatpush1.bf16.msra.mxu0 %v2396
        %2506 = vmatprep.subr.bf16.mxu0 0
        %2507 = vmatpush1.bf16.msra.mxu0 %v2397
        %2508 = vmatprep.subr.bf16.mxu0 0
        %2509 = vmatpush1.bf16.msra.mxu0 %v2398
        %2510 = vmatprep.subr.bf16.mxu0 0
        %2511 = vmatpush1.bf16.msra.mxu0 %v2399
        %2512 = vmatprep.subr.bf16.mxu0 0
        %2513 = vmatpush1.bf16.msra.mxu0 %v2400
        %2514 = vmatprep.subr.bf16.mxu0 0
        %2515 = vmatpush1.bf16.msra.mxu0 %v2401
        %2516 = vmatprep.subr.bf16.mxu0 0
        %2517 = vmatpush1.bf16.msra.mxu0 %v2402
        %2518 = vmatprep.subr.bf16.mxu0 0
        %2519 = vmatpush1.bf16.msra.mxu0 %v2403
        %2520 = vmatprep.subr.bf16.mxu0 0
        %2521 = vmatpush1.bf16.msra.mxu0 %v2404
        %2522 = vmatprep.subr.bf16.mxu0 0
        %2523 = vmatpush1.bf16.msra.mxu0 %v2405
        %2524 = vmatprep.subr.bf16.mxu0 0
        %2525 = vmatpush1.bf16.msra.mxu0 %v2406
        %2526 = vmatprep.subr.bf16.mxu0 0
        %2527 = vmatpush1.bf16.msra.mxu0 %v2407
        %2528 = vmatprep.subr.bf16.mxu0 0
        %2529 = vmatpush1.bf16.msra.mxu0 0
        %2530 = vmatprep.subr.bf16.mxu0 0
        %2531 = vmatpush1.bf16.msra.mxu0 0
        %2532 = vmatprep.subr.bf16.mxu0 0
        %2533 = vmatpush1.bf16.msra.mxu0 0
        %2534 = vmatprep.subr.bf16.mxu0 0
        %2535 = vmatpush1.bf16.msra.mxu0 0
        %2536 = vmatprep.mubr.bf16.mxu0 %v2421
        %2537 = vmatmul.mubr.bf16.gmra.mrb[0].mxu0 %v2267
        %v2538 = vpop.f32.mrb[0].mxu0
        %v2539 = vpop.f32.mrb[0].mxu0
        %v2540 = vpop.f32.mrb[0].mxu0
        %v2541 = vpop.f32.mrb[0].mxu0
        %2542 = vmatprep.mubr.bf16.mxu0 %v2424
        %2543 = vmatmul.mubr.bf16.gmra.mrb[0].mxu0 %v2269
        %v2544 = vpop.f32.mrb[0].mxu0
        %v2545 = vpop.f32.mrb[0].mxu0
        %v2546 = vpop.f32.mrb[0].mxu0
        %v2547 = vpop.f32.mrb[0].mxu0
        %2548 = vmatprep.mubr.bf16.mxu0 %v2427
        %2549 = vmatmul.mubr.bf16.gmra.mrb[0].mxu0 %v2271
        %v2550 = vpop.f32.mrb[0].mxu0
        %v2551 = vadd.f32 0.0, %v2550
        %v2552 = vpop.f32.mrb[0].mxu0
        %v2553 = vpop.f32.mrb[0].mxu0
        %v2554 = vadd.f32 0.0, %v2553
        %v2555 = vpop.f32.mrb[0].mxu0
        %2556 = vmatprep.mubr.bf16.mxu0 %v2430
        %2557 = vmatmul.mubr.bf16.gmra.mrb[0].mxu0 %v2273
        %v2558 = vpop.f32.mrb[0].mxu0
        %v2559 = vadd.f32 0.0, %v2558
        %v2560 = vpop.f32.mrb[0].mxu0
        %v2561 = vpop.f32.mrb[0].mxu0
        %v2562 = vadd.f32 0.0, %v2561
        %v2563 = vpop.f32.mrb[0].mxu0
        %2564 = vmatprep.mubr.bf16.mxu0 %v2433
        %2565 = vmatmul.mubr.bf16.gmra.mrb[0].mxu0 %v2275
        %v2566 = vpop.f32.mrb[0].mxu0
        %v2567 = vadd.f32 0.0, %v2566
        %v2568 = vpop.f32.mrb[0].mxu0
        %v2569 = vpop.f32.mrb[0].mxu0
        %v2570 = vadd.f32 0.0, %v2569
        %v2571 = vpop.f32.mrb[0].mxu0
        %2572 = vmatprep.mubr.bf16.mxu0 %v2436
        %2573 = vmatmul.mubr.bf16.gmra.mrb[0].mxu0 %v2277
        %v2574 = vpop.f32.mrb[0].mxu0
        %v2575 = vadd.f32 0.0, %v2574
        %v2576 = vpop.f32.mrb[0].mxu0
        %v2577 = vpop.f32.mrb[0].mxu0
        %v2578 = vadd.f32 0.0, %v2577
        %v2579 = vpop.f32.mrb[0].mxu0
        %2580 = vmatprep.mubr.bf16.mxu0 %v2439
        %2581 = vmatmul.mubr.bf16.gmra.mrb[0].mxu0 %v2279
        %v2582 = vpop.f32.mrb[0].mxu0
        %v2583 = vadd.f32 0.0, %v2582
        %v2584 = vpop.f32.mrb[0].mxu0
        %v2585 = vpop.f32.mrb[0].mxu0
        %v2586 = vadd.f32 0.0, %v2585
        %v2587 = vpop.f32.mrb[0].mxu0
        %2588 = vmatprep.mubr.bf16.mxu0 %v2442
        %2589 = vmatmul.mubr.bf16.gmra.mrb[0].mxu0 %v2281
        %v2590 = vpop.f32.mrb[0].mxu0
        %v2591 = vadd.f32 0.0, %v2590
        %v2592 = vpop.f32.mrb[0].mxu0
        %v2593 = vpop.f32.mrb[0].mxu0
        %v2594 = vadd.f32 0.0, %v2593
        %v2595 = vpop.f32.mrb[0].mxu0
        %2596 = vmatprep.mubr.bf16.mxu0 %v2445
        %2597 = vmatmul.mubr.bf16.gmra.mrb[0].mxu0 %v2283
        %v2598 = vpop.f32.mrb[0].mxu0
        %v2599 = vadd.f32 0.0, %v2598
        %v2600 = vpop.f32.mrb[0].mxu0
        %v2601 = vpop.f32.mrb[0].mxu0
        %v2602 = vadd.f32 0.0, %v2601
        %v2603 = vpop.f32.mrb[0].mxu0
        %2604 = vmatprep.mubr.bf16.mxu0 %v2448
        %2605 = vmatmul.mubr.bf16.gmra.mrb[0].mxu0 %v2285
        %v2606 = vpop.f32.mrb[0].mxu0
        %v2607 = vadd.f32 0.0, %v2606
        %v2608 = vpop.f32.mrb[0].mxu0
        %v2609 = vpop.f32.mrb[0].mxu0
        %v2610 = vadd.f32 0.0, %v2609
        %v2611 = vpop.f32.mrb[0].mxu0
        %2612 = vmatprep.mubr.bf16.mxu0 %v2451
        %2613 = vmatmul.mubr.bf16.gmra.mrb[0].mxu0 %v2287
        %v2614 = vpop.f32.mrb[0].mxu0
        %v2615 = vadd.f32 0.0, %v2614
        %v2616 = vpop.f32.mrb[0].mxu0
        %v2617 = vpop.f32.mrb[0].mxu0
        %v2618 = vadd.f32 0.0, %v2617
        %v2619 = vpop.f32.mrb[0].mxu0
        %2620 = vmatprep.mubr.bf16.mxu0 %v2454
        %2621 = vmatmul.mubr.bf16.gmra.mrb[0].mxu0 %v2289
        %v2622 = vpop.f32.mrb[0].mxu0
        %v2623 = vadd.f32 0.0, %v2622
        %v2624 = vpop.f32.mrb[0].mxu0
        %v2625 = vpop.f32.mrb[0].mxu0
        %v2626 = vadd.f32 0.0, %v2625
        %v2627 = vpop.f32.mrb[0].mxu0
        %2628 = vmatprep.mubr.bf16.mxu0 %v2457
        %2629 = vmatmul.mubr.bf16.gmra.mrb[0].mxu0 %v2291
        %v2630 = vpop.f32.mrb[0].mxu0
        %v2631 = vadd.f32 0.0, %v2630
        %v2632 = vpop.f32.mrb[0].mxu0
        %v2633 = vpop.f32.mrb[0].mxu0
        %v2634 = vadd.f32 0.0, %v2633
        %v2635 = vpop.f32.mrb[0].mxu0
        %2636 = vmatprep.mubr.bf16.mxu0 %v2460
        %2637 = vmatmul.mubr.bf16.gmra.mrb[0].mxu0 %v2293
        %v2638 = vpop.f32.mrb[0].mxu0
        %v2639 = vadd.f32 0.0, %v2638
        %v2640 = vpop.f32.mrb[0].mxu0
        %v2641 = vpop.f32.mrb[0].mxu0
        %v2642 = vadd.f32 0.0, %v2641
        %v2643 = vpop.f32.mrb[0].mxu0
        %2644 = vmatprep.mubr.bf16.mxu0 %v2463
        %2645 = vmatmul.mubr.bf16.gmra.mrb[0].mxu0 %v2295
        %v2646 = vpop.f32.mrb[0].mxu0
        %v2647 = vadd.f32 0.0, %v2646
        %v2648 = vpop.f32.mrb[0].mxu0
        %v2649 = vpop.f32.mrb[0].mxu0
        %v2650 = vadd.f32 0.0, %v2649
        %v2651 = vpop.f32.mrb[0].mxu0
        %2652 = vmatprep.mubr.bf16.mxu0 %v2466
        %2653 = vmatmul.mubr.bf16.gmra.mrb[0].mxu0 %v2297
        %v2654 = vpop.f32.mrb[0].mxu0
        %v2655 = vadd.f32 0.0, %v2654
        %v2656 = vpop.f32.mrb[0].mxu0
        %v2657 = vpop.f32.mrb[0].mxu0
        %v2658 = vadd.f32 0.0, %v2657
        %v2659 = vpop.f32.mrb[0].mxu0
        %2660 = vmatprep.mubr.bf16.mxu0 %v2469
        %2661 = vmatmul.mubr.bf16.gmra.mrb[0].mxu0 %v2299
        %v2662 = vpop.f32.mrb[0].mxu0
        %v2663 = vadd.f32 0.0, %v2662
        %v2664 = vpop.f32.mrb[0].mxu0
        %v2665 = vpop.f32.mrb[0].mxu0
        %v2666 = vadd.f32 0.0, %v2665
        %v2667 = vpop.f32.mrb[0].mxu0
        %2668 = vmatprep.mubr.bf16.mxu0 %v2472
        %2669 = vmatmul.mubr.bf16.gmra.mrb[0].mxu0 %v2301
        %v2670 = vpop.f32.mrb[0].mxu0
        %v2671 = vadd.f32 0.0, %v2670
        %v2672 = vpop.f32.mrb[0].mxu0
        %v2673 = vpop.f32.mrb[0].mxu0
        %v2674 = vadd.f32 0.0, %v2673
        %v2675 = vpop.f32.mrb[0].mxu0
        %2676 = vmatprep.mubr.bf16.mxu0 %v2475
        %2677 = vmatmul.mubr.bf16.gmra.mrb[0].mxu0 %v2303
        %v2678 = vpop.f32.mrb[0].mxu0
        %v2679 = vadd.f32 0.0, %v2678
        %v2680 = vpop.f32.mrb[0].mxu0
        %v2681 = vpop.f32.mrb[0].mxu0
        %v2682 = vadd.f32 0.0, %v2681
        %v2683 = vpop.f32.mrb[0].mxu0
        %2684 = vmatprep.mubr.bf16.mxu0 %v2478
        %2685 = vmatmul.mubr.bf16.gmra.mrb[0].mxu0 %v2305
        %v2686 = vpop.f32.mrb[0].mxu0
        %v2687 = vadd.f32 0.0, %v2686
        %v2688 = vpop.f32.mrb[0].mxu0
        %v2689 = vpop.f32.mrb[0].mxu0
        %v2690 = vadd.f32 0.0, %v2689
        %v2691 = vpop.f32.mrb[0].mxu0
        %2692 = vmatprep.mubr.bf16.mxu0 %v2481
        %2693 = vmatmul.mubr.bf16.gmra.mrb[0].mxu0 %v2307
        %v2694 = vpop.f32.mrb[0].mxu0
        %v2695 = vadd.f32 0.0, %v2694
        %v2696 = vpop.f32.mrb[0].mxu0
        %v2697 = vpop.f32.mrb[0].mxu0
        %v2698 = vadd.f32 0.0, %v2697
        %v2699 = vpop.f32.mrb[0].mxu0
        %2700 = vmatprep.mubr.bf16.mxu0 %v2484
        %2701 = vmatmul.mubr.bf16.gmra.mrb[0].mxu0 %v2309
        %v2702 = vpop.f32.mrb[0].mxu0
        %v2703 = vadd.f32 0.0, %v2702
        %v2704 = vpop.f32.mrb[0].mxu0
        %v2705 = vpop.f32.mrb[0].mxu0
        %v2706 = vadd.f32 0.0, %v2705
        %v2707 = vpop.f32.mrb[0].mxu0
        %2708 = vmatprep.mubr.bf16.mxu0 %v2487
        %2709 = vmatmul.mubr.bf16.gmra.mrb[0].mxu0 %v2311
        %v2710 = vpop.f32.mrb[0].mxu0
        %v2711 = vadd.f32 0.0, %v2710
        %v2712 = vpop.f32.mrb[0].mxu0
        %v2713 = vpop.f32.mrb[0].mxu0
        %v2714 = vadd.f32 0.0, %v2713
        %v2715 = vpop.f32.mrb[0].mxu0
        %2716 = vmatprep.mubr.bf16.mxu0 %v2490
        %2717 = vmatmul.mubr.bf16.gmra.mrb[0].mxu0 %v2313
        %v2718 = vpop.f32.mrb[0].mxu0
        %v2719 = vadd.f32 0.0, %v2718
        %v2720 = vpop.f32.mrb[0].mxu0
        %v2721 = vpop.f32.mrb[0].mxu0
        %v2722 = vadd.f32 0.0, %v2721
        %v2723 = vpop.f32.mrb[0].mxu0
        %2724 = vmatprep.mubr.bf16.mxu0 %v2493
        %2725 = vmatmul.mubr.bf16.gmra.mrb[0].mxu0 %v2315
        %v2726 = vpop.f32.mrb[0].mxu0
        %v2727 = vadd.f32 0.0, %v2726
        %v2728 = vpop.f32.mrb[0].mxu0
        %v2729 = vpop.f32.mrb[0].mxu0
        %v2730 = vadd.f32 0.0, %v2729
        %v2731 = vpop.f32.mrb[0].mxu0
        %2732 = vmatprep.mubr.bf16.mxu0 %v2496
        %2733 = vmatmul.mubr.bf16.gmra.mrb[0].mxu0 %v2317
        %v2734 = vpop.f32.mrb[0].mxu0
        %v2735 = vadd.f32 0.0, %v2734
        %v2736 = vpop.f32.mrb[0].mxu0
        %v2737 = vpop.f32.mrb[0].mxu0
        %v2738 = vadd.f32 0.0, %v2737
        %v2739 = vpop.f32.mrb[0].mxu0
        %2740 = vmatprep.mubr.bf16.mxu0 %v2499
        %2741 = vmatmul.mubr.bf16.gmra.mrb[0].mxu0 %v2319
        %v2742 = vpop.f32.mrb[0].mxu0
        %v2743 = vpop.f32.mrb[0].mxu0
        %v2744 = vpop.f32.mrb[0].mxu0
        %v2745 = vpop.f32.mrb[0].mxu0
        %2746 = vmatprep.mubr.bf16.mxu0 %v2502
        %2747 = vmatmul.mubr.bf16.gmra.mrb[0].mxu0 %v2321
        %v2748 = vpop.f32.mrb[0].mxu0
        %v2749 = vpop.f32.mrb[0].mxu0
        %v2750 = vpop.f32.mrb[0].mxu0
        %v2751 = vpop.f32.mrb[0].mxu0
        %2752 = vdwg.mxu0
        %v2777 = vunpack.c.l.b16 %v2243
        %v2778 = vunpack.c.l.b16 %v2244
        %v2779 = vunpack.c.l.b16 %v2245
        %v2780 = vunpack.c.l.b16 %v2246
        %v2781 = vunpack.c.l.b16 %v2247
        %v2782 = vunpack.c.l.b16 %v2248
        %v2783 = vunpack.c.l.b16 %v2249
        %v2784 = vunpack.c.l.b16 %v2250
        %v2785 = vunpack.c.l.b16 %v2251
        %v2786 = vunpack.c.l.b16 %v2252
        %v2787 = vunpack.c.l.b16 %v2253
        %v2788 = vunpack.c.l.b16 %v2254
        %v2789 = vunpack.c.l.b16 %v2255
        %v2790 = vunpack.c.l.b16 %v2256
        %v2791 = vunpack.c.l.b16 %v2257
        %v2792 = vunpack.c.l.b16 %v2258
        %v2793 = vunpack.c.l.b16 %v2259
        %v2794 = vunpack.c.l.b16 %v2260
        %v2795 = vunpack.c.l.b16 %v2261
        %v2796 = vunpack.c.l.b16 %v2262
        %v2797 = vunpack.c.l.b16 %v2263
        %v2798 = vunpack.c.l.b16 %v2264
        %v2799 = vunpack.c.l.b16 %v2265
        %v2800 = vunpack.c.l.b16 %v2266
        %v2801 = vpack.c.b16 %v2778, %v2777
        %v2802 = vpack.c.b16 %v2780, %v2779
        %v2803 = vpack.c.b16 %v2782, %v2781
        %v2804 = vpack.c.b16 %v2784, %v2783
        %v2805 = vpack.c.b16 %v2786, %v2785
        %v2806 = vpack.c.b16 %v2788, %v2787
        %v2807 = vpack.c.b16 %v2790, %v2789
        %v2808 = vpack.c.b16 %v2792, %v2791
        %v2809 = vpack.c.b16 %v2794, %v2793
        %v2810 = vpack.c.b16 %v2796, %v2795
        %v2811 = vpack.c.b16 %v2798, %v2797
        %v2812 = vpack.c.b16 %v2800, %v2799
        %v2826 = vsel %vm1373, %v2188, 0
        %v2829 = vsel %vm1373, %v2190, 0
        %v2832 = vsel %vm1373, %v2192, 0
        %v2835 = vsel %vm1373, %v2194, 0
        %v2838 = vsel %vm1373, %v2196, 0
        %v2841 = vsel %vm1373, %v2198, 0
        %v2844 = vsel %vm1373, %v2200, 0
        %v2847 = vsel %vm1373, %v2202, 0
        %v2850 = vsel %vm1373, %v2204, 0
        %v2853 = vsel %vm1373, %v2206, 0
        %v2856 = vsel %vm1373, %v2208, 0
        %v2859 = vsel %vm1373, %v2210, 0
        %v2862 = vsel %vm1373, %v2212, 0
        %v2865 = vsel %vm1373, %v2214, 0
        %v2868 = vsel %vm1373, %v2216, 0
        %v2871 = vsel %vm1373, %v2218, 0
        %v2874 = vsel %vm1373, %v2220, 0
        %v2877 = vsel %vm1373, %v2222, 0
        %v2880 = vsel %vm1373, %v2224, 0
        %v2883 = vsel %vm1373, %v2226, 0
        %v2886 = vsel %vm1373, %v2228, 0
        %v2889 = vsel %vm1373, %v2230, 0
        %v2892 = vsel %vm1373, %v2232, 0
        %v2895 = vsel %vm1373, %v2234, 0
        %v2898 = vsel %vm1373, %v2236, 0
        %v2901 = vsel %vm1373, %v2238, 0
        %v2904 = vsel %vm1373, %v2240, 0
        %v2907 = vsel %vm1373, %v2242, 0
        %2909 = vmatprep.subr.bf16.mxu0 0
        %2910 = vmatpush1.bf16.msra.mxu0 %v2801
        %2911 = vmatprep.subr.bf16.mxu0 0
        %2912 = vmatpush1.bf16.msra.mxu0 %v2802
        %2913 = vmatprep.subr.bf16.mxu0 0
        %2914 = vmatpush1.bf16.msra.mxu0 %v2803
        %2915 = vmatprep.subr.bf16.mxu0 0
        %2916 = vmatpush1.bf16.msra.mxu0 %v2804
        %2917 = vmatprep.subr.bf16.mxu0 0
        %2918 = vmatpush1.bf16.msra.mxu0 %v2805
        %2919 = vmatprep.subr.bf16.mxu0 0
        %2920 = vmatpush1.bf16.msra.mxu0 %v2806
        %2921 = vmatprep.subr.bf16.mxu0 0
        %2922 = vmatpush1.bf16.msra.mxu0 %v2807
        %2923 = vmatprep.subr.bf16.mxu0 0
        %2924 = vmatpush1.bf16.msra.mxu0 %v2808
        %2925 = vmatprep.subr.bf16.mxu0 0
        %2926 = vmatpush1.bf16.msra.mxu0 %v2809
        %2927 = vmatprep.subr.bf16.mxu0 0
        %2928 = vmatpush1.bf16.msra.mxu0 %v2810
        %2929 = vmatprep.subr.bf16.mxu0 0
        %2930 = vmatpush1.bf16.msra.mxu0 %v2811
        %2931 = vmatprep.subr.bf16.mxu0 0
        %2932 = vmatpush1.bf16.msra.mxu0 %v2812
        %2933 = vmatprep.subr.bf16.mxu0 0
        %2934 = vmatpush1.bf16.msra.mxu0 0
        %2935 = vmatprep.subr.bf16.mxu0 0
        %2936 = vmatpush1.bf16.msra.mxu0 0
        %2937 = vmatprep.subr.bf16.mxu0 0
        %2938 = vmatpush1.bf16.msra.mxu0 0
        %2939 = vmatprep.subr.bf16.mxu0 0
        %2940 = vmatpush1.bf16.msra.mxu0 0
        %2941 = vmatprep.mubr.bf16.mxu0 %v2826
        %2942 = vmatmul.mubr.bf16.gmra.mrb[0].mxu0 %v2187
        %v2943 = vpop.f32.mrb[0].mxu0
        %v2944 = vpop.f32.mrb[0].mxu0
        %v2945 = vpop.f32.mrb[0].mxu0
        %v2946 = vpop.f32.mrb[0].mxu0
        %2947 = vmatprep.mubr.bf16.mxu0 %v2829
        %2948 = vmatmul.mubr.bf16.gmra.mrb[0].mxu0 %v2189
        %v2949 = vpop.f32.mrb[0].mxu0
        %v2950 = vpop.f32.mrb[0].mxu0
        %v2951 = vpop.f32.mrb[0].mxu0
        %v2952 = vpop.f32.mrb[0].mxu0
        %2953 = vmatprep.mubr.bf16.mxu0 %v2832
        %2954 = vmatmul.mubr.bf16.gmra.mrb[0].mxu0 %v2191
        %v2955 = vpop.f32.mrb[0].mxu0
        %v2956 = vadd.f32 %v2551, %v2955
        %v2957 = vpop.f32.mrb[0].mxu0
        %v2958 = vpop.f32.mrb[0].mxu0
        %v2959 = vadd.f32 %v2554, %v2958
        %v2960 = vpop.f32.mrb[0].mxu0
        %2961 = vmatprep.mubr.bf16.mxu0 %v2835
        %2962 = vmatmul.mubr.bf16.gmra.mrb[0].mxu0 %v2193
        %v2963 = vpop.f32.mrb[0].mxu0
        %v2964 = vadd.f32 %v2559, %v2963
        %v2965 = vpop.f32.mrb[0].mxu0
        %v2966 = vpop.f32.mrb[0].mxu0
        %v2967 = vadd.f32 %v2562, %v2966
        %v2968 = vpop.f32.mrb[0].mxu0
        %2969 = vmatprep.mubr.bf16.mxu0 %v2838
        %2970 = vmatmul.mubr.bf16.gmra.mrb[0].mxu0 %v2195
        %v2971 = vpop.f32.mrb[0].mxu0
        %v2972 = vadd.f32 %v2567, %v2971
        %v2973 = vpop.f32.mrb[0].mxu0
        %v2974 = vpop.f32.mrb[0].mxu0
        %v2975 = vadd.f32 %v2570, %v2974
        %v2976 = vpop.f32.mrb[0].mxu0
        %2977 = vmatprep.mubr.bf16.mxu0 %v2841
        %2978 = vmatmul.mubr.bf16.gmra.mrb[0].mxu0 %v2197
        %v2979 = vpop.f32.mrb[0].mxu0
        %v2980 = vadd.f32 %v2575, %v2979
        %v2981 = vpop.f32.mrb[0].mxu0
        %v2982 = vpop.f32.mrb[0].mxu0
        %v2983 = vadd.f32 %v2578, %v2982
        %v2984 = vpop.f32.mrb[0].mxu0
        %2985 = vmatprep.mubr.bf16.mxu0 %v2844
        %2986 = vmatmul.mubr.bf16.gmra.mrb[0].mxu0 %v2199
        %v2987 = vpop.f32.mrb[0].mxu0
        %v2988 = vadd.f32 %v2583, %v2987
        %v2989 = vpop.f32.mrb[0].mxu0
        %v2990 = vpop.f32.mrb[0].mxu0
        %v2991 = vadd.f32 %v2586, %v2990
        %v2992 = vpop.f32.mrb[0].mxu0
        %2993 = vmatprep.mubr.bf16.mxu0 %v2847
        %2994 = vmatmul.mubr.bf16.gmra.mrb[0].mxu0 %v2201
        %v2995 = vpop.f32.mrb[0].mxu0
        %v2996 = vadd.f32 %v2591, %v2995
        %v2997 = vpop.f32.mrb[0].mxu0
        %v2998 = vpop.f32.mrb[0].mxu0
        %v2999 = vadd.f32 %v2594, %v2998
        %v3000 = vpop.f32.mrb[0].mxu0
        %3001 = vmatprep.mubr.bf16.mxu0 %v2850
        %3002 = vmatmul.mubr.bf16.gmra.mrb[0].mxu0 %v2203
        %v3003 = vpop.f32.mrb[0].mxu0
        %v3004 = vadd.f32 %v2599, %v3003
        %v3005 = vpop.f32.mrb[0].mxu0
        %v3006 = vpop.f32.mrb[0].mxu0
        %v3007 = vadd.f32 %v2602, %v3006
        %v3008 = vpop.f32.mrb[0].mxu0
        %3009 = vmatprep.mubr.bf16.mxu0 %v2853
        %3010 = vmatmul.mubr.bf16.gmra.mrb[0].mxu0 %v2205
        %v3011 = vpop.f32.mrb[0].mxu0
        %v3012 = vadd.f32 %v2607, %v3011
        %v3013 = vpop.f32.mrb[0].mxu0
        %v3014 = vpop.f32.mrb[0].mxu0
        %v3015 = vadd.f32 %v2610, %v3014
        %v3016 = vpop.f32.mrb[0].mxu0
        %3017 = vmatprep.mubr.bf16.mxu0 %v2856
        %3018 = vmatmul.mubr.bf16.gmra.mrb[0].mxu0 %v2207
        %v3019 = vpop.f32.mrb[0].mxu0
        %v3020 = vadd.f32 %v2615, %v3019
        %v3021 = vpop.f32.mrb[0].mxu0
        %v3022 = vpop.f32.mrb[0].mxu0
        %v3023 = vadd.f32 %v2618, %v3022
        %v3024 = vpop.f32.mrb[0].mxu0
        %3025 = vmatprep.mubr.bf16.mxu0 %v2859
        %3026 = vmatmul.mubr.bf16.gmra.mrb[0].mxu0 %v2209
        %v3027 = vpop.f32.mrb[0].mxu0
        %v3028 = vadd.f32 %v2623, %v3027
        %v3029 = vpop.f32.mrb[0].mxu0
        %v3030 = vpop.f32.mrb[0].mxu0
        %v3031 = vadd.f32 %v2626, %v3030
        %v3032 = vpop.f32.mrb[0].mxu0
        %3033 = vmatprep.mubr.bf16.mxu0 %v2862
        %3034 = vmatmul.mubr.bf16.gmra.mrb[0].mxu0 %v2211
        %v3035 = vpop.f32.mrb[0].mxu0
        %v3036 = vadd.f32 %v2631, %v3035
        %v3037 = vpop.f32.mrb[0].mxu0
        %v3038 = vpop.f32.mrb[0].mxu0
        %v3039 = vadd.f32 %v2634, %v3038
        %v3040 = vpop.f32.mrb[0].mxu0
        %3041 = vmatprep.mubr.bf16.mxu0 %v2865
        %3042 = vmatmul.mubr.bf16.gmra.mrb[0].mxu0 %v2213
        %v3043 = vpop.f32.mrb[0].mxu0
        %v3044 = vadd.f32 %v2639, %v3043
        %v3045 = vpop.f32.mrb[0].mxu0
        %v3046 = vpop.f32.mrb[0].mxu0
        %v3047 = vadd.f32 %v2642, %v3046
        %v3048 = vpop.f32.mrb[0].mxu0
        %3049 = vmatprep.mubr.bf16.mxu0 %v2868
        %3050 = vmatmul.mubr.bf16.gmra.mrb[0].mxu0 %v2215
        %v3051 = vpop.f32.mrb[0].mxu0
        %v3052 = vadd.f32 %v2647, %v3051
        %v3053 = vpop.f32.mrb[0].mxu0
        %v3054 = vpop.f32.mrb[0].mxu0
        %v3055 = vadd.f32 %v2650, %v3054
        %v3056 = vpop.f32.mrb[0].mxu0
        %3057 = vmatprep.mubr.bf16.mxu0 %v2871
        %3058 = vmatmul.mubr.bf16.gmra.mrb[0].mxu0 %v2217
        %v3059 = vpop.f32.mrb[0].mxu0
        %v3060 = vadd.f32 %v2655, %v3059
        %v3061 = vpop.f32.mrb[0].mxu0
        %v3062 = vpop.f32.mrb[0].mxu0
        %v3063 = vadd.f32 %v2658, %v3062
        %v3064 = vpop.f32.mrb[0].mxu0
        %3065 = vmatprep.mubr.bf16.mxu0 %v2874
        %3066 = vmatmul.mubr.bf16.gmra.mrb[0].mxu0 %v2219
        %v3067 = vpop.f32.mrb[0].mxu0
        %v3068 = vadd.f32 %v2663, %v3067
        %v3069 = vpop.f32.mrb[0].mxu0
        %v3070 = vpop.f32.mrb[0].mxu0
        %v3071 = vadd.f32 %v2666, %v3070
        %v3072 = vpop.f32.mrb[0].mxu0
        %3073 = vmatprep.mubr.bf16.mxu0 %v2877
        %3074 = vmatmul.mubr.bf16.gmra.mrb[0].mxu0 %v2221
        %v3075 = vpop.f32.mrb[0].mxu0
        %v3076 = vadd.f32 %v2671, %v3075
        %v3077 = vpop.f32.mrb[0].mxu0
        %v3078 = vpop.f32.mrb[0].mxu0
        %v3079 = vadd.f32 %v2674, %v3078
        %v3080 = vpop.f32.mrb[0].mxu0
        %3081 = vmatprep.mubr.bf16.mxu0 %v2880
        %3082 = vmatmul.mubr.bf16.gmra.mrb[0].mxu0 %v2223
        %v3083 = vpop.f32.mrb[0].mxu0
        %v3084 = vadd.f32 %v2679, %v3083
        %v3085 = vpop.f32.mrb[0].mxu0
        %v3086 = vpop.f32.mrb[0].mxu0
        %v3087 = vadd.f32 %v2682, %v3086
        %v3088 = vpop.f32.mrb[0].mxu0
        %3089 = vmatprep.mubr.bf16.mxu0 %v2883
        %3090 = vmatmul.mubr.bf16.gmra.mrb[0].mxu0 %v2225
        %v3091 = vpop.f32.mrb[0].mxu0
        %v3092 = vadd.f32 %v2687, %v3091
        %v3093 = vpop.f32.mrb[0].mxu0
        %v3094 = vpop.f32.mrb[0].mxu0
        %v3095 = vadd.f32 %v2690, %v3094
        %v3096 = vpop.f32.mrb[0].mxu0
        %3097 = vmatprep.mubr.bf16.mxu0 %v2886
        %3098 = vmatmul.mubr.bf16.gmra.mrb[0].mxu0 %v2227
        %v3099 = vpop.f32.mrb[0].mxu0
        %v3100 = vadd.f32 %v2695, %v3099
        %v3101 = vpop.f32.mrb[0].mxu0
        %v3102 = vpop.f32.mrb[0].mxu0
        %v3103 = vadd.f32 %v2698, %v3102
        %v3104 = vpop.f32.mrb[0].mxu0
        %3105 = vmatprep.mubr.bf16.mxu0 %v2889
        %3106 = vmatmul.mubr.bf16.gmra.mrb[0].mxu0 %v2229
        %v3107 = vpop.f32.mrb[0].mxu0
        %v3108 = vadd.f32 %v2703, %v3107
        %v3109 = vpop.f32.mrb[0].mxu0
        %v3110 = vpop.f32.mrb[0].mxu0
        %v3111 = vadd.f32 %v2706, %v3110
        %v3112 = vpop.f32.mrb[0].mxu0
        %3113 = vmatprep.mubr.bf16.mxu0 %v2892
        %3114 = vmatmul.mubr.bf16.gmra.mrb[0].mxu0 %v2231
        %v3115 = vpop.f32.mrb[0].mxu0
        %v3116 = vadd.f32 %v2711, %v3115
        %v3117 = vpop.f32.mrb[0].mxu0
        %v3118 = vpop.f32.mrb[0].mxu0
        %v3119 = vadd.f32 %v2714, %v3118
        %v3120 = vpop.f32.mrb[0].mxu0
        %3121 = vmatprep.mubr.bf16.mxu0 %v2895
        %3122 = vmatmul.mubr.bf16.gmra.mrb[0].mxu0 %v2233
        %v3123 = vpop.f32.mrb[0].mxu0
        %v3124 = vadd.f32 %v2719, %v3123
        %v3125 = vpop.f32.mrb[0].mxu0
        %v3126 = vpop.f32.mrb[0].mxu0
        %v3127 = vadd.f32 %v2722, %v3126
        %v3128 = vpop.f32.mrb[0].mxu0
        %3129 = vmatprep.mubr.bf16.mxu0 %v2898
        %3130 = vmatmul.mubr.bf16.gmra.mrb[0].mxu0 %v2235
        %v3131 = vpop.f32.mrb[0].mxu0
        %v3132 = vadd.f32 %v2727, %v3131
        %v3133 = vpop.f32.mrb[0].mxu0
        %v3134 = vpop.f32.mrb[0].mxu0
        %v3135 = vadd.f32 %v2730, %v3134
        %v3136 = vpop.f32.mrb[0].mxu0
        %3137 = vmatprep.mubr.bf16.mxu0 %v2901
        %3138 = vmatmul.mubr.bf16.gmra.mrb[0].mxu0 %v2237
        %v3139 = vpop.f32.mrb[0].mxu0
        %v3140 = vadd.f32 %v2735, %v3139
        %v3141 = vpop.f32.mrb[0].mxu0
        %v3142 = vpop.f32.mrb[0].mxu0
        %v3143 = vadd.f32 %v2738, %v3142
        %v3144 = vpop.f32.mrb[0].mxu0
        %3145 = vmatprep.mubr.bf16.mxu0 %v2904
        %3146 = vmatmul.mubr.bf16.gmra.mrb[0].mxu0 %v2239
        %v3147 = vpop.f32.mrb[0].mxu0
        %v3148 = vpop.f32.mrb[0].mxu0
        %v3149 = vpop.f32.mrb[0].mxu0
        %v3150 = vpop.f32.mrb[0].mxu0
        %3151 = vmatprep.mubr.bf16.mxu0 %v2907
        %3152 = vmatmul.mubr.bf16.gmra.mrb[0].mxu0 %v2241
        %v3153 = vpop.f32.mrb[0].mxu0
        %v3154 = vpop.f32.mrb[0].mxu0
        %v3155 = vpop.f32.mrb[0].mxu0
        %v3156 = vpop.f32.mrb[0].mxu0
        %3157 = vdwg.mxu0
        %s3158 = scalar_lea.vmem [#allocation2], 32
        %v3159 = vld [vmem:[%s3158] sm:$0xff]
        %v3160 = vld [vmem:[%s3158 + $0x8] sm:$0xff]
        %v3161 = vld [vmem:[%s3158 + $0x10] sm:$0xff]
        %v3162 = vld [vmem:[%s3158 + $0x18] sm:$0xff]
        %v3163 = vld [vmem:[%s3158 + $0x20] sm:$0xff]
        %v3164 = vld [vmem:[%s3158 + $0x28] sm:$0xff]
        %v3165 = vld [vmem:[%s3158 + $0x30] sm:$0xff]
        %v3166 = vld [vmem:[%s3158 + $0x38] sm:$0xff]
        %v3167 = vld [vmem:[%s3158 + $0x40] sm:$0xff]
        %v3168 = vld [vmem:[%s3158 + $0x48] sm:$0xff]
        %v3169 = vld [vmem:[%s3158 + $0x50] sm:$0xff]
        %v3170 = vld [vmem:[%s3158 + $0x58] sm:$0xff]
        %v3171 = vld [vmem:[%s3158 + $0x60] sm:$0xff]
        %v3172 = vld [vmem:[%s3158 + $0x68] sm:$0xff]
        %v3173 = vld [vmem:[%s3158 + $0x70] sm:$0xff]
        %v3174 = vld [vmem:[%s3158 + $0x78] sm:$0xff]
        %v3175 = vld [vmem:[%s3158 + $0x80] sm:$0xff]
        %v3176 = vld [vmem:[%s3158 + $0x88] sm:$0xff]
        %v3177 = vld [vmem:[%s3158 + $0x90] sm:$0xff]
        %v3178 = vld [vmem:[%s3158 + $0x98] sm:$0xff]
        %v3179 = vld [vmem:[%s3158 + $0xa0] sm:$0xff]
        %v3180 = vld [vmem:[%s3158 + $0xa8] sm:$0xff]
        %v3181 = vld [vmem:[%s3158 + $0xb0] sm:$0xff]
        %v3182 = vld [vmem:[%s3158 + $0xb8] sm:$0xff]
        %v3183 = vld [vmem:[%s3158 + $0xc0] sm:$0xff]
        %v3184 = vld [vmem:[%s3158 + $0xc8] sm:$0xff]
        %v3185 = vld [vmem:[%s3158 + $0xd0] sm:$0xff]
        %v3186 = vld [vmem:[%s3158 + $0xd8] sm:$0xff]
        %v3187 = vld [vmem:[%s3158 + $0xe0] sm:$0xff]
        %v3188 = vld [vmem:[%s3158 + $0xe8] sm:$0xff]
        %v3189 = vld [vmem:[%s3158 + $0xf0] sm:$0xff]
        %v3190 = vld [vmem:[%s3158 + $0xf8] sm:$0xff]
        %v3191 = vld [vmem:[%s3158 + $0x100] sm:$0xff]
        %v3192 = vld [vmem:[%s3158 + $0x108] sm:$0xff]
        %v3193 = vld [vmem:[%s3158 + $0x110] sm:$0xff]
        %v3194 = vld [vmem:[%s3158 + $0x118] sm:$0xff]
        %v3195 = vld [vmem:[%s3158 + $0x120] sm:$0xff]
        %v3196 = vld [vmem:[%s3158 + $0x128] sm:$0xff]
        %v3197 = vld [vmem:[%s3158 + $0x130] sm:$0xff]
        %v3198 = vld [vmem:[%s3158 + $0x138] sm:$0xff]
        %v3199 = vld [vmem:[%s3158 + $0x140] sm:$0xff]
        %v3200 = vld [vmem:[%s3158 + $0x148] sm:$0xff]
        %v3201 = vld [vmem:[%s3158 + $0x150] sm:$0xff]
        %v3202 = vld [vmem:[%s3158 + $0x158] sm:$0xff]
        %v3203 = vld [vmem:[%s3158 + $0x160] sm:$0xff]
        %v3204 = vld [vmem:[%s3158 + $0x168] sm:$0xff]
        %v3205 = vld [vmem:[%s3158 + $0x170] sm:$0xff]
        %v3206 = vld [vmem:[%s3158 + $0x178] sm:$0xff]
        %v3207 = vld [vmem:[%s3158 + $0x180] sm:$0xff]
        %v3208 = vld [vmem:[%s3158 + $0x188] sm:$0xff]
        %v3209 = vld [vmem:[%s3158 + $0x190] sm:$0xff]
        %v3210 = vld [vmem:[%s3158 + $0x198] sm:$0xff]
        %v3211 = vld [vmem:[%s3158 + $0x1a0] sm:$0xff]
        %v3212 = vld [vmem:[%s3158 + $0x1a8] sm:$0xff]
        %v3213 = vld [vmem:[%s3158 + $0x1b0] sm:$0xff]
        %v3214 = vld [vmem:[%s3158 + $0x1b8] sm:$0xff]
        %s3215 = scalar_lea.vmem [#allocation12], 192
        %v3216 = vld [vmem:[%s3215] sm:$0xf]
        %v3217 = vld [vmem:[%s3215 + $0x4] sm:$0xf]
        %v3218 = vld [vmem:[%s3215 + $0x8] sm:$0xf]
        %v3219 = vld [vmem:[%s3215 + $0xc] sm:$0xf]
        %v3220 = vld [vmem:[%s3215 + $0x10] sm:$0xf]
        %v3221 = vld [vmem:[%s3215 + $0x14] sm:$0xf]
        %v3222 = vld [vmem:[%s3215 + $0x18] sm:$0xf]
        %v3223 = vld [vmem:[%s3215 + $0x1c] sm:$0xf]
        %v3224 = vld [vmem:[%s3215 + $0x20] sm:$0xf]
        %v3225 = vld [vmem:[%s3215 + $0x24] sm:$0xf]
        %v3226 = vld [vmem:[%s3215 + $0x28] sm:$0xf]
        %v3227 = vld [vmem:[%s3215 + $0x2c] sm:$0xf]
        %v3228 = vld [vmem:[%s3215 + $0x30] sm:$0xf]
        %v3229 = vld [vmem:[%s3215 + $0x34] sm:$0xf]
        %v3230 = vld [vmem:[%s3215 + $0x38] sm:$0xf]
        %v3231 = vld [vmem:[%s3215 + $0x3c] sm:$0xf]
        %v3232 = vld [vmem:[%s3215 + $0x40] sm:$0xf]
        %v3233 = vld [vmem:[%s3215 + $0x44] sm:$0xf]
        %v3234 = vld [vmem:[%s3215 + $0x48] sm:$0xf]
        %v3235 = vld [vmem:[%s3215 + $0x4c] sm:$0xf]
        %v3236 = vld [vmem:[%s3215 + $0x50] sm:$0xf]
        %v3237 = vld [vmem:[%s3215 + $0x54] sm:$0xf]
        %v3238 = vld [vmem:[%s3215 + $0x58] sm:$0xf]
        %v3239 = vld [vmem:[%s3215 + $0x5c] sm:$0xf]
        %v3264 = vunpack.c.l.b16 %v3216
        %v3265 = vunpack.c.l.b16 %v3217
        %v3266 = vunpack.c.l.b16 %v3218
        %v3267 = vunpack.c.l.b16 %v3219
        %v3268 = vunpack.c.l.b16 %v3220
        %v3269 = vunpack.c.l.b16 %v3221
        %v3270 = vunpack.c.l.b16 %v3222
        %v3271 = vunpack.c.l.b16 %v3223
        %v3272 = vunpack.c.l.b16 %v3224
        %v3273 = vunpack.c.l.b16 %v3225
        %v3274 = vunpack.c.l.b16 %v3226
        %v3275 = vunpack.c.l.b16 %v3227
        %v3276 = vunpack.c.l.b16 %v3228
        %v3277 = vunpack.c.l.b16 %v3229
        %v3278 = vunpack.c.l.b16 %v3230
        %v3279 = vunpack.c.l.b16 %v3231
        %v3280 = vunpack.c.l.b16 %v3232
        %v3281 = vunpack.c.l.b16 %v3233
        %v3282 = vunpack.c.l.b16 %v3234
        %v3283 = vunpack.c.l.b16 %v3235
        %v3284 = vunpack.c.l.b16 %v3236
        %v3285 = vunpack.c.l.b16 %v3237
        %v3286 = vunpack.c.l.b16 %v3238
        %v3287 = vunpack.c.l.b16 %v3239
        %v3288 = vpack.c.b16 %v3265, %v3264
        %v3289 = vpack.c.b16 %v3267, %v3266
        %v3290 = vpack.c.b16 %v3269, %v3268
        %v3291 = vpack.c.b16 %v3271, %v3270
        %v3292 = vpack.c.b16 %v3273, %v3272
        %v3293 = vpack.c.b16 %v3275, %v3274
        %v3294 = vpack.c.b16 %v3277, %v3276
        %v3295 = vpack.c.b16 %v3279, %v3278
        %v3296 = vpack.c.b16 %v3281, %v3280
        %v3297 = vpack.c.b16 %v3283, %v3282
        %v3298 = vpack.c.b16 %v3285, %v3284
        %v3299 = vpack.c.b16 %v3287, %v3286
        %v3313 = vsel %vm1373, %v3160, 0
        %v3316 = vsel %vm1373, %v3162, 0
        %v3319 = vsel %vm1373, %v3164, 0
        %v3322 = vsel %vm1373, %v3166, 0
        %v3325 = vsel %vm1373, %v3168, 0
        %v3328 = vsel %vm1373, %v3170, 0
        %v3331 = vsel %vm1373, %v3172, 0
        %v3334 = vsel %vm1373, %v3174, 0
        %v3337 = vsel %vm1373, %v3176, 0
        %v3340 = vsel %vm1373, %v3178, 0
        %v3343 = vsel %vm1373, %v3180, 0
        %v3346 = vsel %vm1373, %v3182, 0
        %v3349 = vsel %vm1373, %v3184, 0
        %v3352 = vsel %vm1373, %v3186, 0
        %v3355 = vsel %vm1373, %v3188, 0
        %v3358 = vsel %vm1373, %v3190, 0
        %v3361 = vsel %vm1373, %v3192, 0
        %v3364 = vsel %vm1373, %v3194, 0
        %v3367 = vsel %vm1373, %v3196, 0
        %v3370 = vsel %vm1373, %v3198, 0
        %v3373 = vsel %vm1373, %v3200, 0
        %v3376 = vsel %vm1373, %v3202, 0
        %v3379 = vsel %vm1373, %v3204, 0
        %v3382 = vsel %vm1373, %v3206, 0
        %v3385 = vsel %vm1373, %v3208, 0
        %v3388 = vsel %vm1373, %v3210, 0
        %v3391 = vsel %vm1373, %v3212, 0
        %v3394 = vsel %vm1373, %v3214, 0
        %3396 = vmatprep.subr.bf16.mxu0 0
        %3397 = vmatpush1.bf16.msra.mxu0 %v3288
        %3398 = vmatprep.subr.bf16.mxu0 0
        %3399 = vmatpush1.bf16.msra.mxu0 %v3289
        %3400 = vmatprep.subr.bf16.mxu0 0
        %3401 = vmatpush1.bf16.msra.mxu0 %v3290
        %3402 = vmatprep.subr.bf16.mxu0 0
        %3403 = vmatpush1.bf16.msra.mxu0 %v3291
        %3404 = vmatprep.subr.bf16.mxu0 0
        %3405 = vmatpush1.bf16.msra.mxu0 %v3292
        %3406 = vmatprep.subr.bf16.mxu0 0
        %3407 = vmatpush1.bf16.msra.mxu0 %v3293
        %3408 = vmatprep.subr.bf16.mxu0 0
        %3409 = vmatpush1.bf16.msra.mxu0 %v3294
        %3410 = vmatprep.subr.bf16.mxu0 0
        %3411 = vmatpush1.bf16.msra.mxu0 %v3295
        %3412 = vmatprep.subr.bf16.mxu0 0
        %3413 = vmatpush1.bf16.msra.mxu0 %v3296
        %3414 = vmatprep.subr.bf16.mxu0 0
        %3415 = vmatpush1.bf16.msra.mxu0 %v3297
        %3416 = vmatprep.subr.bf16.mxu0 0
        %3417 = vmatpush1.bf16.msra.mxu0 %v3298
        %3418 = vmatprep.subr.bf16.mxu0 0
        %3419 = vmatpush1.bf16.msra.mxu0 %v3299
        %3420 = vmatprep.subr.bf16.mxu0 0
        %3421 = vmatpush1.bf16.msra.mxu0 0
        %3422 = vmatprep.subr.bf16.mxu0 0
        %3423 = vmatpush1.bf16.msra.mxu0 0
        %3424 = vmatprep.subr.bf16.mxu0 0
        %3425 = vmatpush1.bf16.msra.mxu0 0
        %3426 = vmatprep.subr.bf16.mxu0 0
        %3427 = vmatpush1.bf16.msra.mxu0 0
        %3428 = vmatprep.mubr.bf16.mxu0 %v3313
        %3429 = vmatmul.mubr.bf16.gmra.mrb[0].mxu0 %v3159
        %v3430 = vpop.f32.mrb[0].mxu0
        %v3431 = vpop.f32.mrb[0].mxu0
        %v3432 = vpop.f32.mrb[0].mxu0
        %v3433 = vpop.f32.mrb[0].mxu0
        %3434 = vmatprep.mubr.bf16.mxu0 %v3316
        %3435 = vmatmul.mubr.bf16.gmra.mrb[0].mxu0 %v3161
        %v3436 = vpop.f32.mrb[0].mxu0
        %v3437 = vpop.f32.mrb[0].mxu0
        %v3438 = vpop.f32.mrb[0].mxu0
        %v3439 = vpop.f32.mrb[0].mxu0
        %3440 = vmatprep.mubr.bf16.mxu0 %v3319
        %3441 = vmatmul.mubr.bf16.gmra.mrb[0].mxu0 %v3163
        %v3442 = vpop.f32.mrb[0].mxu0
        %v3443 = vadd.f32 0.0, %v3442
        %v3444 = vpop.f32.mrb[0].mxu0
        %v3445 = vpop.f32.mrb[0].mxu0
        %v3446 = vadd.f32 0.0, %v3445
        %v3447 = vpop.f32.mrb[0].mxu0
        %3448 = vmatprep.mubr.bf16.mxu0 %v3322
        %3449 = vmatmul.mubr.bf16.gmra.mrb[0].mxu0 %v3165
        %v3450 = vpop.f32.mrb[0].mxu0
        %v3451 = vadd.f32 0.0, %v3450
        %v3452 = vpop.f32.mrb[0].mxu0
        %v3453 = vpop.f32.mrb[0].mxu0
        %v3454 = vadd.f32 0.0, %v3453
        %v3455 = vpop.f32.mrb[0].mxu0
        %3456 = vmatprep.mubr.bf16.mxu0 %v3325
        %3457 = vmatmul.mubr.bf16.gmra.mrb[0].mxu0 %v3167
        %v3458 = vpop.f32.mrb[0].mxu0
        %v3459 = vadd.f32 0.0, %v3458
        %v3460 = vpop.f32.mrb[0].mxu0
        %v3461 = vpop.f32.mrb[0].mxu0
        %v3462 = vadd.f32 0.0, %v3461
        %v3463 = vpop.f32.mrb[0].mxu0
        %3464 = vmatprep.mubr.bf16.mxu0 %v3328
        %3465 = vmatmul.mubr.bf16.gmra.mrb[0].mxu0 %v3169
        %v3466 = vpop.f32.mrb[0].mxu0
        %v3467 = vadd.f32 0.0, %v3466
        %v3468 = vpop.f32.mrb[0].mxu0
        %v3469 = vpop.f32.mrb[0].mxu0
        %v3470 = vadd.f32 0.0, %v3469
        %v3471 = vpop.f32.mrb[0].mxu0
        %3472 = vmatprep.mubr.bf16.mxu0 %v3331
        %3473 = vmatmul.mubr.bf16.gmra.mrb[0].mxu0 %v3171
        %v3474 = vpop.f32.mrb[0].mxu0
        %v3475 = vadd.f32 0.0, %v3474
        %v3476 = vpop.f32.mrb[0].mxu0
        %v3477 = vpop.f32.mrb[0].mxu0
        %v3478 = vadd.f32 0.0, %v3477
        %v3479 = vpop.f32.mrb[0].mxu0
        %3480 = vmatprep.mubr.bf16.mxu0 %v3334
        %3481 = vmatmul.mubr.bf16.gmra.mrb[0].mxu0 %v3173
        %v3482 = vpop.f32.mrb[0].mxu0
        %v3483 = vadd.f32 0.0, %v3482
        %v3484 = vpop.f32.mrb[0].mxu0
        %v3485 = vpop.f32.mrb[0].mxu0
        %v3486 = vadd.f32 0.0, %v3485
        %v3487 = vpop.f32.mrb[0].mxu0
        %3488 = vmatprep.mubr.bf16.mxu0 %v3337
        %3489 = vmatmul.mubr.bf16.gmra.mrb[0].mxu0 %v3175
        %v3490 = vpop.f32.mrb[0].mxu0
        %v3491 = vadd.f32 0.0, %v3490
        %v3492 = vpop.f32.mrb[0].mxu0
        %v3493 = vpop.f32.mrb[0].mxu0
        %v3494 = vadd.f32 0.0, %v3493
        %v3495 = vpop.f32.mrb[0].mxu0
        %3496 = vmatprep.mubr.bf16.mxu0 %v3340
        %3497 = vmatmul.mubr.bf16.gmra.mrb[0].mxu0 %v3177
        %v3498 = vpop.f32.mrb[0].mxu0
        %v3499 = vadd.f32 0.0, %v3498
        %v3500 = vpop.f32.mrb[0].mxu0
        %v3501 = vpop.f32.mrb[0].mxu0
        %v3502 = vadd.f32 0.0, %v3501
        %v3503 = vpop.f32.mrb[0].mxu0
        %3504 = vmatprep.mubr.bf16.mxu0 %v3343
        %3505 = vmatmul.mubr.bf16.gmra.mrb[0].mxu0 %v3179
        %v3506 = vpop.f32.mrb[0].mxu0
        %v3507 = vadd.f32 0.0, %v3506
        %v3508 = vpop.f32.mrb[0].mxu0
        %v3509 = vpop.f32.mrb[0].mxu0
        %v3510 = vadd.f32 0.0, %v3509
        %v3511 = vpop.f32.mrb[0].mxu0
        %3512 = vmatprep.mubr.bf16.mxu0 %v3346
        %3513 = vmatmul.mubr.bf16.gmra.mrb[0].mxu0 %v3181
        %v3514 = vpop.f32.mrb[0].mxu0
        %v3515 = vadd.f32 0.0, %v3514
        %v3516 = vpop.f32.mrb[0].mxu0
        %v3517 = vpop.f32.mrb[0].mxu0
        %v3518 = vadd.f32 0.0, %v3517
        %v3519 = vpop.f32.mrb[0].mxu0
        %3520 = vmatprep.mubr.bf16.mxu0 %v3349
        %3521 = vmatmul.mubr.bf16.gmra.mrb[0].mxu0 %v3183
        %v3522 = vpop.f32.mrb[0].mxu0
        %v3523 = vadd.f32 0.0, %v3522
        %v3524 = vpop.f32.mrb[0].mxu0
        %v3525 = vpop.f32.mrb[0].mxu0
        %v3526 = vadd.f32 0.0, %v3525
        %v3527 = vpop.f32.mrb[0].mxu0
        %3528 = vmatprep.mubr.bf16.mxu0 %v3352
        %3529 = vmatmul.mubr.bf16.gmra.mrb[0].mxu0 %v3185
        %v3530 = vpop.f32.mrb[0].mxu0
        %v3531 = vadd.f32 0.0, %v3530
        %v3532 = vpop.f32.mrb[0].mxu0
        %v3533 = vpop.f32.mrb[0].mxu0
        %v3534 = vadd.f32 0.0, %v3533
        %v3535 = vpop.f32.mrb[0].mxu0
        %3536 = vmatprep.mubr.bf16.mxu0 %v3355
        %3537 = vmatmul.mubr.bf16.gmra.mrb[0].mxu0 %v3187
        %v3538 = vpop.f32.mrb[0].mxu0
        %v3539 = vadd.f32 0.0, %v3538
        %v3540 = vpop.f32.mrb[0].mxu0
        %v3541 = vpop.f32.mrb[0].mxu0
        %v3542 = vadd.f32 0.0, %v3541
        %v3543 = vpop.f32.mrb[0].mxu0
        %3544 = vmatprep.mubr.bf16.mxu0 %v3358
        %3545 = vmatmul.mubr.bf16.gmra.mrb[0].mxu0 %v3189
        %v3546 = vpop.f32.mrb[0].mxu0
        %v3547 = vadd.f32 0.0, %v3546
        %v3548 = vpop.f32.mrb[0].mxu0
        %v3549 = vpop.f32.mrb[0].mxu0
        %v3550 = vadd.f32 0.0, %v3549
        %v3551 = vpop.f32.mrb[0].mxu0
        %3552 = vmatprep.mubr.bf16.mxu0 %v3361
        %3553 = vmatmul.mubr.bf16.gmra.mrb[0].mxu0 %v3191
        %v3554 = vpop.f32.mrb[0].mxu0
        %v3555 = vadd.f32 0.0, %v3554
        %v3556 = vpop.f32.mrb[0].mxu0
        %v3557 = vpop.f32.mrb[0].mxu0
        %v3558 = vadd.f32 0.0, %v3557
        %v3559 = vpop.f32.mrb[0].mxu0
        %3560 = vmatprep.mubr.bf16.mxu0 %v3364
        %3561 = vmatmul.mubr.bf16.gmra.mrb[0].mxu0 %v3193
        %v3562 = vpop.f32.mrb[0].mxu0
        %v3563 = vadd.f32 0.0, %v3562
        %v3564 = vpop.f32.mrb[0].mxu0
        %v3565 = vpop.f32.mrb[0].mxu0
        %v3566 = vadd.f32 0.0, %v3565
        %v3567 = vpop.f32.mrb[0].mxu0
        %3568 = vmatprep.mubr.bf16.mxu0 %v3367
        %3569 = vmatmul.mubr.bf16.gmra.mrb[0].mxu0 %v3195
        %v3570 = vpop.f32.mrb[0].mxu0
        %v3571 = vadd.f32 0.0, %v3570
        %v3572 = vpop.f32.mrb[0].mxu0
        %v3573 = vpop.f32.mrb[0].mxu0
        %v3574 = vadd.f32 0.0, %v3573
        %v3575 = vpop.f32.mrb[0].mxu0
        %3576 = vmatprep.mubr.bf16.mxu0 %v3370
        %3577 = vmatmul.mubr.bf16.gmra.mrb[0].mxu0 %v3197
        %v3578 = vpop.f32.mrb[0].mxu0
        %v3579 = vadd.f32 0.0, %v3578
        %v3580 = vpop.f32.mrb[0].mxu0
        %v3581 = vpop.f32.mrb[0].mxu0
        %v3582 = vadd.f32 0.0, %v3581
        %v3583 = vpop.f32.mrb[0].mxu0
        %3584 = vmatprep.mubr.bf16.mxu0 %v3373
        %3585 = vmatmul.mubr.bf16.gmra.mrb[0].mxu0 %v3199
        %v3586 = vpop.f32.mrb[0].mxu0
        %v3587 = vadd.f32 0.0, %v3586
        %v3588 = vpop.f32.mrb[0].mxu0
        %v3589 = vpop.f32.mrb[0].mxu0
        %v3590 = vadd.f32 0.0, %v3589
        %v3591 = vpop.f32.mrb[0].mxu0
        %3592 = vmatprep.mubr.bf16.mxu0 %v3376
        %3593 = vmatmul.mubr.bf16.gmra.mrb[0].mxu0 %v3201
        %v3594 = vpop.f32.mrb[0].mxu0
        %v3595 = vadd.f32 0.0, %v3594
        %v3596 = vpop.f32.mrb[0].mxu0
        %v3597 = vpop.f32.mrb[0].mxu0
        %v3598 = vadd.f32 0.0, %v3597
        %v3599 = vpop.f32.mrb[0].mxu0
        %3600 = vmatprep.mubr.bf16.mxu0 %v3379
        %3601 = vmatmul.mubr.bf16.gmra.mrb[0].mxu0 %v3203
        %v3602 = vpop.f32.mrb[0].mxu0
        %v3603 = vadd.f32 0.0, %v3602
        %v3604 = vpop.f32.mrb[0].mxu0
        %v3605 = vpop.f32.mrb[0].mxu0
        %v3606 = vadd.f32 0.0, %v3605
        %v3607 = vpop.f32.mrb[0].mxu0
        %3608 = vmatprep.mubr.bf16.mxu0 %v3382
        %3609 = vmatmul.mubr.bf16.gmra.mrb[0].mxu0 %v3205
        %v3610 = vpop.f32.mrb[0].mxu0
        %v3611 = vadd.f32 0.0, %v3610
        %v3612 = vpop.f32.mrb[0].mxu0
        %v3613 = vpop.f32.mrb[0].mxu0
        %v3614 = vadd.f32 0.0, %v3613
        %v3615 = vpop.f32.mrb[0].mxu0
        %3616 = vmatprep.mubr.bf16.mxu0 %v3385
        %3617 = vmatmul.mubr.bf16.gmra.mrb[0].mxu0 %v3207
        %v3618 = vpop.f32.mrb[0].mxu0
        %v3619 = vadd.f32 0.0, %v3618
        %v3620 = vpop.f32.mrb[0].mxu0
        %v3621 = vpop.f32.mrb[0].mxu0
        %v3622 = vadd.f32 0.0, %v3621
        %v3623 = vpop.f32.mrb[0].mxu0
        %3624 = vmatprep.mubr.bf16.mxu0 %v3388
        %3625 = vmatmul.mubr.bf16.gmra.mrb[0].mxu0 %v3209
        %v3626 = vpop.f32.mrb[0].mxu0
        %v3627 = vadd.f32 0.0, %v3626
        %v3628 = vpop.f32.mrb[0].mxu0
        %v3629 = vpop.f32.mrb[0].mxu0
        %v3630 = vadd.f32 0.0, %v3629
        %v3631 = vpop.f32.mrb[0].mxu0
        %3632 = vmatprep.mubr.bf16.mxu0 %v3391
        %3633 = vmatmul.mubr.bf16.gmra.mrb[0].mxu0 %v3211
        %v3634 = vpop.f32.mrb[0].mxu0
        %v3635 = vpop.f32.mrb[0].mxu0
        %v3636 = vpop.f32.mrb[0].mxu0
        %v3637 = vpop.f32.mrb[0].mxu0
        %3638 = vmatprep.mubr.bf16.mxu0 %v3394
        %3639 = vmatmul.mubr.bf16.gmra.mrb[0].mxu0 %v3213
        %v3640 = vpop.f32.mrb[0].mxu0
        %v3641 = vpop.f32.mrb[0].mxu0
        %v3642 = vpop.f32.mrb[0].mxu0
        %v3643 = vpop.f32.mrb[0].mxu0
        %3644 = vdwg.mxu0
        %v3645 = vadd.f32 %v2956, %v3443
        %v3646 = vadd.f32 %v2959, %v3446
        %v3647 = vadd.f32 %v2964, %v3451
        %v3648 = vadd.f32 %v2967, %v3454
        %v3649 = vadd.f32 %v2972, %v3459
        %v3650 = vadd.f32 %v2975, %v3462
        %v3651 = vadd.f32 %v2980, %v3467
        %v3652 = vadd.f32 %v2983, %v3470
        %v3653 = vadd.f32 %v2988, %v3475
        %v3654 = vadd.f32 %v2991, %v3478
        %v3655 = vadd.f32 %v2996, %v3483
        %v3656 = vadd.f32 %v2999, %v3486
        %v3657 = vadd.f32 %v3004, %v3491
        %v3658 = vadd.f32 %v3007, %v3494
        %v3659 = vadd.f32 %v3012, %v3499
        %v3660 = vadd.f32 %v3015, %v3502
        %v3661 = vadd.f32 %v3020, %v3507
        %v3662 = vadd.f32 %v3023, %v3510
        %v3663 = vadd.f32 %v3028, %v3515
        %v3664 = vadd.f32 %v3031, %v3518
        %v3665 = vadd.f32 %v3036, %v3523
        %v3666 = vadd.f32 %v3039, %v3526
        %v3667 = vadd.f32 %v3044, %v3531
        %v3668 = vadd.f32 %v3047, %v3534
        %v3669 = vadd.f32 %v3052, %v3539
        %v3670 = vadd.f32 %v3055, %v3542
        %v3671 = vadd.f32 %v3060, %v3547
        %v3672 = vadd.f32 %v3063, %v3550
        %v3673 = vadd.f32 %v3068, %v3555
        %v3674 = vadd.f32 %v3071, %v3558
        %v3675 = vadd.f32 %v3076, %v3563
        %v3676 = vadd.f32 %v3079, %v3566
        %v3677 = vadd.f32 %v3084, %v3571
        %v3678 = vadd.f32 %v3087, %v3574
        %v3679 = vadd.f32 %v3092, %v3579
        %v3680 = vadd.f32 %v3095, %v3582
        %v3681 = vadd.f32 %v3100, %v3587
        %v3682 = vadd.f32 %v3103, %v3590
        %v3683 = vadd.f32 %v3108, %v3595
        %v3684 = vadd.f32 %v3111, %v3598
        %v3685 = vadd.f32 %v3116, %v3603
        %v3686 = vadd.f32 %v3119, %v3606
        %v3687 = vadd.f32 %v3124, %v3611
        %v3688 = vadd.f32 %v3127, %v3614
        %v3689 = vadd.f32 %v3132, %v3619
        %v3690 = vadd.f32 %v3135, %v3622
        %v3691 = vadd.f32 %v3140, %v3627
        %v3692 = vadd.f32 %v3143, %v3630
        %v3693 = vld [vmem:[#allocation14] sm:$0x1]
        %v3695 = vlaneseq
        %v3696 = vshrl.u32 %v3695, 7
        %v3697 = vsub.s32 0, %v3696
        %v3698 = vrot.slane %v3693, %v3697
        %v3700 = vadd.f32 %v3645, %v3698
        %v3701 = vadd.f32 %v3646, %v3698
        %v3702 = vadd.f32 %v3647, %v3698
        %v3703 = vadd.f32 %v3648, %v3698
        %v3704 = vadd.f32 %v3649, %v3698
        %v3705 = vadd.f32 %v3650, %v3698
        %v3706 = vadd.f32 %v3651, %v3698
        %v3707 = vadd.f32 %v3652, %v3698
        %v3708 = vadd.f32 %v3653, %v3698
        %v3709 = vadd.f32 %v3654, %v3698
        %v3710 = vadd.f32 %v3655, %v3698
        %v3711 = vadd.f32 %v3656, %v3698
        %v3712 = vadd.f32 %v3657, %v3698
        %v3713 = vadd.f32 %v3658, %v3698
        %v3714 = vadd.f32 %v3659, %v3698
        %v3715 = vadd.f32 %v3660, %v3698
        %v3716 = vadd.f32 %v3661, %v3698
        %v3717 = vadd.f32 %v3662, %v3698
        %v3718 = vadd.f32 %v3663, %v3698
        %v3719 = vadd.f32 %v3664, %v3698
        %v3720 = vadd.f32 %v3665, %v3698
        %v3721 = vadd.f32 %v3666, %v3698
        %v3722 = vadd.f32 %v3667, %v3698
        %v3723 = vadd.f32 %v3668, %v3698
        %v3724 = vadd.f32 %v3669, %v3698
        %v3725 = vadd.f32 %v3670, %v3698
        %v3726 = vadd.f32 %v3671, %v3698
        %v3727 = vadd.f32 %v3672, %v3698
        %v3728 = vadd.f32 %v3673, %v3698
        %v3729 = vadd.f32 %v3674, %v3698
        %v3730 = vadd.f32 %v3675, %v3698
        %v3731 = vadd.f32 %v3676, %v3698
        %v3732 = vadd.f32 %v3677, %v3698
        %v3733 = vadd.f32 %v3678, %v3698
        %v3734 = vadd.f32 %v3679, %v3698
        %v3735 = vadd.f32 %v3680, %v3698
        %v3736 = vadd.f32 %v3681, %v3698
        %v3737 = vadd.f32 %v3682, %v3698
        %v3738 = vadd.f32 %v3683, %v3698
        %v3739 = vadd.f32 %v3684, %v3698
        %v3740 = vadd.f32 %v3685, %v3698
        %v3741 = vadd.f32 %v3686, %v3698
        %v3742 = vadd.f32 %v3687, %v3698
        %v3743 = vadd.f32 %v3688, %v3698
        %v3744 = vadd.f32 %v3689, %v3698
        %v3745 = vadd.f32 %v3690, %v3698
        %v3746 = vadd.f32 %v3691, %v3698
        %v3747 = vadd.f32 %v3692, %v3698
        %v3748 = vmax.f32 %v3700, 0.0
        %v3749 = vmax.f32 %v3701, 0.0
        %v3750 = vmax.f32 %v3702, 0.0
        %v3751 = vmax.f32 %v3703, 0.0
        %v3752 = vmax.f32 %v3704, 0.0
        %v3753 = vmax.f32 %v3705, 0.0
        %v3754 = vmax.f32 %v3706, 0.0
        %v3755 = vmax.f32 %v3707, 0.0
        %v3756 = vmax.f32 %v3708, 0.0
        %v3757 = vmax.f32 %v3709, 0.0
        %v3758 = vmax.f32 %v3710, 0.0
        %v3759 = vmax.f32 %v3711, 0.0
        %v3760 = vmax.f32 %v3712, 0.0
        %v3761 = vmax.f32 %v3713, 0.0
        %v3762 = vmax.f32 %v3714, 0.0
        %v3763 = vmax.f32 %v3715, 0.0
        %v3764 = vmax.f32 %v3716, 0.0
        %v3765 = vmax.f32 %v3717, 0.0
        %v3766 = vmax.f32 %v3718, 0.0
        %v3767 = vmax.f32 %v3719, 0.0
        %v3768 = vmax.f32 %v3720, 0.0
        %v3769 = vmax.f32 %v3721, 0.0
        %v3770 = vmax.f32 %v3722, 0.0
        %v3771 = vmax.f32 %v3723, 0.0
        %v3772 = vmax.f32 %v3724, 0.0
        %v3773 = vmax.f32 %v3725, 0.0
        %v3774 = vmax.f32 %v3726, 0.0
        %v3775 = vmax.f32 %v3727, 0.0
        %v3776 = vmax.f32 %v3728, 0.0
        %v3777 = vmax.f32 %v3729, 0.0
        %v3778 = vmax.f32 %v3730, 0.0
        %v3779 = vmax.f32 %v3731, 0.0
        %v3780 = vmax.f32 %v3732, 0.0
        %v3781 = vmax.f32 %v3733, 0.0
        %v3782 = vmax.f32 %v3734, 0.0
        %v3783 = vmax.f32 %v3735, 0.0
        %v3784 = vmax.f32 %v3736, 0.0
        %v3785 = vmax.f32 %v3737, 0.0
        %v3786 = vmax.f32 %v3738, 0.0
        %v3787 = vmax.f32 %v3739, 0.0
        %v3788 = vmax.f32 %v3740, 0.0
        %v3789 = vmax.f32 %v3741, 0.0
        %v3790 = vmax.f32 %v3742, 0.0
        %v3791 = vmax.f32 %v3743, 0.0
        %v3792 = vmax.f32 %v3744, 0.0
        %v3793 = vmax.f32 %v3745, 0.0
        %v3794 = vmax.f32 %v3746, 0.0
        %v3795 = vmax.f32 %v3747, 0.0
        %v3796 = vmax.f32 %v3748, %v3750
        %v3797 = vmax.f32 %v3749, %v3751
        %v3798 = vmax.f32 %v3754, %v3756
        %v3799 = vmax.f32 %v3755, %v3757
        %v3800 = vmax.f32 %v3760, %v3762
        %v3801 = vmax.f32 %v3761, %v3763
        %v3802 = vmax.f32 %v3766, %v3768
        %v3803 = vmax.f32 %v3767, %v3769
        %v3804 = vmax.f32 %v3772, %v3774
        %v3805 = vmax.f32 %v3773, %v3775
        %v3806 = vmax.f32 %v3778, %v3780
        %v3807 = vmax.f32 %v3779, %v3781
        %v3808 = vmax.f32 %v3784, %v3786
        %v3809 = vmax.f32 %v3785, %v3787
        %v3810 = vmax.f32 %v3790, %v3792
        %v3811 = vmax.f32 %v3791, %v3793
        %v3812 = vmax.f32 %v3796, %v3752
        %v3813 = vmax.f32 %v3797, %v3753
        %v3814 = vmax.f32 %v3798, %v3758
        %v3815 = vmax.f32 %v3799, %v3759
        %v3816 = vmax.f32 %v3800, %v3764
        %v3817 = vmax.f32 %v3801, %v3765
        %v3818 = vmax.f32 %v3802, %v3770
        %v3819 = vmax.f32 %v3803, %v3771
        %v3820 = vmax.f32 %v3804, %v3776
        %v3821 = vmax.f32 %v3805, %v3777
        %v3822 = vmax.f32 %v3806, %v3782
        %v3823 = vmax.f32 %v3807, %v3783
        %v3824 = vmax.f32 %v3808, %v3788
        %v3825 = vmax.f32 %v3809, %v3789
        %v3826 = vmax.f32 %v3810, %v3794
        %v3827 = vmax.f32 %v3811, %v3795
        %v3844 = vcombine.high %v3812, %v3812
        %v3846 = vunpack.c.l.s4 1983009808
        %v3847 = vunpack.c.0.s8 %v3846
        %v3848 = vlaneseq
        %v3849 = vshrl.u32 %v3848, 7
        %v3850 = vsub.s32 %v3847, %v3849
        %v3851 = vrot.slane %v3812, %v3850
        %v3853 = vunpack.c.l.s4 1983009808
        %v3854 = vunpack.c.0.s8 %v3853
        %v3855 = vlaneseq
        %v3856 = vshrl.u32 %v3855, 7
        %v3857 = vsub.s32 %v3854, %v3856
        %v3858 = vrot.slane %v3844, %v3857
        %v3859 = vcombine.high %v3851, %v3851
        %v3860 = vcombine.high %v3858, %v3858
        %v3861 = vcombine.high %v3813, %v3813
        %v3863 = vunpack.c.l.s4 1983009808
        %v3864 = vunpack.c.0.s8 %v3863
        %v3865 = vlaneseq
        %v3866 = vshrl.u32 %v3865, 7
        %v3867 = vsub.s32 %v3864, %v3866
        %v3868 = vrot.slane %v3813, %v3867
        %v3870 = vunpack.c.l.s4 1983009808
        %v3871 = vunpack.c.0.s8 %v3870
        %v3872 = vlaneseq
        %v3873 = vshrl.u32 %v3872, 7
        %v3874 = vsub.s32 %v3871, %v3873
        %v3875 = vrot.slane %v3861, %v3874
        %v3876 = vcombine.high %v3868, %v3868
        %v3877 = vcombine.high %v3875, %v3875
        %v3878 = vcombine.high %v3814, %v3814
        %v3880 = vunpack.c.l.s4 1983009808
        %v3881 = vunpack.c.0.s8 %v3880
        %v3882 = vlaneseq
        %v3883 = vshrl.u32 %v3882, 7
        %v3884 = vsub.s32 %v3881, %v3883
        %v3885 = vrot.slane %v3814, %v3884
        %v3887 = vunpack.c.l.s4 1983009808
        %v3888 = vunpack.c.0.s8 %v3887
        %v3889 = vlaneseq
        %v3890 = vshrl.u32 %v3889, 7
        %v3891 = vsub.s32 %v3888, %v3890
        %v3892 = vrot.slane %v3878, %v3891
        %v3893 = vcombine.high %v3885, %v3885
        %v3894 = vcombine.high %v3892, %v3892
        %v3895 = vcombine.high %v3815, %v3815
        %v3897 = vunpack.c.l.s4 1983009808
        %v3898 = vunpack.c.0.s8 %v3897
        %v3899 = vlaneseq
        %v3900 = vshrl.u32 %v3899, 7
        %v3901 = vsub.s32 %v3898, %v3900
        %v3902 = vrot.slane %v3815, %v3901
        %v3904 = vunpack.c.l.s4 1983009808
        %v3905 = vunpack.c.0.s8 %v3904
        %v3906 = vlaneseq
        %v3907 = vshrl.u32 %v3906, 7
        %v3908 = vsub.s32 %v3905, %v3907
        %v3909 = vrot.slane %v3895, %v3908
        %v3910 = vcombine.high %v3902, %v3902
        %v3911 = vcombine.high %v3909, %v3909
        %v3912 = vcombine.high %v3816, %v3816
        %v3914 = vunpack.c.l.s4 1983009808
        %v3915 = vunpack.c.0.s8 %v3914
        %v3916 = vlaneseq
        %v3917 = vshrl.u32 %v3916, 7
        %v3918 = vsub.s32 %v3915, %v3917
        %v3919 = vrot.slane %v3816, %v3918
        %v3921 = vunpack.c.l.s4 1983009808
        %v3922 = vunpack.c.0.s8 %v3921
        %v3923 = vlaneseq
        %v3924 = vshrl.u32 %v3923, 7
        %v3925 = vsub.s32 %v3922, %v3924
        %v3926 = vrot.slane %v3912, %v3925
        %v3927 = vcombine.high %v3919, %v3919
        %v3928 = vcombine.high %v3926, %v3926
        %v3929 = vcombine.high %v3817, %v3817
        %v3931 = vunpack.c.l.s4 1983009808
        %v3932 = vunpack.c.0.s8 %v3931
        %v3933 = vlaneseq
        %v3934 = vshrl.u32 %v3933, 7
        %v3935 = vsub.s32 %v3932, %v3934
        %v3936 = vrot.slane %v3817, %v3935
        %v3938 = vunpack.c.l.s4 1983009808
        %v3939 = vunpack.c.0.s8 %v3938
        %v3940 = vlaneseq
        %v3941 = vshrl.u32 %v3940, 7
        %v3942 = vsub.s32 %v3939, %v3941
        %v3943 = vrot.slane %v3929, %v3942
        %v3944 = vcombine.high %v3936, %v3936
        %v3945 = vcombine.high %v3943, %v3943
        %v3946 = vcombine.high %v3818, %v3818
        %v3948 = vunpack.c.l.s4 1983009808
        %v3949 = vunpack.c.0.s8 %v3948
        %v3950 = vlaneseq
        %v3951 = vshrl.u32 %v3950, 7
        %v3952 = vsub.s32 %v3949, %v3951
        %v3953 = vrot.slane %v3818, %v3952
        %v3955 = vunpack.c.l.s4 1983009808
        %v3956 = vunpack.c.0.s8 %v3955
        %v3957 = vlaneseq
        %v3958 = vshrl.u32 %v3957, 7
        %v3959 = vsub.s32 %v3956, %v3958
        %v3960 = vrot.slane %v3946, %v3959
        %v3961 = vcombine.high %v3953, %v3953
        %v3962 = vcombine.high %v3960, %v3960
        %v3963 = vcombine.high %v3819, %v3819
        %v3965 = vunpack.c.l.s4 1983009808
        %v3966 = vunpack.c.0.s8 %v3965
        %v3967 = vlaneseq
        %v3968 = vshrl.u32 %v3967, 7
        %v3969 = vsub.s32 %v3966, %v3968
        %v3970 = vrot.slane %v3819, %v3969
        %v3972 = vunpack.c.l.s4 1983009808
        %v3973 = vunpack.c.0.s8 %v3972
        %v3974 = vlaneseq
        %v3975 = vshrl.u32 %v3974, 7
        %v3976 = vsub.s32 %v3973, %v3975
        %v3977 = vrot.slane %v3963, %v3976
        %v3978 = vcombine.high %v3970, %v3970
        %v3979 = vcombine.high %v3977, %v3977
        %v3980 = vcombine.high %v3820, %v3820
        %v3982 = vunpack.c.l.s4 1983009808
        %v3983 = vunpack.c.0.s8 %v3982
        %v3984 = vlaneseq
        %v3985 = vshrl.u32 %v3984, 7
        %v3986 = vsub.s32 %v3983, %v3985
        %v3987 = vrot.slane %v3820, %v3986
        %v3989 = vunpack.c.l.s4 1983009808
        %v3990 = vunpack.c.0.s8 %v3989
        %v3991 = vlaneseq
        %v3992 = vshrl.u32 %v3991, 7
        %v3993 = vsub.s32 %v3990, %v3992
        %v3994 = vrot.slane %v3980, %v3993
        %v3995 = vcombine.high %v3987, %v3987
        %v3996 = vcombine.high %v3994, %v3994
        %v3997 = vcombine.high %v3821, %v3821
        %v3999 = vunpack.c.l.s4 1983009808
        %v4000 = vunpack.c.0.s8 %v3999
        %v4001 = vlaneseq
        %v4002 = vshrl.u32 %v4001, 7
        %v4003 = vsub.s32 %v4000, %v4002
        %v4004 = vrot.slane %v3821, %v4003
        %v4006 = vunpack.c.l.s4 1983009808
        %v4007 = vunpack.c.0.s8 %v4006
        %v4008 = vlaneseq
        %v4009 = vshrl.u32 %v4008, 7
        %v4010 = vsub.s32 %v4007, %v4009
        %v4011 = vrot.slane %v3997, %v4010
        %v4012 = vcombine.high %v4004, %v4004
        %v4013 = vcombine.high %v4011, %v4011
        %v4014 = vcombine.high %v3822, %v3822
        %v4016 = vunpack.c.l.s4 1983009808
        %v4017 = vunpack.c.0.s8 %v4016
        %v4018 = vlaneseq
        %v4019 = vshrl.u32 %v4018, 7
        %v4020 = vsub.s32 %v4017, %v4019
        %v4021 = vrot.slane %v3822, %v4020
        %v4023 = vunpack.c.l.s4 1983009808
        %v4024 = vunpack.c.0.s8 %v4023
        %v4025 = vlaneseq
        %v4026 = vshrl.u32 %v4025, 7
        %v4027 = vsub.s32 %v4024, %v4026
        %v4028 = vrot.slane %v4014, %v4027
        %v4029 = vcombine.high %v4021, %v4021
        %v4030 = vcombine.high %v4028, %v4028
        %v4031 = vcombine.high %v3823, %v3823
        %v4033 = vunpack.c.l.s4 1983009808
        %v4034 = vunpack.c.0.s8 %v4033
        %v4035 = vlaneseq
        %v4036 = vshrl.u32 %v4035, 7
        %v4037 = vsub.s32 %v4034, %v4036
        %v4038 = vrot.slane %v3823, %v4037
        %v4040 = vunpack.c.l.s4 1983009808
        %v4041 = vunpack.c.0.s8 %v4040
        %v4042 = vlaneseq
        %v4043 = vshrl.u32 %v4042, 7
        %v4044 = vsub.s32 %v4041, %v4043
        %v4045 = vrot.slane %v4031, %v4044
        %v4046 = vcombine.high %v4038, %v4038
        %v4047 = vcombine.high %v4045, %v4045
        %v4048 = vcombine.high %v3824, %v3824
        %v4050 = vunpack.c.l.s4 1983009808
        %v4051 = vunpack.c.0.s8 %v4050
        %v4052 = vlaneseq
        %v4053 = vshrl.u32 %v4052, 7
        %v4054 = vsub.s32 %v4051, %v4053
        %v4055 = vrot.slane %v3824, %v4054
        %v4057 = vunpack.c.l.s4 1983009808
        %v4058 = vunpack.c.0.s8 %v4057
        %v4059 = vlaneseq
        %v4060 = vshrl.u32 %v4059, 7
        %v4061 = vsub.s32 %v4058, %v4060
        %v4062 = vrot.slane %v4048, %v4061
        %v4063 = vcombine.high %v4055, %v4055
        %v4064 = vcombine.high %v4062, %v4062
        %v4065 = vcombine.high %v3825, %v3825
        %v4067 = vunpack.c.l.s4 1983009808
        %v4068 = vunpack.c.0.s8 %v4067
        %v4069 = vlaneseq
        %v4070 = vshrl.u32 %v4069, 7
        %v4071 = vsub.s32 %v4068, %v4070
        %v4072 = vrot.slane %v3825, %v4071
        %v4074 = vunpack.c.l.s4 1983009808
        %v4075 = vunpack.c.0.s8 %v4074
        %v4076 = vlaneseq
        %v4077 = vshrl.u32 %v4076, 7
        %v4078 = vsub.s32 %v4075, %v4077
        %v4079 = vrot.slane %v4065, %v4078
        %v4080 = vcombine.high %v4072, %v4072
        %v4081 = vcombine.high %v4079, %v4079
        %v4082 = vcombine.high %v3826, %v3826
        %v4084 = vunpack.c.l.s4 1983009808
        %v4085 = vunpack.c.0.s8 %v4084
        %v4086 = vlaneseq
        %v4087 = vshrl.u32 %v4086, 7
        %v4088 = vsub.s32 %v4085, %v4087
        %v4089 = vrot.slane %v3826, %v4088
        %v4091 = vunpack.c.l.s4 1983009808
        %v4092 = vunpack.c.0.s8 %v4091
        %v4093 = vlaneseq
        %v4094 = vshrl.u32 %v4093, 7
        %v4095 = vsub.s32 %v4092, %v4094
        %v4096 = vrot.slane %v4082, %v4095
        %v4097 = vcombine.high %v4089, %v4089
        %v4098 = vcombine.high %v4096, %v4096
        %v4099 = vcombine.high %v3827, %v3827
        %v4101 = vunpack.c.l.s4 1983009808
        %v4102 = vunpack.c.0.s8 %v4101
        %v4103 = vlaneseq
        %v4104 = vshrl.u32 %v4103, 7
        %v4105 = vsub.s32 %v4102, %v4104
        %v4106 = vrot.slane %v3827, %v4105
        %v4108 = vunpack.c.l.s4 1983009808
        %v4109 = vunpack.c.0.s8 %v4108
        %v4110 = vlaneseq
        %v4111 = vshrl.u32 %v4110, 7
        %v4112 = vsub.s32 %v4109, %v4111
        %v4113 = vrot.slane %v4099, %v4112
        %v4114 = vcombine.high %v4106, %v4106
        %v4115 = vcombine.high %v4113, %v4113
        %vm4180 = vcmask 517120
        %v4181 = vsel %vm4180, %v3851, -inf
        %v4182 = vrot.slane %v4181, 4
        %v4183 = vmax.f32 %v4181, %v4182
        %v4184 = vrot.slane %v4183, 2
        %v4185 = vmax.f32 %v4183, %v4184
        %v4186 = vrot.slane %v4185, 1
        %v4187 = vmax.f32 %v4185, %v4186
        %v4188 = vsel %vm4180, %v3859, -inf
        %v4189 = vrot.slane %v4188, 4
        %v4190 = vmax.f32 %v4188, %v4189
        %v4191 = vrot.slane %v4190, 2
        %v4192 = vmax.f32 %v4190, %v4191
        %v4193 = vrot.slane %v4192, 1
        %v4194 = vmax.f32 %v4192, %v4193
        %v4195 = vsel %vm4180, %v3858, -inf
        %v4196 = vrot.slane %v4195, 4
        %v4197 = vmax.f32 %v4195, %v4196
        %v4198 = vrot.slane %v4197, 2
        %v4199 = vmax.f32 %v4197, %v4198
        %v4200 = vrot.slane %v4199, 1
        %v4201 = vmax.f32 %v4199, %v4200
        %v4202 = vsel %vm4180, %v3860, -inf
        %v4203 = vrot.slane %v4202, 4
        %v4204 = vmax.f32 %v4202, %v4203
        %v4205 = vrot.slane %v4204, 2
        %v4206 = vmax.f32 %v4204, %v4205
        %v4207 = vrot.slane %v4206, 1
        %v4208 = vmax.f32 %v4206, %v4207
        %v4209 = vsel %vm4180, %v3868, -inf
        %v4210 = vrot.slane %v4209, 4
        %v4211 = vmax.f32 %v4209, %v4210
        %v4212 = vrot.slane %v4211, 2
        %v4213 = vmax.f32 %v4211, %v4212
        %v4214 = vrot.slane %v4213, 1
        %v4215 = vmax.f32 %v4213, %v4214
        %v4216 = vsel %vm4180, %v3876, -inf
        %v4217 = vrot.slane %v4216, 4
        %v4218 = vmax.f32 %v4216, %v4217
        %v4219 = vrot.slane %v4218, 2
        %v4220 = vmax.f32 %v4218, %v4219
        %v4221 = vrot.slane %v4220, 1
        %v4222 = vmax.f32 %v4220, %v4221
        %v4223 = vsel %vm4180, %v3875, -inf
        %v4224 = vrot.slane %v4223, 4
        %v4225 = vmax.f32 %v4223, %v4224
        %v4226 = vrot.slane %v4225, 2
        %v4227 = vmax.f32 %v4225, %v4226
        %v4228 = vrot.slane %v4227, 1
        %v4229 = vmax.f32 %v4227, %v4228
        %v4230 = vsel %vm4180, %v3877, -inf
        %v4231 = vrot.slane %v4230, 4
        %v4232 = vmax.f32 %v4230, %v4231
        %v4233 = vrot.slane %v4232, 2
        %v4234 = vmax.f32 %v4232, %v4233
        %v4235 = vrot.slane %v4234, 1
        %v4236 = vmax.f32 %v4234, %v4235
        %v4237 = vsel %vm4180, %v3885, -inf
        %v4238 = vrot.slane %v4237, 4
        %v4239 = vmax.f32 %v4237, %v4238
        %v4240 = vrot.slane %v4239, 2
        %v4241 = vmax.f32 %v4239, %v4240
        %v4242 = vrot.slane %v4241, 1
        %v4243 = vmax.f32 %v4241, %v4242
        %v4244 = vsel %vm4180, %v3893, -inf
        %v4245 = vrot.slane %v4244, 4
        %v4246 = vmax.f32 %v4244, %v4245
        %v4247 = vrot.slane %v4246, 2
        %v4248 = vmax.f32 %v4246, %v4247
        %v4249 = vrot.slane %v4248, 1
        %v4250 = vmax.f32 %v4248, %v4249
        %v4251 = vsel %vm4180, %v3892, -inf
        %v4252 = vrot.slane %v4251, 4
        %v4253 = vmax.f32 %v4251, %v4252
        %v4254 = vrot.slane %v4253, 2
        %v4255 = vmax.f32 %v4253, %v4254
        %v4256 = vrot.slane %v4255, 1
        %v4257 = vmax.f32 %v4255, %v4256
        %v4258 = vsel %vm4180, %v3894, -inf
        %v4259 = vrot.slane %v4258, 4
        %v4260 = vmax.f32 %v4258, %v4259
        %v4261 = vrot.slane %v4260, 2
        %v4262 = vmax.f32 %v4260, %v4261
        %v4263 = vrot.slane %v4262, 1
        %v4264 = vmax.f32 %v4262, %v4263
        %v4265 = vsel %vm4180, %v3902, -inf
        %v4266 = vrot.slane %v4265, 4
        %v4267 = vmax.f32 %v4265, %v4266
        %v4268 = vrot.slane %v4267, 2
        %v4269 = vmax.f32 %v4267, %v4268
        %v4270 = vrot.slane %v4269, 1
        %v4271 = vmax.f32 %v4269, %v4270
        %v4272 = vsel %vm4180, %v3910, -inf
        %v4273 = vrot.slane %v4272, 4
        %v4274 = vmax.f32 %v4272, %v4273
        %v4275 = vrot.slane %v4274, 2
        %v4276 = vmax.f32 %v4274, %v4275
        %v4277 = vrot.slane %v4276, 1
        %v4278 = vmax.f32 %v4276, %v4277
        %v4279 = vsel %vm4180, %v3909, -inf
        %v4280 = vrot.slane %v4279, 4
        %v4281 = vmax.f32 %v4279, %v4280
        %v4282 = vrot.slane %v4281, 2
        %v4283 = vmax.f32 %v4281, %v4282
        %v4284 = vrot.slane %v4283, 1
        %v4285 = vmax.f32 %v4283, %v4284
        %v4286 = vsel %vm4180, %v3911, -inf
        %v4287 = vrot.slane %v4286, 4
        %v4288 = vmax.f32 %v4286, %v4287
        %v4289 = vrot.slane %v4288, 2
        %v4290 = vmax.f32 %v4288, %v4289
        %v4291 = vrot.slane %v4290, 1
        %v4292 = vmax.f32 %v4290, %v4291
        %v4293 = vsel %vm4180, %v3919, -inf
        %v4294 = vrot.slane %v4293, 4
        %v4295 = vmax.f32 %v4293, %v4294
        %v4296 = vrot.slane %v4295, 2
        %v4297 = vmax.f32 %v4295, %v4296
        %v4298 = vrot.slane %v4297, 1
        %v4299 = vmax.f32 %v4297, %v4298
        %v4300 = vsel %vm4180, %v3927, -inf
        %v4301 = vrot.slane %v4300, 4
        %v4302 = vmax.f32 %v4300, %v4301
        %v4303 = vrot.slane %v4302, 2
        %v4304 = vmax.f32 %v4302, %v4303
        %v4305 = vrot.slane %v4304, 1
        %v4306 = vmax.f32 %v4304, %v4305
        %v4307 = vsel %vm4180, %v3926, -inf
        %v4308 = vrot.slane %v4307, 4
        %v4309 = vmax.f32 %v4307, %v4308
        %v4310 = vrot.slane %v4309, 2
        %v4311 = vmax.f32 %v4309, %v4310
        %v4312 = vrot.slane %v4311, 1
        %v4313 = vmax.f32 %v4311, %v4312
        %v4314 = vsel %vm4180, %v3928, -inf
        %v4315 = vrot.slane %v4314, 4
        %v4316 = vmax.f32 %v4314, %v4315
        %v4317 = vrot.slane %v4316, 2
        %v4318 = vmax.f32 %v4316, %v4317
        %v4319 = vrot.slane %v4318, 1
        %v4320 = vmax.f32 %v4318, %v4319
        %v4321 = vsel %vm4180, %v3936, -inf
        %v4322 = vrot.slane %v4321, 4
        %v4323 = vmax.f32 %v4321, %v4322
        %v4324 = vrot.slane %v4323, 2
        %v4325 = vmax.f32 %v4323, %v4324
        %v4326 = vrot.slane %v4325, 1
        %v4327 = vmax.f32 %v4325, %v4326
        %v4328 = vsel %vm4180, %v3944, -inf
        %v4329 = vrot.slane %v4328, 4
        %v4330 = vmax.f32 %v4328, %v4329
        %v4331 = vrot.slane %v4330, 2
        %v4332 = vmax.f32 %v4330, %v4331
        %v4333 = vrot.slane %v4332, 1
        %v4334 = vmax.f32 %v4332, %v4333
        %v4335 = vsel %vm4180, %v3943, -inf
        %v4336 = vrot.slane %v4335, 4
        %v4337 = vmax.f32 %v4335, %v4336
        %v4338 = vrot.slane %v4337, 2
        %v4339 = vmax.f32 %v4337, %v4338
        %v4340 = vrot.slane %v4339, 1
        %v4341 = vmax.f32 %v4339, %v4340
        %v4342 = vsel %vm4180, %v3945, -inf
        %v4343 = vrot.slane %v4342, 4
        %v4344 = vmax.f32 %v4342, %v4343
        %v4345 = vrot.slane %v4344, 2
        %v4346 = vmax.f32 %v4344, %v4345
        %v4347 = vrot.slane %v4346, 1
        %v4348 = vmax.f32 %v4346, %v4347
        %v4349 = vsel %vm4180, %v3953, -inf
        %v4350 = vrot.slane %v4349, 4
        %v4351 = vmax.f32 %v4349, %v4350
        %v4352 = vrot.slane %v4351, 2
        %v4353 = vmax.f32 %v4351, %v4352
        %v4354 = vrot.slane %v4353, 1
        %v4355 = vmax.f32 %v4353, %v4354
        %v4356 = vsel %vm4180, %v3961, -inf
        %v4357 = vrot.slane %v4356, 4
        %v4358 = vmax.f32 %v4356, %v4357
        %v4359 = vrot.slane %v4358, 2
        %v4360 = vmax.f32 %v4358, %v4359
        %v4361 = vrot.slane %v4360, 1
        %v4362 = vmax.f32 %v4360, %v4361
        %v4363 = vsel %vm4180, %v3960, -inf
        %v4364 = vrot.slane %v4363, 4
        %v4365 = vmax.f32 %v4363, %v4364
        %v4366 = vrot.slane %v4365, 2
        %v4367 = vmax.f32 %v4365, %v4366
        %v4368 = vrot.slane %v4367, 1
        %v4369 = vmax.f32 %v4367, %v4368
        %v4370 = vsel %vm4180, %v3962, -inf
        %v4371 = vrot.slane %v4370, 4
        %v4372 = vmax.f32 %v4370, %v4371
        %v4373 = vrot.slane %v4372, 2
        %v4374 = vmax.f32 %v4372, %v4373
        %v4375 = vrot.slane %v4374, 1
        %v4376 = vmax.f32 %v4374, %v4375
        %v4377 = vsel %vm4180, %v3970, -inf
        %v4378 = vrot.slane %v4377, 4
        %v4379 = vmax.f32 %v4377, %v4378
        %v4380 = vrot.slane %v4379, 2
        %v4381 = vmax.f32 %v4379, %v4380
        %v4382 = vrot.slane %v4381, 1
        %v4383 = vmax.f32 %v4381, %v4382
        %v4384 = vsel %vm4180, %v3978, -inf
        %v4385 = vrot.slane %v4384, 4
        %v4386 = vmax.f32 %v4384, %v4385
        %v4387 = vrot.slane %v4386, 2
        %v4388 = vmax.f32 %v4386, %v4387
        %v4389 = vrot.slane %v4388, 1
        %v4390 = vmax.f32 %v4388, %v4389
        %v4391 = vsel %vm4180, %v3977, -inf
        %v4392 = vrot.slane %v4391, 4
        %v4393 = vmax.f32 %v4391, %v4392
        %v4394 = vrot.slane %v4393, 2
        %v4395 = vmax.f32 %v4393, %v4394
        %v4396 = vrot.slane %v4395, 1
        %v4397 = vmax.f32 %v4395, %v4396
        %v4398 = vsel %vm4180, %v3979, -inf
        %v4399 = vrot.slane %v4398, 4
        %v4400 = vmax.f32 %v4398, %v4399
        %v4401 = vrot.slane %v4400, 2
        %v4402 = vmax.f32 %v4400, %v4401
        %v4403 = vrot.slane %v4402, 1
        %v4404 = vmax.f32 %v4402, %v4403
        %v4405 = vsel %vm4180, %v3987, -inf
        %v4406 = vrot.slane %v4405, 4
        %v4407 = vmax.f32 %v4405, %v4406
        %v4408 = vrot.slane %v4407, 2
        %v4409 = vmax.f32 %v4407, %v4408
        %v4410 = vrot.slane %v4409, 1
        %v4411 = vmax.f32 %v4409, %v4410
        %v4412 = vsel %vm4180, %v3995, -inf
        %v4413 = vrot.slane %v4412, 4
        %v4414 = vmax.f32 %v4412, %v4413
        %v4415 = vrot.slane %v4414, 2
        %v4416 = vmax.f32 %v4414, %v4415
        %v4417 = vrot.slane %v4416, 1
        %v4418 = vmax.f32 %v4416, %v4417
        %v4419 = vsel %vm4180, %v3994, -inf
        %v4420 = vrot.slane %v4419, 4
        %v4421 = vmax.f32 %v4419, %v4420
        %v4422 = vrot.slane %v4421, 2
        %v4423 = vmax.f32 %v4421, %v4422
        %v4424 = vrot.slane %v4423, 1
        %v4425 = vmax.f32 %v4423, %v4424
        %v4426 = vsel %vm4180, %v3996, -inf
        %v4427 = vrot.slane %v4426, 4
        %v4428 = vmax.f32 %v4426, %v4427
        %v4429 = vrot.slane %v4428, 2
        %v4430 = vmax.f32 %v4428, %v4429
        %v4431 = vrot.slane %v4430, 1
        %v4432 = vmax.f32 %v4430, %v4431
        %v4433 = vsel %vm4180, %v4004, -inf
        %v4434 = vrot.slane %v4433, 4
        %v4435 = vmax.f32 %v4433, %v4434
        %v4436 = vrot.slane %v4435, 2
        %v4437 = vmax.f32 %v4435, %v4436
        %v4438 = vrot.slane %v4437, 1
        %v4439 = vmax.f32 %v4437, %v4438
        %v4440 = vsel %vm4180, %v4012, -inf
        %v4441 = vrot.slane %v4440, 4
        %v4442 = vmax.f32 %v4440, %v4441
        %v4443 = vrot.slane %v4442, 2
        %v4444 = vmax.f32 %v4442, %v4443
        %v4445 = vrot.slane %v4444, 1
        %v4446 = vmax.f32 %v4444, %v4445
        %v4447 = vsel %vm4180, %v4011, -inf
        %v4448 = vrot.slane %v4447, 4
        %v4449 = vmax.f32 %v4447, %v4448
        %v4450 = vrot.slane %v4449, 2
        %v4451 = vmax.f32 %v4449, %v4450
        %v4452 = vrot.slane %v4451, 1
        %v4453 = vmax.f32 %v4451, %v4452
        %v4454 = vsel %vm4180, %v4013, -inf
        %v4455 = vrot.slane %v4454, 4
        %v4456 = vmax.f32 %v4454, %v4455
        %v4457 = vrot.slane %v4456, 2
        %v4458 = vmax.f32 %v4456, %v4457
        %v4459 = vrot.slane %v4458, 1
        %v4460 = vmax.f32 %v4458, %v4459
        %v4461 = vsel %vm4180, %v4021, -inf
        %v4462 = vrot.slane %v4461, 4
        %v4463 = vmax.f32 %v4461, %v4462
        %v4464 = vrot.slane %v4463, 2
        %v4465 = vmax.f32 %v4463, %v4464
        %v4466 = vrot.slane %v4465, 1
        %v4467 = vmax.f32 %v4465, %v4466
        %v4468 = vsel %vm4180, %v4029, -inf
        %v4469 = vrot.slane %v4468, 4
        %v4470 = vmax.f32 %v4468, %v4469
        %v4471 = vrot.slane %v4470, 2
        %v4472 = vmax.f32 %v4470, %v4471
        %v4473 = vrot.slane %v4472, 1
        %v4474 = vmax.f32 %v4472, %v4473
        %v4475 = vsel %vm4180, %v4028, -inf
        %v4476 = vrot.slane %v4475, 4
        %v4477 = vmax.f32 %v4475, %v4476
        %v4478 = vrot.slane %v4477, 2
        %v4479 = vmax.f32 %v4477, %v4478
        %v4480 = vrot.slane %v4479, 1
        %v4481 = vmax.f32 %v4479, %v4480
        %v4482 = vsel %vm4180, %v4030, -inf
        %v4483 = vrot.slane %v4482, 4
        %v4484 = vmax.f32 %v4482, %v4483
        %v4485 = vrot.slane %v4484, 2
        %v4486 = vmax.f32 %v4484, %v4485
        %v4487 = vrot.slane %v4486, 1
        %v4488 = vmax.f32 %v4486, %v4487
        %v4489 = vsel %vm4180, %v4038, -inf
        %v4490 = vrot.slane %v4489, 4
        %v4491 = vmax.f32 %v4489, %v4490
        %v4492 = vrot.slane %v4491, 2
        %v4493 = vmax.f32 %v4491, %v4492
        %v4494 = vrot.slane %v4493, 1
        %v4495 = vmax.f32 %v4493, %v4494
        %v4496 = vsel %vm4180, %v4046, -inf
        %v4497 = vrot.slane %v4496, 4
        %v4498 = vmax.f32 %v4496, %v4497
        %v4499 = vrot.slane %v4498, 2
        %v4500 = vmax.f32 %v4498, %v4499
        %v4501 = vrot.slane %v4500, 1
        %v4502 = vmax.f32 %v4500, %v4501
        %v4503 = vsel %vm4180, %v4045, -inf
        %v4504 = vrot.slane %v4503, 4
        %v4505 = vmax.f32 %v4503, %v4504
        %v4506 = vrot.slane %v4505, 2
        %v4507 = vmax.f32 %v4505, %v4506
        %v4508 = vrot.slane %v4507, 1
        %v4509 = vmax.f32 %v4507, %v4508
        %v4510 = vsel %vm4180, %v4047, -inf
        %v4511 = vrot.slane %v4510, 4
        %v4512 = vmax.f32 %v4510, %v4511
        %v4513 = vrot.slane %v4512, 2
        %v4514 = vmax.f32 %v4512, %v4513
        %v4515 = vrot.slane %v4514, 1
        %v4516 = vmax.f32 %v4514, %v4515
        %v4517 = vsel %vm4180, %v4055, -inf
        %v4518 = vrot.slane %v4517, 4
        %v4519 = vmax.f32 %v4517, %v4518
        %v4520 = vrot.slane %v4519, 2
        %v4521 = vmax.f32 %v4519, %v4520
        %v4522 = vrot.slane %v4521, 1
        %v4523 = vmax.f32 %v4521, %v4522
        %v4524 = vsel %vm4180, %v4063, -inf
        %v4525 = vrot.slane %v4524, 4
        %v4526 = vmax.f32 %v4524, %v4525
        %v4527 = vrot.slane %v4526, 2
        %v4528 = vmax.f32 %v4526, %v4527
        %v4529 = vrot.slane %v4528, 1
        %v4530 = vmax.f32 %v4528, %v4529
        %v4531 = vsel %vm4180, %v4062, -inf
        %v4532 = vrot.slane %v4531, 4
        %v4533 = vmax.f32 %v4531, %v4532
        %v4534 = vrot.slane %v4533, 2
        %v4535 = vmax.f32 %v4533, %v4534
        %v4536 = vrot.slane %v4535, 1
        %v4537 = vmax.f32 %v4535, %v4536
        %v4538 = vsel %vm4180, %v4064, -inf
        %v4539 = vrot.slane %v4538, 4
        %v4540 = vmax.f32 %v4538, %v4539
        %v4541 = vrot.slane %v4540, 2
        %v4542 = vmax.f32 %v4540, %v4541
        %v4543 = vrot.slane %v4542, 1
        %v4544 = vmax.f32 %v4542, %v4543
        %v4545 = vsel %vm4180, %v4072, -inf
        %v4546 = vrot.slane %v4545, 4
        %v4547 = vmax.f32 %v4545, %v4546
        %v4548 = vrot.slane %v4547, 2
        %v4549 = vmax.f32 %v4547, %v4548
        %v4550 = vrot.slane %v4549, 1
        %v4551 = vmax.f32 %v4549, %v4550
        %v4552 = vsel %vm4180, %v4080, -inf
        %v4553 = vrot.slane %v4552, 4
        %v4554 = vmax.f32 %v4552, %v4553
        %v4555 = vrot.slane %v4554, 2
        %v4556 = vmax.f32 %v4554, %v4555
        %v4557 = vrot.slane %v4556, 1
        %v4558 = vmax.f32 %v4556, %v4557
        %v4559 = vsel %vm4180, %v4079, -inf
        %v4560 = vrot.slane %v4559, 4
        %v4561 = vmax.f32 %v4559, %v4560
        %v4562 = vrot.slane %v4561, 2
        %v4563 = vmax.f32 %v4561, %v4562
        %v4564 = vrot.slane %v4563, 1
        %v4565 = vmax.f32 %v4563, %v4564
        %v4566 = vsel %vm4180, %v4081, -inf
        %v4567 = vrot.slane %v4566, 4
        %v4568 = vmax.f32 %v4566, %v4567
        %v4569 = vrot.slane %v4568, 2
        %v4570 = vmax.f32 %v4568, %v4569
        %v4571 = vrot.slane %v4570, 1
        %v4572 = vmax.f32 %v4570, %v4571
        %v4573 = vsel %vm4180, %v4089, -inf
        %v4574 = vrot.slane %v4573, 4
        %v4575 = vmax.f32 %v4573, %v4574
        %v4576 = vrot.slane %v4575, 2
        %v4577 = vmax.f32 %v4575, %v4576
        %v4578 = vrot.slane %v4577, 1
        %v4579 = vmax.f32 %v4577, %v4578
        %v4580 = vsel %vm4180, %v4097, -inf
        %v4581 = vrot.slane %v4580, 4
        %v4582 = vmax.f32 %v4580, %v4581
        %v4583 = vrot.slane %v4582, 2
        %v4584 = vmax.f32 %v4582, %v4583
        %v4585 = vrot.slane %v4584, 1
        %v4586 = vmax.f32 %v4584, %v4585
        %v4587 = vsel %vm4180, %v4096, -inf
        %v4588 = vrot.slane %v4587, 4
        %v4589 = vmax.f32 %v4587, %v4588
        %v4590 = vrot.slane %v4589, 2
        %v4591 = vmax.f32 %v4589, %v4590
        %v4592 = vrot.slane %v4591, 1
        %v4593 = vmax.f32 %v4591, %v4592
        %v4594 = vsel %vm4180, %v4098, -inf
        %v4595 = vrot.slane %v4594, 4
        %v4596 = vmax.f32 %v4594, %v4595
        %v4597 = vrot.slane %v4596, 2
        %v4598 = vmax.f32 %v4596, %v4597
        %v4599 = vrot.slane %v4598, 1
        %v4600 = vmax.f32 %v4598, %v4599
        %v4601 = vsel %vm4180, %v4106, -inf
        %v4602 = vrot.slane %v4601, 4
        %v4603 = vmax.f32 %v4601, %v4602
        %v4604 = vrot.slane %v4603, 2
        %v4605 = vmax.f32 %v4603, %v4604
        %v4606 = vrot.slane %v4605, 1
        %v4607 = vmax.f32 %v4605, %v4606
        %v4608 = vsel %vm4180, %v4114, -inf
        %v4609 = vrot.slane %v4608, 4
        %v4610 = vmax.f32 %v4608, %v4609
        %v4611 = vrot.slane %v4610, 2
        %v4612 = vmax.f32 %v4610, %v4611
        %v4613 = vrot.slane %v4612, 1
        %v4614 = vmax.f32 %v4612, %v4613
        %v4615 = vsel %vm4180, %v4113, -inf
        %v4616 = vrot.slane %v4615, 4
        %v4617 = vmax.f32 %v4615, %v4616
        %v4618 = vrot.slane %v4617, 2
        %v4619 = vmax.f32 %v4617, %v4618
        %v4620 = vrot.slane %v4619, 1
        %v4621 = vmax.f32 %v4619, %v4620
        %v4622 = vsel %vm4180, %v4115, -inf
        %v4623 = vrot.slane %v4622, 4
        %v4624 = vmax.f32 %v4622, %v4623
        %v4625 = vrot.slane %v4624, 2
        %v4626 = vmax.f32 %v4624, %v4625
        %v4627 = vrot.slane %v4626, 1
        %v4628 = vmax.f32 %v4626, %v4627
        %s4629 = smul.u32 %s38, 4
        %s4630 = ssub.s32 %s4629, 2
        %v4631 = vstv %s4630
        %v4632 = vadd.s32 %v4631, 1
        %v4633 = vadd.s32 %v4631, 2
        %v4634 = vadd.s32 %v4631, 3
        %v4635 = vadd.s32 %v4631, 4
        %v4636 = vadd.s32 %v4631, 5
        %v4637 = vadd.s32 %v4631, 6
        %v4638 = vadd.s32 %v4631, 7
        %vm4639 = vcmp.ge.s32.totalorder %v4631, 0
        %vm4640 = vcmp.ge.s32.totalorder %v4632, 0
        %vm4641 = vcmp.ge.s32.totalorder %v4633, 0
        %vm4642 = vcmp.ge.s32.totalorder %v4634, 0
        %vm4643 = vcmp.ge.s32.totalorder %v4635, 0
        %vm4644 = vcmp.ge.s32.totalorder %v4636, 0
        %vm4645 = vcmp.ge.s32.totalorder %v4637, 0
        %vm4646 = vcmp.ge.s32.totalorder %v4638, 0
        %vm4647 = vcmp.lt.s32.totalorder %v4631, 4
        %vm4648 = vcmp.lt.s32.totalorder %v4632, 4
        %vm4649 = vcmp.lt.s32.totalorder %v4633, 4
        %vm4650 = vcmp.lt.s32.totalorder %v4634, 4
        %vm4651 = vcmp.lt.s32.totalorder %v4635, 4
        %vm4652 = vcmp.lt.s32.totalorder %v4636, 4
        %vm4653 = vcmp.lt.s32.totalorder %v4637, 4
        %vm4654 = vcmp.lt.s32.totalorder %v4638, 4
        %vm4655 = vmand %vm4639, %vm4647
        %vm4656 = vmand %vm4640, %vm4648
        %vm4657 = vmand %vm4641, %vm4649
        %vm4658 = vmand %vm4642, %vm4650
        %vm4659 = vmand %vm4643, %vm4651
        %vm4660 = vmand %vm4644, %vm4652
        %vm4661 = vmand %vm4645, %vm4653
        %vm4662 = vmand %vm4646, %vm4654
        %v4663 = vsel %vm4655, %v4187, 0.0
        %v4664 = vsel %vm4655, %v4194, 0.0
        %v4665 = vsel %vm4655, %v4201, 0.0
        %v4666 = vsel %vm4655, %v4208, 0.0
        %v4667 = vsel %vm4655, %v4215, 0.0
        %v4668 = vsel %vm4655, %v4222, 0.0
        %v4669 = vsel %vm4655, %v4229, 0.0
        %v4670 = vsel %vm4655, %v4236, 0.0
        %v4671 = vsel %vm4656, %v4243, 0.0
        %v4672 = vsel %vm4656, %v4250, 0.0
        %v4673 = vsel %vm4656, %v4257, 0.0
        %v4674 = vsel %vm4656, %v4264, 0.0
        %v4675 = vsel %vm4656, %v4271, 0.0
        %v4676 = vsel %vm4656, %v4278, 0.0
        %v4677 = vsel %vm4656, %v4285, 0.0
        %v4678 = vsel %vm4656, %v4292, 0.0
        %v4679 = vsel %vm4657, %v4299, 0.0
        %v4680 = vsel %vm4657, %v4306, 0.0
        %v4681 = vsel %vm4657, %v4313, 0.0
        %v4682 = vsel %vm4657, %v4320, 0.0
        %v4683 = vsel %vm4657, %v4327, 0.0
        %v4684 = vsel %vm4657, %v4334, 0.0
        %v4685 = vsel %vm4657, %v4341, 0.0
        %v4686 = vsel %vm4657, %v4348, 0.0
        %v4687 = vsel %vm4658, %v4355, 0.0
        %v4688 = vsel %vm4658, %v4362, 0.0
        %v4689 = vsel %vm4658, %v4369, 0.0
        %v4690 = vsel %vm4658, %v4376, 0.0
        %v4691 = vsel %vm4658, %v4383, 0.0
        %v4692 = vsel %vm4658, %v4390, 0.0
        %v4693 = vsel %vm4658, %v4397, 0.0
        %v4694 = vsel %vm4658, %v4404, 0.0
        %v4695 = vsel %vm4659, %v4411, 0.0
        %v4696 = vsel %vm4659, %v4418, 0.0
        %v4697 = vsel %vm4659, %v4425, 0.0
        %v4698 = vsel %vm4659, %v4432, 0.0
        %v4699 = vsel %vm4659, %v4439, 0.0
        %v4700 = vsel %vm4659, %v4446, 0.0
        %v4701 = vsel %vm4659, %v4453, 0.0
        %v4702 = vsel %vm4659, %v4460, 0.0
        %v4703 = vsel %vm4660, %v4467, 0.0
        %v4704 = vsel %vm4660, %v4474, 0.0
        %v4705 = vsel %vm4660, %v4481, 0.0
        %v4706 = vsel %vm4660, %v4488, 0.0
        %v4707 = vsel %vm4660, %v4495, 0.0
        %v4708 = vsel %vm4660, %v4502, 0.0
        %v4709 = vsel %vm4660, %v4509, 0.0
        %v4710 = vsel %vm4660, %v4516, 0.0
        %v4711 = vsel %vm4661, %v4523, 0.0
        %v4712 = vsel %vm4661, %v4530, 0.0
        %v4713 = vsel %vm4661, %v4537, 0.0
        %v4714 = vsel %vm4661, %v4544, 0.0
        %v4715 = vsel %vm4661, %v4551, 0.0
        %v4716 = vsel %vm4661, %v4558, 0.0
        %v4717 = vsel %vm4661, %v4565, 0.0
        %v4718 = vsel %vm4661, %v4572, 0.0
        %v4719 = vsel %vm4662, %v4579, 0.0
        %v4720 = vsel %vm4662, %v4586, 0.0
        %v4721 = vsel %vm4662, %v4593, 0.0
        %v4722 = vsel %vm4662, %v4600, 0.0
        %v4723 = vsel %vm4662, %v4607, 0.0
        %v4724 = vsel %vm4662, %v4614, 0.0
        %v4725 = vsel %vm4662, %v4621, 0.0
        %v4726 = vsel %vm4662, %v4628, 0.0
        %v4727 = vpack.c.bf16 %v4663, %v4663
        %v4728 = vpack.c.bf16 %v4664, %v4664
        %v4729 = vpack.c.bf16 %v4665, %v4665
        %v4730 = vpack.c.bf16 %v4666, %v4666
        %v4731 = vpack.c.bf16 %v4667, %v4667
        %v4732 = vpack.c.bf16 %v4668, %v4668
        %v4733 = vpack.c.bf16 %v4669, %v4669
        %v4734 = vpack.c.bf16 %v4670, %v4670
        %v4735 = vpack.c.bf16 %v4671, %v4671
        %v4736 = vpack.c.bf16 %v4672, %v4672
        %v4737 = vpack.c.bf16 %v4673, %v4673
        %v4738 = vpack.c.bf16 %v4674, %v4674
        %v4739 = vpack.c.bf16 %v4675, %v4675
        %v4740 = vpack.c.bf16 %v4676, %v4676
        %v4741 = vpack.c.bf16 %v4677, %v4677
        %v4742 = vpack.c.bf16 %v4678, %v4678
        %v4743 = vpack.c.bf16 %v4679, %v4679
        %v4744 = vpack.c.bf16 %v4680, %v4680
        %v4745 = vpack.c.bf16 %v4681, %v4681
        %v4746 = vpack.c.bf16 %v4682, %v4682
        %v4747 = vpack.c.bf16 %v4683, %v4683
        %v4748 = vpack.c.bf16 %v4684, %v4684
        %v4749 = vpack.c.bf16 %v4685, %v4685
        %v4750 = vpack.c.bf16 %v4686, %v4686
        %v4751 = vpack.c.bf16 %v4687, %v4687
        %v4752 = vpack.c.bf16 %v4688, %v4688
        %v4753 = vpack.c.bf16 %v4689, %v4689
        %v4754 = vpack.c.bf16 %v4690, %v4690
        %v4755 = vpack.c.bf16 %v4691, %v4691
        %v4756 = vpack.c.bf16 %v4692, %v4692
        %v4757 = vpack.c.bf16 %v4693, %v4693
        %v4758 = vpack.c.bf16 %v4694, %v4694
        %v4759 = vpack.c.bf16 %v4695, %v4695
        %v4760 = vpack.c.bf16 %v4696, %v4696
        %v4761 = vpack.c.bf16 %v4697, %v4697
        %v4762 = vpack.c.bf16 %v4698, %v4698
        %v4763 = vpack.c.bf16 %v4699, %v4699
        %v4764 = vpack.c.bf16 %v4700, %v4700
        %v4765 = vpack.c.bf16 %v4701, %v4701
        %v4766 = vpack.c.bf16 %v4702, %v4702
        %v4767 = vpack.c.bf16 %v4703, %v4703
        %v4768 = vpack.c.bf16 %v4704, %v4704
        %v4769 = vpack.c.bf16 %v4705, %v4705
        %v4770 = vpack.c.bf16 %v4706, %v4706
        %v4771 = vpack.c.bf16 %v4707, %v4707
        %v4772 = vpack.c.bf16 %v4708, %v4708
        %v4773 = vpack.c.bf16 %v4709, %v4709
        %v4774 = vpack.c.bf16 %v4710, %v4710
        %v4775 = vpack.c.bf16 %v4711, %v4711
        %v4776 = vpack.c.bf16 %v4712, %v4712
        %v4777 = vpack.c.bf16 %v4713, %v4713
        %v4778 = vpack.c.bf16 %v4714, %v4714
        %v4779 = vpack.c.bf16 %v4715, %v4715
        %v4780 = vpack.c.bf16 %v4716, %v4716
        %v4781 = vpack.c.bf16 %v4717, %v4717
        %v4782 = vpack.c.bf16 %v4718, %v4718
        %v4783 = vpack.c.bf16 %v4719, %v4719
        %v4784 = vpack.c.bf16 %v4720, %v4720
        %v4785 = vpack.c.bf16 %v4721, %v4721
        %v4786 = vpack.c.bf16 %v4722, %v4722
        %v4787 = vpack.c.bf16 %v4723, %v4723
        %v4788 = vpack.c.bf16 %v4724, %v4724
        %v4789 = vpack.c.bf16 %v4725, %v4725
        %v4790 = vpack.c.bf16 %v4726, %v4726
        %vm4791 = vcmask 523268
        %vm4792 = vmor %vm4791, %vm854
        %4793 = vst.msk [vmem:[#allocation3] sm:$0xff] %vm4792, 0
        %s4794 = scalar_lea.vmem [#allocation3], 72
        %4795 = vst.msk [vmem:[%s4794] sm:$0xff] %vm4792, 0
        %v4796 = vld [vmem:[#allocation3] sm:$0x1]
        %v4797 = vsel %vm1380, 0, %v4796
        %4798 = vst [vmem:[#allocation3] sm:$0x1] %v4797
        %v4799 = vld [vmem:[#allocation3 + $0x8] sm:$0x1]
        %v4800 = vsel %vm1380, 0, %v4799
        %4801 = vst [vmem:[#allocation3 + $0x8] sm:$0x1] %v4800
        %v4802 = vld [vmem:[#allocation3 + $0x10] sm:$0x1]
        %v4803 = vsel %vm1380, 0, %v4802
        %4804 = vst [vmem:[#allocation3 + $0x10] sm:$0x1] %v4803
        %v4805 = vld [vmem:[#allocation3 + $0x18] sm:$0x1]
        %v4806 = vsel %vm1380, 0, %v4805
        %4807 = vst [vmem:[#allocation3 + $0x18] sm:$0x1] %v4806
        %v4808 = vld [vmem:[#allocation3 + $0x20] sm:$0x1]
        %v4809 = vsel %vm1380, 0, %v4808
        %4810 = vst [vmem:[#allocation3 + $0x20] sm:$0x1] %v4809
        %v4811 = vld [vmem:[#allocation3 + $0x28] sm:$0x1]
        %v4812 = vsel %vm1380, 0, %v4811
        %4813 = vst [vmem:[#allocation3 + $0x28] sm:$0x1] %v4812
        %v4814 = vld [vmem:[#allocation3 + $0x30] sm:$0x1]
        %v4815 = vsel %vm1380, 0, %v4814
        %4816 = vst [vmem:[#allocation3 + $0x30] sm:$0x1] %v4815
        %v4817 = vld [vmem:[#allocation3 + $0x38] sm:$0x1]
        %v4818 = vsel %vm1380, 0, %v4817
        %4819 = vst [vmem:[#allocation3 + $0x38] sm:$0x1] %v4818
        %v4820 = vld [vmem:[#allocation3 + $0x40] sm:$0x1]
        %v4821 = vsel %vm1380, 0, %v4820
        %4822 = vst [vmem:[#allocation3 + $0x40] sm:$0x1] %v4821
        %v4823 = vld [vmem:[#allocation3 + $0x48] sm:$0x1]
        %v4824 = vsel %vm1380, 0, %v4823
        %4825 = vst [vmem:[#allocation3 + $0x48] sm:$0x1] %v4824
        %vm4826 = vcmask 519171
        %vm4827 = vsmask.f32 7950
        %vm4828 = vmand %vm4826, %vm4827
        %v4829 = vld [vmem:[#allocation3 + $0x4] sm:$0x8]
        %v4830 = vsel %vm4828, 0, %v4829
        %4831 = vst [vmem:[#allocation3 + $0x4] sm:$0x8] %v4830
        %v4832 = vld [vmem:[#allocation3 + $0xc] sm:$0x8]
        %v4833 = vsel %vm4828, 0, %v4832
        %4834 = vst [vmem:[#allocation3 + $0xc] sm:$0x8] %v4833
        %v4835 = vld [vmem:[#allocation3 + $0x14] sm:$0x8]
        %v4836 = vsel %vm4828, 0, %v4835
        %4837 = vst [vmem:[#allocation3 + $0x14] sm:$0x8] %v4836
        %v4838 = vld [vmem:[#allocation3 + $0x1c] sm:$0x8]
        %v4839 = vsel %vm4828, 0, %v4838
        %4840 = vst [vmem:[#allocation3 + $0x1c] sm:$0x8] %v4839
        %v4841 = vld [vmem:[#allocation3 + $0x24] sm:$0x8]
        %v4842 = vsel %vm4828, 0, %v4841
        %4843 = vst [vmem:[#allocation3 + $0x24] sm:$0x8] %v4842
        %v4844 = vld [vmem:[#allocation3 + $0x2c] sm:$0x8]
        %v4845 = vsel %vm4828, 0, %v4844
        %4846 = vst [vmem:[#allocation3 + $0x2c] sm:$0x8] %v4845
        %v4847 = vld [vmem:[#allocation3 + $0x34] sm:$0x8]
        %v4848 = vsel %vm4828, 0, %v4847
        %4849 = vst [vmem:[#allocation3 + $0x34] sm:$0x8] %v4848
        %v4850 = vld [vmem:[#allocation3 + $0x3c] sm:$0x8]
        %v4851 = vsel %vm4828, 0, %v4850
        %4852 = vst [vmem:[#allocation3 + $0x3c] sm:$0x8] %v4851
        %v4853 = vld [vmem:[#allocation3 + $0x44] sm:$0x8]
        %v4854 = vsel %vm4828, 0, %v4853
        %4855 = vst [vmem:[#allocation3 + $0x44] sm:$0x8] %v4854
        %v4856 = vld [vmem:[#allocation3 + $0x4c] sm:$0x8]
        %v4857 = vsel %vm4828, 0, %v4856
        %4858 = vst [vmem:[#allocation3 + $0x4c] sm:$0x8] %v4857
        %v4915 = vunpack.c.l.b16 %v4727
        %v4916 = vunpack.c.l.b16 %v4728
        %v4917 = vunpack.c.l.b16 %v4729
        %v4918 = vunpack.c.l.b16 %v4730
        %v4919 = vunpack.c.l.b16 %v4731
        %v4920 = vunpack.c.l.b16 %v4732
        %v4921 = vunpack.c.l.b16 %v4733
        %v4922 = vunpack.c.l.b16 %v4735
        %v4923 = vunpack.c.l.b16 %v4736
        %v4924 = vunpack.c.l.b16 %v4737
        %v4925 = vunpack.c.l.b16 %v4738
        %v4926 = vunpack.c.l.b16 %v4739
        %v4927 = vunpack.c.l.b16 %v4740
        %v4928 = vunpack.c.l.b16 %v4741
        %v4929 = vunpack.c.l.b16 %v4743
        %v4930 = vunpack.c.l.b16 %v4744
        %v4931 = vunpack.c.l.b16 %v4745
        %v4932 = vunpack.c.l.b16 %v4746
        %v4933 = vunpack.c.l.b16 %v4747
        %v4934 = vunpack.c.l.b16 %v4748
        %v4935 = vunpack.c.l.b16 %v4749
        %v4936 = vunpack.c.l.b16 %v4751
        %v4937 = vunpack.c.l.b16 %v4752
        %v4938 = vunpack.c.l.b16 %v4753
        %v4939 = vunpack.c.l.b16 %v4754
        %v4940 = vunpack.c.l.b16 %v4755
        %v4941 = vunpack.c.l.b16 %v4756
        %v4942 = vunpack.c.l.b16 %v4757
        %v4943 = vunpack.c.l.b16 %v4759
        %v4944 = vunpack.c.l.b16 %v4760
        %v4945 = vunpack.c.l.b16 %v4761
        %v4946 = vunpack.c.l.b16 %v4762
        %v4947 = vunpack.c.l.b16 %v4763
        %v4948 = vunpack.c.l.b16 %v4764
        %v4949 = vunpack.c.l.b16 %v4765
        %v4950 = vunpack.c.l.b16 %v4767
        %v4951 = vunpack.c.l.b16 %v4768
        %v4952 = vunpack.c.l.b16 %v4769
        %v4953 = vunpack.c.l.b16 %v4770
        %v4954 = vunpack.c.l.b16 %v4771
        %v4955 = vunpack.c.l.b16 %v4772
        %v4956 = vunpack.c.l.b16 %v4773
        %v4957 = vunpack.c.l.b16 %v4775
        %v4958 = vunpack.c.l.b16 %v4776
        %v4959 = vunpack.c.l.b16 %v4777
        %v4960 = vunpack.c.l.b16 %v4778
        %v4961 = vunpack.c.l.b16 %v4779
        %v4962 = vunpack.c.l.b16 %v4780
        %v4963 = vunpack.c.l.b16 %v4781
        %v4964 = vunpack.c.l.b16 %v4783
        %v4965 = vunpack.c.l.b16 %v4784
        %v4966 = vunpack.c.l.b16 %v4785
        %v4967 = vunpack.c.l.b16 %v4786
        %v4968 = vunpack.c.l.b16 %v4787
        %v4969 = vunpack.c.l.b16 %v4788
        %v4970 = vunpack.c.l.b16 %v4789
        %v4971 = vpack.c.b16 %v4915, %v4915
        %v4972 = vpack.c.b16 %v4916, %v4916
        %v4973 = vpack.c.b16 %v4917, %v4917
        %v4974 = vpack.c.b16 %v4918, %v4918
        %v4975 = vpack.c.b16 %v4919, %v4919
        %v4976 = vpack.c.b16 %v4920, %v4920
        %v4977 = vpack.c.b16 %v4921, %v4921
        %v4978 = vpack.c.b16 %v4922, %v4922
        %v4979 = vpack.c.b16 %v4923, %v4923
        %v4980 = vpack.c.b16 %v4924, %v4924
        %v4981 = vpack.c.b16 %v4925, %v4925
        %v4982 = vpack.c.b16 %v4926, %v4926
        %v4983 = vpack.c.b16 %v4927, %v4927
        %v4984 = vpack.c.b16 %v4928, %v4928
        %v4985 = vpack.c.b16 %v4929, %v4929
        %v4986 = vpack.c.b16 %v4930, %v4930
        %v4987 = vpack.c.b16 %v4931, %v4931
        %v4988 = vpack.c.b16 %v4932, %v4932
        %v4989 = vpack.c.b16 %v4933, %v4933
        %v4990 = vpack.c.b16 %v4934, %v4934
        %v4991 = vpack.c.b16 %v4935, %v4935
        %v4992 = vpack.c.b16 %v4936, %v4936
        %v4993 = vpack.c.b16 %v4937, %v4937
        %v4994 = vpack.c.b16 %v4938, %v4938
        %v4995 = vpack.c.b16 %v4939, %v4939
        %v4996 = vpack.c.b16 %v4940, %v4940
        %v4997 = vpack.c.b16 %v4941, %v4941
        %v4998 = vpack.c.b16 %v4942, %v4942
        %v4999 = vpack.c.b16 %v4943, %v4943
        %v5000 = vpack.c.b16 %v4944, %v4944
        %v5001 = vpack.c.b16 %v4945, %v4945
        %v5002 = vpack.c.b16 %v4946, %v4946
        %v5003 = vpack.c.b16 %v4947, %v4947
        %v5004 = vpack.c.b16 %v4948, %v4948
        %v5005 = vpack.c.b16 %v4949, %v4949
        %v5006 = vpack.c.b16 %v4950, %v4950
        %v5007 = vpack.c.b16 %v4951, %v4951
        %v5008 = vpack.c.b16 %v4952, %v4952
        %v5009 = vpack.c.b16 %v4953, %v4953
        %v5010 = vpack.c.b16 %v4954, %v4954
        %v5011 = vpack.c.b16 %v4955, %v4955
        %v5012 = vpack.c.b16 %v4956, %v4956
        %v5013 = vpack.c.b16 %v4957, %v4957
        %v5014 = vpack.c.b16 %v4958, %v4958
        %v5015 = vpack.c.b16 %v4959, %v4959
        %v5016 = vpack.c.b16 %v4960, %v4960
        %v5017 = vpack.c.b16 %v4961, %v4961
        %v5018 = vpack.c.b16 %v4962, %v4962
        %v5019 = vpack.c.b16 %v4963, %v4963
        %v5020 = vpack.c.b16 %v4964, %v4964
        %v5021 = vpack.c.b16 %v4965, %v4965
        %v5022 = vpack.c.b16 %v4966, %v4966
        %v5023 = vpack.c.b16 %v4967, %v4967
        %v5024 = vpack.c.b16 %v4968, %v4968
        %v5025 = vpack.c.b16 %v4969, %v4969
        %v5026 = vpack.c.b16 %v4970, %v4970
        %v5027 = vunpack.c.l.b16 %v4971
        %v5028 = vunpack.c.l.b16 %v4972
        %v5029 = vunpack.c.l.b16 %v4973
        %v5030 = vunpack.c.l.b16 %v4974
        %v5031 = vunpack.c.l.b16 %v4975
        %v5032 = vunpack.c.l.b16 %v4976
        %v5033 = vunpack.c.l.b16 %v4977
        %v5034 = vunpack.c.l.b16 %v4978
        %v5035 = vunpack.c.l.b16 %v4979
        %v5036 = vunpack.c.l.b16 %v4980
        %v5037 = vunpack.c.l.b16 %v4981
        %v5038 = vunpack.c.l.b16 %v4982
        %v5039 = vunpack.c.l.b16 %v4983
        %v5040 = vunpack.c.l.b16 %v4984
        %v5041 = vunpack.c.l.b16 %v4985
        %v5042 = vunpack.c.l.b16 %v4986
        %v5043 = vunpack.c.l.b16 %v4987
        %v5044 = vunpack.c.l.b16 %v4988
        %v5045 = vunpack.c.l.b16 %v4989
        %v5046 = vunpack.c.l.b16 %v4990
        %v5047 = vunpack.c.l.b16 %v4991
        %v5048 = vunpack.c.l.b16 %v4992
        %v5049 = vunpack.c.l.b16 %v4993
        %v5050 = vunpack.c.l.b16 %v4994
        %v5051 = vunpack.c.l.b16 %v4995
        %v5052 = vunpack.c.l.b16 %v4996
        %v5053 = vunpack.c.l.b16 %v4997
        %v5054 = vunpack.c.l.b16 %v4998
        %v5055 = vunpack.c.l.b16 %v4999
        %v5056 = vunpack.c.l.b16 %v5000
        %v5057 = vunpack.c.l.b16 %v5001
        %v5058 = vunpack.c.l.b16 %v5002
        %v5059 = vunpack.c.l.b16 %v5003
        %v5060 = vunpack.c.l.b16 %v5004
        %v5061 = vunpack.c.l.b16 %v5005
        %v5062 = vunpack.c.l.b16 %v5006
        %v5063 = vunpack.c.l.b16 %v5007
        %v5064 = vunpack.c.l.b16 %v5008
        %v5065 = vunpack.c.l.b16 %v5009
        %v5066 = vunpack.c.l.b16 %v5010
        %v5067 = vunpack.c.l.b16 %v5011
        %v5068 = vunpack.c.l.b16 %v5012
        %v5069 = vunpack.c.l.b16 %v5013
        %v5070 = vunpack.c.l.b16 %v5014
        %v5071 = vunpack.c.l.b16 %v5015
        %v5072 = vunpack.c.l.b16 %v5016
        %v5073 = vunpack.c.l.b16 %v5017
        %v5074 = vunpack.c.l.b16 %v5018
        %v5075 = vunpack.c.l.b16 %v5019
        %v5076 = vunpack.c.l.b16 %v5020
        %v5077 = vunpack.c.l.b16 %v5021
        %v5078 = vunpack.c.l.b16 %v5022
        %v5079 = vunpack.c.l.b16 %v5023
        %v5080 = vunpack.c.l.b16 %v5024
        %v5081 = vunpack.c.l.b16 %v5025
        %v5082 = vunpack.c.l.b16 %v5026
        %vm5083 = vcmask 1042434
        %v5084 = vsel %vm5083, %v5028, %v5027
        %vm5085 = vcmask 1043459
        %v5086 = vsel %vm5085, %v5029, %v5084
        %vm5087 = vcmask 1044484
        %v5088 = vsel %vm5087, %v5030, %v5086
        %vm5089 = vcmask 1045509
        %v5090 = vsel %vm5089, %v5031, %v5088
        %vm5091 = vcmask 1046534
        %v5092 = vsel %vm5091, %v5032, %v5090
        %vm5093 = vcmask 1047559
        %v5094 = vsel %vm5093, %v5033, %v5092
        %v5095 = vsel %vm5083, %v5035, %v5034
        %v5096 = vsel %vm5085, %v5036, %v5095
        %v5097 = vsel %vm5087, %v5037, %v5096
        %v5098 = vsel %vm5089, %v5038, %v5097
        %v5099 = vsel %vm5091, %v5039, %v5098
        %v5100 = vsel %vm5093, %v5040, %v5099
        %v5101 = vsel %vm5083, %v5042, %v5041
        %v5102 = vsel %vm5085, %v5043, %v5101
        %v5103 = vsel %vm5087, %v5044, %v5102
        %v5104 = vsel %vm5089, %v5045, %v5103
        %v5105 = vsel %vm5091, %v5046, %v5104
        %v5106 = vsel %vm5093, %v5047, %v5105
        %v5107 = vsel %vm5083, %v5049, %v5048
        %v5108 = vsel %vm5085, %v5050, %v5107
        %v5109 = vsel %vm5087, %v5051, %v5108
        %v5110 = vsel %vm5089, %v5052, %v5109
        %v5111 = vsel %vm5091, %v5053, %v5110
        %v5112 = vsel %vm5093, %v5054, %v5111
        %v5113 = vsel %vm5083, %v5056, %v5055
        %v5114 = vsel %vm5085, %v5057, %v5113
        %v5115 = vsel %vm5087, %v5058, %v5114
        %v5116 = vsel %vm5089, %v5059, %v5115
        %v5117 = vsel %vm5091, %v5060, %v5116
        %v5118 = vsel %vm5093, %v5061, %v5117
        %v5119 = vsel %vm5083, %v5063, %v5062
        %v5120 = vsel %vm5085, %v5064, %v5119
        %v5121 = vsel %vm5087, %v5065, %v5120
        %v5122 = vsel %vm5089, %v5066, %v5121
        %v5123 = vsel %vm5091, %v5067, %v5122
        %v5124 = vsel %vm5093, %v5068, %v5123
        %v5125 = vsel %vm5083, %v5070, %v5069
        %v5126 = vsel %vm5085, %v5071, %v5125
        %v5127 = vsel %vm5087, %v5072, %v5126
        %v5128 = vsel %vm5089, %v5073, %v5127
        %v5129 = vsel %vm5091, %v5074, %v5128
        %v5130 = vsel %vm5093, %v5075, %v5129
        %v5131 = vsel %vm5083, %v5077, %v5076
        %v5132 = vsel %vm5085, %v5078, %v5131
        %v5133 = vsel %vm5087, %v5079, %v5132
        %v5134 = vsel %vm5089, %v5080, %v5133
        %v5135 = vsel %vm5091, %v5081, %v5134
        %v5136 = vsel %vm5093, %v5082, %v5135
        %v5137 = vpack.c.b16 %v5094, %v5094
        %v5138 = vpack.c.b16 %v5100, %v5100
        %v5139 = vpack.c.b16 %v5106, %v5106
        %v5140 = vpack.c.b16 %v5112, %v5112
        %v5141 = vpack.c.b16 %v5118, %v5118
        %v5142 = vpack.c.b16 %v5124, %v5124
        %v5143 = vpack.c.b16 %v5130, %v5130
        %v5144 = vpack.c.b16 %v5136, %v5136
        %s5153 = scalar_lea.vmem [#allocation3], 8
        %vm5154 = vcmask 519168
        %vm5155 = vmand %vm5154, %vm1790
        %v5156 = vld [vmem:[%s5153] sm:$0xf]
        %v5157 = vsel %vm5155, %v5137, %v5156
        %5158 = vst [vmem:[%s5153] sm:$0xf] %v5157
        %v5159 = vld [vmem:[%s5153 + $0x8] sm:$0xf]
        %v5160 = vsel %vm5155, %v5138, %v5159
        %5161 = vst [vmem:[%s5153 + $0x8] sm:$0xf] %v5160
        %v5162 = vld [vmem:[%s5153 + $0x10] sm:$0xf]
        %v5163 = vsel %vm5155, %v5139, %v5162
        %5164 = vst [vmem:[%s5153 + $0x10] sm:$0xf] %v5163
        %v5165 = vld [vmem:[%s5153 + $0x18] sm:$0xf]
        %v5166 = vsel %vm5155, %v5140, %v5165
        %5167 = vst [vmem:[%s5153 + $0x18] sm:$0xf] %v5166
        %v5168 = vld [vmem:[%s5153 + $0x20] sm:$0xf]
        %v5169 = vsel %vm5155, %v5141, %v5168
        %5170 = vst [vmem:[%s5153 + $0x20] sm:$0xf] %v5169
        %v5171 = vld [vmem:[%s5153 + $0x28] sm:$0xf]
        %v5172 = vsel %vm5155, %v5142, %v5171
        %5173 = vst [vmem:[%s5153 + $0x28] sm:$0xf] %v5172
        %v5174 = vld [vmem:[%s5153 + $0x30] sm:$0xf]
        %v5175 = vsel %vm5155, %v5143, %v5174
        %5176 = vst [vmem:[%s5153 + $0x30] sm:$0xf] %v5175
        %v5177 = vld [vmem:[%s5153 + $0x38] sm:$0xf]
        %v5178 = vsel %vm5155, %v5144, %v5177
        %5179 = vst [vmem:[%s5153 + $0x38] sm:$0xf] %v5178
        %v5188 = vunpack.c.l.b16 %v4734
        %v5189 = vunpack.c.l.b16 %v4742
        %v5190 = vunpack.c.l.b16 %v4750
        %v5191 = vunpack.c.l.b16 %v4758
        %v5192 = vunpack.c.l.b16 %v4766
        %v5193 = vunpack.c.l.b16 %v4774
        %v5194 = vunpack.c.l.b16 %v4782
        %v5195 = vunpack.c.l.b16 %v4790
        %v5196 = vpack.c.b16 %v5188, %v5188
        %v5197 = vpack.c.b16 %v5189, %v5189
        %v5198 = vpack.c.b16 %v5190, %v5190
        %v5199 = vpack.c.b16 %v5191, %v5191
        %v5200 = vpack.c.b16 %v5192, %v5192
        %v5201 = vpack.c.b16 %v5193, %v5193
        %v5202 = vpack.c.b16 %v5194, %v5194
        %v5203 = vpack.c.b16 %v5195, %v5195
        %v5204 = vunpack.c.l.b16 %v5196
        %v5205 = vunpack.c.l.b16 %v5197
        %v5206 = vunpack.c.l.b16 %v5198
        %v5207 = vunpack.c.l.b16 %v5199
        %v5208 = vunpack.c.l.b16 %v5200
        %v5209 = vunpack.c.l.b16 %v5201
        %v5210 = vunpack.c.l.b16 %v5202
        %v5211 = vunpack.c.l.b16 %v5203
        %vm5212 = vcmask 1041409
        %v5213 = vsel %vm5212, %v5028, %v5027
        %v5214 = vsel %vm5083, %v5029, %v5213
        %v5215 = vsel %vm5085, %v5030, %v5214
        %v5216 = vsel %vm5087, %v5031, %v5215
        %v5217 = vsel %vm5089, %v5032, %v5216
        %v5218 = vsel %vm5091, %v5033, %v5217
        %v5219 = vsel %vm5093, %v5204, %v5218
        %v5220 = vsel %vm5212, %v5035, %v5034
        %v5221 = vsel %vm5083, %v5036, %v5220
        %v5222 = vsel %vm5085, %v5037, %v5221
        %v5223 = vsel %vm5087, %v5038, %v5222
        %v5224 = vsel %vm5089, %v5039, %v5223
        %v5225 = vsel %vm5091, %v5040, %v5224
        %v5226 = vsel %vm5093, %v5205, %v5225
        %v5227 = vsel %vm5212, %v5042, %v5041
        %v5228 = vsel %vm5083, %v5043, %v5227
        %v5229 = vsel %vm5085, %v5044, %v5228
        %v5230 = vsel %vm5087, %v5045, %v5229
        %v5231 = vsel %vm5089, %v5046, %v5230
        %v5232 = vsel %vm5091, %v5047, %v5231
        %v5233 = vsel %vm5093, %v5206, %v5232
        %v5234 = vsel %vm5212, %v5049, %v5048
        %v5235 = vsel %vm5083, %v5050, %v5234
        %v5236 = vsel %vm5085, %v5051, %v5235
        %v5237 = vsel %vm5087, %v5052, %v5236
        %v5238 = vsel %vm5089, %v5053, %v5237
        %v5239 = vsel %vm5091, %v5054, %v5238
        %v5240 = vsel %vm5093, %v5207, %v5239
        %v5241 = vsel %vm5212, %v5056, %v5055
        %v5242 = vsel %vm5083, %v5057, %v5241
        %v5243 = vsel %vm5085, %v5058, %v5242
        %v5244 = vsel %vm5087, %v5059, %v5243
        %v5245 = vsel %vm5089, %v5060, %v5244
        %v5246 = vsel %vm5091, %v5061, %v5245
        %v5247 = vsel %vm5093, %v5208, %v5246
        %v5248 = vsel %vm5212, %v5063, %v5062
        %v5249 = vsel %vm5083, %v5064, %v5248
        %v5250 = vsel %vm5085, %v5065, %v5249
        %v5251 = vsel %vm5087, %v5066, %v5250
        %v5252 = vsel %vm5089, %v5067, %v5251
        %v5253 = vsel %vm5091, %v5068, %v5252
        %v5254 = vsel %vm5093, %v5209, %v5253
        %v5255 = vsel %vm5212, %v5070, %v5069
        %v5256 = vsel %vm5083, %v5071, %v5255
        %v5257 = vsel %vm5085, %v5072, %v5256
        %v5258 = vsel %vm5087, %v5073, %v5257
        %v5259 = vsel %vm5089, %v5074, %v5258
        %v5260 = vsel %vm5091, %v5075, %v5259
        %v5261 = vsel %vm5093, %v5210, %v5260
        %v5262 = vsel %vm5212, %v5077, %v5076
        %v5263 = vsel %vm5083, %v5078, %v5262
        %v5264 = vsel %vm5085, %v5079, %v5263
        %v5265 = vsel %vm5087, %v5080, %v5264
        %v5266 = vsel %vm5089, %v5081, %v5265
        %v5267 = vsel %vm5091, %v5082, %v5266
        %v5268 = vsel %vm5093, %v5211, %v5267
        %v5269 = vpack.c.b16 %v5219, %v5219
        %v5270 = vpack.c.b16 %v5226, %v5226
        %v5271 = vpack.c.b16 %v5233, %v5233
        %v5272 = vpack.c.b16 %v5240, %v5240
        %v5273 = vpack.c.b16 %v5247, %v5247
        %v5274 = vpack.c.b16 %v5254, %v5254
        %v5275 = vpack.c.b16 %v5261, %v5261
        %v5276 = vpack.c.b16 %v5268, %v5268
        %5277 = vrot.lane.b32.xlu0 %v5269, 64
        %v5278 = vpop.permute.xlu0 %5277
        %5279 = vrot.lane.b32.xlu0 %v5270, 64
        %v5280 = vpop.permute.xlu0 %5279
        %5281 = vrot.lane.b32.xlu0 %v5271, 64
        %v5282 = vpop.permute.xlu0 %5281
        %5283 = vrot.lane.b32.xlu0 %v5272, 64
        %v5284 = vpop.permute.xlu0 %5283
        %5285 = vrot.lane.b32.xlu0 %v5273, 64
        %v5286 = vpop.permute.xlu0 %5285
        %5287 = vrot.lane.b32.xlu0 %v5274, 64
        %v5288 = vpop.permute.xlu0 %5287
        %5289 = vrot.lane.b32.xlu0 %v5275, 64
        %v5290 = vpop.permute.xlu0 %5289
        %5291 = vrot.lane.b32.xlu0 %v5276, 64
        %v5292 = vpop.permute.xlu0 %5291
        %vm5301 = vcmask 1043968
        %5302 = vst.msk [vmem:[%s5153] sm:$0xf] %vm5301, %v5278
        %5303 = vst.msk [vmem:[%s5153 + $0x8] sm:$0xf] %vm5301, %v5280
        %5304 = vst.msk [vmem:[%s5153 + $0x10] sm:$0xf] %vm5301, %v5282
        %5305 = vst.msk [vmem:[%s5153 + $0x18] sm:$0xf] %vm5301, %v5284
        %5306 = vst.msk [vmem:[%s5153 + $0x20] sm:$0xf] %vm5301, %v5286
        %5307 = vst.msk [vmem:[%s5153 + $0x28] sm:$0xf] %vm5301, %v5288
        %5308 = vst.msk [vmem:[%s5153 + $0x30] sm:$0xf] %vm5301, %v5290
        %5309 = vst.msk [vmem:[%s5153 + $0x38] sm:$0xf] %vm5301, %v5292
        %v5310 = vsel %vm5212, %v5029, %v5028
        %v5311 = vsel %vm5083, %v5030, %v5310
        %v5312 = vsel %vm5085, %v5031, %v5311
        %v5313 = vsel %vm5087, %v5032, %v5312
        %v5314 = vsel %vm5089, %v5033, %v5313
        %v5315 = vsel %vm5091, %v5204, %v5314
        %v5316 = vsel %vm5212, %v5036, %v5035
        %v5317 = vsel %vm5083, %v5037, %v5316
        %v5318 = vsel %vm5085, %v5038, %v5317
        %v5319 = vsel %vm5087, %v5039, %v5318
        %v5320 = vsel %vm5089, %v5040, %v5319
        %v5321 = vsel %vm5091, %v5205, %v5320
        %v5322 = vsel %vm5212, %v5043, %v5042
        %v5323 = vsel %vm5083, %v5044, %v5322
        %v5324 = vsel %vm5085, %v5045, %v5323
        %v5325 = vsel %vm5087, %v5046, %v5324
        %v5326 = vsel %vm5089, %v5047, %v5325
        %v5327 = vsel %vm5091, %v5206, %v5326
        %v5328 = vsel %vm5212, %v5050, %v5049
        %v5329 = vsel %vm5083, %v5051, %v5328
        %v5330 = vsel %vm5085, %v5052, %v5329
        %v5331 = vsel %vm5087, %v5053, %v5330
        %v5332 = vsel %vm5089, %v5054, %v5331
        %v5333 = vsel %vm5091, %v5207, %v5332
        %v5334 = vsel %vm5212, %v5057, %v5056
        %v5335 = vsel %vm5083, %v5058, %v5334
        %v5336 = vsel %vm5085, %v5059, %v5335
        %v5337 = vsel %vm5087, %v5060, %v5336
        %v5338 = vsel %vm5089, %v5061, %v5337
        %v5339 = vsel %vm5091, %v5208, %v5338
        %v5340 = vsel %vm5212, %v5064, %v5063
        %v5341 = vsel %vm5083, %v5065, %v5340
        %v5342 = vsel %vm5085, %v5066, %v5341
        %v5343 = vsel %vm5087, %v5067, %v5342
        %v5344 = vsel %vm5089, %v5068, %v5343
        %v5345 = vsel %vm5091, %v5209, %v5344
        %v5346 = vsel %vm5212, %v5071, %v5070
        %v5347 = vsel %vm5083, %v5072, %v5346
        %v5348 = vsel %vm5085, %v5073, %v5347
        %v5349 = vsel %vm5087, %v5074, %v5348
        %v5350 = vsel %vm5089, %v5075, %v5349
        %v5351 = vsel %vm5091, %v5210, %v5350
        %v5352 = vsel %vm5212, %v5078, %v5077
        %v5353 = vsel %vm5083, %v5079, %v5352
        %v5354 = vsel %vm5085, %v5080, %v5353
        %v5355 = vsel %vm5087, %v5081, %v5354
        %v5356 = vsel %vm5089, %v5082, %v5355
        %v5357 = vsel %vm5091, %v5211, %v5356
        %v5358 = vpack.c.b16 %v5315, %v5315
        %v5359 = vpack.c.b16 %v5321, %v5321
        %v5360 = vpack.c.b16 %v5327, %v5327
        %v5361 = vpack.c.b16 %v5333, %v5333
        %v5362 = vpack.c.b16 %v5339, %v5339
        %v5363 = vpack.c.b16 %v5345, %v5345
        %v5364 = vpack.c.b16 %v5351, %v5351
        %v5365 = vpack.c.b16 %v5357, %v5357
        %vm5374 = vsmask.f32 3328
        %vm5375 = vmand %vm5154, %vm5374
        %v5376 = vld [vmem:[%s5153 + $0x4] sm:$0xf]
        %v5377 = vsel %vm5375, %v5358, %v5376
        %5378 = vst [vmem:[%s5153 + $0x4] sm:$0xf] %v5377
        %v5379 = vld [vmem:[%s5153 + $0xc] sm:$0xf]
        %v5380 = vsel %vm5375, %v5359, %v5379
        %5381 = vst [vmem:[%s5153 + $0xc] sm:$0xf] %v5380
        %v5382 = vld [vmem:[%s5153 + $0x14] sm:$0xf]
        %v5383 = vsel %vm5375, %v5360, %v5382
        %5384 = vst [vmem:[%s5153 + $0x14] sm:$0xf] %v5383
        %v5385 = vld [vmem:[%s5153 + $0x1c] sm:$0xf]
        %v5386 = vsel %vm5375, %v5361, %v5385
        %5387 = vst [vmem:[%s5153 + $0x1c] sm:$0xf] %v5386
        %v5388 = vld [vmem:[%s5153 + $0x24] sm:$0xf]
        %v5389 = vsel %vm5375, %v5362, %v5388
        %5390 = vst [vmem:[%s5153 + $0x24] sm:$0xf] %v5389
        %v5391 = vld [vmem:[%s5153 + $0x2c] sm:$0xf]
        %v5392 = vsel %vm5375, %v5363, %v5391
        %5393 = vst [vmem:[%s5153 + $0x2c] sm:$0xf] %v5392
        %v5394 = vld [vmem:[%s5153 + $0x34] sm:$0xf]
        %v5395 = vsel %vm5375, %v5364, %v5394
        %5396 = vst [vmem:[%s5153 + $0x34] sm:$0xf] %v5395
        %v5397 = vld [vmem:[%s5153 + $0x3c] sm:$0xf]
        %v5398 = vsel %vm5375, %v5365, %v5397
        %5399 = vst [vmem:[%s5153 + $0x3c] sm:$0xf] %v5398
        %v5400 = vld [vmem:[#allocation3] sm:$0xff]
        %v5401 = vld [vmem:[#allocation3 + $0x8] sm:$0xff]
        %v5402 = vld [vmem:[#allocation3 + $0x10] sm:$0xff]
        %v5403 = vld [vmem:[#allocation3 + $0x18] sm:$0xff]
        %v5404 = vld [vmem:[#allocation3 + $0x20] sm:$0xff]
        %v5405 = vld [vmem:[#allocation3 + $0x28] sm:$0xff]
        %v5406 = vld [vmem:[#allocation3 + $0x30] sm:$0xff]
        %v5407 = vld [vmem:[#allocation3 + $0x38] sm:$0xff]
        %v5408 = vld [vmem:[#allocation15] sm:$0xf]
        %v5409 = vld [vmem:[#allocation15 + $0x4] sm:$0xf]
        %v5410 = vld [vmem:[#allocation15 + $0x8] sm:$0xf]
        %v5411 = vld [vmem:[#allocation15 + $0xc] sm:$0xf]
        %v5412 = vld [vmem:[#allocation15 + $0x10] sm:$0xf]
        %v5413 = vld [vmem:[#allocation15 + $0x14] sm:$0xf]
        %v5414 = vld [vmem:[#allocation15 + $0x18] sm:$0xf]
        %v5415 = vld [vmem:[#allocation15 + $0x1c] sm:$0xf]
        %v5416 = vld [vmem:[#allocation15 + $0x20] sm:$0xf]
        %v5417 = vld [vmem:[#allocation15 + $0x24] sm:$0xf]
        %v5418 = vld [vmem:[#allocation15 + $0x28] sm:$0xf]
        %v5419 = vld [vmem:[#allocation15 + $0x2c] sm:$0xf]
        %v5420 = vld [vmem:[#allocation15 + $0x30] sm:$0xf]
        %v5421 = vld [vmem:[#allocation15 + $0x34] sm:$0xf]
        %v5422 = vld [vmem:[#allocation15 + $0x38] sm:$0xf]
        %v5423 = vld [vmem:[#allocation15 + $0x3c] sm:$0xf]
        %v5424 = vld [vmem:[#allocation15 + $0x40] sm:$0xf]
        %v5425 = vld [vmem:[#allocation15 + $0x44] sm:$0xf]
        %v5426 = vld [vmem:[#allocation15 + $0x48] sm:$0xf]
        %v5427 = vld [vmem:[#allocation15 + $0x4c] sm:$0xf]
        %v5428 = vld [vmem:[#allocation15 + $0x50] sm:$0xf]
        %v5429 = vld [vmem:[#allocation15 + $0x54] sm:$0xf]
        %v5430 = vld [vmem:[#allocation15 + $0x58] sm:$0xf]
        %v5431 = vld [vmem:[#allocation15 + $0x5c] sm:$0xf]
        %v5432 = vld [vmem:[%s5153] sm:$0xff]
        %v5433 = vld [vmem:[%s5153 + $0x8] sm:$0xff]
        %v5434 = vld [vmem:[%s5153 + $0x10] sm:$0xff]
        %v5435 = vld [vmem:[%s5153 + $0x18] sm:$0xff]
        %v5436 = vld [vmem:[%s5153 + $0x20] sm:$0xff]
        %v5437 = vld [vmem:[%s5153 + $0x28] sm:$0xff]
        %v5438 = vld [vmem:[%s5153 + $0x30] sm:$0xff]
        %v5439 = vld [vmem:[%s5153 + $0x38] sm:$0xff]
        %s5440 = scalar_lea.vmem [#allocation15], 96
        %v5441 = vld [vmem:[%s5440] sm:$0xf]
        %v5442 = vld [vmem:[%s5440 + $0x4] sm:$0xf]
        %v5443 = vld [vmem:[%s5440 + $0x8] sm:$0xf]
        %v5444 = vld [vmem:[%s5440 + $0xc] sm:$0xf]
        %v5445 = vld [vmem:[%s5440 + $0x10] sm:$0xf]
        %v5446 = vld [vmem:[%s5440 + $0x14] sm:$0xf]
        %v5447 = vld [vmem:[%s5440 + $0x18] sm:$0xf]
        %v5448 = vld [vmem:[%s5440 + $0x1c] sm:$0xf]
        %v5449 = vld [vmem:[%s5440 + $0x20] sm:$0xf]
        %v5450 = vld [vmem:[%s5440 + $0x24] sm:$0xf]
        %v5451 = vld [vmem:[%s5440 + $0x28] sm:$0xf]
        %v5452 = vld [vmem:[%s5440 + $0x2c] sm:$0xf]
        %v5453 = vld [vmem:[%s5440 + $0x30] sm:$0xf]
        %v5454 = vld [vmem:[%s5440 + $0x34] sm:$0xf]
        %v5455 = vld [vmem:[%s5440 + $0x38] sm:$0xf]
        %v5456 = vld [vmem:[%s5440 + $0x3c] sm:$0xf]
        %v5457 = vld [vmem:[%s5440 + $0x40] sm:$0xf]
        %v5458 = vld [vmem:[%s5440 + $0x44] sm:$0xf]
        %v5459 = vld [vmem:[%s5440 + $0x48] sm:$0xf]
        %v5460 = vld [vmem:[%s5440 + $0x4c] sm:$0xf]
        %v5461 = vld [vmem:[%s5440 + $0x50] sm:$0xf]
        %v5462 = vld [vmem:[%s5440 + $0x54] sm:$0xf]
        %v5463 = vld [vmem:[%s5440 + $0x58] sm:$0xf]
        %v5464 = vld [vmem:[%s5440 + $0x5c] sm:$0xf]
        %v5473 = vunpack.c.l.b16 %v5432
        %v5474 = vunpack.c.h.b16 %v5432
        %v5475 = vunpack.c.l.b16 %v5433
        %v5476 = vunpack.c.h.b16 %v5433
        %v5477 = vunpack.c.l.b16 %v5434
        %v5478 = vunpack.c.h.b16 %v5434
        %v5479 = vunpack.c.l.b16 %v5435
        %v5480 = vunpack.c.h.b16 %v5435
        %v5481 = vunpack.c.l.b16 %v5436
        %v5482 = vunpack.c.h.b16 %v5436
        %v5483 = vunpack.c.l.b16 %v5437
        %v5484 = vunpack.c.h.b16 %v5437
        %v5485 = vunpack.c.l.b16 %v5438
        %v5486 = vunpack.c.h.b16 %v5438
        %v5487 = vunpack.c.l.b16 %v5439
        %v5488 = vunpack.c.h.b16 %v5439
        %v5489 = vpack.c.b16 %v5475, %v5473
        %v5490 = vpack.c.b16 %v5476, %v5474
        %v5491 = vpack.c.b16 %v5479, %v5477
        %v5492 = vpack.c.b16 %v5480, %v5478
        %v5493 = vpack.c.b16 %v5483, %v5481
        %v5494 = vpack.c.b16 %v5484, %v5482
        %v5495 = vpack.c.b16 %v5487, %v5485
        %v5496 = vpack.c.b16 %v5488, %v5486
        %v5525 = vunpack.c.l.b16 %v5441
        %v5526 = vunpack.c.l.b16 %v5442
        %v5527 = vunpack.c.l.b16 %v5443
        %v5528 = vunpack.c.l.b16 %v5444
        %v5529 = vunpack.c.l.b16 %v5445
        %v5530 = vunpack.c.l.b16 %v5446
        %v5531 = vunpack.c.l.b16 %v5447
        %v5532 = vunpack.c.l.b16 %v5448
        %v5533 = vunpack.c.l.b16 %v5449
        %v5534 = vunpack.c.l.b16 %v5450
        %v5535 = vunpack.c.l.b16 %v5451
        %v5536 = vunpack.c.l.b16 %v5452
        %v5537 = vunpack.c.l.b16 %v5453
        %v5538 = vunpack.c.l.b16 %v5454
        %v5539 = vunpack.c.l.b16 %v5455
        %v5540 = vunpack.c.l.b16 %v5456
        %v5541 = vunpack.c.l.b16 %v5457
        %v5542 = vunpack.c.l.b16 %v5458
        %v5543 = vunpack.c.l.b16 %v5459
        %v5544 = vunpack.c.l.b16 %v5460
        %v5545 = vunpack.c.l.b16 %v5461
        %v5546 = vunpack.c.l.b16 %v5462
        %v5547 = vunpack.c.l.b16 %v5463
        %v5548 = vunpack.c.l.b16 %v5464
        %v5549 = vpack.c.b16 %v5526, %v5525
        %v5550 = vpack.c.b16 %v5528, %v5527
        %v5551 = vpack.c.b16 %v5530, %v5529
        %v5552 = vpack.c.b16 %v5532, %v5531
        %v5553 = vpack.c.b16 %v5534, %v5533
        %v5554 = vpack.c.b16 %v5536, %v5535
        %v5555 = vpack.c.b16 %v5538, %v5537
        %v5556 = vpack.c.b16 %v5540, %v5539
        %v5557 = vpack.c.b16 %v5542, %v5541
        %v5558 = vpack.c.b16 %v5544, %v5543
        %v5559 = vpack.c.b16 %v5546, %v5545
        %v5560 = vpack.c.b16 %v5548, %v5547
        %v5574 = vsel %vm1373, %v5490, 0
        %v5577 = vsel %vm1373, %v5492, 0
        %v5580 = vsel %vm1373, %v5494, 0
        %v5583 = vsel %vm1373, %v5496, 0
        %5585 = vmatprep.subr.bf16.mxu0 0
        %5586 = vmatpush1.bf16.msra.mxu0 %v5549
        %5587 = vmatprep.subr.bf16.mxu0 0
        %5588 = vmatpush1.bf16.msra.mxu0 %v5550
        %5589 = vmatprep.subr.bf16.mxu0 0
        %5590 = vmatpush1.bf16.msra.mxu0 %v5551
        %5591 = vmatprep.subr.bf16.mxu0 0
        %5592 = vmatpush1.bf16.msra.mxu0 %v5552
        %5593 = vmatprep.subr.bf16.mxu0 0
        %5594 = vmatpush1.bf16.msra.mxu0 %v5553
        %5595 = vmatprep.subr.bf16.mxu0 0
        %5596 = vmatpush1.bf16.msra.mxu0 %v5554
        %5597 = vmatprep.subr.bf16.mxu0 0
        %5598 = vmatpush1.bf16.msra.mxu0 %v5555
        %5599 = vmatprep.subr.bf16.mxu0 0
        %5600 = vmatpush1.bf16.msra.mxu0 %v5556
        %5601 = vmatprep.subr.bf16.mxu0 0
        %5602 = vmatpush1.bf16.msra.mxu0 %v5557
        %5603 = vmatprep.subr.bf16.mxu0 0
        %5604 = vmatpush1.bf16.msra.mxu0 %v5558
        %5605 = vmatprep.subr.bf16.mxu0 0
        %5606 = vmatpush1.bf16.msra.mxu0 %v5559
        %5607 = vmatprep.subr.bf16.mxu0 0
        %5608 = vmatpush1.bf16.msra.mxu0 %v5560
        %5609 = vmatprep.subr.bf16.mxu0 0
        %5610 = vmatpush1.bf16.msra.mxu0 0
        %5611 = vmatprep.subr.bf16.mxu0 0
        %5612 = vmatpush1.bf16.msra.mxu0 0
        %5613 = vmatprep.subr.bf16.mxu0 0
        %5614 = vmatpush1.bf16.msra.mxu0 0
        %5615 = vmatprep.subr.bf16.mxu0 0
        %5616 = vmatpush1.bf16.msra.mxu0 0
        %5617 = vmatprep.mubr.bf16.mxu0 %v5574
        %5618 = vmatmul.mubr.bf16.gmra.mrb[0].mxu0 %v5489
        %v5619 = vpop.f32.mrb[0].mxu0
        %v5620 = vadd.f32 0.0, %v5619
        %v5621 = vpop.f32.mrb[0].mxu0
        %v5622 = vpop.f32.mrb[0].mxu0
        %v5623 = vadd.f32 0.0, %v5622
        %v5624 = vpop.f32.mrb[0].mxu0
        %5625 = vmatprep.mubr.bf16.mxu0 %v5577
        %5626 = vmatmul.mubr.bf16.gmra.mrb[0].mxu0 %v5491
        %v5627 = vpop.f32.mrb[0].mxu0
        %v5628 = vadd.f32 0.0, %v5627
        %v5629 = vpop.f32.mrb[0].mxu0
        %v5630 = vpop.f32.mrb[0].mxu0
        %v5631 = vadd.f32 0.0, %v5630
        %v5632 = vpop.f32.mrb[0].mxu0
        %5633 = vmatprep.mubr.bf16.mxu0 %v5580
        %5634 = vmatmul.mubr.bf16.gmra.mrb[0].mxu0 %v5493
        %v5635 = vpop.f32.mrb[0].mxu0
        %v5636 = vadd.f32 0.0, %v5635
        %v5637 = vpop.f32.mrb[0].mxu0
        %v5638 = vpop.f32.mrb[0].mxu0
        %v5639 = vadd.f32 0.0, %v5638
        %v5640 = vpop.f32.mrb[0].mxu0
        %5641 = vmatprep.mubr.bf16.mxu0 %v5583
        %5642 = vmatmul.mubr.bf16.gmra.mrb[0].mxu0 %v5495
        %v5643 = vpop.f32.mrb[0].mxu0
        %v5644 = vadd.f32 0.0, %v5643
        %v5645 = vpop.f32.mrb[0].mxu0
        %v5646 = vpop.f32.mrb[0].mxu0
        %v5647 = vadd.f32 0.0, %v5646
        %v5648 = vpop.f32.mrb[0].mxu0
        %5649 = vdwg.mxu0
        %v5658 = vunpack.c.l.b16 %v5400
        %v5659 = vunpack.c.h.b16 %v5400
        %v5660 = vunpack.c.l.b16 %v5401
        %v5661 = vunpack.c.h.b16 %v5401
        %v5662 = vunpack.c.l.b16 %v5402
        %v5663 = vunpack.c.h.b16 %v5402
        %v5664 = vunpack.c.l.b16 %v5403
        %v5665 = vunpack.c.h.b16 %v5403
        %v5666 = vunpack.c.l.b16 %v5404
        %v5667 = vunpack.c.h.b16 %v5404
        %v5668 = vunpack.c.l.b16 %v5405
        %v5669 = vunpack.c.h.b16 %v5405
        %v5670 = vunpack.c.l.b16 %v5406
        %v5671 = vunpack.c.h.b16 %v5406
        %v5672 = vunpack.c.l.b16 %v5407
        %v5673 = vunpack.c.h.b16 %v5407
        %v5674 = vpack.c.b16 %v5660, %v5658
        %v5675 = vpack.c.b16 %v5661, %v5659
        %v5676 = vpack.c.b16 %v5664, %v5662
        %v5677 = vpack.c.b16 %v5665, %v5663
        %v5678 = vpack.c.b16 %v5668, %v5666
        %v5679 = vpack.c.b16 %v5669, %v5667
        %v5680 = vpack.c.b16 %v5672, %v5670
        %v5681 = vpack.c.b16 %v5673, %v5671
        %v5710 = vunpack.c.l.b16 %v5408
        %v5711 = vunpack.c.l.b16 %v5409
        %v5712 = vunpack.c.l.b16 %v5410
        %v5713 = vunpack.c.l.b16 %v5411
        %v5714 = vunpack.c.l.b16 %v5412
        %v5715 = vunpack.c.l.b16 %v5413
        %v5716 = vunpack.c.l.b16 %v5414
        %v5717 = vunpack.c.l.b16 %v5415
        %v5718 = vunpack.c.l.b16 %v5416
        %v5719 = vunpack.c.l.b16 %v5417
        %v5720 = vunpack.c.l.b16 %v5418
        %v5721 = vunpack.c.l.b16 %v5419
        %v5722 = vunpack.c.l.b16 %v5420
        %v5723 = vunpack.c.l.b16 %v5421
        %v5724 = vunpack.c.l.b16 %v5422
        %v5725 = vunpack.c.l.b16 %v5423
        %v5726 = vunpack.c.l.b16 %v5424
        %v5727 = vunpack.c.l.b16 %v5425
        %v5728 = vunpack.c.l.b16 %v5426
        %v5729 = vunpack.c.l.b16 %v5427
        %v5730 = vunpack.c.l.b16 %v5428
        %v5731 = vunpack.c.l.b16 %v5429
        %v5732 = vunpack.c.l.b16 %v5430
        %v5733 = vunpack.c.l.b16 %v5431
        %v5734 = vpack.c.b16 %v5711, %v5710
        %v5735 = vpack.c.b16 %v5713, %v5712
        %v5736 = vpack.c.b16 %v5715, %v5714
        %v5737 = vpack.c.b16 %v5717, %v5716
        %v5738 = vpack.c.b16 %v5719, %v5718
        %v5739 = vpack.c.b16 %v5721, %v5720
        %v5740 = vpack.c.b16 %v5723, %v5722
        %v5741 = vpack.c.b16 %v5725, %v5724
        %v5742 = vpack.c.b16 %v5727, %v5726
        %v5743 = vpack.c.b16 %v5729, %v5728
        %v5744 = vpack.c.b16 %v5731, %v5730
        %v5745 = vpack.c.b16 %v5733, %v5732
        %v5759 = vsel %vm1373, %v5675, 0
        %v5762 = vsel %vm1373, %v5677, 0
        %v5765 = vsel %vm1373, %v5679, 0
        %v5768 = vsel %vm1373, %v5681, 0
        %5770 = vmatprep.subr.bf16.mxu0 0
        %5771 = vmatpush1.bf16.msra.mxu0 %v5734
        %5772 = vmatprep.subr.bf16.mxu0 0
        %5773 = vmatpush1.bf16.msra.mxu0 %v5735
        %5774 = vmatprep.subr.bf16.mxu0 0
        %5775 = vmatpush1.bf16.msra.mxu0 %v5736
        %5776 = vmatprep.subr.bf16.mxu0 0
        %5777 = vmatpush1.bf16.msra.mxu0 %v5737
        %5778 = vmatprep.subr.bf16.mxu0 0
        %5779 = vmatpush1.bf16.msra.mxu0 %v5738
        %5780 = vmatprep.subr.bf16.mxu0 0
        %5781 = vmatpush1.bf16.msra.mxu0 %v5739
        %5782 = vmatprep.subr.bf16.mxu0 0
        %5783 = vmatpush1.bf16.msra.mxu0 %v5740
        %5784 = vmatprep.subr.bf16.mxu0 0
        %5785 = vmatpush1.bf16.msra.mxu0 %v5741
        %5786 = vmatprep.subr.bf16.mxu0 0
        %5787 = vmatpush1.bf16.msra.mxu0 %v5742
        %5788 = vmatprep.subr.bf16.mxu0 0
        %5789 = vmatpush1.bf16.msra.mxu0 %v5743
        %5790 = vmatprep.subr.bf16.mxu0 0
        %5791 = vmatpush1.bf16.msra.mxu0 %v5744
        %5792 = vmatprep.subr.bf16.mxu0 0
        %5793 = vmatpush1.bf16.msra.mxu0 %v5745
        %5794 = vmatprep.subr.bf16.mxu0 0
        %5795 = vmatpush1.bf16.msra.mxu0 0
        %5796 = vmatprep.subr.bf16.mxu0 0
        %5797 = vmatpush1.bf16.msra.mxu0 0
        %5798 = vmatprep.subr.bf16.mxu0 0
        %5799 = vmatpush1.bf16.msra.mxu0 0
        %5800 = vmatprep.subr.bf16.mxu0 0
        %5801 = vmatpush1.bf16.msra.mxu0 0
        %5802 = vmatprep.mubr.bf16.mxu0 %v5759
        %5803 = vmatmul.mubr.bf16.gmra.mrb[0].mxu0 %v5674
        %v5804 = vpop.f32.mrb[0].mxu0
        %v5805 = vadd.f32 %v5620, %v5804
        %v5806 = vpop.f32.mrb[0].mxu0
        %v5807 = vpop.f32.mrb[0].mxu0
        %v5808 = vadd.f32 %v5623, %v5807
        %v5809 = vpop.f32.mrb[0].mxu0
        %5810 = vmatprep.mubr.bf16.mxu0 %v5762
        %5811 = vmatmul.mubr.bf16.gmra.mrb[0].mxu0 %v5676
        %v5812 = vpop.f32.mrb[0].mxu0
        %v5813 = vadd.f32 %v5628, %v5812
        %v5814 = vpop.f32.mrb[0].mxu0
        %v5815 = vpop.f32.mrb[0].mxu0
        %v5816 = vadd.f32 %v5631, %v5815
        %v5817 = vpop.f32.mrb[0].mxu0
        %5818 = vmatprep.mubr.bf16.mxu0 %v5765
        %5819 = vmatmul.mubr.bf16.gmra.mrb[0].mxu0 %v5678
        %v5820 = vpop.f32.mrb[0].mxu0
        %v5821 = vadd.f32 %v5636, %v5820
        %v5822 = vpop.f32.mrb[0].mxu0
        %v5823 = vpop.f32.mrb[0].mxu0
        %v5824 = vadd.f32 %v5639, %v5823
        %v5825 = vpop.f32.mrb[0].mxu0
        %5826 = vmatprep.mubr.bf16.mxu0 %v5768
        %5827 = vmatmul.mubr.bf16.gmra.mrb[0].mxu0 %v5680
        %v5828 = vpop.f32.mrb[0].mxu0
        %v5829 = vadd.f32 %v5644, %v5828
        %v5830 = vpop.f32.mrb[0].mxu0
        %v5831 = vpop.f32.mrb[0].mxu0
        %v5832 = vadd.f32 %v5647, %v5831
        %v5833 = vpop.f32.mrb[0].mxu0
        %5834 = vdwg.mxu0
        %s5835 = scalar_lea.vmem [#allocation3], 16
        %v5836 = vld [vmem:[%s5835] sm:$0xff]
        %v5837 = vld [vmem:[%s5835 + $0x8] sm:$0xff]
        %v5838 = vld [vmem:[%s5835 + $0x10] sm:$0xff]
        %v5839 = vld [vmem:[%s5835 + $0x18] sm:$0xff]
        %v5840 = vld [vmem:[%s5835 + $0x20] sm:$0xff]
        %v5841 = vld [vmem:[%s5835 + $0x28] sm:$0xff]
        %v5842 = vld [vmem:[%s5835 + $0x30] sm:$0xff]
        %v5843 = vld [vmem:[%s5835 + $0x38] sm:$0xff]
        %s5844 = scalar_lea.vmem [#allocation15], 192
        %v5845 = vld [vmem:[%s5844] sm:$0xf]
        %v5846 = vld [vmem:[%s5844 + $0x4] sm:$0xf]
        %v5847 = vld [vmem:[%s5844 + $0x8] sm:$0xf]
        %v5848 = vld [vmem:[%s5844 + $0xc] sm:$0xf]
        %v5849 = vld [vmem:[%s5844 + $0x10] sm:$0xf]
        %v5850 = vld [vmem:[%s5844 + $0x14] sm:$0xf]
        %v5851 = vld [vmem:[%s5844 + $0x18] sm:$0xf]
        %v5852 = vld [vmem:[%s5844 + $0x1c] sm:$0xf]
        %v5853 = vld [vmem:[%s5844 + $0x20] sm:$0xf]
        %v5854 = vld [vmem:[%s5844 + $0x24] sm:$0xf]
        %v5855 = vld [vmem:[%s5844 + $0x28] sm:$0xf]
        %v5856 = vld [vmem:[%s5844 + $0x2c] sm:$0xf]
        %v5857 = vld [vmem:[%s5844 + $0x30] sm:$0xf]
        %v5858 = vld [vmem:[%s5844 + $0x34] sm:$0xf]
        %v5859 = vld [vmem:[%s5844 + $0x38] sm:$0xf]
        %v5860 = vld [vmem:[%s5844 + $0x3c] sm:$0xf]
        %v5861 = vld [vmem:[%s5844 + $0x40] sm:$0xf]
        %v5862 = vld [vmem:[%s5844 + $0x44] sm:$0xf]
        %v5863 = vld [vmem:[%s5844 + $0x48] sm:$0xf]
        %v5864 = vld [vmem:[%s5844 + $0x4c] sm:$0xf]
        %v5865 = vld [vmem:[%s5844 + $0x50] sm:$0xf]
        %v5866 = vld [vmem:[%s5844 + $0x54] sm:$0xf]
        %v5867 = vld [vmem:[%s5844 + $0x58] sm:$0xf]
        %v5868 = vld [vmem:[%s5844 + $0x5c] sm:$0xf]
        %v5877 = vunpack.c.l.b16 %v5836
        %v5878 = vunpack.c.h.b16 %v5836
        %v5879 = vunpack.c.l.b16 %v5837
        %v5880 = vunpack.c.h.b16 %v5837
        %v5881 = vunpack.c.l.b16 %v5838
        %v5882 = vunpack.c.h.b16 %v5838
        %v5883 = vunpack.c.l.b16 %v5839
        %v5884 = vunpack.c.h.b16 %v5839
        %v5885 = vunpack.c.l.b16 %v5840
        %v5886 = vunpack.c.h.b16 %v5840
        %v5887 = vunpack.c.l.b16 %v5841
        %v5888 = vunpack.c.h.b16 %v5841
        %v5889 = vunpack.c.l.b16 %v5842
        %v5890 = vunpack.c.h.b16 %v5842
        %v5891 = vunpack.c.l.b16 %v5843
        %v5892 = vunpack.c.h.b16 %v5843
        %v5893 = vpack.c.b16 %v5879, %v5877
        %v5894 = vpack.c.b16 %v5880, %v5878
        %v5895 = vpack.c.b16 %v5883, %v5881
        %v5896 = vpack.c.b16 %v5884, %v5882
        %v5897 = vpack.c.b16 %v5887, %v5885
        %v5898 = vpack.c.b16 %v5888, %v5886
        %v5899 = vpack.c.b16 %v5891, %v5889
        %v5900 = vpack.c.b16 %v5892, %v5890
        %v5929 = vunpack.c.l.b16 %v5845
        %v5930 = vunpack.c.l.b16 %v5846
        %v5931 = vunpack.c.l.b16 %v5847
        %v5932 = vunpack.c.l.b16 %v5848
        %v5933 = vunpack.c.l.b16 %v5849
        %v5934 = vunpack.c.l.b16 %v5850
        %v5935 = vunpack.c.l.b16 %v5851
        %v5936 = vunpack.c.l.b16 %v5852
        %v5937 = vunpack.c.l.b16 %v5853
        %v5938 = vunpack.c.l.b16 %v5854
        %v5939 = vunpack.c.l.b16 %v5855
        %v5940 = vunpack.c.l.b16 %v5856
        %v5941 = vunpack.c.l.b16 %v5857
        %v5942 = vunpack.c.l.b16 %v5858
        %v5943 = vunpack.c.l.b16 %v5859
        %v5944 = vunpack.c.l.b16 %v5860
        %v5945 = vunpack.c.l.b16 %v5861
        %v5946 = vunpack.c.l.b16 %v5862
        %v5947 = vunpack.c.l.b16 %v5863
        %v5948 = vunpack.c.l.b16 %v5864
        %v5949 = vunpack.c.l.b16 %v5865
        %v5950 = vunpack.c.l.b16 %v5866
        %v5951 = vunpack.c.l.b16 %v5867
        %v5952 = vunpack.c.l.b16 %v5868
        %v5953 = vpack.c.b16 %v5930, %v5929
        %v5954 = vpack.c.b16 %v5932, %v5931
        %v5955 = vpack.c.b16 %v5934, %v5933
        %v5956 = vpack.c.b16 %v5936, %v5935
        %v5957 = vpack.c.b16 %v5938, %v5937
        %v5958 = vpack.c.b16 %v5940, %v5939
        %v5959 = vpack.c.b16 %v5942, %v5941
        %v5960 = vpack.c.b16 %v5944, %v5943
        %v5961 = vpack.c.b16 %v5946, %v5945
        %v5962 = vpack.c.b16 %v5948, %v5947
        %v5963 = vpack.c.b16 %v5950, %v5949
        %v5964 = vpack.c.b16 %v5952, %v5951
        %v5978 = vsel %vm1373, %v5894, 0
        %v5981 = vsel %vm1373, %v5896, 0
        %v5984 = vsel %vm1373, %v5898, 0
        %v5987 = vsel %vm1373, %v5900, 0
        %5989 = vmatprep.subr.bf16.mxu0 0
        %5990 = vmatpush1.bf16.msra.mxu0 %v5953
        %5991 = vmatprep.subr.bf16.mxu0 0
        %5992 = vmatpush1.bf16.msra.mxu0 %v5954
        %5993 = vmatprep.subr.bf16.mxu0 0
        %5994 = vmatpush1.bf16.msra.mxu0 %v5955
        %5995 = vmatprep.subr.bf16.mxu0 0
        %5996 = vmatpush1.bf16.msra.mxu0 %v5956
        %5997 = vmatprep.subr.bf16.mxu0 0
        %5998 = vmatpush1.bf16.msra.mxu0 %v5957
        %5999 = vmatprep.subr.bf16.mxu0 0
        %6000 = vmatpush1.bf16.msra.mxu0 %v5958
        %6001 = vmatprep.subr.bf16.mxu0 0
        %6002 = vmatpush1.bf16.msra.mxu0 %v5959
        %6003 = vmatprep.subr.bf16.mxu0 0
        %6004 = vmatpush1.bf16.msra.mxu0 %v5960
        %6005 = vmatprep.subr.bf16.mxu0 0
        %6006 = vmatpush1.bf16.msra.mxu0 %v5961
        %6007 = vmatprep.subr.bf16.mxu0 0
        %6008 = vmatpush1.bf16.msra.mxu0 %v5962
        %6009 = vmatprep.subr.bf16.mxu0 0
        %6010 = vmatpush1.bf16.msra.mxu0 %v5963
        %6011 = vmatprep.subr.bf16.mxu0 0
        %6012 = vmatpush1.bf16.msra.mxu0 %v5964
        %6013 = vmatprep.subr.bf16.mxu0 0
        %6014 = vmatpush1.bf16.msra.mxu0 0
        %6015 = vmatprep.subr.bf16.mxu0 0
        %6016 = vmatpush1.bf16.msra.mxu0 0
        %6017 = vmatprep.subr.bf16.mxu0 0
        %6018 = vmatpush1.bf16.msra.mxu0 0
        %6019 = vmatprep.subr.bf16.mxu0 0
        %6020 = vmatpush1.bf16.msra.mxu0 0
        %6021 = vmatprep.mubr.bf16.mxu0 %v5978
        %6022 = vmatmul.mubr.bf16.gmra.mrb[0].mxu0 %v5893
        %v6023 = vpop.f32.mrb[0].mxu0
        %v6024 = vadd.f32 0.0, %v6023
        %v6025 = vpop.f32.mrb[0].mxu0
        %v6026 = vpop.f32.mrb[0].mxu0
        %v6027 = vadd.f32 0.0, %v6026
        %v6028 = vpop.f32.mrb[0].mxu0
        %6029 = vmatprep.mubr.bf16.mxu0 %v5981
        %6030 = vmatmul.mubr.bf16.gmra.mrb[0].mxu0 %v5895
        %v6031 = vpop.f32.mrb[0].mxu0
        %v6032 = vadd.f32 0.0, %v6031
        %v6033 = vpop.f32.mrb[0].mxu0
        %v6034 = vpop.f32.mrb[0].mxu0
        %v6035 = vadd.f32 0.0, %v6034
        %v6036 = vpop.f32.mrb[0].mxu0
        %6037 = vmatprep.mubr.bf16.mxu0 %v5984
        %6038 = vmatmul.mubr.bf16.gmra.mrb[0].mxu0 %v5897
        %v6039 = vpop.f32.mrb[0].mxu0
        %v6040 = vadd.f32 0.0, %v6039
        %v6041 = vpop.f32.mrb[0].mxu0
        %v6042 = vpop.f32.mrb[0].mxu0
        %v6043 = vadd.f32 0.0, %v6042
        %v6044 = vpop.f32.mrb[0].mxu0
        %6045 = vmatprep.mubr.bf16.mxu0 %v5987
        %6046 = vmatmul.mubr.bf16.gmra.mrb[0].mxu0 %v5899
        %v6047 = vpop.f32.mrb[0].mxu0
        %v6048 = vadd.f32 0.0, %v6047
        %v6049 = vpop.f32.mrb[0].mxu0
        %v6050 = vpop.f32.mrb[0].mxu0
        %v6051 = vadd.f32 0.0, %v6050
        %v6052 = vpop.f32.mrb[0].mxu0
        %6053 = vdwg.mxu0
        %v6054 = vadd.f32 %v5805, %v6024
        %v6055 = vadd.f32 %v5808, %v6027
        %v6056 = vadd.f32 %v5813, %v6032
        %v6057 = vadd.f32 %v5816, %v6035
        %v6058 = vadd.f32 %v5821, %v6040
        %v6059 = vadd.f32 %v5824, %v6043
        %v6060 = vadd.f32 %v5829, %v6048
        %v6061 = vadd.f32 %v5832, %v6051
        %v6062 = vld [vmem:[#allocation17] sm:$0x1]
        %v6064 = vlaneseq
        %v6065 = vshrl.u32 %v6064, 7
        %v6066 = vsub.s32 0, %v6065
        %v6067 = vrot.slane %v6062, %v6066
        %v6069 = vadd.f32 %v6054, %v6067
        %v6070 = vadd.f32 %v6055, %v6067
        %v6071 = vadd.f32 %v6056, %v6067
        %v6072 = vadd.f32 %v6057, %v6067
        %v6073 = vadd.f32 %v6058, %v6067
        %v6074 = vadd.f32 %v6059, %v6067
        %v6075 = vadd.f32 %v6060, %v6067
        %v6076 = vadd.f32 %v6061, %v6067
        %v6077 = vmax.f32 %v6069, 0.0
        %v6078 = vmax.f32 %v6070, 0.0
        %v6079 = vmax.f32 %v6071, 0.0
        %v6080 = vmax.f32 %v6072, 0.0
        %v6081 = vmax.f32 %v6073, 0.0
        %v6082 = vmax.f32 %v6074, 0.0
        %v6083 = vmax.f32 %v6075, 0.0
        %v6084 = vmax.f32 %v6076, 0.0
        %v6085 = vsel %vm4655, %v6077, 0.0
        %v6086 = vsel %vm4656, %v6078, 0.0
        %v6087 = vsel %vm4657, %v6079, 0.0
        %v6088 = vsel %vm4658, %v6080, 0.0
        %v6089 = vsel %vm4659, %v6081, 0.0
        %v6090 = vsel %vm4660, %v6082, 0.0
        %v6091 = vsel %vm4661, %v6083, 0.0
        %v6092 = vsel %vm4662, %v6084, 0.0
        %v6093 = vpack.c.bf16 %v6085, %v6085
        %v6094 = vpack.c.bf16 %v6086, %v6086
        %v6095 = vpack.c.bf16 %v6087, %v6087
        %v6096 = vpack.c.bf16 %v6088, %v6088
        %v6097 = vpack.c.bf16 %v6089, %v6089
        %v6098 = vpack.c.bf16 %v6090, %v6090
        %v6099 = vpack.c.bf16 %v6091, %v6091
        %v6100 = vpack.c.bf16 %v6092, %v6092
        %6101 = vst [vmem:[#allocation4] sm:$0xff] 0
        %6102 = vst [vmem:[#allocation4 + $0x8] sm:$0xf] 0
        %s6103 = scalar_lea.vmem [#allocation4], 108
        %6104 = vst [vmem:[%s6103] sm:$0xff] 0
        %6105 = vst [vmem:[%s6103 + $0x8] sm:$0xf] 0
        %vm6106 = vcmask 1040384
        %vm6107 = vmand %vm6106, %vm1379
        %v6108 = vld [vmem:[#allocation4] sm:$0x1]
        %v6109 = vsel %vm6107, 0, %v6108
        %6110 = vst [vmem:[#allocation4] sm:$0x1] %v6109
        %v6111 = vld [vmem:[#allocation4 + $0xc] sm:$0x1]
        %v6112 = vsel %vm6107, 0, %v6111
        %6113 = vst [vmem:[#allocation4 + $0xc] sm:$0x1] %v6112
        %v6114 = vld [vmem:[#allocation4 + $0x18] sm:$0x1]
        %v6115 = vsel %vm6107, 0, %v6114
        %6116 = vst [vmem:[#allocation4 + $0x18] sm:$0x1] %v6115
        %v6117 = vld [vmem:[#allocation4 + $0x24] sm:$0x1]
        %v6118 = vsel %vm6107, 0, %v6117
        %6119 = vst [vmem:[#allocation4 + $0x24] sm:$0x1] %v6118
        %v6120 = vld [vmem:[#allocation4 + $0x30] sm:$0x1]
        %v6121 = vsel %vm6107, 0, %v6120
        %6122 = vst [vmem:[#allocation4 + $0x30] sm:$0x1] %v6121
        %v6123 = vld [vmem:[#allocation4 + $0x3c] sm:$0x1]
        %v6124 = vsel %vm6107, 0, %v6123
        %6125 = vst [vmem:[#allocation4 + $0x3c] sm:$0x1] %v6124
        %v6126 = vld [vmem:[#allocation4 + $0x48] sm:$0x1]
        %v6127 = vsel %vm6107, 0, %v6126
        %6128 = vst [vmem:[#allocation4 + $0x48] sm:$0x1] %v6127
        %v6129 = vld [vmem:[#allocation4 + $0x54] sm:$0x1]
        %v6130 = vsel %vm6107, 0, %v6129
        %6131 = vst [vmem:[#allocation4 + $0x54] sm:$0x1] %v6130
        %v6132 = vld [vmem:[#allocation4 + $0x60] sm:$0x1]
        %v6133 = vsel %vm6107, 0, %v6132
        %6134 = vst [vmem:[#allocation4 + $0x60] sm:$0x1] %v6133
        %v6135 = vld [vmem:[#allocation4 + $0x6c] sm:$0x1]
        %v6136 = vsel %vm6107, 0, %v6135
        %6137 = vst [vmem:[#allocation4 + $0x6c] sm:$0x1] %v6136
        %vm6138 = vcmask 1043459
        %vm6139 = vmand %vm6138, %vm4827
        %v6140 = vld [vmem:[#allocation4 + $0x8] sm:$0x8]
        %v6141 = vsel %vm6139, 0, %v6140
        %6142 = vst [vmem:[#allocation4 + $0x8] sm:$0x8] %v6141
        %v6143 = vld [vmem:[#allocation4 + $0x14] sm:$0x8]
        %v6144 = vsel %vm6139, 0, %v6143
        %6145 = vst [vmem:[#allocation4 + $0x14] sm:$0x8] %v6144
        %v6146 = vld [vmem:[#allocation4 + $0x20] sm:$0x8]
        %v6147 = vsel %vm6139, 0, %v6146
        %6148 = vst [vmem:[#allocation4 + $0x20] sm:$0x8] %v6147
        %v6149 = vld [vmem:[#allocation4 + $0x2c] sm:$0x8]
        %v6150 = vsel %vm6139, 0, %v6149
        %6151 = vst [vmem:[#allocation4 + $0x2c] sm:$0x8] %v6150
        %v6152 = vld [vmem:[#allocation4 + $0x38] sm:$0x8]
        %v6153 = vsel %vm6139, 0, %v6152
        %6154 = vst [vmem:[#allocation4 + $0x38] sm:$0x8] %v6153
        %v6155 = vld [vmem:[#allocation4 + $0x44] sm:$0x8]
        %v6156 = vsel %vm6139, 0, %v6155
        %6157 = vst [vmem:[#allocation4 + $0x44] sm:$0x8] %v6156
        %v6158 = vld [vmem:[#allocation4 + $0x50] sm:$0x8]
        %v6159 = vsel %vm6139, 0, %v6158
        %6160 = vst [vmem:[#allocation4 + $0x50] sm:$0x8] %v6159
        %v6161 = vld [vmem:[#allocation4 + $0x5c] sm:$0x8]
        %v6162 = vsel %vm6139, 0, %v6161
        %6163 = vst [vmem:[#allocation4 + $0x5c] sm:$0x8] %v6162
        %v6164 = vld [vmem:[#allocation4 + $0x68] sm:$0x8]
        %v6165 = vsel %vm6139, 0, %v6164
        %6166 = vst [vmem:[#allocation4 + $0x68] sm:$0x8] %v6165
        %v6167 = vld [vmem:[#allocation4 + $0x74] sm:$0x8]
        %v6168 = vsel %vm6139, 0, %v6167
        %6169 = vst [vmem:[#allocation4 + $0x74] sm:$0x8] %v6168
        %v6178 = vunpack.c.l.b16 %v6093
        %v6179 = vunpack.c.l.b16 %v6094
        %v6180 = vunpack.c.l.b16 %v6095
        %v6181 = vunpack.c.l.b16 %v6096
        %v6182 = vunpack.c.l.b16 %v6097
        %v6183 = vunpack.c.l.b16 %v6098
        %v6184 = vunpack.c.l.b16 %v6099
        %v6185 = vunpack.c.l.b16 %v6100
        %v6186 = vpack.c.b16 %v6178, %v6178
        %v6187 = vpack.c.b16 %v6179, %v6179
        %v6188 = vpack.c.b16 %v6180, %v6180
        %v6189 = vpack.c.b16 %v6181, %v6181
        %v6190 = vpack.c.b16 %v6182, %v6182
        %v6191 = vpack.c.b16 %v6183, %v6183
        %v6192 = vpack.c.b16 %v6184, %v6184
        %v6193 = vpack.c.b16 %v6185, %v6185
        %v6195 = vshrl.u32 %v6186, 16
        %v6197 = vrot.slane %v6195, 7
        %v6198 = vshll.u32 %v6186, 16
        %v6200 = vor.u32 %v6197, %v6198
        %v6202 = vshrl.u32 %v6187, 16
        %v6204 = vrot.slane %v6202, 7
        %v6205 = vshll.u32 %v6187, 16
        %v6207 = vor.u32 %v6204, %v6205
        %v6209 = vshrl.u32 %v6188, 16
        %v6211 = vrot.slane %v6209, 7
        %v6212 = vshll.u32 %v6188, 16
        %v6214 = vor.u32 %v6211, %v6212
        %v6216 = vshrl.u32 %v6189, 16
        %v6218 = vrot.slane %v6216, 7
        %v6219 = vshll.u32 %v6189, 16
        %v6221 = vor.u32 %v6218, %v6219
        %v6223 = vshrl.u32 %v6190, 16
        %v6225 = vrot.slane %v6223, 7
        %v6226 = vshll.u32 %v6190, 16
        %v6228 = vor.u32 %v6225, %v6226
        %v6230 = vshrl.u32 %v6191, 16
        %v6232 = vrot.slane %v6230, 7
        %v6233 = vshll.u32 %v6191, 16
        %v6235 = vor.u32 %v6232, %v6233
        %v6237 = vshrl.u32 %v6192, 16
        %v6239 = vrot.slane %v6237, 7
        %v6240 = vshll.u32 %v6192, 16
        %v6242 = vor.u32 %v6239, %v6240
        %v6244 = vshrl.u32 %v6193, 16
        %v6246 = vrot.slane %v6244, 7
        %v6247 = vshll.u32 %v6193, 16
        %v6249 = vor.u32 %v6246, %v6247
        %s6258 = scalar_lea.vmem [#allocation4], 12
        %vm6259 = vcmask 1043456
        %vm6260 = vmand %vm6259, %vm1790
        %v6261 = vld [vmem:[%s6258] sm:$0xf]
        %v6262 = vsel %vm6260, %v6200, %v6261
        %6263 = vst [vmem:[%s6258] sm:$0xf] %v6262
        %v6264 = vld [vmem:[%s6258 + $0xc] sm:$0xf]
        %v6265 = vsel %vm6260, %v6207, %v6264
        %6266 = vst [vmem:[%s6258 + $0xc] sm:$0xf] %v6265
        %v6267 = vld [vmem:[%s6258 + $0x18] sm:$0xf]
        %v6268 = vsel %vm6260, %v6214, %v6267
        %6269 = vst [vmem:[%s6258 + $0x18] sm:$0xf] %v6268
        %v6270 = vld [vmem:[%s6258 + $0x24] sm:$0xf]
        %v6271 = vsel %vm6260, %v6221, %v6270
        %6272 = vst [vmem:[%s6258 + $0x24] sm:$0xf] %v6271
        %v6273 = vld [vmem:[%s6258 + $0x30] sm:$0xf]
        %v6274 = vsel %vm6260, %v6228, %v6273
        %6275 = vst [vmem:[%s6258 + $0x30] sm:$0xf] %v6274
        %v6276 = vld [vmem:[%s6258 + $0x3c] sm:$0xf]
        %v6277 = vsel %vm6260, %v6235, %v6276
        %6278 = vst [vmem:[%s6258 + $0x3c] sm:$0xf] %v6277
        %v6279 = vld [vmem:[%s6258 + $0x48] sm:$0xf]
        %v6280 = vsel %vm6260, %v6242, %v6279
        %6281 = vst [vmem:[%s6258 + $0x48] sm:$0xf] %v6280
        %v6282 = vld [vmem:[%s6258 + $0x54] sm:$0xf]
        %v6283 = vsel %vm6260, %v6249, %v6282
        %6284 = vst [vmem:[%s6258 + $0x54] sm:$0xf] %v6283
        %6285 = vst [vmem:[%s6258 + $0x4] sm:$0xf] %v6093
        %6286 = vst [vmem:[%s6258 + $0x10] sm:$0xf] %v6094
        %6287 = vst [vmem:[%s6258 + $0x1c] sm:$0xf] %v6095
        %6288 = vst [vmem:[%s6258 + $0x28] sm:$0xf] %v6096
        %6289 = vst [vmem:[%s6258 + $0x34] sm:$0xf] %v6097
        %6290 = vst [vmem:[%s6258 + $0x40] sm:$0xf] %v6098
        %6291 = vst [vmem:[%s6258 + $0x4c] sm:$0xf] %v6099
        %6292 = vst [vmem:[%s6258 + $0x58] sm:$0xf] %v6100
        %v6293 = vrot.slane %v6195, 4
        %v6294 = vrot.slane %v6198, 5
        %v6295 = vor.u32 %v6293, %v6294
        %v6296 = vrot.slane %v6295, 4
        %v6297 = vrot.slane %v6202, 4
        %v6298 = vrot.slane %v6205, 5
        %v6299 = vor.u32 %v6297, %v6298
        %v6300 = vrot.slane %v6299, 4
        %v6301 = vrot.slane %v6209, 4
        %v6302 = vrot.slane %v6212, 5
        %v6303 = vor.u32 %v6301, %v6302
        %v6304 = vrot.slane %v6303, 4
        %v6305 = vrot.slane %v6216, 4
        %v6306 = vrot.slane %v6219, 5
        %v6307 = vor.u32 %v6305, %v6306
        %v6308 = vrot.slane %v6307, 4
        %v6309 = vrot.slane %v6223, 4
        %v6310 = vrot.slane %v6226, 5
        %v6311 = vor.u32 %v6309, %v6310
        %v6312 = vrot.slane %v6311, 4
        %v6313 = vrot.slane %v6230, 4
        %v6314 = vrot.slane %v6233, 5
        %v6315 = vor.u32 %v6313, %v6314
        %v6316 = vrot.slane %v6315, 4
        %v6317 = vrot.slane %v6237, 4
        %v6318 = vrot.slane %v6240, 5
        %v6319 = vor.u32 %v6317, %v6318
        %v6320 = vrot.slane %v6319, 4
        %v6321 = vrot.slane %v6244, 4
        %v6322 = vrot.slane %v6247, 5
        %v6323 = vor.u32 %v6321, %v6322
        %v6324 = vrot.slane %v6323, 4
        %vm6333 = vmand %vm6259, %vm5374
        %v6334 = vld [vmem:[%s6258 + $0x8] sm:$0xf]
        %v6335 = vsel %vm6333, %v6296, %v6334
        %6336 = vst [vmem:[%s6258 + $0x8] sm:$0xf] %v6335
        %v6337 = vld [vmem:[%s6258 + $0x14] sm:$0xf]
        %v6338 = vsel %vm6333, %v6300, %v6337
        %6339 = vst [vmem:[%s6258 + $0x14] sm:$0xf] %v6338
        %v6340 = vld [vmem:[%s6258 + $0x20] sm:$0xf]
        %v6341 = vsel %vm6333, %v6304, %v6340
        %6342 = vst [vmem:[%s6258 + $0x20] sm:$0xf] %v6341
        %v6343 = vld [vmem:[%s6258 + $0x2c] sm:$0xf]
        %v6344 = vsel %vm6333, %v6308, %v6343
        %6345 = vst [vmem:[%s6258 + $0x2c] sm:$0xf] %v6344
        %v6346 = vld [vmem:[%s6258 + $0x38] sm:$0xf]
        %v6347 = vsel %vm6333, %v6312, %v6346
        %6348 = vst [vmem:[%s6258 + $0x38] sm:$0xf] %v6347
        %v6349 = vld [vmem:[%s6258 + $0x44] sm:$0xf]
        %v6350 = vsel %vm6333, %v6316, %v6349
        %6351 = vst [vmem:[%s6258 + $0x44] sm:$0xf] %v6350
        %v6352 = vld [vmem:[%s6258 + $0x50] sm:$0xf]
        %v6353 = vsel %vm6333, %v6320, %v6352
        %6354 = vst [vmem:[%s6258 + $0x50] sm:$0xf] %v6353
        %v6355 = vld [vmem:[%s6258 + $0x5c] sm:$0xf]
        %v6356 = vsel %vm6333, %v6324, %v6355
        %6357 = vst [vmem:[%s6258 + $0x5c] sm:$0xf] %v6356
        %v6358 = vld [vmem:[#allocation4] sm:$0xff]
        %v6359 = vld [vmem:[#allocation4 + $0x8] sm:$0xf]
        %v6360 = vld [vmem:[#allocation4 + $0xc] sm:$0xff]
        %v6361 = vld [vmem:[#allocation4 + $0x14] sm:$0xf]
        %v6362 = vld [vmem:[#allocation4 + $0x18] sm:$0xff]
        %v6363 = vld [vmem:[#allocation4 + $0x20] sm:$0xf]
        %v6364 = vld [vmem:[#allocation4 + $0x24] sm:$0xff]
        %v6365 = vld [vmem:[#allocation4 + $0x2c] sm:$0xf]
        %v6366 = vld [vmem:[#allocation4 + $0x30] sm:$0xff]
        %v6367 = vld [vmem:[#allocation4 + $0x38] sm:$0xf]
        %v6368 = vld [vmem:[#allocation4 + $0x3c] sm:$0xff]
        %v6369 = vld [vmem:[#allocation4 + $0x44] sm:$0xf]
        %v6370 = vld [vmem:[#allocation4 + $0x48] sm:$0xff]
        %v6371 = vld [vmem:[#allocation4 + $0x50] sm:$0xf]
        %v6372 = vld [vmem:[#allocation4 + $0x54] sm:$0xff]
        %v6373 = vld [vmem:[#allocation4 + $0x5c] sm:$0xf]
        %v6374 = vld [vmem:[#allocation18] sm:$0xf]
        %v6375 = vld [vmem:[#allocation18 + $0x4] sm:$0xf]
        %v6376 = vld [vmem:[#allocation18 + $0x8] sm:$0xf]
        %v6377 = vld [vmem:[#allocation18 + $0xc] sm:$0xf]
        %v6378 = vld [vmem:[#allocation18 + $0x10] sm:$0xf]
        %v6379 = vld [vmem:[#allocation18 + $0x14] sm:$0xf]
        %v6380 = vld [vmem:[#allocation18 + $0x18] sm:$0xf]
        %v6381 = vld [vmem:[#allocation18 + $0x1c] sm:$0xf]
        %v6382 = vld [vmem:[#allocation18 + $0x20] sm:$0xf]
        %v6383 = vld [vmem:[#allocation18 + $0x24] sm:$0xf]
        %v6384 = vld [vmem:[#allocation18 + $0x28] sm:$0xf]
        %v6385 = vld [vmem:[#allocation18 + $0x2c] sm:$0xf]
        %v6386 = vld [vmem:[#allocation18 + $0x30] sm:$0xf]
        %v6387 = vld [vmem:[#allocation18 + $0x34] sm:$0xf]
        %v6388 = vld [vmem:[#allocation18 + $0x38] sm:$0xf]
        %v6389 = vld [vmem:[#allocation18 + $0x3c] sm:$0xf]
        %v6390 = vld [vmem:[#allocation18 + $0x40] sm:$0xf]
        %v6391 = vld [vmem:[#allocation18 + $0x44] sm:$0xf]
        %v6392 = vld [vmem:[#allocation18 + $0x48] sm:$0xf]
        %v6393 = vld [vmem:[#allocation18 + $0x4c] sm:$0xf]
        %v6394 = vld [vmem:[#allocation18 + $0x50] sm:$0xf]
        %v6395 = vld [vmem:[#allocation18 + $0x54] sm:$0xf]
        %v6396 = vld [vmem:[#allocation18 + $0x58] sm:$0xf]
        %v6397 = vld [vmem:[#allocation18 + $0x5c] sm:$0xf]
        %v6398 = vld [vmem:[#allocation18 + $0x60] sm:$0xf]
        %v6399 = vld [vmem:[#allocation18 + $0x64] sm:$0xf]
        %v6400 = vld [vmem:[#allocation18 + $0x68] sm:$0xf]
        %v6401 = vld [vmem:[#allocation18 + $0x6c] sm:$0xf]
        %v6402 = vld [vmem:[#allocation18 + $0x70] sm:$0xf]
        %v6403 = vld [vmem:[#allocation18 + $0x74] sm:$0xf]
        %v6404 = vld [vmem:[#allocation18 + $0x78] sm:$0xf]
        %v6405 = vld [vmem:[#allocation18 + $0x7c] sm:$0xf]
        %v6406 = vld [vmem:[#allocation18 + $0x80] sm:$0xf]
        %v6407 = vld [vmem:[#allocation18 + $0x84] sm:$0xf]
        %v6408 = vld [vmem:[#allocation18 + $0x88] sm:$0xf]
        %v6409 = vld [vmem:[#allocation18 + $0x8c] sm:$0xf]
        %v6410 = vld [vmem:[#allocation18 + $0x90] sm:$0xf]
        %v6411 = vld [vmem:[#allocation18 + $0x94] sm:$0xf]
        %v6412 = vld [vmem:[#allocation18 + $0x98] sm:$0xf]
        %v6413 = vld [vmem:[#allocation18 + $0x9c] sm:$0xf]
        %v6414 = vld [vmem:[#allocation18 + $0xa0] sm:$0xf]
        %v6415 = vld [vmem:[#allocation18 + $0xa4] sm:$0xf]
        %v6416 = vld [vmem:[#allocation18 + $0xa8] sm:$0xf]
        %v6417 = vld [vmem:[#allocation18 + $0xac] sm:$0xf]
        %v6418 = vld [vmem:[#allocation18 + $0xb0] sm:$0xf]
        %v6419 = vld [vmem:[#allocation18 + $0xb4] sm:$0xf]
        %v6420 = vld [vmem:[#allocation18 + $0xb8] sm:$0xf]
        %v6421 = vld [vmem:[#allocation18 + $0xbc] sm:$0xf]
        %v6422 = vld [vmem:[%s6258] sm:$0xff]
        %v6423 = vld [vmem:[%s6258 + $0x8] sm:$0xf]
        %v6424 = vld [vmem:[%s6258 + $0xc] sm:$0xff]
        %v6425 = vld [vmem:[%s6258 + $0x14] sm:$0xf]
        %v6426 = vld [vmem:[%s6258 + $0x18] sm:$0xff]
        %v6427 = vld [vmem:[%s6258 + $0x20] sm:$0xf]
        %v6428 = vld [vmem:[%s6258 + $0x24] sm:$0xff]
        %v6429 = vld [vmem:[%s6258 + $0x2c] sm:$0xf]
        %v6430 = vld [vmem:[%s6258 + $0x30] sm:$0xff]
        %v6431 = vld [vmem:[%s6258 + $0x38] sm:$0xf]
        %v6432 = vld [vmem:[%s6258 + $0x3c] sm:$0xff]
        %v6433 = vld [vmem:[%s6258 + $0x44] sm:$0xf]
        %v6434 = vld [vmem:[%s6258 + $0x48] sm:$0xff]
        %v6435 = vld [vmem:[%s6258 + $0x50] sm:$0xf]
        %v6436 = vld [vmem:[%s6258 + $0x54] sm:$0xff]
        %v6437 = vld [vmem:[%s6258 + $0x5c] sm:$0xf]
        %s6438 = scalar_lea.vmem [#allocation18], 192
        %v6439 = vld [vmem:[%s6438] sm:$0xf]
        %v6440 = vld [vmem:[%s6438 + $0x4] sm:$0xf]
        %v6441 = vld [vmem:[%s6438 + $0x8] sm:$0xf]
        %v6442 = vld [vmem:[%s6438 + $0xc] sm:$0xf]
        %v6443 = vld [vmem:[%s6438 + $0x10] sm:$0xf]
        %v6444 = vld [vmem:[%s6438 + $0x14] sm:$0xf]
        %v6445 = vld [vmem:[%s6438 + $0x18] sm:$0xf]
        %v6446 = vld [vmem:[%s6438 + $0x1c] sm:$0xf]
        %v6447 = vld [vmem:[%s6438 + $0x20] sm:$0xf]
        %v6448 = vld [vmem:[%s6438 + $0x24] sm:$0xf]
        %v6449 = vld [vmem:[%s6438 + $0x28] sm:$0xf]
        %v6450 = vld [vmem:[%s6438 + $0x2c] sm:$0xf]
        %v6451 = vld [vmem:[%s6438 + $0x30] sm:$0xf]
        %v6452 = vld [vmem:[%s6438 + $0x34] sm:$0xf]
        %v6453 = vld [vmem:[%s6438 + $0x38] sm:$0xf]
        %v6454 = vld [vmem:[%s6438 + $0x3c] sm:$0xf]
        %v6455 = vld [vmem:[%s6438 + $0x40] sm:$0xf]
        %v6456 = vld [vmem:[%s6438 + $0x44] sm:$0xf]
        %v6457 = vld [vmem:[%s6438 + $0x48] sm:$0xf]
        %v6458 = vld [vmem:[%s6438 + $0x4c] sm:$0xf]
        %v6459 = vld [vmem:[%s6438 + $0x50] sm:$0xf]
        %v6460 = vld [vmem:[%s6438 + $0x54] sm:$0xf]
        %v6461 = vld [vmem:[%s6438 + $0x58] sm:$0xf]
        %v6462 = vld [vmem:[%s6438 + $0x5c] sm:$0xf]
        %v6463 = vld [vmem:[%s6438 + $0x60] sm:$0xf]
        %v6464 = vld [vmem:[%s6438 + $0x64] sm:$0xf]
        %v6465 = vld [vmem:[%s6438 + $0x68] sm:$0xf]
        %v6466 = vld [vmem:[%s6438 + $0x6c] sm:$0xf]
        %v6467 = vld [vmem:[%s6438 + $0x70] sm:$0xf]
        %v6468 = vld [vmem:[%s6438 + $0x74] sm:$0xf]
        %v6469 = vld [vmem:[%s6438 + $0x78] sm:$0xf]
        %v6470 = vld [vmem:[%s6438 + $0x7c] sm:$0xf]
        %v6471 = vld [vmem:[%s6438 + $0x80] sm:$0xf]
        %v6472 = vld [vmem:[%s6438 + $0x84] sm:$0xf]
        %v6473 = vld [vmem:[%s6438 + $0x88] sm:$0xf]
        %v6474 = vld [vmem:[%s6438 + $0x8c] sm:$0xf]
        %v6475 = vld [vmem:[%s6438 + $0x90] sm:$0xf]
        %v6476 = vld [vmem:[%s6438 + $0x94] sm:$0xf]
        %v6477 = vld [vmem:[%s6438 + $0x98] sm:$0xf]
        %v6478 = vld [vmem:[%s6438 + $0x9c] sm:$0xf]
        %v6479 = vld [vmem:[%s6438 + $0xa0] sm:$0xf]
        %v6480 = vld [vmem:[%s6438 + $0xa4] sm:$0xf]
        %v6481 = vld [vmem:[%s6438 + $0xa8] sm:$0xf]
        %v6482 = vld [vmem:[%s6438 + $0xac] sm:$0xf]
        %v6483 = vld [vmem:[%s6438 + $0xb0] sm:$0xf]
        %v6484 = vld [vmem:[%s6438 + $0xb4] sm:$0xf]
        %v6485 = vld [vmem:[%s6438 + $0xb8] sm:$0xf]
        %v6486 = vld [vmem:[%s6438 + $0xbc] sm:$0xf]
        %v6503 = vunpack.c.l.b16 %v6422
        %v6504 = vunpack.c.h.b16 %v6422
        %v6505 = vunpack.c.l.b16 %v6423
        %v6506 = vunpack.c.l.b16 %v6424
        %v6507 = vunpack.c.h.b16 %v6424
        %v6508 = vunpack.c.l.b16 %v6425
        %v6509 = vunpack.c.l.b16 %v6426
        %v6510 = vunpack.c.h.b16 %v6426
        %v6511 = vunpack.c.l.b16 %v6427
        %v6512 = vunpack.c.l.b16 %v6428
        %v6513 = vunpack.c.h.b16 %v6428
        %v6514 = vunpack.c.l.b16 %v6429
        %v6515 = vunpack.c.l.b16 %v6430
        %v6516 = vunpack.c.h.b16 %v6430
        %v6517 = vunpack.c.l.b16 %v6431
        %v6518 = vunpack.c.l.b16 %v6432
        %v6519 = vunpack.c.h.b16 %v6432
        %v6520 = vunpack.c.l.b16 %v6433
        %v6521 = vunpack.c.l.b16 %v6434
        %v6522 = vunpack.c.h.b16 %v6434
        %v6523 = vunpack.c.l.b16 %v6435
        %v6524 = vunpack.c.l.b16 %v6436
        %v6525 = vunpack.c.h.b16 %v6436
        %v6526 = vunpack.c.l.b16 %v6437
        %v6527 = vpack.c.b16 %v6506, %v6503
        %v6528 = vpack.c.b16 %v6507, %v6504
        %v6529 = vpack.c.b16 %v6508, %v6505
        %v6530 = vpack.c.b16 %v6512, %v6509
        %v6531 = vpack.c.b16 %v6513, %v6510
        %v6532 = vpack.c.b16 %v6514, %v6511
        %v6533 = vpack.c.b16 %v6518, %v6515
        %v6534 = vpack.c.b16 %v6519, %v6516
        %v6535 = vpack.c.b16 %v6520, %v6517
        %v6536 = vpack.c.b16 %v6524, %v6521
        %v6537 = vpack.c.b16 %v6525, %v6522
        %v6538 = vpack.c.b16 %v6526, %v6523
        %v6599 = vunpack.c.l.b16 %v6439
        %v6600 = vunpack.c.l.b16 %v6440
        %v6601 = vunpack.c.l.b16 %v6441
        %v6602 = vunpack.c.l.b16 %v6442
        %v6603 = vunpack.c.l.b16 %v6443
        %v6604 = vunpack.c.l.b16 %v6444
        %v6605 = vunpack.c.l.b16 %v6445
        %v6606 = vunpack.c.l.b16 %v6446
        %v6607 = vunpack.c.l.b16 %v6447
        %v6608 = vunpack.c.l.b16 %v6448
        %v6609 = vunpack.c.l.b16 %v6449
        %v6610 = vunpack.c.l.b16 %v6450
        %v6611 = vunpack.c.l.b16 %v6451
        %v6612 = vunpack.c.l.b16 %v6452
        %v6613 = vunpack.c.l.b16 %v6453
        %v6614 = vunpack.c.l.b16 %v6454
        %v6615 = vunpack.c.l.b16 %v6455
        %v6616 = vunpack.c.l.b16 %v6456
        %v6617 = vunpack.c.l.b16 %v6457
        %v6618 = vunpack.c.l.b16 %v6458
        %v6619 = vunpack.c.l.b16 %v6459
        %v6620 = vunpack.c.l.b16 %v6460
        %v6621 = vunpack.c.l.b16 %v6461
        %v6622 = vunpack.c.l.b16 %v6462
        %v6623 = vunpack.c.l.b16 %v6463
        %v6624 = vunpack.c.l.b16 %v6464
        %v6625 = vunpack.c.l.b16 %v6465
        %v6626 = vunpack.c.l.b16 %v6466
        %v6627 = vunpack.c.l.b16 %v6467
        %v6628 = vunpack.c.l.b16 %v6468
        %v6629 = vunpack.c.l.b16 %v6469
        %v6630 = vunpack.c.l.b16 %v6470
        %v6631 = vunpack.c.l.b16 %v6471
        %v6632 = vunpack.c.l.b16 %v6472
        %v6633 = vunpack.c.l.b16 %v6473
        %v6634 = vunpack.c.l.b16 %v6474
        %v6635 = vunpack.c.l.b16 %v6475
        %v6636 = vunpack.c.l.b16 %v6476
        %v6637 = vunpack.c.l.b16 %v6477
        %v6638 = vunpack.c.l.b16 %v6478
        %v6639 = vunpack.c.l.b16 %v6479
        %v6640 = vunpack.c.l.b16 %v6480
        %v6641 = vunpack.c.l.b16 %v6481
        %v6642 = vunpack.c.l.b16 %v6482
        %v6643 = vunpack.c.l.b16 %v6483
        %v6644 = vunpack.c.l.b16 %v6484
        %v6645 = vunpack.c.l.b16 %v6485
        %v6646 = vunpack.c.l.b16 %v6486
        %v6647 = vpack.c.b16 %v6600, %v6599
        %v6648 = vpack.c.b16 %v6602, %v6601
        %v6649 = vpack.c.b16 %v6604, %v6603
        %v6650 = vpack.c.b16 %v6606, %v6605
        %v6651 = vpack.c.b16 %v6608, %v6607
        %v6652 = vpack.c.b16 %v6610, %v6609
        %v6653 = vpack.c.b16 %v6612, %v6611
        %v6654 = vpack.c.b16 %v6614, %v6613
        %v6655 = vpack.c.b16 %v6616, %v6615
        %v6656 = vpack.c.b16 %v6618, %v6617
        %v6657 = vpack.c.b16 %v6620, %v6619
        %v6658 = vpack.c.b16 %v6622, %v6621
        %v6659 = vpack.c.b16 %v6624, %v6623
        %v6660 = vpack.c.b16 %v6626, %v6625
        %v6661 = vpack.c.b16 %v6628, %v6627
        %v6662 = vpack.c.b16 %v6630, %v6629
        %v6663 = vpack.c.b16 %v6632, %v6631
        %v6664 = vpack.c.b16 %v6634, %v6633
        %v6665 = vpack.c.b16 %v6636, %v6635
        %v6666 = vpack.c.b16 %v6638, %v6637
        %v6667 = vpack.c.b16 %v6640, %v6639
        %v6668 = vpack.c.b16 %v6642, %v6641
        %v6669 = vpack.c.b16 %v6644, %v6643
        %v6670 = vpack.c.b16 %v6646, %v6645
        %6695 = vmatprep.subr.bf16.mxu0 0
        %6696 = vmatpush1.bf16.msra.mxu0 %v6647
        %6697 = vmatprep.subr.bf16.mxu0 0
        %6698 = vmatpush1.bf16.msra.mxu0 %v6648
        %6699 = vmatprep.subr.bf16.mxu0 0
        %6700 = vmatpush1.bf16.msra.mxu0 %v6649
        %6701 = vmatprep.subr.bf16.mxu0 0
        %6702 = vmatpush1.bf16.msra.mxu0 %v6650
        %6703 = vmatprep.subr.bf16.mxu0 0
        %6704 = vmatpush1.bf16.msra.mxu0 %v6651
        %6705 = vmatprep.subr.bf16.mxu0 0
        %6706 = vmatpush1.bf16.msra.mxu0 %v6652
        %6707 = vmatprep.subr.bf16.mxu0 0
        %6708 = vmatpush1.bf16.msra.mxu0 %v6653
        %6709 = vmatprep.subr.bf16.mxu0 0
        %6710 = vmatpush1.bf16.msra.mxu0 %v6654
        %6711 = vmatprep.subr.bf16.mxu0 0
        %6712 = vmatpush1.bf16.msra.mxu0 %v6655
        %6713 = vmatprep.subr.bf16.mxu0 0
        %6714 = vmatpush1.bf16.msra.mxu0 %v6656
        %6715 = vmatprep.subr.bf16.mxu0 0
        %6716 = vmatpush1.bf16.msra.mxu0 %v6657
        %6717 = vmatprep.subr.bf16.mxu0 0
        %6718 = vmatpush1.bf16.msra.mxu0 %v6658
        %6719 = vmatprep.subr.bf16.mxu0 0
        %6720 = vmatpush1.bf16.msra.mxu0 %v6659
        %6721 = vmatprep.subr.bf16.mxu0 0
        %6722 = vmatpush1.bf16.msra.mxu0 %v6660
        %6723 = vmatprep.subr.bf16.mxu0 0
        %6724 = vmatpush1.bf16.msra.mxu0 %v6661
        %6725 = vmatprep.subr.bf16.mxu0 0
        %6726 = vmatpush1.bf16.msra.mxu0 %v6662
        %6727 = vmatprep.mubr.bf16.mxu0 %v6528
        %6728 = vmatmul.mubr.bf16.gmra.mrb[0].mxu0 %v6527
        %v6729 = vpop.f32.mrb[0].mxu0
        %v6730 = vpop.f32.mrb[0].mxu0
        %v6731 = vpop.f32.mrb[0].mxu0
        %v6732 = vpop.f32.mrb[0].mxu0
        %6733 = vmatprep.mubr.bf16.mxu0 %v6531
        %6734 = vmatmul.mubr.bf16.gmra.mrb[0].mxu0 %v6530
        %v6735 = vpop.f32.mrb[0].mxu0
        %v6736 = vadd.f32 0.0, %v6735
        %v6737 = vpop.f32.mrb[0].mxu0
        %v6738 = vpop.f32.mrb[0].mxu0
        %v6739 = vadd.f32 0.0, %v6738
        %v6740 = vpop.f32.mrb[0].mxu0
        %6741 = vmatprep.mubr.bf16.mxu0 %v6534
        %6742 = vmatmul.mubr.bf16.gmra.mrb[0].mxu0 %v6533
        %v6743 = vpop.f32.mrb[0].mxu0
        %v6744 = vadd.f32 0.0, %v6743
        %v6745 = vpop.f32.mrb[0].mxu0
        %v6746 = vpop.f32.mrb[0].mxu0
        %v6747 = vadd.f32 0.0, %v6746
        %v6748 = vpop.f32.mrb[0].mxu0
        %6749 = vmatprep.mubr.bf16.mxu0 %v6537
        %6750 = vmatmul.mubr.bf16.gmra.mrb[0].mxu0 %v6536
        %v6751 = vpop.f32.mrb[0].mxu0
        %v6752 = vpop.f32.mrb[0].mxu0
        %v6753 = vpop.f32.mrb[0].mxu0
        %v6754 = vpop.f32.mrb[0].mxu0
        %6755 = vdwg.mxu0
        %6756 = vmatprep.subr.bf16.mxu0 0
        %6757 = vmatpush1.bf16.msra.mxu0 %v6663
        %6758 = vmatprep.subr.bf16.mxu0 0
        %6759 = vmatpush1.bf16.msra.mxu0 %v6664
        %6760 = vmatprep.subr.bf16.mxu0 0
        %6761 = vmatpush1.bf16.msra.mxu0 %v6665
        %6762 = vmatprep.subr.bf16.mxu0 0
        %6763 = vmatpush1.bf16.msra.mxu0 %v6666
        %6764 = vmatprep.subr.bf16.mxu0 0
        %6765 = vmatpush1.bf16.msra.mxu0 %v6667
        %6766 = vmatprep.subr.bf16.mxu0 0
        %6767 = vmatpush1.bf16.msra.mxu0 %v6668
        %6768 = vmatprep.subr.bf16.mxu0 0
        %6769 = vmatpush1.bf16.msra.mxu0 %v6669
        %6770 = vmatprep.subr.bf16.mxu0 0
        %6771 = vmatpush1.bf16.msra.mxu0 %v6670
        %6772 = vmatprep.subr.bf16.mxu0 0
        %6773 = vmatpush1.bf16.msra.mxu0 0
        %6774 = vmatprep.subr.bf16.mxu0 0
        %6775 = vmatpush1.bf16.msra.mxu0 0
        %6776 = vmatprep.subr.bf16.mxu0 0
        %6777 = vmatpush1.bf16.msra.mxu0 0
        %6778 = vmatprep.subr.bf16.mxu0 0
        %6779 = vmatpush1.bf16.msra.mxu0 0
        %6780 = vmatprep.subr.bf16.mxu0 0
        %6781 = vmatpush1.bf16.msra.mxu0 0
        %6782 = vmatprep.subr.bf16.mxu0 0
        %6783 = vmatpush1.bf16.msra.mxu0 0
        %6784 = vmatprep.subr.bf16.mxu0 0
        %6785 = vmatpush1.bf16.msra.mxu0 0
        %6786 = vmatprep.subr.bf16.mxu0 0
        %6787 = vmatpush1.bf16.msra.mxu0 0
        %6788 = vmatprep.mubr.bf16.mxu0 0
        %6789 = vmatmul.mubr.bf16.gmra.mrb[0].mxu0 %v6529
        %v6790 = vpop.f32.mrb[0].mxu0
        %v6791 = vpop.f32.mrb[0].mxu0
        %v6792 = vpop.f32.mrb[0].mxu0
        %v6793 = vpop.f32.mrb[0].mxu0
        %6794 = vmatprep.mubr.bf16.mxu0 0
        %6795 = vmatmul.mubr.bf16.gmra.mrb[0].mxu0 %v6532
        %v6796 = vpop.f32.mrb[0].mxu0
        %v6797 = vadd.f32 %v6736, %v6796
        %v6798 = vpop.f32.mrb[0].mxu0
        %v6799 = vpop.f32.mrb[0].mxu0
        %v6800 = vadd.f32 %v6739, %v6799
        %v6801 = vpop.f32.mrb[0].mxu0
        %6802 = vmatprep.mubr.bf16.mxu0 0
        %6803 = vmatmul.mubr.bf16.gmra.mrb[0].mxu0 %v6535
        %v6804 = vpop.f32.mrb[0].mxu0
        %v6805 = vadd.f32 %v6744, %v6804
        %v6806 = vpop.f32.mrb[0].mxu0
        %v6807 = vpop.f32.mrb[0].mxu0
        %v6808 = vadd.f32 %v6747, %v6807
        %v6809 = vpop.f32.mrb[0].mxu0
        %6810 = vmatprep.mubr.bf16.mxu0 0
        %6811 = vmatmul.mubr.bf16.gmra.mrb[0].mxu0 %v6538
        %v6812 = vpop.f32.mrb[0].mxu0
        %v6813 = vpop.f32.mrb[0].mxu0
        %v6814 = vpop.f32.mrb[0].mxu0
        %v6815 = vpop.f32.mrb[0].mxu0
        %6816 = vdwg.mxu0
        %v6833 = vunpack.c.l.b16 %v6358
        %v6834 = vunpack.c.h.b16 %v6358
        %v6835 = vunpack.c.l.b16 %v6359
        %v6836 = vunpack.c.l.b16 %v6360
        %v6837 = vunpack.c.h.b16 %v6360
        %v6838 = vunpack.c.l.b16 %v6361
        %v6839 = vunpack.c.l.b16 %v6362
        %v6840 = vunpack.c.h.b16 %v6362
        %v6841 = vunpack.c.l.b16 %v6363
        %v6842 = vunpack.c.l.b16 %v6364
        %v6843 = vunpack.c.h.b16 %v6364
        %v6844 = vunpack.c.l.b16 %v6365
        %v6845 = vunpack.c.l.b16 %v6366
        %v6846 = vunpack.c.h.b16 %v6366
        %v6847 = vunpack.c.l.b16 %v6367
        %v6848 = vunpack.c.l.b16 %v6368
        %v6849 = vunpack.c.h.b16 %v6368
        %v6850 = vunpack.c.l.b16 %v6369
        %v6851 = vunpack.c.l.b16 %v6370
        %v6852 = vunpack.c.h.b16 %v6370
        %v6853 = vunpack.c.l.b16 %v6371
        %v6854 = vunpack.c.l.b16 %v6372
        %v6855 = vunpack.c.h.b16 %v6372
        %v6856 = vunpack.c.l.b16 %v6373
        %v6857 = vpack.c.b16 %v6836, %v6833
        %v6858 = vpack.c.b16 %v6837, %v6834
        %v6859 = vpack.c.b16 %v6838, %v6835
        %v6860 = vpack.c.b16 %v6842, %v6839
        %v6861 = vpack.c.b16 %v6843, %v6840
        %v6862 = vpack.c.b16 %v6844, %v6841
        %v6863 = vpack.c.b16 %v6848, %v6845
        %v6864 = vpack.c.b16 %v6849, %v6846
        %v6865 = vpack.c.b16 %v6850, %v6847
        %v6866 = vpack.c.b16 %v6854, %v6851
        %v6867 = vpack.c.b16 %v6855, %v6852
        %v6868 = vpack.c.b16 %v6856, %v6853
        %v6929 = vunpack.c.l.b16 %v6374
        %v6930 = vunpack.c.l.b16 %v6375
        %v6931 = vunpack.c.l.b16 %v6376
        %v6932 = vunpack.c.l.b16 %v6377
        %v6933 = vunpack.c.l.b16 %v6378
        %v6934 = vunpack.c.l.b16 %v6379
        %v6935 = vunpack.c.l.b16 %v6380
        %v6936 = vunpack.c.l.b16 %v6381
        %v6937 = vunpack.c.l.b16 %v6382
        %v6938 = vunpack.c.l.b16 %v6383
        %v6939 = vunpack.c.l.b16 %v6384
        %v6940 = vunpack.c.l.b16 %v6385
        %v6941 = vunpack.c.l.b16 %v6386
        %v6942 = vunpack.c.l.b16 %v6387
        %v6943 = vunpack.c.l.b16 %v6388
        %v6944 = vunpack.c.l.b16 %v6389
        %v6945 = vunpack.c.l.b16 %v6390
        %v6946 = vunpack.c.l.b16 %v6391
        %v6947 = vunpack.c.l.b16 %v6392
        %v6948 = vunpack.c.l.b16 %v6393
        %v6949 = vunpack.c.l.b16 %v6394
        %v6950 = vunpack.c.l.b16 %v6395
        %v6951 = vunpack.c.l.b16 %v6396
        %v6952 = vunpack.c.l.b16 %v6397
        %v6953 = vunpack.c.l.b16 %v6398
        %v6954 = vunpack.c.l.b16 %v6399
        %v6955 = vunpack.c.l.b16 %v6400
        %v6956 = vunpack.c.l.b16 %v6401
        %v6957 = vunpack.c.l.b16 %v6402
        %v6958 = vunpack.c.l.b16 %v6403
        %v6959 = vunpack.c.l.b16 %v6404
        %v6960 = vunpack.c.l.b16 %v6405
        %v6961 = vunpack.c.l.b16 %v6406
        %v6962 = vunpack.c.l.b16 %v6407
        %v6963 = vunpack.c.l.b16 %v6408
        %v6964 = vunpack.c.l.b16 %v6409
        %v6965 = vunpack.c.l.b16 %v6410
        %v6966 = vunpack.c.l.b16 %v6411
        %v6967 = vunpack.c.l.b16 %v6412
        %v6968 = vunpack.c.l.b16 %v6413
        %v6969 = vunpack.c.l.b16 %v6414
        %v6970 = vunpack.c.l.b16 %v6415
        %v6971 = vunpack.c.l.b16 %v6416
        %v6972 = vunpack.c.l.b16 %v6417
        %v6973 = vunpack.c.l.b16 %v6418
        %v6974 = vunpack.c.l.b16 %v6419
        %v6975 = vunpack.c.l.b16 %v6420
        %v6976 = vunpack.c.l.b16 %v6421
        %v6977 = vpack.c.b16 %v6930, %v6929
        %v6978 = vpack.c.b16 %v6932, %v6931
        %v6979 = vpack.c.b16 %v6934, %v6933
        %v6980 = vpack.c.b16 %v6936, %v6935
        %v6981 = vpack.c.b16 %v6938, %v6937
        %v6982 = vpack.c.b16 %v6940, %v6939
        %v6983 = vpack.c.b16 %v6942, %v6941
        %v6984 = vpack.c.b16 %v6944, %v6943
        %v6985 = vpack.c.b16 %v6946, %v6945
        %v6986 = vpack.c.b16 %v6948, %v6947
        %v6987 = vpack.c.b16 %v6950, %v6949
        %v6988 = vpack.c.b16 %v6952, %v6951
        %v6989 = vpack.c.b16 %v6954, %v6953
        %v6990 = vpack.c.b16 %v6956, %v6955
        %v6991 = vpack.c.b16 %v6958, %v6957
        %v6992 = vpack.c.b16 %v6960, %v6959
        %v6993 = vpack.c.b16 %v6962, %v6961
        %v6994 = vpack.c.b16 %v6964, %v6963
        %v6995 = vpack.c.b16 %v6966, %v6965
        %v6996 = vpack.c.b16 %v6968, %v6967
        %v6997 = vpack.c.b16 %v6970, %v6969
        %v6998 = vpack.c.b16 %v6972, %v6971
        %v6999 = vpack.c.b16 %v6974, %v6973
        %v7000 = vpack.c.b16 %v6976, %v6975
        %7025 = vmatprep.subr.bf16.mxu0 0
        %7026 = vmatpush1.bf16.msra.mxu0 %v6977
        %7027 = vmatprep.subr.bf16.mxu0 0
        %7028 = vmatpush1.bf16.msra.mxu0 %v6978
        %7029 = vmatprep.subr.bf16.mxu0 0
        %7030 = vmatpush1.bf16.msra.mxu0 %v6979
        %7031 = vmatprep.subr.bf16.mxu0 0
        %7032 = vmatpush1.bf16.msra.mxu0 %v6980
        %7033 = vmatprep.subr.bf16.mxu0 0
        %7034 = vmatpush1.bf16.msra.mxu0 %v6981
        %7035 = vmatprep.subr.bf16.mxu0 0
        %7036 = vmatpush1.bf16.msra.mxu0 %v6982
        %7037 = vmatprep.subr.bf16.mxu0 0
        %7038 = vmatpush1.bf16.msra.mxu0 %v6983
        %7039 = vmatprep.subr.bf16.mxu0 0
        %7040 = vmatpush1.bf16.msra.mxu0 %v6984
        %7041 = vmatprep.subr.bf16.mxu0 0
        %7042 = vmatpush1.bf16.msra.mxu0 %v6985
        %7043 = vmatprep.subr.bf16.mxu0 0
        %7044 = vmatpush1.bf16.msra.mxu0 %v6986
        %7045 = vmatprep.subr.bf16.mxu0 0
        %7046 = vmatpush1.bf16.msra.mxu0 %v6987
        %7047 = vmatprep.subr.bf16.mxu0 0
        %7048 = vmatpush1.bf16.msra.mxu0 %v6988
        %7049 = vmatprep.subr.bf16.mxu0 0
        %7050 = vmatpush1.bf16.msra.mxu0 %v6989
        %7051 = vmatprep.subr.bf16.mxu0 0
        %7052 = vmatpush1.bf16.msra.mxu0 %v6990
        %7053 = vmatprep.subr.bf16.mxu0 0
        %7054 = vmatpush1.bf16.msra.mxu0 %v6991
        %7055 = vmatprep.subr.bf16.mxu0 0
        %7056 = vmatpush1.bf16.msra.mxu0 %v6992
        %7057 = vmatprep.mubr.bf16.mxu0 %v6858
        %7058 = vmatmul.mubr.bf16.gmra.mrb[0].mxu0 %v6857
        %v7059 = vpop.f32.mrb[0].mxu0
        %v7060 = vpop.f32.mrb[0].mxu0
        %v7061 = vpop.f32.mrb[0].mxu0
        %v7062 = vpop.f32.mrb[0].mxu0
        %7063 = vmatprep.mubr.bf16.mxu0 %v6861
        %7064 = vmatmul.mubr.bf16.gmra.mrb[0].mxu0 %v6860
        %v7065 = vpop.f32.mrb[0].mxu0
        %v7066 = vadd.f32 %v6797, %v7065
        %v7067 = vpop.f32.mrb[0].mxu0
        %v7068 = vpop.f32.mrb[0].mxu0
        %v7069 = vadd.f32 %v6800, %v7068
        %v7070 = vpop.f32.mrb[0].mxu0
        %7071 = vmatprep.mubr.bf16.mxu0 %v6864
        %7072 = vmatmul.mubr.bf16.gmra.mrb[0].mxu0 %v6863
        %v7073 = vpop.f32.mrb[0].mxu0
        %v7074 = vadd.f32 %v6805, %v7073
        %v7075 = vpop.f32.mrb[0].mxu0
        %v7076 = vpop.f32.mrb[0].mxu0
        %v7077 = vadd.f32 %v6808, %v7076
        %v7078 = vpop.f32.mrb[0].mxu0
        %7079 = vmatprep.mubr.bf16.mxu0 %v6867
        %7080 = vmatmul.mubr.bf16.gmra.mrb[0].mxu0 %v6866
        %v7081 = vpop.f32.mrb[0].mxu0
        %v7082 = vpop.f32.mrb[0].mxu0
        %v7083 = vpop.f32.mrb[0].mxu0
        %v7084 = vpop.f32.mrb[0].mxu0
        %7085 = vdwg.mxu0
        %7086 = vmatprep.subr.bf16.mxu0 0
        %7087 = vmatpush1.bf16.msra.mxu0 %v6993
        %7088 = vmatprep.subr.bf16.mxu0 0
        %7089 = vmatpush1.bf16.msra.mxu0 %v6994
        %7090 = vmatprep.subr.bf16.mxu0 0
        %7091 = vmatpush1.bf16.msra.mxu0 %v6995
        %7092 = vmatprep.subr.bf16.mxu0 0
        %7093 = vmatpush1.bf16.msra.mxu0 %v6996
        %7094 = vmatprep.subr.bf16.mxu0 0
        %7095 = vmatpush1.bf16.msra.mxu0 %v6997
        %7096 = vmatprep.subr.bf16.mxu0 0
        %7097 = vmatpush1.bf16.msra.mxu0 %v6998
        %7098 = vmatprep.subr.bf16.mxu0 0
        %7099 = vmatpush1.bf16.msra.mxu0 %v6999
        %7100 = vmatprep.subr.bf16.mxu0 0
        %7101 = vmatpush1.bf16.msra.mxu0 %v7000
        %7102 = vmatprep.subr.bf16.mxu0 0
        %7103 = vmatpush1.bf16.msra.mxu0 0
        %7104 = vmatprep.subr.bf16.mxu0 0
        %7105 = vmatpush1.bf16.msra.mxu0 0
        %7106 = vmatprep.subr.bf16.mxu0 0
        %7107 = vmatpush1.bf16.msra.mxu0 0
        %7108 = vmatprep.subr.bf16.mxu0 0
        %7109 = vmatpush1.bf16.msra.mxu0 0
        %7110 = vmatprep.subr.bf16.mxu0 0
        %7111 = vmatpush1.bf16.msra.mxu0 0
        %7112 = vmatprep.subr.bf16.mxu0 0
        %7113 = vmatpush1.bf16.msra.mxu0 0
        %7114 = vmatprep.subr.bf16.mxu0 0
        %7115 = vmatpush1.bf16.msra.mxu0 0
        %7116 = vmatprep.subr.bf16.mxu0 0
        %7117 = vmatpush1.bf16.msra.mxu0 0
        %7118 = vmatprep.mubr.bf16.mxu0 0
        %7119 = vmatmul.mubr.bf16.gmra.mrb[0].mxu0 %v6859
        %v7120 = vpop.f32.mrb[0].mxu0
        %v7121 = vpop.f32.mrb[0].mxu0
        %v7122 = vpop.f32.mrb[0].mxu0
        %v7123 = vpop.f32.mrb[0].mxu0
        %7124 = vmatprep.mubr.bf16.mxu0 0
        %7125 = vmatmul.mubr.bf16.gmra.mrb[0].mxu0 %v6862
        %v7126 = vpop.f32.mrb[0].mxu0
        %v7127 = vadd.f32 %v7066, %v7126
        %v7128 = vpop.f32.mrb[0].mxu0
        %v7129 = vpop.f32.mrb[0].mxu0
        %v7130 = vadd.f32 %v7069, %v7129
        %v7131 = vpop.f32.mrb[0].mxu0
        %7132 = vmatprep.mubr.bf16.mxu0 0
        %7133 = vmatmul.mubr.bf16.gmra.mrb[0].mxu0 %v6865
        %v7134 = vpop.f32.mrb[0].mxu0
        %v7135 = vadd.f32 %v7074, %v7134
        %v7136 = vpop.f32.mrb[0].mxu0
        %v7137 = vpop.f32.mrb[0].mxu0
        %v7138 = vadd.f32 %v7077, %v7137
        %v7139 = vpop.f32.mrb[0].mxu0
        %7140 = vmatprep.mubr.bf16.mxu0 0
        %7141 = vmatmul.mubr.bf16.gmra.mrb[0].mxu0 %v6868
        %v7142 = vpop.f32.mrb[0].mxu0
        %v7143 = vpop.f32.mrb[0].mxu0
        %v7144 = vpop.f32.mrb[0].mxu0
        %v7145 = vpop.f32.mrb[0].mxu0
        %7146 = vdwg.mxu0
        %s7147 = scalar_lea.vmem [#allocation4], 24
        %v7148 = vld [vmem:[%s7147] sm:$0xff]
        %v7149 = vld [vmem:[%s7147 + $0x8] sm:$0xf]
        %v7150 = vld [vmem:[%s7147 + $0xc] sm:$0xff]
        %v7151 = vld [vmem:[%s7147 + $0x14] sm:$0xf]
        %v7152 = vld [vmem:[%s7147 + $0x18] sm:$0xff]
        %v7153 = vld [vmem:[%s7147 + $0x20] sm:$0xf]
        %v7154 = vld [vmem:[%s7147 + $0x24] sm:$0xff]
        %v7155 = vld [vmem:[%s7147 + $0x2c] sm:$0xf]
        %v7156 = vld [vmem:[%s7147 + $0x30] sm:$0xff]
        %v7157 = vld [vmem:[%s7147 + $0x38] sm:$0xf]
        %v7158 = vld [vmem:[%s7147 + $0x3c] sm:$0xff]
        %v7159 = vld [vmem:[%s7147 + $0x44] sm:$0xf]
        %v7160 = vld [vmem:[%s7147 + $0x48] sm:$0xff]
        %v7161 = vld [vmem:[%s7147 + $0x50] sm:$0xf]
        %v7162 = vld [vmem:[%s7147 + $0x54] sm:$0xff]
        %v7163 = vld [vmem:[%s7147 + $0x5c] sm:$0xf]
        %s7164 = scalar_lea.vmem [#allocation18], 384
        %v7165 = vld [vmem:[%s7164] sm:$0xf]
        %v7166 = vld [vmem:[%s7164 + $0x4] sm:$0xf]
        %v7167 = vld [vmem:[%s7164 + $0x8] sm:$0xf]
        %v7168 = vld [vmem:[%s7164 + $0xc] sm:$0xf]
        %v7169 = vld [vmem:[%s7164 + $0x10] sm:$0xf]
        %v7170 = vld [vmem:[%s7164 + $0x14] sm:$0xf]
        %v7171 = vld [vmem:[%s7164 + $0x18] sm:$0xf]
        %v7172 = vld [vmem:[%s7164 + $0x1c] sm:$0xf]
        %v7173 = vld [vmem:[%s7164 + $0x20] sm:$0xf]
        %v7174 = vld [vmem:[%s7164 + $0x24] sm:$0xf]
        %v7175 = vld [vmem:[%s7164 + $0x28] sm:$0xf]
        %v7176 = vld [vmem:[%s7164 + $0x2c] sm:$0xf]
        %v7177 = vld [vmem:[%s7164 + $0x30] sm:$0xf]
        %v7178 = vld [vmem:[%s7164 + $0x34] sm:$0xf]
        %v7179 = vld [vmem:[%s7164 + $0x38] sm:$0xf]
        %v7180 = vld [vmem:[%s7164 + $0x3c] sm:$0xf]
        %v7181 = vld [vmem:[%s7164 + $0x40] sm:$0xf]
        %v7182 = vld [vmem:[%s7164 + $0x44] sm:$0xf]
        %v7183 = vld [vmem:[%s7164 + $0x48] sm:$0xf]
        %v7184 = vld [vmem:[%s7164 + $0x4c] sm:$0xf]
        %v7185 = vld [vmem:[%s7164 + $0x50] sm:$0xf]
        %v7186 = vld [vmem:[%s7164 + $0x54] sm:$0xf]
        %v7187 = vld [vmem:[%s7164 + $0x58] sm:$0xf]
        %v7188 = vld [vmem:[%s7164 + $0x5c] sm:$0xf]
        %v7189 = vld [vmem:[%s7164 + $0x60] sm:$0xf]
        %v7190 = vld [vmem:[%s7164 + $0x64] sm:$0xf]
        %v7191 = vld [vmem:[%s7164 + $0x68] sm:$0xf]
        %v7192 = vld [vmem:[%s7164 + $0x6c] sm:$0xf]
        %v7193 = vld [vmem:[%s7164 + $0x70] sm:$0xf]
        %v7194 = vld [vmem:[%s7164 + $0x74] sm:$0xf]
        %v7195 = vld [vmem:[%s7164 + $0x78] sm:$0xf]
        %v7196 = vld [vmem:[%s7164 + $0x7c] sm:$0xf]
        %v7197 = vld [vmem:[%s7164 + $0x80] sm:$0xf]
        %v7198 = vld [vmem:[%s7164 + $0x84] sm:$0xf]
        %v7199 = vld [vmem:[%s7164 + $0x88] sm:$0xf]
        %v7200 = vld [vmem:[%s7164 + $0x8c] sm:$0xf]
        %v7201 = vld [vmem:[%s7164 + $0x90] sm:$0xf]
        %v7202 = vld [vmem:[%s7164 + $0x94] sm:$0xf]
        %v7203 = vld [vmem:[%s7164 + $0x98] sm:$0xf]
        %v7204 = vld [vmem:[%s7164 + $0x9c] sm:$0xf]
        %v7205 = vld [vmem:[%s7164 + $0xa0] sm:$0xf]
        %v7206 = vld [vmem:[%s7164 + $0xa4] sm:$0xf]
        %v7207 = vld [vmem:[%s7164 + $0xa8] sm:$0xf]
        %v7208 = vld [vmem:[%s7164 + $0xac] sm:$0xf]
        %v7209 = vld [vmem:[%s7164 + $0xb0] sm:$0xf]
        %v7210 = vld [vmem:[%s7164 + $0xb4] sm:$0xf]
        %v7211 = vld [vmem:[%s7164 + $0xb8] sm:$0xf]
        %v7212 = vld [vmem:[%s7164 + $0xbc] sm:$0xf]
        %v7229 = vunpack.c.l.b16 %v7148
        %v7230 = vunpack.c.h.b16 %v7148
        %v7231 = vunpack.c.l.b16 %v7149
        %v7232 = vunpack.c.l.b16 %v7150
        %v7233 = vunpack.c.h.b16 %v7150
        %v7234 = vunpack.c.l.b16 %v7151
        %v7235 = vunpack.c.l.b16 %v7152
        %v7236 = vunpack.c.h.b16 %v7152
        %v7237 = vunpack.c.l.b16 %v7153
        %v7238 = vunpack.c.l.b16 %v7154
        %v7239 = vunpack.c.h.b16 %v7154
        %v7240 = vunpack.c.l.b16 %v7155
        %v7241 = vunpack.c.l.b16 %v7156
        %v7242 = vunpack.c.h.b16 %v7156
        %v7243 = vunpack.c.l.b16 %v7157
        %v7244 = vunpack.c.l.b16 %v7158
        %v7245 = vunpack.c.h.b16 %v7158
        %v7246 = vunpack.c.l.b16 %v7159
        %v7247 = vunpack.c.l.b16 %v7160
        %v7248 = vunpack.c.h.b16 %v7160
        %v7249 = vunpack.c.l.b16 %v7161
        %v7250 = vunpack.c.l.b16 %v7162
        %v7251 = vunpack.c.h.b16 %v7162
        %v7252 = vunpack.c.l.b16 %v7163
        %v7253 = vpack.c.b16 %v7232, %v7229
        %v7254 = vpack.c.b16 %v7233, %v7230
        %v7255 = vpack.c.b16 %v7234, %v7231
        %v7256 = vpack.c.b16 %v7238, %v7235
        %v7257 = vpack.c.b16 %v7239, %v7236
        %v7258 = vpack.c.b16 %v7240, %v7237
        %v7259 = vpack.c.b16 %v7244, %v7241
        %v7260 = vpack.c.b16 %v7245, %v7242
        %v7261 = vpack.c.b16 %v7246, %v7243
        %v7262 = vpack.c.b16 %v7250, %v7247
        %v7263 = vpack.c.b16 %v7251, %v7248
        %v7264 = vpack.c.b16 %v7252, %v7249
        %v7325 = vunpack.c.l.b16 %v7165
        %v7326 = vunpack.c.l.b16 %v7166
        %v7327 = vunpack.c.l.b16 %v7167
        %v7328 = vunpack.c.l.b16 %v7168
        %v7329 = vunpack.c.l.b16 %v7169
        %v7330 = vunpack.c.l.b16 %v7170
        %v7331 = vunpack.c.l.b16 %v7171
        %v7332 = vunpack.c.l.b16 %v7172
        %v7333 = vunpack.c.l.b16 %v7173
        %v7334 = vunpack.c.l.b16 %v7174
        %v7335 = vunpack.c.l.b16 %v7175
        %v7336 = vunpack.c.l.b16 %v7176
        %v7337 = vunpack.c.l.b16 %v7177
        %v7338 = vunpack.c.l.b16 %v7178
        %v7339 = vunpack.c.l.b16 %v7179
        %v7340 = vunpack.c.l.b16 %v7180
        %v7341 = vunpack.c.l.b16 %v7181
        %v7342 = vunpack.c.l.b16 %v7182
        %v7343 = vunpack.c.l.b16 %v7183
        %v7344 = vunpack.c.l.b16 %v7184
        %v7345 = vunpack.c.l.b16 %v7185
        %v7346 = vunpack.c.l.b16 %v7186
        %v7347 = vunpack.c.l.b16 %v7187
        %v7348 = vunpack.c.l.b16 %v7188
        %v7349 = vunpack.c.l.b16 %v7189
        %v7350 = vunpack.c.l.b16 %v7190
        %v7351 = vunpack.c.l.b16 %v7191
        %v7352 = vunpack.c.l.b16 %v7192
        %v7353 = vunpack.c.l.b16 %v7193
        %v7354 = vunpack.c.l.b16 %v7194
        %v7355 = vunpack.c.l.b16 %v7195
        %v7356 = vunpack.c.l.b16 %v7196
        %v7357 = vunpack.c.l.b16 %v7197
        %v7358 = vunpack.c.l.b16 %v7198
        %v7359 = vunpack.c.l.b16 %v7199
        %v7360 = vunpack.c.l.b16 %v7200
        %v7361 = vunpack.c.l.b16 %v7201
        %v7362 = vunpack.c.l.b16 %v7202
        %v7363 = vunpack.c.l.b16 %v7203
        %v7364 = vunpack.c.l.b16 %v7204
        %v7365 = vunpack.c.l.b16 %v7205
        %v7366 = vunpack.c.l.b16 %v7206
        %v7367 = vunpack.c.l.b16 %v7207
        %v7368 = vunpack.c.l.b16 %v7208
        %v7369 = vunpack.c.l.b16 %v7209
        %v7370 = vunpack.c.l.b16 %v7210
        %v7371 = vunpack.c.l.b16 %v7211
        %v7372 = vunpack.c.l.b16 %v7212
        %v7373 = vpack.c.b16 %v7326, %v7325
        %v7374 = vpack.c.b16 %v7328, %v7327
        %v7375 = vpack.c.b16 %v7330, %v7329
        %v7376 = vpack.c.b16 %v7332, %v7331
        %v7377 = vpack.c.b16 %v7334, %v7333
        %v7378 = vpack.c.b16 %v7336, %v7335
        %v7379 = vpack.c.b16 %v7338, %v7337
        %v7380 = vpack.c.b16 %v7340, %v7339
        %v7381 = vpack.c.b16 %v7342, %v7341
        %v7382 = vpack.c.b16 %v7344, %v7343
        %v7383 = vpack.c.b16 %v7346, %v7345
        %v7384 = vpack.c.b16 %v7348, %v7347
        %v7385 = vpack.c.b16 %v7350, %v7349
        %v7386 = vpack.c.b16 %v7352, %v7351
        %v7387 = vpack.c.b16 %v7354, %v7353
        %v7388 = vpack.c.b16 %v7356, %v7355
        %v7389 = vpack.c.b16 %v7358, %v7357
        %v7390 = vpack.c.b16 %v7360, %v7359
        %v7391 = vpack.c.b16 %v7362, %v7361
        %v7392 = vpack.c.b16 %v7364, %v7363
        %v7393 = vpack.c.b16 %v7366, %v7365
        %v7394 = vpack.c.b16 %v7368, %v7367
        %v7395 = vpack.c.b16 %v7370, %v7369
        %v7396 = vpack.c.b16 %v7372, %v7371
        %7421 = vmatprep.subr.bf16.mxu0 0
        %7422 = vmatpush1.bf16.msra.mxu0 %v7373
        %7423 = vmatprep.subr.bf16.mxu0 0
        %7424 = vmatpush1.bf16.msra.mxu0 %v7374
        %7425 = vmatprep.subr.bf16.mxu0 0
        %7426 = vmatpush1.bf16.msra.mxu0 %v7375
        %7427 = vmatprep.subr.bf16.mxu0 0
        %7428 = vmatpush1.bf16.msra.mxu0 %v7376
        %7429 = vmatprep.subr.bf16.mxu0 0
        %7430 = vmatpush1.bf16.msra.mxu0 %v7377
        %7431 = vmatprep.subr.bf16.mxu0 0
        %7432 = vmatpush1.bf16.msra.mxu0 %v7378
        %7433 = vmatprep.subr.bf16.mxu0 0
        %7434 = vmatpush1.bf16.msra.mxu0 %v7379
        %7435 = vmatprep.subr.bf16.mxu0 0
        %7436 = vmatpush1.bf16.msra.mxu0 %v7380
        %7437 = vmatprep.subr.bf16.mxu0 0
        %7438 = vmatpush1.bf16.msra.mxu0 %v7381
        %7439 = vmatprep.subr.bf16.mxu0 0
        %7440 = vmatpush1.bf16.msra.mxu0 %v7382
        %7441 = vmatprep.subr.bf16.mxu0 0
        %7442 = vmatpush1.bf16.msra.mxu0 %v7383
        %7443 = vmatprep.subr.bf16.mxu0 0
        %7444 = vmatpush1.bf16.msra.mxu0 %v7384
        %7445 = vmatprep.subr.bf16.mxu0 0
        %7446 = vmatpush1.bf16.msra.mxu0 %v7385
        %7447 = vmatprep.subr.bf16.mxu0 0
        %7448 = vmatpush1.bf16.msra.mxu0 %v7386
        %7449 = vmatprep.subr.bf16.mxu0 0
        %7450 = vmatpush1.bf16.msra.mxu0 %v7387
        %7451 = vmatprep.subr.bf16.mxu0 0
        %7452 = vmatpush1.bf16.msra.mxu0 %v7388
        %7453 = vmatprep.mubr.bf16.mxu0 %v7254
        %7454 = vmatmul.mubr.bf16.gmra.mrb[0].mxu0 %v7253
        %v7455 = vpop.f32.mrb[0].mxu0
        %v7456 = vpop.f32.mrb[0].mxu0
        %v7457 = vpop.f32.mrb[0].mxu0
        %v7458 = vpop.f32.mrb[0].mxu0
        %7459 = vmatprep.mubr.bf16.mxu0 %v7257
        %7460 = vmatmul.mubr.bf16.gmra.mrb[0].mxu0 %v7256
        %v7461 = vpop.f32.mrb[0].mxu0
        %v7462 = vadd.f32 0.0, %v7461
        %v7463 = vpop.f32.mrb[0].mxu0
        %v7464 = vpop.f32.mrb[0].mxu0
        %v7465 = vadd.f32 0.0, %v7464
        %v7466 = vpop.f32.mrb[0].mxu0
        %7467 = vmatprep.mubr.bf16.mxu0 %v7260
        %7468 = vmatmul.mubr.bf16.gmra.mrb[0].mxu0 %v7259
        %v7469 = vpop.f32.mrb[0].mxu0
        %v7470 = vadd.f32 0.0, %v7469
        %v7471 = vpop.f32.mrb[0].mxu0
        %v7472 = vpop.f32.mrb[0].mxu0
        %v7473 = vadd.f32 0.0, %v7472
        %v7474 = vpop.f32.mrb[0].mxu0
        %7475 = vmatprep.mubr.bf16.mxu0 %v7263
        %7476 = vmatmul.mubr.bf16.gmra.mrb[0].mxu0 %v7262
        %v7477 = vpop.f32.mrb[0].mxu0
        %v7478 = vpop.f32.mrb[0].mxu0
        %v7479 = vpop.f32.mrb[0].mxu0
        %v7480 = vpop.f32.mrb[0].mxu0
        %7481 = vdwg.mxu0
        %7482 = vmatprep.subr.bf16.mxu0 0
        %7483 = vmatpush1.bf16.msra.mxu0 %v7389
        %7484 = vmatprep.subr.bf16.mxu0 0
        %7485 = vmatpush1.bf16.msra.mxu0 %v7390
        %7486 = vmatprep.subr.bf16.mxu0 0
        %7487 = vmatpush1.bf16.msra.mxu0 %v7391
        %7488 = vmatprep.subr.bf16.mxu0 0
        %7489 = vmatpush1.bf16.msra.mxu0 %v7392
        %7490 = vmatprep.subr.bf16.mxu0 0
        %7491 = vmatpush1.bf16.msra.mxu0 %v7393
        %7492 = vmatprep.subr.bf16.mxu0 0
        %7493 = vmatpush1.bf16.msra.mxu0 %v7394
        %7494 = vmatprep.subr.bf16.mxu0 0
        %7495 = vmatpush1.bf16.msra.mxu0 %v7395
        %7496 = vmatprep.subr.bf16.mxu0 0
        %7497 = vmatpush1.bf16.msra.mxu0 %v7396
        %7498 = vmatprep.subr.bf16.mxu0 0
        %7499 = vmatpush1.bf16.msra.mxu0 0
        %7500 = vmatprep.subr.bf16.mxu0 0
        %7501 = vmatpush1.bf16.msra.mxu0 0
        %7502 = vmatprep.subr.bf16.mxu0 0
        %7503 = vmatpush1.bf16.msra.mxu0 0
        %7504 = vmatprep.subr.bf16.mxu0 0
        %7505 = vmatpush1.bf16.msra.mxu0 0
        %7506 = vmatprep.subr.bf16.mxu0 0
        %7507 = vmatpush1.bf16.msra.mxu0 0
        %7508 = vmatprep.subr.bf16.mxu0 0
        %7509 = vmatpush1.bf16.msra.mxu0 0
        %7510 = vmatprep.subr.bf16.mxu0 0
        %7511 = vmatpush1.bf16.msra.mxu0 0
        %7512 = vmatprep.subr.bf16.mxu0 0
        %7513 = vmatpush1.bf16.msra.mxu0 0
        %7514 = vmatprep.mubr.bf16.mxu0 0
        %7515 = vmatmul.mubr.bf16.gmra.mrb[0].mxu0 %v7255
        %v7516 = vpop.f32.mrb[0].mxu0
        %v7517 = vpop.f32.mrb[0].mxu0
        %v7518 = vpop.f32.mrb[0].mxu0
        %v7519 = vpop.f32.mrb[0].mxu0
        %7520 = vmatprep.mubr.bf16.mxu0 0
        %7521 = vmatmul.mubr.bf16.gmra.mrb[0].mxu0 %v7258
        %v7522 = vpop.f32.mrb[0].mxu0
        %v7523 = vadd.f32 %v7462, %v7522
        %v7524 = vpop.f32.mrb[0].mxu0
        %v7525 = vpop.f32.mrb[0].mxu0
        %v7526 = vadd.f32 %v7465, %v7525
        %v7527 = vpop.f32.mrb[0].mxu0
        %7528 = vmatprep.mubr.bf16.mxu0 0
        %7529 = vmatmul.mubr.bf16.gmra.mrb[0].mxu0 %v7261
        %v7530 = vpop.f32.mrb[0].mxu0
        %v7531 = vadd.f32 %v7470, %v7530
        %v7532 = vpop.f32.mrb[0].mxu0
        %v7533 = vpop.f32.mrb[0].mxu0
        %v7534 = vadd.f32 %v7473, %v7533
        %v7535 = vpop.f32.mrb[0].mxu0
        %7536 = vmatprep.mubr.bf16.mxu0 0
        %7537 = vmatmul.mubr.bf16.gmra.mrb[0].mxu0 %v7264
        %v7538 = vpop.f32.mrb[0].mxu0
        %v7539 = vpop.f32.mrb[0].mxu0
        %v7540 = vpop.f32.mrb[0].mxu0
        %v7541 = vpop.f32.mrb[0].mxu0
        %7542 = vdwg.mxu0
        %v7543 = vadd.f32 %v7127, %v7523
        %v7544 = vadd.f32 %v7130, %v7526
        %v7545 = vadd.f32 %v7135, %v7531
        %v7546 = vadd.f32 %v7138, %v7534
        %v7547 = vld [vmem:[#allocation20] sm:$0x1]
        %v7549 = vlaneseq
        %v7550 = vshrl.u32 %v7549, 7
        %v7551 = vsub.s32 0, %v7550
        %v7552 = vrot.slane %v7547, %v7551
        %v7554 = vadd.f32 %v7543, %v7552
        %v7555 = vadd.f32 %v7544, %v7552
        %v7556 = vadd.f32 %v7545, %v7552
        %v7557 = vadd.f32 %v7546, %v7552
        %v7558 = vmax.f32 %v7554, 0.0
        %v7559 = vmax.f32 %v7555, 0.0
        %v7560 = vmax.f32 %v7556, 0.0
        %v7561 = vmax.f32 %v7557, 0.0
        %v7562 = vmax.f32 %v7558, %v7559
        %v7563 = vmax.f32 %v7560, %v7561
        %v7566 = vcombine.high %v7562, %v7562
        %v7568 = vunpack.c.l.s4 1983009808
        %v7569 = vunpack.c.0.s8 %v7568
        %v7570 = vlaneseq
        %v7571 = vshrl.u32 %v7570, 7
        %v7572 = vsub.s32 %v7569, %v7571
        %v7573 = vrot.slane %v7562, %v7572
        %v7575 = vunpack.c.l.s4 1983009808
        %v7576 = vunpack.c.0.s8 %v7575
        %v7577 = vlaneseq
        %v7578 = vshrl.u32 %v7577, 7
        %v7579 = vsub.s32 %v7576, %v7578
        %v7580 = vrot.slane %v7566, %v7579
        %v7581 = vcombine.high %v7573, %v7573
        %v7582 = vcombine.high %v7580, %v7580
        %v7583 = vcombine.high %v7563, %v7563
        %v7585 = vunpack.c.l.s4 1983009808
        %v7586 = vunpack.c.0.s8 %v7585
        %v7587 = vlaneseq
        %v7588 = vshrl.u32 %v7587, 7
        %v7589 = vsub.s32 %v7586, %v7588
        %v7590 = vrot.slane %v7563, %v7589
        %v7592 = vunpack.c.l.s4 1983009808
        %v7593 = vunpack.c.0.s8 %v7592
        %v7594 = vlaneseq
        %v7595 = vshrl.u32 %v7594, 7
        %v7596 = vsub.s32 %v7593, %v7595
        %v7597 = vrot.slane %v7583, %v7596
        %v7598 = vcombine.high %v7590, %v7590
        %v7599 = vcombine.high %v7597, %v7597
        %vm7608 = vcmask 1041408
        %v7609 = vsel %vm7608, %v7573, -inf
        %v7610 = vrot.slane %v7609, 4
        %v7611 = vmax.f32 %v7609, %v7610
        %v7612 = vrot.slane %v7611, 2
        %v7613 = vmax.f32 %v7611, %v7612
        %v7614 = vrot.slane %v7613, 1
        %v7615 = vmax.f32 %v7613, %v7614
        %v7616 = vsel %vm7608, %v7581, -inf
        %v7617 = vrot.slane %v7616, 4
        %v7618 = vmax.f32 %v7616, %v7617
        %v7619 = vrot.slane %v7618, 2
        %v7620 = vmax.f32 %v7618, %v7619
        %v7621 = vrot.slane %v7620, 1
        %v7622 = vmax.f32 %v7620, %v7621
        %v7623 = vsel %vm7608, %v7580, -inf
        %v7624 = vrot.slane %v7623, 4
        %v7625 = vmax.f32 %v7623, %v7624
        %v7626 = vrot.slane %v7625, 2
        %v7627 = vmax.f32 %v7625, %v7626
        %v7628 = vrot.slane %v7627, 1
        %v7629 = vmax.f32 %v7627, %v7628
        %v7630 = vsel %vm7608, %v7582, -inf
        %v7631 = vrot.slane %v7630, 4
        %v7632 = vmax.f32 %v7630, %v7631
        %v7633 = vrot.slane %v7632, 2
        %v7634 = vmax.f32 %v7632, %v7633
        %v7635 = vrot.slane %v7634, 1
        %v7636 = vmax.f32 %v7634, %v7635
        %v7637 = vsel %vm7608, %v7590, -inf
        %v7638 = vrot.slane %v7637, 4
        %v7639 = vmax.f32 %v7637, %v7638
        %v7640 = vrot.slane %v7639, 2
        %v7641 = vmax.f32 %v7639, %v7640
        %v7642 = vrot.slane %v7641, 1
        %v7643 = vmax.f32 %v7641, %v7642
        %v7644 = vsel %vm7608, %v7598, -inf
        %v7645 = vrot.slane %v7644, 4
        %v7646 = vmax.f32 %v7644, %v7645
        %v7647 = vrot.slane %v7646, 2
        %v7648 = vmax.f32 %v7646, %v7647
        %v7649 = vrot.slane %v7648, 1
        %v7650 = vmax.f32 %v7648, %v7649
        %v7651 = vsel %vm7608, %v7597, -inf
        %v7652 = vrot.slane %v7651, 4
        %v7653 = vmax.f32 %v7651, %v7652
        %v7654 = vrot.slane %v7653, 2
        %v7655 = vmax.f32 %v7653, %v7654
        %v7656 = vrot.slane %v7655, 1
        %v7657 = vmax.f32 %v7655, %v7656
        %v7658 = vsel %vm7608, %v7599, -inf
        %v7659 = vrot.slane %v7658, 4
        %v7660 = vmax.f32 %v7658, %v7659
        %v7661 = vrot.slane %v7660, 2
        %v7662 = vmax.f32 %v7660, %v7661
        %v7663 = vrot.slane %v7662, 1
        %v7664 = vmax.f32 %v7662, %v7663
        %v7665 = vpack.c.bf16 %v7615, %v7615
        %v7666 = vpack.c.bf16 %v7622, %v7622
        %v7667 = vpack.c.bf16 %v7629, %v7629
        %v7668 = vpack.c.bf16 %v7636, %v7636
        %v7669 = vpack.c.bf16 %v7643, %v7643
        %v7670 = vpack.c.bf16 %v7650, %v7650
        %v7671 = vpack.c.bf16 %v7657, %v7657
        %v7672 = vpack.c.bf16 %v7664, %v7664
        %v7676 = vunpack.c.l.s4 1966171168
        %v7677 = vunpack.c.0.s8 %v7676
        %v7678 = vlaneseq
        %v7679 = vshrl.u32 %v7678, 7
        %v7680 = vsub.s32 %v7677, %v7679
        %v7681 = vrot.slane %v7665, %v7680
        %v7683 = vunpack.c.l.s4 1966171168
        %v7684 = vunpack.c.0.s8 %v7683
        %v7685 = vlaneseq
        %v7686 = vshrl.u32 %v7685, 7
        %v7687 = vsub.s32 %v7684, %v7686
        %v7688 = vrot.slane %v7681, %v7687
        %v7690 = vunpack.c.l.s4 1966171168
        %v7691 = vunpack.c.0.s8 %v7690
        %v7692 = vlaneseq
        %v7693 = vshrl.u32 %v7692, 7
        %v7694 = vsub.s32 %v7691, %v7693
        %v7695 = vrot.slane %v7669, %v7694
        %v7697 = vunpack.c.l.s4 1966171168
        %v7698 = vunpack.c.0.s8 %v7697
        %v7699 = vlaneseq
        %v7700 = vshrl.u32 %v7699, 7
        %v7701 = vsub.s32 %v7698, %v7700
        %v7702 = vrot.slane %v7695, %v7701
        %v7704 = vunpack.c.l.s4 1935823168
        %v7705 = vunpack.c.0.s8 %v7704
        %v7706 = vlaneseq
        %v7707 = vshrl.u32 %v7706, 7
        %v7708 = vsub.s32 %v7705, %v7707
        %v7709 = vrot.slane %v7688, %v7708
        %v7711 = vunpack.c.l.s4 1935823168
        %v7712 = vunpack.c.0.s8 %v7711
        %v7713 = vlaneseq
        %v7714 = vshrl.u32 %v7713, 7
        %v7715 = vsub.s32 %v7712, %v7714
        %v7716 = vrot.slane %v7709, %v7715
        %v7718 = vunpack.c.l.s4 1935823168
        %v7719 = vunpack.c.0.s8 %v7718
        %v7720 = vlaneseq
        %v7721 = vshrl.u32 %v7720, 7
        %v7722 = vsub.s32 %v7719, %v7721
        %v7723 = vrot.slane %v7702, %v7722
        %v7725 = vunpack.c.l.s4 1935823168
        %v7726 = vunpack.c.0.s8 %v7725
        %v7727 = vlaneseq
        %v7728 = vshrl.u32 %v7727, 7
        %v7729 = vsub.s32 %v7726, %v7728
        %v7730 = vrot.slane %v7723, %v7729
        %v7731 = vunpack.c.l.b16 %v7716
        %v7732 = vunpack.c.l.b16 %v7730
        %v7733 = vrot.slane %v7732, 7
        %v7734 = vsel %vm5212, %v7733, %v7731
        %v7735 = vpack.c.b16 %v7734, %v7734
        %v7737 = vunpack.c.l.s4 1966171168
        %v7738 = vunpack.c.0.s8 %v7737
        %v7739 = vlaneseq
        %v7740 = vshrl.u32 %v7739, 7
        %v7741 = vsub.s32 %v7738, %v7740
        %v7742 = vrot.slane %v7735, %v7741
        %v7744 = vunpack.c.l.s4 1966171168
        %v7745 = vunpack.c.0.s8 %v7744
        %v7746 = vlaneseq
        %v7747 = vshrl.u32 %v7746, 7
        %v7748 = vsub.s32 %v7745, %v7747
        %v7749 = vrot.slane %v7742, %v7748
        %7751 = vst [vmem:[#allocation5] sm:$0x1] %v7749
        %v7755 = vunpack.c.l.s4 1966171168
        %v7756 = vunpack.c.0.s8 %v7755
        %v7757 = vlaneseq
        %v7758 = vshrl.u32 %v7757, 7
        %v7759 = vsub.s32 %v7756, %v7758
        %v7760 = vrot.slane %v7666, %v7759
        %v7762 = vunpack.c.l.s4 1966171168
        %v7763 = vunpack.c.0.s8 %v7762
        %v7764 = vlaneseq
        %v7765 = vshrl.u32 %v7764, 7
        %v7766 = vsub.s32 %v7763, %v7765
        %v7767 = vrot.slane %v7760, %v7766
        %v7769 = vunpack.c.l.s4 1966171168
        %v7770 = vunpack.c.0.s8 %v7769
        %v7771 = vlaneseq
        %v7772 = vshrl.u32 %v7771, 7
        %v7773 = vsub.s32 %v7770, %v7772
        %v7774 = vrot.slane %v7670, %v7773
        %v7776 = vunpack.c.l.s4 1966171168
        %v7777 = vunpack.c.0.s8 %v7776
        %v7778 = vlaneseq
        %v7779 = vshrl.u32 %v7778, 7
        %v7780 = vsub.s32 %v7777, %v7779
        %v7781 = vrot.slane %v7774, %v7780
        %v7783 = vunpack.c.l.s4 1935823168
        %v7784 = vunpack.c.0.s8 %v7783
        %v7785 = vlaneseq
        %v7786 = vshrl.u32 %v7785, 7
        %v7787 = vsub.s32 %v7784, %v7786
        %v7788 = vrot.slane %v7767, %v7787
        %v7790 = vunpack.c.l.s4 1935823168
        %v7791 = vunpack.c.0.s8 %v7790
        %v7792 = vlaneseq
        %v7793 = vshrl.u32 %v7792, 7
        %v7794 = vsub.s32 %v7791, %v7793
        %v7795 = vrot.slane %v7788, %v7794
        %v7797 = vunpack.c.l.s4 1935823168
        %v7798 = vunpack.c.0.s8 %v7797
        %v7799 = vlaneseq
        %v7800 = vshrl.u32 %v7799, 7
        %v7801 = vsub.s32 %v7798, %v7800
        %v7802 = vrot.slane %v7781, %v7801
        %v7804 = vunpack.c.l.s4 1935823168
        %v7805 = vunpack.c.0.s8 %v7804
        %v7806 = vlaneseq
        %v7807 = vshrl.u32 %v7806, 7
        %v7808 = vsub.s32 %v7805, %v7807
        %v7809 = vrot.slane %v7802, %v7808
        %v7810 = vunpack.c.l.b16 %v7795
        %v7811 = vunpack.c.l.b16 %v7809
        %v7812 = vrot.slane %v7811, 7
        %v7813 = vsel %vm5212, %v7812, %v7810
        %v7814 = vpack.c.b16 %v7813, %v7813
        %v7816 = vunpack.c.l.s4 1966171168
        %v7817 = vunpack.c.0.s8 %v7816
        %v7818 = vlaneseq
        %v7819 = vshrl.u32 %v7818, 7
        %v7820 = vsub.s32 %v7817, %v7819
        %v7821 = vrot.slane %v7814, %v7820
        %v7823 = vunpack.c.l.s4 1966171168
        %v7824 = vunpack.c.0.s8 %v7823
        %v7825 = vlaneseq
        %v7826 = vshrl.u32 %v7825, 7
        %v7827 = vsub.s32 %v7824, %v7826
        %v7828 = vrot.slane %v7821, %v7827
        %7830 = vst [vmem:[#allocation5 + $0x1] sm:$0x1] %v7828
        %v7834 = vunpack.c.l.s4 1966171168
        %v7835 = vunpack.c.0.s8 %v7834
        %v7836 = vlaneseq
        %v7837 = vshrl.u32 %v7836, 7
        %v7838 = vsub.s32 %v7835, %v7837
        %v7839 = vrot.slane %v7667, %v7838
        %v7841 = vunpack.c.l.s4 1966171168
        %v7842 = vunpack.c.0.s8 %v7841
        %v7843 = vlaneseq
        %v7844 = vshrl.u32 %v7843, 7
        %v7845 = vsub.s32 %v7842, %v7844
        %v7846 = vrot.slane %v7839, %v7845
        %v7848 = vunpack.c.l.s4 1966171168
        %v7849 = vunpack.c.0.s8 %v7848
        %v7850 = vlaneseq
        %v7851 = vshrl.u32 %v7850, 7
        %v7852 = vsub.s32 %v7849, %v7851
        %v7853 = vrot.slane %v7671, %v7852
        %v7855 = vunpack.c.l.s4 1966171168
        %v7856 = vunpack.c.0.s8 %v7855
        %v7857 = vlaneseq
        %v7858 = vshrl.u32 %v7857, 7
        %v7859 = vsub.s32 %v7856, %v7858
        %v7860 = vrot.slane %v7853, %v7859
        %v7862 = vunpack.c.l.s4 1935823168
        %v7863 = vunpack.c.0.s8 %v7862
        %v7864 = vlaneseq
        %v7865 = vshrl.u32 %v7864, 7
        %v7866 = vsub.s32 %v7863, %v7865
        %v7867 = vrot.slane %v7846, %v7866
        %v7869 = vunpack.c.l.s4 1935823168
        %v7870 = vunpack.c.0.s8 %v7869
        %v7871 = vlaneseq
        %v7872 = vshrl.u32 %v7871, 7
        %v7873 = vsub.s32 %v7870, %v7872
        %v7874 = vrot.slane %v7867, %v7873
        %v7876 = vunpack.c.l.s4 1935823168
        %v7877 = vunpack.c.0.s8 %v7876
        %v7878 = vlaneseq
        %v7879 = vshrl.u32 %v7878, 7
        %v7880 = vsub.s32 %v7877, %v7879
        %v7881 = vrot.slane %v7860, %v7880
        %v7883 = vunpack.c.l.s4 1935823168
        %v7884 = vunpack.c.0.s8 %v7883
        %v7885 = vlaneseq
        %v7886 = vshrl.u32 %v7885, 7
        %v7887 = vsub.s32 %v7884, %v7886
        %v7888 = vrot.slane %v7881, %v7887
        %v7889 = vunpack.c.l.b16 %v7874
        %v7890 = vunpack.c.l.b16 %v7888
        %v7891 = vrot.slane %v7890, 7
        %v7892 = vsel %vm5212, %v7891, %v7889
        %v7893 = vpack.c.b16 %v7892, %v7892
        %v7895 = vunpack.c.l.s4 1966171168
        %v7896 = vunpack.c.0.s8 %v7895
        %v7897 = vlaneseq
        %v7898 = vshrl.u32 %v7897, 7
        %v7899 = vsub.s32 %v7896, %v7898
        %v7900 = vrot.slane %v7893, %v7899
        %v7902 = vunpack.c.l.s4 1966171168
        %v7903 = vunpack.c.0.s8 %v7902
        %v7904 = vlaneseq
        %v7905 = vshrl.u32 %v7904, 7
        %v7906 = vsub.s32 %v7903, %v7905
        %v7907 = vrot.slane %v7900, %v7906
        %7909 = vst [vmem:[#allocation5 + $0x2] sm:$0x1] %v7907
        %v7913 = vunpack.c.l.s4 1966171168
        %v7914 = vunpack.c.0.s8 %v7913
        %v7915 = vlaneseq
        %v7916 = vshrl.u32 %v7915, 7
        %v7917 = vsub.s32 %v7914, %v7916
        %v7918 = vrot.slane %v7668, %v7917
        %v7920 = vunpack.c.l.s4 1966171168
        %v7921 = vunpack.c.0.s8 %v7920
        %v7922 = vlaneseq
        %v7923 = vshrl.u32 %v7922, 7
        %v7924 = vsub.s32 %v7921, %v7923
        %v7925 = vrot.slane %v7918, %v7924
        %v7927 = vunpack.c.l.s4 1966171168
        %v7928 = vunpack.c.0.s8 %v7927
        %v7929 = vlaneseq
        %v7930 = vshrl.u32 %v7929, 7
        %v7931 = vsub.s32 %v7928, %v7930
        %v7932 = vrot.slane %v7672, %v7931
        %v7934 = vunpack.c.l.s4 1966171168
        %v7935 = vunpack.c.0.s8 %v7934
        %v7936 = vlaneseq
        %v7937 = vshrl.u32 %v7936, 7
        %v7938 = vsub.s32 %v7935, %v7937
        %v7939 = vrot.slane %v7932, %v7938
        %v7941 = vunpack.c.l.s4 1935823168
        %v7942 = vunpack.c.0.s8 %v7941
        %v7943 = vlaneseq
        %v7944 = vshrl.u32 %v7943, 7
        %v7945 = vsub.s32 %v7942, %v7944
        %v7946 = vrot.slane %v7925, %v7945
        %v7948 = vunpack.c.l.s4 1935823168
        %v7949 = vunpack.c.0.s8 %v7948
        %v7950 = vlaneseq
        %v7951 = vshrl.u32 %v7950, 7
        %v7952 = vsub.s32 %v7949, %v7951
        %v7953 = vrot.slane %v7946, %v7952
        %v7955 = vunpack.c.l.s4 1935823168
        %v7956 = vunpack.c.0.s8 %v7955
        %v7957 = vlaneseq
        %v7958 = vshrl.u32 %v7957, 7
        %v7959 = vsub.s32 %v7956, %v7958
        %v7960 = vrot.slane %v7939, %v7959
        %v7962 = vunpack.c.l.s4 1935823168
        %v7963 = vunpack.c.0.s8 %v7962
        %v7964 = vlaneseq
        %v7965 = vshrl.u32 %v7964, 7
        %v7966 = vsub.s32 %v7963, %v7965
        %v7967 = vrot.slane %v7960, %v7966
        %v7968 = vunpack.c.l.b16 %v7953
        %v7969 = vunpack.c.l.b16 %v7967
        %v7970 = vrot.slane %v7969, 7
        %v7971 = vsel %vm5212, %v7970, %v7968
        %v7972 = vpack.c.b16 %v7971, %v7971
        %v7974 = vunpack.c.l.s4 1966171168
        %v7975 = vunpack.c.0.s8 %v7974
        %v7976 = vlaneseq
        %v7977 = vshrl.u32 %v7976, 7
        %v7978 = vsub.s32 %v7975, %v7977
        %v7979 = vrot.slane %v7972, %v7978
        %v7981 = vunpack.c.l.s4 1966171168
        %v7982 = vunpack.c.0.s8 %v7981
        %v7983 = vlaneseq
        %v7984 = vshrl.u32 %v7983, 7
        %v7985 = vsub.s32 %v7982, %v7984
        %v7986 = vrot.slane %v7979, %v7985
        %7988 = vst [vmem:[#allocation5 + $0x3] sm:$0x1] %v7986
        %v7989 = vld [vmem:[#allocation5] sm:$0xf]
        %v7990 = vld [vmem:[#allocation21] sm:$0xf]
        %v7991 = vld [vmem:[#allocation21 + $0x4] sm:$0xf]
        %v7992 = vld [vmem:[#allocation21 + $0x8] sm:$0xf]
        %v7993 = vld [vmem:[#allocation21 + $0xc] sm:$0xf]
        %v7994 = vld [vmem:[#allocation21 + $0x10] sm:$0xf]
        %v7995 = vld [vmem:[#allocation21 + $0x14] sm:$0xf]
        %v7996 = vld [vmem:[#allocation21 + $0x18] sm:$0xf]
        %v7997 = vld [vmem:[#allocation21 + $0x1c] sm:$0xf]
        %v7998 = vld [vmem:[#allocation21 + $0x20] sm:$0xf]
        %v7999 = vld [vmem:[#allocation21 + $0x24] sm:$0xf]
        %v8000 = vld [vmem:[#allocation21 + $0x28] sm:$0xf]
        %v8001 = vld [vmem:[#allocation21 + $0x2c] sm:$0xf]
        %v8002 = vld [vmem:[#allocation21 + $0x30] sm:$0xf]
        %v8003 = vld [vmem:[#allocation21 + $0x34] sm:$0xf]
        %v8004 = vld [vmem:[#allocation21 + $0x38] sm:$0xf]
        %v8005 = vld [vmem:[#allocation21 + $0x3c] sm:$0xf]
        %v8006 = vld [vmem:[#allocation21 + $0x40] sm:$0xf]
        %v8007 = vld [vmem:[#allocation21 + $0x44] sm:$0xf]
        %v8008 = vld [vmem:[#allocation21 + $0x48] sm:$0xf]
        %v8009 = vld [vmem:[#allocation21 + $0x4c] sm:$0xf]
        %v8010 = vld [vmem:[#allocation21 + $0x50] sm:$0xf]
        %v8011 = vld [vmem:[#allocation21 + $0x54] sm:$0xf]
        %v8012 = vld [vmem:[#allocation21 + $0x58] sm:$0xf]
        %v8013 = vld [vmem:[#allocation21 + $0x5c] sm:$0xf]
        %v8014 = vld [vmem:[#allocation21 + $0x60] sm:$0xf]
        %v8015 = vld [vmem:[#allocation21 + $0x64] sm:$0xf]
        %v8016 = vld [vmem:[#allocation21 + $0x68] sm:$0xf]
        %v8017 = vld [vmem:[#allocation21 + $0x6c] sm:$0xf]
        %v8018 = vld [vmem:[#allocation21 + $0x70] sm:$0xf]
        %v8019 = vld [vmem:[#allocation21 + $0x74] sm:$0xf]
        %v8020 = vld [vmem:[#allocation21 + $0x78] sm:$0xf]
        %v8021 = vld [vmem:[#allocation21 + $0x7c] sm:$0xf]
        %v8022 = vld [vmem:[#allocation21 + $0x80] sm:$0xf]
        %v8023 = vld [vmem:[#allocation21 + $0x84] sm:$0xf]
        %v8024 = vld [vmem:[#allocation21 + $0x88] sm:$0xf]
        %v8025 = vld [vmem:[#allocation21 + $0x8c] sm:$0xf]
        %v8026 = vld [vmem:[#allocation21 + $0x90] sm:$0xf]
        %v8027 = vld [vmem:[#allocation21 + $0x94] sm:$0xf]
        %v8028 = vld [vmem:[#allocation21 + $0x98] sm:$0xf]
        %v8029 = vld [vmem:[#allocation21 + $0x9c] sm:$0xf]
        %v8030 = vld [vmem:[#allocation21 + $0xa0] sm:$0xf]
        %v8031 = vld [vmem:[#allocation21 + $0xa4] sm:$0xf]
        %v8032 = vld [vmem:[#allocation21 + $0xa8] sm:$0xf]
        %v8033 = vld [vmem:[#allocation21 + $0xac] sm:$0xf]
        %v8034 = vld [vmem:[#allocation21 + $0xb0] sm:$0xf]
        %v8035 = vld [vmem:[#allocation21 + $0xb4] sm:$0xf]
        %v8036 = vld [vmem:[#allocation21 + $0xb8] sm:$0xf]
        %v8037 = vld [vmem:[#allocation21 + $0xbc] sm:$0xf]
        %v8038 = vld [vmem:[#allocation21 + $0xc0] sm:$0xf]
        %v8039 = vld [vmem:[#allocation21 + $0xc4] sm:$0xf]
        %v8040 = vld [vmem:[#allocation21 + $0xc8] sm:$0xf]
        %v8041 = vld [vmem:[#allocation21 + $0xcc] sm:$0xf]
        %v8042 = vld [vmem:[#allocation21 + $0xd0] sm:$0xf]
        %v8043 = vld [vmem:[#allocation21 + $0xd4] sm:$0xf]
        %v8044 = vld [vmem:[#allocation21 + $0xd8] sm:$0xf]
        %v8045 = vld [vmem:[#allocation21 + $0xdc] sm:$0xf]
        %v8046 = vld [vmem:[#allocation21 + $0xe0] sm:$0xf]
        %v8047 = vld [vmem:[#allocation21 + $0xe4] sm:$0xf]
        %v8048 = vld [vmem:[#allocation21 + $0xe8] sm:$0xf]
        %v8049 = vld [vmem:[#allocation21 + $0xec] sm:$0xf]
        %v8050 = vld [vmem:[#allocation21 + $0xf0] sm:$0xf]
        %v8051 = vld [vmem:[#allocation21 + $0xf4] sm:$0xf]
        %v8052 = vld [vmem:[#allocation21 + $0xf8] sm:$0xf]
        %v8053 = vld [vmem:[#allocation21 + $0xfc] sm:$0xf]
        %v8054 = vld [vmem:[#allocation23] sm:$0x1]
        %v8056 = vlaneseq
        %v8057 = vshrl.u32 %v8056, 7
        %v8058 = vsub.s32 0, %v8057
        %v8059 = vrot.slane %v8054, %v8058
        %v8063 = vunpack.c.l.s4 1966171168
        %v8064 = vunpack.c.0.s8 %v8063
        %v8065 = vlaneseq
        %v8066 = vshrl.u32 %v8065, 7
        %v8067 = vsub.s32 %v8064, %v8066
        %v8068 = vrot.slane %v7989, %v8067
        %v8069 = vcombine.high %v8068, %v8068
        %v8071 = vunpack.c.l.s4 1966171168
        %v8072 = vunpack.c.0.s8 %v8071
        %v8073 = vlaneseq
        %v8074 = vshrl.u32 %v8073, 7
        %v8075 = vsub.s32 %v8072, %v8074
        %v8076 = vrot.slane %v8068, %v8075
        %v8078 = vunpack.c.l.s4 1966171168
        %v8079 = vunpack.c.0.s8 %v8078
        %v8080 = vlaneseq
        %v8081 = vshrl.u32 %v8080, 7
        %v8082 = vsub.s32 %v8079, %v8081
        %v8083 = vrot.slane %v8069, %v8082
        %v8084 = vcombine.high %v8076, %v8076
        %v8085 = vcombine.high %v8083, %v8083
        %v8154 = vunpack.c.l.b16 %v7990
        %v8155 = vunpack.c.l.b16 %v7991
        %v8156 = vunpack.c.l.b16 %v7992
        %v8157 = vunpack.c.l.b16 %v7993
        %v8158 = vunpack.c.l.b16 %v7994
        %v8159 = vunpack.c.l.b16 %v7995
        %v8160 = vunpack.c.l.b16 %v7996
        %v8161 = vunpack.c.l.b16 %v7997
        %v8162 = vunpack.c.l.b16 %v7998
        %v8163 = vunpack.c.l.b16 %v7999
        %v8164 = vunpack.c.l.b16 %v8000
        %v8165 = vunpack.c.l.b16 %v8001
        %v8166 = vunpack.c.l.b16 %v8002
        %v8167 = vunpack.c.l.b16 %v8003
        %v8168 = vunpack.c.l.b16 %v8004
        %v8169 = vunpack.c.l.b16 %v8005
        %v8170 = vunpack.c.l.b16 %v8006
        %v8171 = vunpack.c.l.b16 %v8007
        %v8172 = vunpack.c.l.b16 %v8008
        %v8173 = vunpack.c.l.b16 %v8009
        %v8174 = vunpack.c.l.b16 %v8010
        %v8175 = vunpack.c.l.b16 %v8011
        %v8176 = vunpack.c.l.b16 %v8012
        %v8177 = vunpack.c.l.b16 %v8013
        %v8178 = vunpack.c.l.b16 %v8014
        %v8179 = vunpack.c.l.b16 %v8015
        %v8180 = vunpack.c.l.b16 %v8016
        %v8181 = vunpack.c.l.b16 %v8017
        %v8182 = vunpack.c.l.b16 %v8018
        %v8183 = vunpack.c.l.b16 %v8019
        %v8184 = vunpack.c.l.b16 %v8020
        %v8185 = vunpack.c.l.b16 %v8021
        %v8186 = vunpack.c.l.b16 %v8022
        %v8187 = vunpack.c.l.b16 %v8023
        %v8188 = vunpack.c.l.b16 %v8024
        %v8189 = vunpack.c.l.b16 %v8025
        %v8190 = vunpack.c.l.b16 %v8026
        %v8191 = vunpack.c.l.b16 %v8027
        %v8192 = vunpack.c.l.b16 %v8028
        %v8193 = vunpack.c.l.b16 %v8029
        %v8194 = vunpack.c.l.b16 %v8030
        %v8195 = vunpack.c.l.b16 %v8031
        %v8196 = vunpack.c.l.b16 %v8032
        %v8197 = vunpack.c.l.b16 %v8033
        %v8198 = vunpack.c.l.b16 %v8034
        %v8199 = vunpack.c.l.b16 %v8035
        %v8200 = vunpack.c.l.b16 %v8036
        %v8201 = vunpack.c.l.b16 %v8037
        %v8202 = vunpack.c.l.b16 %v8038
        %v8203 = vunpack.c.l.b16 %v8039
        %v8204 = vunpack.c.l.b16 %v8040
        %v8205 = vunpack.c.l.b16 %v8041
        %v8206 = vunpack.c.l.b16 %v8042
        %v8207 = vunpack.c.l.b16 %v8043
        %v8208 = vunpack.c.l.b16 %v8044
        %v8209 = vunpack.c.l.b16 %v8045
        %v8210 = vunpack.c.l.b16 %v8046
        %v8211 = vunpack.c.l.b16 %v8047
        %v8212 = vunpack.c.l.b16 %v8048
        %v8213 = vunpack.c.l.b16 %v8049
        %v8214 = vunpack.c.l.b16 %v8050
        %v8215 = vunpack.c.l.b16 %v8051
        %v8216 = vunpack.c.l.b16 %v8052
        %v8217 = vunpack.c.l.b16 %v8053
        %v8218 = vpack.c.b16 %v8155, %v8154
        %v8219 = vpack.c.b16 %v8157, %v8156
        %v8220 = vpack.c.b16 %v8159, %v8158
        %v8221 = vpack.c.b16 %v8161, %v8160
        %v8222 = vpack.c.b16 %v8163, %v8162
        %v8223 = vpack.c.b16 %v8165, %v8164
        %v8224 = vpack.c.b16 %v8167, %v8166
        %v8225 = vpack.c.b16 %v8169, %v8168
        %v8226 = vpack.c.b16 %v8171, %v8170
        %v8227 = vpack.c.b16 %v8173, %v8172
        %v8228 = vpack.c.b16 %v8175, %v8174
        %v8229 = vpack.c.b16 %v8177, %v8176
        %v8230 = vpack.c.b16 %v8179, %v8178
        %v8231 = vpack.c.b16 %v8181, %v8180
        %v8232 = vpack.c.b16 %v8183, %v8182
        %v8233 = vpack.c.b16 %v8185, %v8184
        %v8234 = vpack.c.b16 %v8187, %v8186
        %v8235 = vpack.c.b16 %v8189, %v8188
        %v8236 = vpack.c.b16 %v8191, %v8190
        %v8237 = vpack.c.b16 %v8193, %v8192
        %v8238 = vpack.c.b16 %v8195, %v8194
        %v8239 = vpack.c.b16 %v8197, %v8196
        %v8240 = vpack.c.b16 %v8199, %v8198
        %v8241 = vpack.c.b16 %v8201, %v8200
        %v8242 = vpack.c.b16 %v8203, %v8202
        %v8243 = vpack.c.b16 %v8205, %v8204
        %v8244 = vpack.c.b16 %v8207, %v8206
        %v8245 = vpack.c.b16 %v8209, %v8208
        %v8246 = vpack.c.b16 %v8211, %v8210
        %v8247 = vpack.c.b16 %v8213, %v8212
        %v8248 = vpack.c.b16 %v8215, %v8214
        %v8249 = vpack.c.b16 %v8217, %v8216
        %8282 = vmatprep.subr.bf16.mxu0 0
        %8283 = vmatpush1.bf16.msra.mxu0 %v8218
        %8284 = vmatprep.subr.bf16.mxu0 0
        %8285 = vmatpush1.bf16.msra.mxu0 %v8219
        %8286 = vmatprep.subr.bf16.mxu0 0
        %8287 = vmatpush1.bf16.msra.mxu0 %v8220
        %8288 = vmatprep.subr.bf16.mxu0 0
        %8289 = vmatpush1.bf16.msra.mxu0 %v8221
        %8290 = vmatprep.subr.bf16.mxu0 0
        %8291 = vmatpush1.bf16.msra.mxu0 %v8222
        %8292 = vmatprep.subr.bf16.mxu0 0
        %8293 = vmatpush1.bf16.msra.mxu0 %v8223
        %8294 = vmatprep.subr.bf16.mxu0 0
        %8295 = vmatpush1.bf16.msra.mxu0 %v8224
        %8296 = vmatprep.subr.bf16.mxu0 0
        %8297 = vmatpush1.bf16.msra.mxu0 %v8225
        %8298 = vmatprep.subr.bf16.mxu0 0
        %8299 = vmatpush1.bf16.msra.mxu0 %v8226
        %8300 = vmatprep.subr.bf16.mxu0 0
        %8301 = vmatpush1.bf16.msra.mxu0 %v8227
        %8302 = vmatprep.subr.bf16.mxu0 0
        %8303 = vmatpush1.bf16.msra.mxu0 %v8228
        %8304 = vmatprep.subr.bf16.mxu0 0
        %8305 = vmatpush1.bf16.msra.mxu0 %v8229
        %8306 = vmatprep.subr.bf16.mxu0 0
        %8307 = vmatpush1.bf16.msra.mxu0 %v8230
        %8308 = vmatprep.subr.bf16.mxu0 0
        %8309 = vmatpush1.bf16.msra.mxu0 %v8231
        %8310 = vmatprep.subr.bf16.mxu0 0
        %8311 = vmatpush1.bf16.msra.mxu0 %v8232
        %8312 = vmatprep.subr.bf16.mxu0 0
        %8313 = vmatpush1.bf16.msra.mxu0 %v8233
        %8314 = vmatprep.mubr.bf16.mxu0 %v8083
        %8315 = vmatmul.mubr.bf16.gmra.mrb[0].mxu0 %v8076
        %v8316 = vpop.f32.mrb[0].mxu0
        %v8317 = vadd.f32 %v8059, %v8316
        %v8318 = vpop.f32.mrb[0].mxu0
        %v8319 = vpop.f32.mrb[0].mxu0
        %v8320 = vpop.f32.mrb[0].mxu0
        %8321 = vdwg.mxu0
        %8322 = vmatprep.subr.bf16.mxu0 0
        %8323 = vmatpush1.bf16.msra.mxu0 %v8234
        %8324 = vmatprep.subr.bf16.mxu0 0
        %8325 = vmatpush1.bf16.msra.mxu0 %v8235
        %8326 = vmatprep.subr.bf16.mxu0 0
        %8327 = vmatpush1.bf16.msra.mxu0 %v8236
        %8328 = vmatprep.subr.bf16.mxu0 0
        %8329 = vmatpush1.bf16.msra.mxu0 %v8237
        %8330 = vmatprep.subr.bf16.mxu0 0
        %8331 = vmatpush1.bf16.msra.mxu0 %v8238
        %8332 = vmatprep.subr.bf16.mxu0 0
        %8333 = vmatpush1.bf16.msra.mxu0 %v8239
        %8334 = vmatprep.subr.bf16.mxu0 0
        %8335 = vmatpush1.bf16.msra.mxu0 %v8240
        %8336 = vmatprep.subr.bf16.mxu0 0
        %8337 = vmatpush1.bf16.msra.mxu0 %v8241
        %8338 = vmatprep.subr.bf16.mxu0 0
        %8339 = vmatpush1.bf16.msra.mxu0 %v8242
        %8340 = vmatprep.subr.bf16.mxu0 0
        %8341 = vmatpush1.bf16.msra.mxu0 %v8243
        %8342 = vmatprep.subr.bf16.mxu0 0
        %8343 = vmatpush1.bf16.msra.mxu0 %v8244
        %8344 = vmatprep.subr.bf16.mxu0 0
        %8345 = vmatpush1.bf16.msra.mxu0 %v8245
        %8346 = vmatprep.subr.bf16.mxu0 0
        %8347 = vmatpush1.bf16.msra.mxu0 %v8246
        %8348 = vmatprep.subr.bf16.mxu0 0
        %8349 = vmatpush1.bf16.msra.mxu0 %v8247
        %8350 = vmatprep.subr.bf16.mxu0 0
        %8351 = vmatpush1.bf16.msra.mxu0 %v8248
        %8352 = vmatprep.subr.bf16.mxu0 0
        %8353 = vmatpush1.bf16.msra.mxu0 %v8249
        %8354 = vmatprep.mubr.bf16.mxu0 %v8085
        %8355 = vmatmul.mubr.bf16.gmra.mrb[0].mxu0 %v8084
        %v8356 = vpop.f32.mrb[0].mxu0
        %v8357 = vadd.f32 %v8317, %v8356
        %v8358 = vpop.f32.mrb[0].mxu0
        %v8359 = vpop.f32.mrb[0].mxu0
        %v8360 = vpop.f32.mrb[0].mxu0
        %8361 = vdwg.mxu0
        %8362 = vst [vmem:[%s557] sm:$0x3] %v8357
        %s8363 = sand.u32 %s293, 1
        %s8364 = scalar_lea.sflag [#allocation8], %s8363
        %s8365 = sand.u32 %s293, 1
        %s8366 = smul.addr %s8365, 2
        %s8367 = scalar_lea.vmem [#allocation24], %s8366
        // Predicated region
        $region109: #{vgg2l_forward.1} parent=63 // pred_check
          %p8368 = pneg %p303
        $region110: #{vgg2l_forward.1} parent=63 // pred_check_branch
          %8370 = sbr.rel (%p8368) target = $region112
        $region111: #{vgg2l_forward.1} parent=63 // pred_region
          %s8372 = ssub.s32 32, 32
          %8373 = vsyncadd %s8364, %s8372
          %s8374 = sadd.s32 %s38, %s37
          %s8375 = smul.addr %s8374, 32
          %s8376 = scalar_lea.hbm %s11, %s8375
          %s8378 = sshll.u32 %s8367, 4
          %s8379 = int_to_ptr.vmem [resolvable:$true] %s8378
          %8381 = dma.vmem_to_hbm [thread:$0]  %s8379, 32, %s8376, %s8364
        $region112: #{vgg2l_forward.1} parent=63 // pred_fallthru
          _
      $region64: #{vgg2l_forward.1} parent=5 // pred_fallthru
        _
      %p8382 = scmp.le.s32.totalorder 2, %s28
      // Predicated region
      $region113: #{vgg2l_forward.1} parent=5 // pred_check
        %p8383 = pneg %p8382
      $region114: #{vgg2l_forward.1} parent=5 // pred_check_branch
        %8385 = sbr.rel (%p8383) target = $region116
      $region115: #{vgg2l_forward.1} parent=5 // pred_region
        %s8386 = ssub.s32 %s28, 2
        // Predicated region
        $region117: #{vgg2l_forward.1} parent=115 // pred_check
          %p8387 = pneg %p309
        $region118: #{vgg2l_forward.1} parent=115 // pred_check_branch
          %8389 = sbr.rel (%p8387) target = $region120
        $region119: #{vgg2l_forward.1} parent=115 // pred_region
          %s8390 = sand.u32 %s294, 1
          %s8391 = scalar_lea.sflag [#allocation8], %s8390
          %s8392 = sand.u32 %s294, 1
          %s8393 = smul.addr %s8392, 2
          %s8394 = scalar_lea.vmem [#allocation24], %s8393
          %8395 = dma.done %s8391, 32
        $region120: #{vgg2l_forward.1} parent=115 // pred_fallthru
          _
      $region116: #{vgg2l_forward.1} parent=5 // pred_fallthru
        _
    $region6: #{vgg2l_forward.1} parent=1 // loop_footer
      %s32 = sadd.s32 1, %s28
    $region7: #{vgg2l_forward.1} parent=1 // loop_footer_branch
      %27 = sbr.rel target = $region3
    $region8: #{vgg2l_forward.1} parent=1 // loop_exit
      _
    %8396 = vsyncpa [#allocation7], 1
    %s8397 = scalar_lea.sflag [#allocation7], 1
    %8398 = vsyncpa %s8397, 1
    %8399 = vsyncpa [#allocation10], 1
    %8400 = vsyncpa [#allocation13], 1
    %8401 = vsyncpa [#allocation16], 1
    %8402 = vsyncpa [#allocation19], 1
    %8403 = vsyncpa [#allocation22], 1
    %8404 = vsyncpa [#allocation8], 1
    %s8405 = scalar_lea.sflag [#allocation8], 1
    %8406 = vsyncpa %s8405, 1

</llo_original>
